<compile_context>
chip_gen: v5e
topology: v5e:2x2
jax: 0.10.0
libtpu: 0.0.40
codegen_flags: <defaults>
</compile_context>

<pallas_src>
import jax
import jax.numpy as jnp
import numpy as np
from jax.experimental import pallas as pl
from jax.experimental.pallas import tpu as pltpu

# Hyper-parameters hard-coded inside the PyTorch module
NUM_ASPECTS = 5     # aspects
H1 = 10             # aspect representation dim
H2 = 50             # AIE hidden dim
CTX = 3             # context window size
WORD_DIM = 300      # word embedding dim (aspects_projection is (5, 300, 10))
DOC_LEN = 500       # document length (hard-coded via .view(-1, 500, 3*10))
L_PAD = 512         # doc length padded to a multiple of 8 sublanes (extra rows are zero)

# Fused-weight column layout (lane-padded to 128)
NF = 128
PROJ_W = NUM_ASPECTS * H1          # 50 projection columns (aspect a at cols 10a..10a+10)
CTR_OFF = PROJ_W                   # 50..55  : doc[t]   · (P[a] @ E[a,1])
PREV_OFF = PROJ_W + NUM_ASPECTS    # 55..60  : doc[t-1] · (P[a] @ E[a,0])
NEXT_OFF = PROJ_W + 2 * NUM_ASPECTS  # 60..65: doc[t+1] · (P[a] @ E[a,2])

# Small synthetic sizes
BSZ = 2
USER_NUM = 7
ITEM_NUM = 9
VOCAB = 64


def anr_kernel(udoc_ref, idoc_ref,          # (1, L_PAD, D) bf16 user / item docs
               Wf_ref,                      # (D, 128) bf16 fused [proj | ctr | prev | next | 0]
               mask_ref, fold_ref,          # (5, 128) block-diag mask, (128, 10) fold matrix
               Wa_ref, WuT_ref, WiT_ref,    # W_a (H1,H1), W_u^T (H1,H2), W_i^T (H1,H2)
               whu_ref, whi_ref,            # w_hu (H2,1), w_hi (H2,1)
               out_ref):                    # (1, 1, 1) per-batch rating (before offsets)
    f32 = jnp.float32

    def arl_side(doc_ref):
        dc = doc_ref[0]                                                   # (L_PAD, D) bf16
        # One fused MXU matmul: projections for all aspects + folded window logit terms.
        Z = jnp.dot(dc, Wf_ref[...], preferred_element_type=f32)          # (L_PAD, 128) f32
        c_ctr = Z[:, CTR_OFF:CTR_OFF + NUM_ASPECTS]                       # (L_PAD, 5)
        c_prev = Z[:, PREV_OFF:PREV_OFF + NUM_ASPECTS]
        c_next = Z[:, NEXT_OFF:NEXT_OFF + NUM_ASPECTS]
        # logits[t, a] = doc[t-1]·v_prev + doc[t]·v_ctr + doc[t+1]·v_next.
        # Padding rows (>= DOC_LEN) are zero, so the circularly-wrapped rows contribute 0
        # where it matters (t=0 prev, t=DOC_LEN-1 next); wrapped garbage only lands on
        # padded positions, which are masked out of the softmax below.
        logits = (c_ctr
                  + pltpu.roll(c_prev, shift=1, axis=0)                   # row t <- row t-1
                  + pltpu.roll(c_next, shift=L_PAD - 1, axis=0))          # row t <- row t+1
        pos = jax.lax.broadcasted_iota(jnp.int32, (L_PAD, NUM_ASPECTS), 0)
        logits = jnp.where(pos < DOC_LEN, logits, -1e30)                  # softmax over 500 only
        m = jnp.max(logits, axis=0, keepdims=True)                        # (1, 5)
        e = jnp.exp(logits - m)
        attn = e / jnp.sum(e, axis=0, keepdims=True)                      # (L_PAD, 5)
        # Weighted sum over the document as an MXU contraction over L.
        rep_full = jax.lax.dot_general(attn, Z, (((0,), (0,)), ((), ())),
                                       preferred_element_type=f32)        # (5, 128)
        # Keep only aspect a's own projection block and fold (5, 128) -> (5, H1).
        rep = jnp.dot(rep_full * mask_ref[...], fold_ref[...],
                      preferred_element_type=f32)                         # (5, H1)
        return rep

    # --- ARL for user & item documents ---
    U = arl_side(udoc_ref)          # (5, H1)
    I = arl_side(idoc_ref)          # (5, H1)

    # --- AIE (co-attention) ---
    UWa = jnp.dot(U, Wa_ref[...], preferred_element_type=f32)                        # (5, H1)
    aff = jnp.maximum(jax.lax.dot_general(UWa, I, (((1,), (1,)), ((), ())),
                                          preferred_element_type=f32), 0.0)          # (5u, 5i)
    Gu = jnp.dot(U, WuT_ref[...], preferred_element_type=f32)                        # (5, H2)
    Gi = jnp.dot(I, WiT_ref[...], preferred_element_type=f32)                        # (5, H2)
    HuT = jnp.maximum(Gu + jnp.dot(aff, Gi, preferred_element_type=f32), 0.0)        # (5, H2)
    HiT = jnp.maximum(Gi + jax.lax.dot_general(aff, Gu, (((0,), (0,)), ((), ())),
                                               preferred_element_type=f32), 0.0)     # (5, H2)
    ulog = jnp.dot(HuT, whu_ref[...], preferred_element_type=f32)                    # (5, 1)
    ilog = jnp.dot(HiT, whi_ref[...], preferred_element_type=f32)                    # (5, 1)

    def softmax0(x):
        mm = jnp.max(x, axis=0, keepdims=True)
        ee = jnp.exp(x - mm)
        return ee / jnp.sum(ee, axis=0, keepdims=True)

    u_impt = softmax0(ulog)         # (5, 1)
    i_impt = softmax0(ilog)         # (5, 1)

    # --- rating prediction core (offsets added outside; they are all zeros by construction) ---
    asp_rating = jnp.sum(U * I, axis=1, keepdims=True)                   # (5, 1)
    r = jnp.sum(u_impt * i_impt * asp_rating, axis=0, keepdims=True)     # (1, 1)
    out_ref[0] = r


def anr_pallas_core(user_doc_bf, item_doc_bf, params):
    """Runs ARL + AIE + rating core in Pallas. Inputs are zero-padded bf16 docs
    of shape (bsz, L_PAD, WORD_DIM). Returns (bsz, 1) pre-offset ratings."""
    bsz = user_doc_bf.shape[0]

    P = params["P"]                                  # (5, 300, 10)
    E = params["E"].reshape(NUM_ASPECTS, CTX, H1)    # (5, 3, 10): [prev, ctr, next] per aspect

    # Fused weight: [P_0 | ... | P_4 | ctr | prev | next | zeros] -> (300, 128), bf16.
    Wp = jnp.transpose(P, (1, 0, 2)).reshape(WORD_DIM, PROJ_W)           # col 10a+h = P[a,:,h]
    V = jnp.einsum("adh,ach->cda", P, E)                                 # (3, 300, 5): P[a]@E[a,c]
    Wf = jnp.concatenate(
        [Wp, V[1], V[0], V[2],
         jnp.zeros((WORD_DIM, NF - (PROJ_W + CTX * NUM_ASPECTS)), jnp.float32)],
        axis=1).astype(jnp.bfloat16)                                     # (300, 128)

    # Small constant helpers for the block-diag extraction (built once on host).
    j = np.arange(NF)
    a = np.arange(NUM_ASPECTS)
    h = np.arange(H1)
    diag_mask = jnp.asarray(((j[None, :] // H1 == a[:, None]) &
                             (j[None, :] < PROJ_W)).astype(np.float32))  # (5, 128)
    fold = jnp.asarray(((j[:, None] < PROJ_W) &
                        (j[:, None] % H1 == h[None, :])).astype(np.float32))  # (128, 10)

    WuT = params["W_u"].T                                                # (H1, H2)
    WiT = params["W_i"].T                                                # (H1, H2)

    doc_spec = pl.BlockSpec((1, L_PAD, WORD_DIM), lambda b: (b, 0, 0))

    def full_spec(shape):
        n = len(shape)
        return pl.BlockSpec(shape, lambda b, n=n: (0,) * n)

    out = pl.pallas_call(
        anr_kernel,
        out_shape=jax.ShapeDtypeStruct((bsz, 1, 1), jnp.float32),
        grid_spec=pltpu.PrefetchScalarGridSpec(
            num_scalar_prefetch=0,
            grid=(bsz,),
            in_specs=[doc_spec, doc_spec,
                      full_spec(Wf.shape),
                      full_spec(diag_mask.shape),
                      full_spec(fold.shape),
                      full_spec(params["W_a"].shape),
                      full_spec(WuT.shape),
                      full_spec(WiT.shape),
                      full_spec(params["w_hu"].shape),
                      full_spec(params["w_hi"].shape)],
            out_specs=pl.BlockSpec((1, 1, 1), lambda b: (b, 0, 0))),
        compiler_params=pltpu.CompilerParams(
            dimension_semantics=("parallel",)),
    )(user_doc_bf, item_doc_bf,
      Wf, diag_mask, fold,
      params["W_a"], WuT, WiT, params["w_hu"], params["w_hi"])
    return out[:, 0, :]   # (bsz, 1)


def anr_forward(params, uids, iids):
    """Full ANR.forward: embedding gathers (glue) + Pallas core + (zero) offsets."""
    user_doc_idx = params["uid_user_doc"][uids].astype(jnp.int32)   # (bsz, L)
    item_doc_idx = params["iid_item_doc"][iids].astype(jnp.int32)
    word_bf = params["word_emb"].astype(jnp.bfloat16)               # cast table once -> bf16 gather
    pad = ((0, 0), (0, L_PAD - DOC_LEN), (0, 0))
    user_doc = jnp.pad(word_bf[user_doc_idx], pad)                  # (bsz, L_PAD, D) bf16
    item_doc = jnp.pad(word_bf[item_doc_idx], pad)
    # TODO(synk): nn.Dropout(p=0.5) in ANR_RatingPred is treated as inference-mode identity.
    core = anr_pallas_core(user_doc, item_doc, params)              # (bsz, 1)
    rating = (core
              + params["uid_userOffset"][uids]
              + params["iid_itemOffset"][iids]
              + params["globalOffset"])
    return rating


def reference_forward(params, uids, iids):
    """Pure-JAX translation of the PyTorch forward (for validation, full f32)."""
    user_doc_idx = params["uid_user_doc"][uids].astype(jnp.int32)
    item_doc_idx = params["iid_item_doc"][iids].astype(jnp.int32)
    user_emb = params["word_emb"][user_doc_idx]
    item_emb = params["word_emb"][item_doc_idx]

    def arl(doc):
        reps = []
        for a in range(NUM_ASPECTS):
            proj = jnp.einsum("bld,dh->blh", doc, params["P"][a])           # (b,L,H1)
            padded = jnp.pad(proj, ((0, 0), (1, 1), (0, 0)))
            win = jnp.concatenate([padded[:, 0:DOC_LEN],
                                   padded[:, 1:DOC_LEN + 1],
                                   padded[:, 2:DOC_LEN + 2]], axis=-1)      # (b,L,3*H1)
            logits = jnp.einsum("blw,w->bl", win, params["E"][a])[..., None]
            attn = jax.nn.softmax(logits, axis=1)
            reps.append(jnp.sum(proj * attn, axis=1)[:, None, :])
        return jnp.concatenate(reps, axis=1)                                # (b,5,H1)

    U, I = arl(user_emb), arl(item_emb)
    aff = jax.nn.relu(jnp.einsum("bkh,hg,blg->bkl", U, params["W_a"], I))
    Hu = jax.nn.relu(jnp.einsum("ch,bkh->bck", params["W_u"], U)
                     + jnp.einsum("ch,blh,bkl->bck", params["W_i"], I, aff))
    Hi = jax.nn.relu(jnp.einsum("ch,blh->bcl", params["W_i"], I)
                     + jnp.einsum("ch,bkh,bkl->bcl", params["W_u"], U, aff))
    u_impt = jax.nn.softmax(jnp.einsum("c,bck->bk", params["w_hu"][:, 0], Hu), axis=1)
    i_impt = jax.nn.softmax(jnp.einsum("c,bcl->bl", params["w_hi"][:, 0], Hi), axis=1)
    asp_rating = jnp.sum(U * I, axis=2)
    r = jnp.sum(u_impt * i_impt * asp_rating, axis=1, keepdims=True)
    r = r + params["uid_userOffset"][uids] + params["iid_itemOffset"][iids] + params["globalOffset"]
    return r


def make_params(key):
    ks = jax.random.split(key, 12)

    def uni(k, shape, lim=0.1):
        return jax.random.uniform(k, shape, jnp.float32, -lim, lim)

    params = {
        # ARL
        "P": uni(ks[0], (NUM_ASPECTS, WORD_DIM, H1)),
        "E": uni(ks[1], (NUM_ASPECTS, CTX * H1)),
        # AIE
        "W_a": uni(ks[2], (H1, H1)),
        "W_u": uni(ks[3], (H2, H1)),
        "w_hu": uni(ks[4], (H2, 1)),
        "W_i": uni(ks[5], (H2, H1)),
        "w_hi": uni(ks[6], (H2, 1)),
        # embeddings (doc tables store word indices as floats, like the PyTorch module)
        "word_emb": jax.random.normal(ks[7], (VOCAB, WORD_DIM), jnp.float32),
        "uid_user_doc": jax.random.randint(ks[8], (USER_NUM, DOC_LEN), 0, VOCAB).astype(jnp.float32),
        "iid_item_doc": jax.random.randint(ks[9], (ITEM_NUM, DOC_LEN), 0, VOCAB).astype(jnp.float32),
        # rating-pred offsets (zero-initialized in the PyTorch module)
        "globalOffset": jnp.zeros((1,), jnp.float32),
        "uid_userOffset": jnp.zeros((USER_NUM, 1), jnp.float32),
        "iid_itemOffset": jnp.zeros((ITEM_NUM, 1), jnp.float32),
    }
    uids = jax.random.randint(ks[10], (BSZ,), 0, USER_NUM)
    iids = jax.random.randint(ks[11], (BSZ,), 0, ITEM_NUM)
    return params, uids, iids


if __name__ == "__main__":
    params, uids, iids = make_params(jax.random.PRNGKey(0))

    rating = anr_forward(params, uids, iids)
    rating = jax.block_until_ready(rating)

    ref = jax.block_until_ready(reference_forward(params, uids, iids))
    np.testing.assert_allclose(np.asarray(rating), np.asarray(ref), rtol=5e-2, atol=1e-3)

    assert rating.shape == (BSZ, 1)
    print("KERNEL_OK")
</pallas_src>

<mosaic_0001>
module attributes {stable_mosaic.version = 11 : i64} {
  func.func @anr_kernel(%arg0: i32, %arg1: memref<1x512x300xbf16, #tpu.memory_space<vmem>>, %arg2: memref<1x512x300xbf16, #tpu.memory_space<vmem>>, %arg3: memref<300x128xbf16, #tpu.memory_space<vmem>>, %arg4: memref<5x128xf32, #tpu.memory_space<vmem>>, %arg5: memref<128x10xf32, #tpu.memory_space<vmem>>, %arg6: memref<10x10xf32, #tpu.memory_space<vmem>>, %arg7: memref<10x50xf32, #tpu.memory_space<vmem>>, %arg8: memref<10x50xf32, #tpu.memory_space<vmem>>, %arg9: memref<50x1xf32, #tpu.memory_space<vmem>>, %arg10: memref<50x1xf32, #tpu.memory_space<vmem>>, %arg11: memref<1x1x1xf32, #tpu.memory_space<vmem>>) attributes {dimension_semantics = [#tpu.dimension_semantics<parallel>], iteration_bounds = array<i64: 2>, scalar_prefetch = 0 : i64, scratch_operands = 0 : i64, tpu.core_type = #tpu.core_type<tc>, window_params = [{transform_indices = @transform_0, window_bounds = array<i64: 1, 512, 300>}, {transform_indices = @transform_1, window_bounds = array<i64: 1, 512, 300>}, {pipeline_mode = #tpu.pipeline_mode<synchronous>, transform_indices = @transform_2, window_bounds = array<i64: 300, 128>}, {pipeline_mode = #tpu.pipeline_mode<synchronous>, transform_indices = @transform_3, window_bounds = array<i64: 5, 128>}, {pipeline_mode = #tpu.pipeline_mode<synchronous>, transform_indices = @transform_4, window_bounds = array<i64: 128, 10>}, {pipeline_mode = #tpu.pipeline_mode<synchronous>, transform_indices = @transform_5, window_bounds = array<i64: 10, 10>}, {pipeline_mode = #tpu.pipeline_mode<synchronous>, transform_indices = @transform_6, window_bounds = array<i64: 10, 50>}, {pipeline_mode = #tpu.pipeline_mode<synchronous>, transform_indices = @transform_7, window_bounds = array<i64: 10, 50>}, {pipeline_mode = #tpu.pipeline_mode<synchronous>, transform_indices = @transform_8, window_bounds = array<i64: 50, 1>}, {pipeline_mode = #tpu.pipeline_mode<synchronous>, transform_indices = @transform_9, window_bounds = array<i64: 50, 1>}, {transform_indices = @transform_10, window_bounds = array<i64: 1, 1, 1>}]} {
    %c0 = arith.constant 0 : index
    %c0_0 = arith.constant 0 : index
    %c0_1 = arith.constant 0 : index
    %0 = vector.load %arg1[%c0, %c0_0, %c0_1] : memref<1x512x300xbf16, #tpu.memory_space<vmem>>, vector<1x512x300xbf16>
    %1 = vector.shape_cast %0 : vector<1x512x300xbf16> to vector<512x300xbf16>
    %c0_2 = arith.constant 0 : index
    %c0_3 = arith.constant 0 : index
    %2 = vector.load %arg3[%c0_2, %c0_3] : memref<300x128xbf16, #tpu.memory_space<vmem>>, vector<300x128xbf16>
    %cst = arith.constant dense<0.000000e+00> : vector<512x128xf32>
    %3 = tpu.matmul %1, %2, %cst {dimension_numbers = #tpu.dot_dimension_numbers<[1], [0], [0], [1], [0, 0, 1, 1], [], []>} : vector<512x300xbf16>, vector<300x128xbf16>, vector<512x128xf32> -> vector<512x128xf32>
    %4 = vector.extract_strided_slice %3 {offsets = [0, 50], sizes = [512, 5], strides = [1, 1]} : vector<512x128xf32> to vector<512x5xf32>
    %5 = vector.extract_strided_slice %3 {offsets = [0, 55], sizes = [512, 5], strides = [1, 1]} : vector<512x128xf32> to vector<512x5xf32>
    %6 = vector.extract_strided_slice %3 {offsets = [0, 60], sizes = [512, 5], strides = [1, 1]} : vector<512x128xf32> to vector<512x5xf32>
    %c1_i32 = arith.constant 1 : i32
    %7 = tpu.dynamic_rotate %5 by %c1_i32 dim 0 : vector<512x5xf32>, i32 -> vector<512x5xf32>
    %8 = arith.addf %4, %7 : vector<512x5xf32>
    %c511_i32 = arith.constant 511 : i32
    %9 = tpu.dynamic_rotate %6 by %c511_i32 dim 0 : vector<512x5xf32>, i32 -> vector<512x5xf32>
    %10 = arith.addf %8, %9 : vector<512x5xf32>
    %11 = tpu.iota {dimensions = array<i32: 0>} : vector<512x5xi32>
    %c500_i32 = arith.constant 500 : i32
    %12 = vector.broadcast %c500_i32 : i32 to vector<512x5xi32>
    %13 = arith.cmpi slt, %11, %12 : vector<512x5xi32>
    %cst_4 = arith.constant -1.000000e+30 : f32
    %14 = vector.broadcast %cst_4 : f32 to vector<512x5xf32>
    %15 = arith.select %13, %10, %14 : vector<512x5xi1>, vector<512x5xf32>
    %cst_5 = arith.constant dense<0xFF800000> : vector<5xf32>
    %16 = vector.multi_reduction <maximumf>, %15, %cst_5 [0] : vector<512x5xf32> to vector<5xf32>
    %17 = vector.shape_cast %16 : vector<5xf32> to vector<1x5xf32>
    %18 = vector.broadcast %17 : vector<1x5xf32> to vector<512x5xf32>
    %19 = arith.subf %15, %18 : vector<512x5xf32>
    %20 = math.exp %19 : vector<512x5xf32>
    %cst_6 = arith.constant dense<0.000000e+00> : vector<5xf32>
    %21 = vector.multi_reduction <add>, %20, %cst_6 [0] : vector<512x5xf32> to vector<5xf32>
    %22 = vector.shape_cast %21 : vector<5xf32> to vector<1x5xf32>
    %23 = vector.broadcast %22 : vector<1x5xf32> to vector<512x5xf32>
    %24 = arith.divf %20, %23 : vector<512x5xf32>
    %cst_7 = arith.constant dense<0.000000e+00> : vector<5x128xf32>
    %25 = tpu.matmul %24, %3, %cst_7 {dimension_numbers = #tpu.dot_dimension_numbers<[0], [0], [1], [1], [0, 1, 1, 1], [], []>} : vector<512x5xf32>, vector<512x128xf32>, vector<5x128xf32> -> vector<5x128xf32>
    %c0_8 = arith.constant 0 : index
    %c0_9 = arith.constant 0 : index
    %26 = vector.load %arg4[%c0_8, %c0_9] : memref<5x128xf32, #tpu.memory_space<vmem>>, vector<5x128xf32>
    %27 = arith.mulf %25, %26 : vector<5x128xf32>
    %c0_10 = arith.constant 0 : index
    %c0_11 = arith.constant 0 : index
    %28 = vector.load %arg5[%c0_10, %c0_11] : memref<128x10xf32, #tpu.memory_space<vmem>>, vector<128x10xf32>
    %cst_12 = arith.constant dense<0.000000e+00> : vector<5x10xf32>
    %29 = tpu.matmul %27, %28, %cst_12 {dimension_numbers = #tpu.dot_dimension_numbers<[1], [0], [0], [1], [0, 0, 1, 1], [], []>} : vector<5x128xf32>, vector<128x10xf32>, vector<5x10xf32> -> vector<5x10xf32>
    %c0_13 = arith.constant 0 : index
    %c0_14 = arith.constant 0 : index
    %c0_15 = arith.constant 0 : index
    %30 = vector.load %arg2[%c0_13, %c0_14, %c0_15] : memref<1x512x300xbf16, #tpu.memory_space<vmem>>, vector<1x512x300xbf16>
    %31 = vector.shape_cast %30 : vector<1x512x300xbf16> to vector<512x300xbf16>
    %c0_16 = arith.constant 0 : index
    %c0_17 = arith.constant 0 : index
    %32 = vector.load %arg3[%c0_16, %c0_17] : memref<300x128xbf16, #tpu.memory_space<vmem>>, vector<300x128xbf16>
    %cst_18 = arith.constant dense<0.000000e+00> : vector<512x128xf32>
    %33 = tpu.matmul %31, %32, %cst_18 {dimension_numbers = #tpu.dot_dimension_numbers<[1], [0], [0], [1], [0, 0, 1, 1], [], []>} : vector<512x300xbf16>, vector<300x128xbf16>, vector<512x128xf32> -> vector<512x128xf32>
    %34 = vector.extract_strided_slice %33 {offsets = [0, 50], sizes = [512, 5], strides = [1, 1]} : vector<512x128xf32> to vector<512x5xf32>
    %35 = vector.extract_strided_slice %33 {offsets = [0, 55], sizes = [512, 5], strides = [1, 1]} : vector<512x128xf32> to vector<512x5xf32>
    %36 = vector.extract_strided_slice %33 {offsets = [0, 60], sizes = [512, 5], strides = [1, 1]} : vector<512x128xf32> to vector<512x5xf32>
    %c1_i32_19 = arith.constant 1 : i32
    %37 = tpu.dynamic_rotate %35 by %c1_i32_19 dim 0 : vector<512x5xf32>, i32 -> vector<512x5xf32>
    %38 = arith.addf %34, %37 : vector<512x5xf32>
    %c511_i32_20 = arith.constant 511 : i32
    %39 = tpu.dynamic_rotate %36 by %c511_i32_20 dim 0 : vector<512x5xf32>, i32 -> vector<512x5xf32>
    %40 = arith.addf %38, %39 : vector<512x5xf32>
    %41 = tpu.iota {dimensions = array<i32: 0>} : vector<512x5xi32>
    %c500_i32_21 = arith.constant 500 : i32
    %42 = vector.broadcast %c500_i32_21 : i32 to vector<512x5xi32>
    %43 = arith.cmpi slt, %41, %42 : vector<512x5xi32>
    %cst_22 = arith.constant -1.000000e+30 : f32
    %44 = vector.broadcast %cst_22 : f32 to vector<512x5xf32>
    %45 = arith.select %43, %40, %44 : vector<512x5xi1>, vector<512x5xf32>
    %cst_23 = arith.constant dense<0xFF800000> : vector<5xf32>
    %46 = vector.multi_reduction <maximumf>, %45, %cst_23 [0] : vector<512x5xf32> to vector<5xf32>
    %47 = vector.shape_cast %46 : vector<5xf32> to vector<1x5xf32>
    %48 = vector.broadcast %47 : vector<1x5xf32> to vector<512x5xf32>
    %49 = arith.subf %45, %48 : vector<512x5xf32>
    %50 = math.exp %49 : vector<512x5xf32>
    %cst_24 = arith.constant dense<0.000000e+00> : vector<5xf32>
    %51 = vector.multi_reduction <add>, %50, %cst_24 [0] : vector<512x5xf32> to vector<5xf32>
    %52 = vector.shape_cast %51 : vector<5xf32> to vector<1x5xf32>
    %53 = vector.broadcast %52 : vector<1x5xf32> to vector<512x5xf32>
    %54 = arith.divf %50, %53 : vector<512x5xf32>
    %cst_25 = arith.constant dense<0.000000e+00> : vector<5x128xf32>
    %55 = tpu.matmul %54, %33, %cst_25 {dimension_numbers = #tpu.dot_dimension_numbers<[0], [0], [1], [1], [0, 1, 1, 1], [], []>} : vector<512x5xf32>, vector<512x128xf32>, vector<5x128xf32> -> vector<5x128xf32>
    %c0_26 = arith.constant 0 : index
    %c0_27 = arith.constant 0 : index
    %56 = vector.load %arg4[%c0_26, %c0_27] : memref<5x128xf32, #tpu.memory_space<vmem>>, vector<5x128xf32>
    %57 = arith.mulf %55, %56 : vector<5x128xf32>
    %c0_28 = arith.constant 0 : index
    %c0_29 = arith.constant 0 : index
    %58 = vector.load %arg5[%c0_28, %c0_29] : memref<128x10xf32, #tpu.memory_space<vmem>>, vector<128x10xf32>
    %cst_30 = arith.constant dense<0.000000e+00> : vector<5x10xf32>
    %59 = tpu.matmul %57, %58, %cst_30 {dimension_numbers = #tpu.dot_dimension_numbers<[1], [0], [0], [1], [0, 0, 1, 1], [], []>} : vector<5x128xf32>, vector<128x10xf32>, vector<5x10xf32> -> vector<5x10xf32>
    %c0_31 = arith.constant 0 : index
    %c0_32 = arith.constant 0 : index
    %60 = vector.load %arg6[%c0_31, %c0_32] : memref<10x10xf32, #tpu.memory_space<vmem>>, vector<10x10xf32>
    %cst_33 = arith.constant dense<0.000000e+00> : vector<5x10xf32>
    %61 = tpu.matmul %29, %60, %cst_33 {dimension_numbers = #tpu.dot_dimension_numbers<[1], [0], [0], [1], [0, 0, 1, 1], [], []>} : vector<5x10xf32>, vector<10x10xf32>, vector<5x10xf32> -> vector<5x10xf32>
    %cst_34 = arith.constant dense<0.000000e+00> : vector<5x5xf32>
    %62 = tpu.matmul %61, %59, %cst_34 {dimension_numbers = #tpu.dot_dimension_numbers<[1], [1], [0], [0], [0, 0, 1, 0], [], []>} : vector<5x10xf32>, vector<5x10xf32>, vector<5x5xf32> -> vector<5x5xf32>
    %cst_35 = arith.constant 0.000000e+00 : f32
    %63 = vector.broadcast %cst_35 : f32 to vector<5x5xf32>
    %64 = arith.maximumf %62, %63 : vector<5x5xf32>
    %c0_36 = arith.constant 0 : index
    %c0_37 = arith.constant 0 : index
    %65 = vector.load %arg7[%c0_36, %c0_37] : memref<10x50xf32, #tpu.memory_space<vmem>>, vector<10x50xf32>
    %cst_38 = arith.constant dense<0.000000e+00> : vector<5x50xf32>
    %66 = tpu.matmul %29, %65, %cst_38 {dimension_numbers = #tpu.dot_dimension_numbers<[1], [0], [0], [1], [0, 0, 1, 1], [], []>} : vector<5x10xf32>, vector<10x50xf32>, vector<5x50xf32> -> vector<5x50xf32>
    %c0_39 = arith.constant 0 : index
    %c0_40 = arith.constant 0 : index
    %67 = vector.load %arg8[%c0_39, %c0_40] : memref<10x50xf32, #tpu.memory_space<vmem>>, vector<10x50xf32>
    %cst_41 = arith.constant dense<0.000000e+00> : vector<5x50xf32>
    %68 = tpu.matmul %59, %67, %cst_41 {dimension_numbers = #tpu.dot_dimension_numbers<[1], [0], [0], [1], [0, 0, 1, 1], [], []>} : vector<5x10xf32>, vector<10x50xf32>, vector<5x50xf32> -> vector<5x50xf32>
    %cst_42 = arith.constant dense<0.000000e+00> : vector<5x50xf32>
    %69 = tpu.matmul %64, %68, %cst_42 {dimension_numbers = #tpu.dot_dimension_numbers<[1], [0], [0], [1], [0, 0, 1, 1], [], []>} : vector<5x5xf32>, vector<5x50xf32>, vector<5x50xf32> -> vector<5x50xf32>
    %70 = arith.addf %66, %69 : vector<5x50xf32>
    %cst_43 = arith.constant 0.000000e+00 : f32
    %71 = vector.broadcast %cst_43 : f32 to vector<5x50xf32>
    %72 = arith.maximumf %70, %71 : vector<5x50xf32>
    %cst_44 = arith.constant dense<0.000000e+00> : vector<5x50xf32>
    %73 = tpu.matmul %64, %66, %cst_44 {dimension_numbers = #tpu.dot_dimension_numbers<[0], [0], [1], [1], [0, 1, 1, 1], [], []>} : vector<5x5xf32>, vector<5x50xf32>, vector<5x50xf32> -> vector<5x50xf32>
    %74 = arith.addf %68, %73 : vector<5x50xf32>
    %cst_45 = arith.constant 0.000000e+00 : f32
    %75 = vector.broadcast %cst_45 : f32 to vector<5x50xf32>
    %76 = arith.maximumf %74, %75 : vector<5x50xf32>
    %c0_46 = arith.constant 0 : index
    %c0_47 = arith.constant 0 : index
    %77 = vector.load %arg9[%c0_46, %c0_47] : memref<50x1xf32, #tpu.memory_space<vmem>>, vector<50x1xf32>
    %cst_48 = arith.constant dense<0.000000e+00> : vector<5x1xf32>
    %78 = tpu.matmul %72, %77, %cst_48 {dimension_numbers = #tpu.dot_dimension_numbers<[1], [0], [0], [1], [0, 0, 1, 1], [], []>} : vector<5x50xf32>, vector<50x1xf32>, vector<5x1xf32> -> vector<5x1xf32>
    %c0_49 = arith.constant 0 : index
    %c0_50 = arith.constant 0 : index
    %79 = vector.load %arg10[%c0_49, %c0_50] : memref<50x1xf32, #tpu.memory_space<vmem>>, vector<50x1xf32>
    %cst_51 = arith.constant dense<0.000000e+00> : vector<5x1xf32>
    %80 = tpu.matmul %76, %79, %cst_51 {dimension_numbers = #tpu.dot_dimension_numbers<[1], [0], [0], [1], [0, 0, 1, 1], [], []>} : vector<5x50xf32>, vector<50x1xf32>, vector<5x1xf32> -> vector<5x1xf32>
    %cst_52 = arith.constant dense<0xFF800000> : vector<1xf32>
    %81 = vector.multi_reduction <maximumf>, %78, %cst_52 [0] : vector<5x1xf32> to vector<1xf32>
    %82 = vector.shape_cast %81 : vector<1xf32> to vector<1x1xf32>
    %83 = vector.broadcast %82 : vector<1x1xf32> to vector<5x1xf32>
    %84 = arith.subf %78, %83 : vector<5x1xf32>
    %85 = math.exp %84 : vector<5x1xf32>
    %cst_53 = arith.constant dense<0.000000e+00> : vector<1xf32>
    %86 = vector.multi_reduction <add>, %85, %cst_53 [0] : vector<5x1xf32> to vector<1xf32>
    %87 = vector.shape_cast %86 : vector<1xf32> to vector<1x1xf32>
    %88 = vector.broadcast %87 : vector<1x1xf32> to vector<5x1xf32>
    %89 = arith.divf %85, %88 : vector<5x1xf32>
    %cst_54 = arith.constant dense<0xFF800000> : vector<1xf32>
    %90 = vector.multi_reduction <maximumf>, %80, %cst_54 [0] : vector<5x1xf32> to vector<1xf32>
    %91 = vector.shape_cast %90 : vector<1xf32> to vector<1x1xf32>
    %92 = vector.broadcast %91 : vector<1x1xf32> to vector<5x1xf32>
    %93 = arith.subf %80, %92 : vector<5x1xf32>
    %94 = math.exp %93 : vector<5x1xf32>
    %cst_55 = arith.constant dense<0.000000e+00> : vector<1xf32>
    %95 = vector.multi_reduction <add>, %94, %cst_55 [0] : vector<5x1xf32> to vector<1xf32>
    %96 = vector.shape_cast %95 : vector<1xf32> to vector<1x1xf32>
    %97 = vector.broadcast %96 : vector<1x1xf32> to vector<5x1xf32>
    %98 = arith.divf %94, %97 : vector<5x1xf32>
    %99 = arith.mulf %29, %59 : vector<5x10xf32>
    %cst_56 = arith.constant dense<0.000000e+00> : vector<5xf32>
    %100 = vector.multi_reduction <add>, %99, %cst_56 [1] : vector<5x10xf32> to vector<5xf32>
    %101 = vector.shape_cast %100 : vector<5xf32> to vector<5x1xf32>
    %102 = arith.mulf %89, %98 : vector<5x1xf32>
    %103 = arith.mulf %102, %101 : vector<5x1xf32>
    %cst_57 = arith.constant dense<0.000000e+00> : vector<1xf32>
    %104 = vector.multi_reduction <add>, %103, %cst_57 [0] : vector<5x1xf32> to vector<1xf32>
    %105 = vector.shape_cast %104 : vector<1xf32> to vector<1x1xf32>
    %c0_58 = arith.constant 0 : index
    %c0_59 = arith.constant 0 : index
    %c0_60 = arith.constant 0 : index
    %106 = vector.load %arg11[%c0_58, %c0_59, %c0_60] : memref<1x1x1xf32, #tpu.memory_space<vmem>>, vector<1x1x1xf32>
    %107 = vector.shape_cast %106 : vector<1x1x1xf32> to vector<1x1xf32>
    %108 = vector.shape_cast %105 : vector<1x1xf32> to vector<1x1x1xf32>
    tpu.vector_store %arg11[%c0_58, %c0_59, %c0_60], %108 {strides = array<i32>} : memref<1x1x1xf32, #tpu.memory_space<vmem>>, vector<1x1x1xf32>,
    return
  }
  func.func @transform_0(%arg0: i32) -> (i32, i32, i32) {
    %c0_i32 = arith.constant 0 : i32
    %c0_i32_0 = arith.constant 0 : i32
    %c0_i32_1 = arith.constant 0 : i32
    return %arg0, %c0_i32, %c0_i32_0 : i32, i32, i32
  }
  func.func @transform_1(%arg0: i32) -> (i32, i32, i32) {
    %c0_i32 = arith.constant 0 : i32
    %c0_i32_0 = arith.constant 0 : i32
    %c0_i32_1 = arith.constant 0 : i32
    return %arg0, %c0_i32, %c0_i32_0 : i32, i32, i32
  }
  func.func @transform_2(%arg0: i32) -> (i32, i32) {
    %c0_i32 = arith.constant 0 : i32
    %c0_i32_0 = arith.constant 0 : i32
    %c0_i32_1 = arith.constant 0 : i32
    return %c0_i32, %c0_i32_0 : i32, i32
  }
  func.func @transform_3(%arg0: i32) -> (i32, i32) {
    %c0_i32 = arith.constant 0 : i32
    %c0_i32_0 = arith.constant 0 : i32
    %c0_i32_1 = arith.constant 0 : i32
    return %c0_i32, %c0_i32_0 : i32, i32
  }
  func.func @transform_4(%arg0: i32) -> (i32, i32) {
    %c0_i32 = arith.constant 0 : i32
    %c0_i32_0 = arith.constant 0 : i32
    %c0_i32_1 = arith.constant 0 : i32
    return %c0_i32, %c0_i32_0 : i32, i32
  }
  func.func @transform_5(%arg0: i32) -> (i32, i32) {
    %c0_i32 = arith.constant 0 : i32
    %c0_i32_0 = arith.constant 0 : i32
    %c0_i32_1 = arith.constant 0 : i32
    return %c0_i32, %c0_i32_0 : i32, i32
  }
  func.func @transform_6(%arg0: i32) -> (i32, i32) {
    %c0_i32 = arith.constant 0 : i32
    %c0_i32_0 = arith.constant 0 : i32
    %c0_i32_1 = arith.constant 0 : i32
    return %c0_i32, %c0_i32_0 : i32, i32
  }
  func.func @transform_7(%arg0: i32) -> (i32, i32) {
    %c0_i32 = arith.constant 0 : i32
    %c0_i32_0 = arith.constant 0 : i32
    %c0_i32_1 = arith.constant 0 : i32
    return %c0_i32, %c0_i32_0 : i32, i32
  }
  func.func @transform_8(%arg0: i32) -> (i32, i32) {
    %c0_i32 = arith.constant 0 : i32
    %c0_i32_0 = arith.constant 0 : i32
    %c0_i32_1 = arith.constant 0 : i32
    return %c0_i32, %c0_i32_0 : i32, i32
  }
  func.func @transform_9(%arg0: i32) -> (i32, i32) {
    %c0_i32 = arith.constant 0 : i32
    %c0_i32_0 = arith.constant 0 : i32
    %c0_i32_1 = arith.constant 0 : i32
    return %c0_i32, %c0_i32_0 : i32, i32
  }
  func.func @transform_10(%arg0: i32) -> (i32, i32, i32) {
    %c0_i32 = arith.constant 0 : i32
    %c0_i32_0 = arith.constant 0 : i32
    %c0_i32_1 = arith.constant 0 : i32
    return %arg0, %c0_i32, %c0_i32_0 : i32, i32, i32
  }
}

</mosaic_0001>

<llo_original>
// kernel: tpu_custom_call.1
$region0: #{tpu_custom_call.1}
  #allocation0 [shape = 'u32[]', space=smem, size = 0x4, offset = 0x4, fixed_abs, tag = 'smem constant byte address 0x4 - core index']
  #allocation1 [shape = 'u32[72,128]{1,0:T(1,128)}', space=vmem, size = 0x9000, scoped, tag = 'internal scratch']
  %s0 = inlined_call_operand.vmem [shape: bf16[2,512,300], index: 0, kind: input, shape index: {}]
  %s1 = inlined_call_operand.vmem [shape: bf16[2,512,300], index: 1, kind: input, shape index: {}]
  %s2 = inlined_call_operand.vmem [shape: bf16[300,128], index: 2, kind: input, shape index: {}]
  %s3 = inlined_call_operand.vmem [shape: f32[5,128], index: 3, kind: input, shape index: {}]
  %s4 = inlined_call_operand.vmem [shape: f32[128,10], index: 4, kind: input, shape index: {}]
  %s5 = inlined_call_operand.vmem [shape: f32[10,10], index: 5, kind: input, shape index: {}]
  %s6 = inlined_call_operand.vmem [shape: f32[10,50], index: 6, kind: input, shape index: {}]
  %s7 = inlined_call_operand.vmem [shape: f32[10,50], index: 7, kind: input, shape index: {}]
  %s8 = inlined_call_operand.vmem [shape: f32[50,1], index: 8, kind: input, shape index: {}]
  %s9 = inlined_call_operand.vmem [shape: f32[50,1], index: 9, kind: input, shape index: {}]
  %s10 = inlined_call_operand.vmem [shape: f32[2,1,1], index: 10, kind: output, shape index: {}]
  %s11 = sld [smem:[#allocation0]]
  $region73: #{tpu_custom_call.1} parent=0
    _
  %s13 = ssub.s32 1, %s11
  %s14 = scalar_select 0, %s13, %s11
  loop: start=0, step=1, limit=4
  $region2: #{tpu_custom_call.1} parent=0 // loop_pre_header
    _
  $region3: #{tpu_custom_call.1} parent=0 // loop_header
    %s16 = sphi 0, %s20
    %p17 = scmp.ge.s32.totalorder %s16, 4
    %s26 = sphi 0, %s28
    %s29 = sphi 0, %s26
    %s30 = sphi 0, %s29
    %s46 = sphi 0, %s30
    %s52 = sphi 0, %s54
    %s55 = sphi 0, %s52
    %s56 = sphi 0, %s55
    %s72 = sphi 0, %s56
    %s76 = sphi 0, %s76
    %s78 = sphi 0, %s76
    %s79 = sphi 0, %s78
    %s93 = sphi 0, %s79
    %s97 = sphi 0, %s97
    %s99 = sphi 0, %s97
    %s100 = sphi 0, %s99
    %s114 = sphi 0, %s100
    %s118 = sphi 0, %s118
    %s120 = sphi 0, %s118
    %s121 = sphi 0, %s120
    %s135 = sphi 0, %s121
    %s139 = sphi 0, %s139
    %s141 = sphi 0, %s139
    %s142 = sphi 0, %s141
    %s156 = sphi 0, %s142
    %s160 = sphi 0, %s160
    %s162 = sphi 0, %s160
    %s163 = sphi 0, %s162
    %s177 = sphi 0, %s163
    %s181 = sphi 0, %s181
    %s183 = sphi 0, %s181
    %s184 = sphi 0, %s183
    %s198 = sphi 0, %s184
    %s202 = sphi 0, %s202
    %s204 = sphi 0, %s202
    %s205 = sphi 0, %s204
    %s219 = sphi 0, %s205
    %s223 = sphi 0, %s223
    %s225 = sphi 0, %s223
    %s226 = sphi 0, %s225
    %s240 = sphi 0, %s226
    %s246 = sphi 0, %s248
    %s249 = sphi 0, %s246
    %s250 = sphi 0, %s249
    %s266 = sphi 0, %s250
  $region4: #{tpu_custom_call.1} parent=0 // loop_header_branch
    %19 = sbr.rel (%p17) target = $region8
  $region5: #{tpu_custom_call.1} parent=0 // loop_body
    %s21 = ssub.s32 %s16, 1
    %s22 = ssub.s32 %s16, 2
    %s23 = sadd.s32 %s16, 1
    %s24 = ssub.s32 %s16, %s23
    %p25 = scmp.eq.s32.totalorder %s24, 0
    %s27 = sadd.s32 %s26, 1
    %s28 = scalar_select %p25, %s26, %s27
    %p31 = pneg %p25
    %p32 = scmp.eq.s32.totalorder %s16, 1
    %p33 = por %p31, %p32
    %p34 = scmp.ne.s32.totalorder %s26, %s29
    %p35 = scmp.eq.s32.totalorder %s16, 0
    %p36 = por %p34, %p35
    %p37 = scmp.ne.s32.totalorder %s26, %s29
    %p38 = scmp.eq.s32.totalorder %s21, 1
    %p39 = por %p37, %p38
    %p40 = scmp.ne.s32.totalorder %s29, %s30
    %p41 = scmp.eq.s32.totalorder %s21, 0
    %p42 = por %p40, %p41
    %p43 = scmp.ne.s32.totalorder %s29, %s30
    %p44 = scmp.eq.s32.totalorder %s22, 1
    %p45 = por %p43, %p44
    %p47 = scmp.ne.s32.totalorder %s30, %s46
    %p48 = scmp.eq.s32.totalorder %s22, 0
    %p49 = por %p47, %p48
    %s50 = ssub.s32 %s16, %s23
    %p51 = scmp.eq.s32.totalorder %s50, 0
    %s53 = sadd.s32 %s52, 1
    %s54 = scalar_select %p51, %s52, %s53
    %p57 = pneg %p51
    %p58 = scmp.eq.s32.totalorder %s16, 1
    %p59 = por %p57, %p58
    %p60 = scmp.ne.s32.totalorder %s52, %s55
    %p61 = scmp.eq.s32.totalorder %s16, 0
    %p62 = por %p60, %p61
    %p63 = scmp.ne.s32.totalorder %s52, %s55
    %p64 = scmp.eq.s32.totalorder %s21, 1
    %p65 = por %p63, %p64
    %p66 = scmp.ne.s32.totalorder %s55, %s56
    %p67 = scmp.eq.s32.totalorder %s21, 0
    %p68 = por %p66, %p67
    %p69 = scmp.ne.s32.totalorder %s55, %s56
    %p70 = scmp.eq.s32.totalorder %s22, 1
    %p71 = por %p69, %p70
    %p73 = scmp.ne.s32.totalorder %s56, %s72
    %p74 = scmp.eq.s32.totalorder %s22, 0
    %p75 = por %p73, %p74
    %s77 = sadd.s32 %s76, 1
    %p80 = scmp.eq.s32.totalorder %s16, 1
    %p81 = scmp.ne.s32.totalorder %s76, %s78
    %p82 = scmp.eq.s32.totalorder %s16, 0
    %p83 = por %p81, %p82
    %p84 = scmp.ne.s32.totalorder %s76, %s78
    %p85 = scmp.eq.s32.totalorder %s21, 1
    %p86 = por %p84, %p85
    %p87 = scmp.ne.s32.totalorder %s78, %s79
    %p88 = scmp.eq.s32.totalorder %s21, 0
    %p89 = por %p87, %p88
    %p90 = scmp.ne.s32.totalorder %s78, %s79
    %p91 = scmp.eq.s32.totalorder %s22, 1
    %p92 = por %p90, %p91
    %p94 = scmp.ne.s32.totalorder %s79, %s93
    %p95 = scmp.eq.s32.totalorder %s22, 0
    %p96 = por %p94, %p95
    %s98 = sadd.s32 %s97, 1
    %p101 = scmp.eq.s32.totalorder %s16, 1
    %p102 = scmp.ne.s32.totalorder %s97, %s99
    %p103 = scmp.eq.s32.totalorder %s16, 0
    %p104 = por %p102, %p103
    %p105 = scmp.ne.s32.totalorder %s97, %s99
    %p106 = scmp.eq.s32.totalorder %s21, 1
    %p107 = por %p105, %p106
    %p108 = scmp.ne.s32.totalorder %s99, %s100
    %p109 = scmp.eq.s32.totalorder %s21, 0
    %p110 = por %p108, %p109
    %p111 = scmp.ne.s32.totalorder %s99, %s100
    %p112 = scmp.eq.s32.totalorder %s22, 1
    %p113 = por %p111, %p112
    %p115 = scmp.ne.s32.totalorder %s100, %s114
    %p116 = scmp.eq.s32.totalorder %s22, 0
    %p117 = por %p115, %p116
    %s119 = sadd.s32 %s118, 1
    %p122 = scmp.eq.s32.totalorder %s16, 1
    %p123 = scmp.ne.s32.totalorder %s118, %s120
    %p124 = scmp.eq.s32.totalorder %s16, 0
    %p125 = por %p123, %p124
    %p126 = scmp.ne.s32.totalorder %s118, %s120
    %p127 = scmp.eq.s32.totalorder %s21, 1
    %p128 = por %p126, %p127
    %p129 = scmp.ne.s32.totalorder %s120, %s121
    %p130 = scmp.eq.s32.totalorder %s21, 0
    %p131 = por %p129, %p130
    %p132 = scmp.ne.s32.totalorder %s120, %s121
    %p133 = scmp.eq.s32.totalorder %s22, 1
    %p134 = por %p132, %p133
    %p136 = scmp.ne.s32.totalorder %s121, %s135
    %p137 = scmp.eq.s32.totalorder %s22, 0
    %p138 = por %p136, %p137
    %s140 = sadd.s32 %s139, 1
    %p143 = scmp.eq.s32.totalorder %s16, 1
    %p144 = scmp.ne.s32.totalorder %s139, %s141
    %p145 = scmp.eq.s32.totalorder %s16, 0
    %p146 = por %p144, %p145
    %p147 = scmp.ne.s32.totalorder %s139, %s141
    %p148 = scmp.eq.s32.totalorder %s21, 1
    %p149 = por %p147, %p148
    %p150 = scmp.ne.s32.totalorder %s141, %s142
    %p151 = scmp.eq.s32.totalorder %s21, 0
    %p152 = por %p150, %p151
    %p153 = scmp.ne.s32.totalorder %s141, %s142
    %p154 = scmp.eq.s32.totalorder %s22, 1
    %p155 = por %p153, %p154
    %p157 = scmp.ne.s32.totalorder %s142, %s156
    %p158 = scmp.eq.s32.totalorder %s22, 0
    %p159 = por %p157, %p158
    %s161 = sadd.s32 %s160, 1
    %p164 = scmp.eq.s32.totalorder %s16, 1
    %p165 = scmp.ne.s32.totalorder %s160, %s162
    %p166 = scmp.eq.s32.totalorder %s16, 0
    %p167 = por %p165, %p166
    %p168 = scmp.ne.s32.totalorder %s160, %s162
    %p169 = scmp.eq.s32.totalorder %s21, 1
    %p170 = por %p168, %p169
    %p171 = scmp.ne.s32.totalorder %s162, %s163
    %p172 = scmp.eq.s32.totalorder %s21, 0
    %p173 = por %p171, %p172
    %p174 = scmp.ne.s32.totalorder %s162, %s163
    %p175 = scmp.eq.s32.totalorder %s22, 1
    %p176 = por %p174, %p175
    %p178 = scmp.ne.s32.totalorder %s163, %s177
    %p179 = scmp.eq.s32.totalorder %s22, 0
    %p180 = por %p178, %p179
    %s182 = sadd.s32 %s181, 1
    %p185 = scmp.eq.s32.totalorder %s16, 1
    %p186 = scmp.ne.s32.totalorder %s181, %s183
    %p187 = scmp.eq.s32.totalorder %s16, 0
    %p188 = por %p186, %p187
    %p189 = scmp.ne.s32.totalorder %s181, %s183
    %p190 = scmp.eq.s32.totalorder %s21, 1
    %p191 = por %p189, %p190
    %p192 = scmp.ne.s32.totalorder %s183, %s184
    %p193 = scmp.eq.s32.totalorder %s21, 0
    %p194 = por %p192, %p193
    %p195 = scmp.ne.s32.totalorder %s183, %s184
    %p196 = scmp.eq.s32.totalorder %s22, 1
    %p197 = por %p195, %p196
    %p199 = scmp.ne.s32.totalorder %s184, %s198
    %p200 = scmp.eq.s32.totalorder %s22, 0
    %p201 = por %p199, %p200
    %s203 = sadd.s32 %s202, 1
    %p206 = scmp.eq.s32.totalorder %s16, 1
    %p207 = scmp.ne.s32.totalorder %s202, %s204
    %p208 = scmp.eq.s32.totalorder %s16, 0
    %p209 = por %p207, %p208
    %p210 = scmp.ne.s32.totalorder %s202, %s204
    %p211 = scmp.eq.s32.totalorder %s21, 1
    %p212 = por %p210, %p211
    %p213 = scmp.ne.s32.totalorder %s204, %s205
    %p214 = scmp.eq.s32.totalorder %s21, 0
    %p215 = por %p213, %p214
    %p216 = scmp.ne.s32.totalorder %s204, %s205
    %p217 = scmp.eq.s32.totalorder %s22, 1
    %p218 = por %p216, %p217
    %p220 = scmp.ne.s32.totalorder %s205, %s219
    %p221 = scmp.eq.s32.totalorder %s22, 0
    %p222 = por %p220, %p221
    %s224 = sadd.s32 %s223, 1
    %p227 = scmp.eq.s32.totalorder %s16, 1
    %p228 = scmp.ne.s32.totalorder %s223, %s225
    %p229 = scmp.eq.s32.totalorder %s16, 0
    %p230 = por %p228, %p229
    %p231 = scmp.ne.s32.totalorder %s223, %s225
    %p232 = scmp.eq.s32.totalorder %s21, 1
    %p233 = por %p231, %p232
    %p234 = scmp.ne.s32.totalorder %s225, %s226
    %p235 = scmp.eq.s32.totalorder %s21, 0
    %p236 = por %p234, %p235
    %p237 = scmp.ne.s32.totalorder %s225, %s226
    %p238 = scmp.eq.s32.totalorder %s22, 1
    %p239 = por %p237, %p238
    %p241 = scmp.ne.s32.totalorder %s226, %s240
    %p242 = scmp.eq.s32.totalorder %s22, 0
    %p243 = por %p241, %p242
    %s244 = ssub.s32 %s16, %s23
    %p245 = scmp.eq.s32.totalorder %s244, 0
    %s247 = sadd.s32 %s246, 1
    %s248 = scalar_select %p245, %s246, %s247
    %p251 = pneg %p245
    %p252 = scmp.eq.s32.totalorder %s16, 1
    %p253 = por %p251, %p252
    %p254 = scmp.ne.s32.totalorder %s246, %s249
    %p255 = scmp.eq.s32.totalorder %s16, 0
    %p256 = por %p254, %p255
    %p257 = scmp.ne.s32.totalorder %s246, %s249
    %p258 = scmp.eq.s32.totalorder %s21, 1
    %p259 = por %p257, %p258
    %p260 = scmp.ne.s32.totalorder %s249, %s250
    %p261 = scmp.eq.s32.totalorder %s21, 0
    %p262 = por %p260, %p261
    %p263 = scmp.ne.s32.totalorder %s249, %s250
    %p264 = scmp.eq.s32.totalorder %s22, 1
    %p265 = por %p263, %p264
    %p267 = scmp.ne.s32.totalorder %s250, %s266
    %p268 = scmp.eq.s32.totalorder %s22, 0
    %p269 = por %p267, %p268
    %p270 = scmp.le.s32.totalorder 1, %s16
    %p271 = scmp.lt.s32.totalorder %s16, 3
    %p272 = pnand %p270, %p271
    %p273 = pneg %p272
    // Predicated region
    $region9: #{tpu_custom_call.1} parent=5 // pred_check
      _
    $region10: #{tpu_custom_call.1} parent=5 // pred_check_branch
      %275 = sbr.rel (%p272) target = $region12
    $region11: #{tpu_custom_call.1} parent=5 // pred_region
      %s276 = ssub.s32 %s16, 1
      // Predicated region
      $region13: #{tpu_custom_call.1} parent=11 // pred_check
        %p277 = pneg %p89
      $region14: #{tpu_custom_call.1} parent=11 // pred_check_branch
        %279 = sbr.rel (%p277) target = $region16
      $region15: #{tpu_custom_call.1} parent=11 // pred_region
        _
      $region16: #{tpu_custom_call.1} parent=11 // pred_fallthru
        _
      // Predicated region
      $region17: #{tpu_custom_call.1} parent=11 // pred_check
        %p280 = pneg %p110
      $region18: #{tpu_custom_call.1} parent=11 // pred_check_branch
        %282 = sbr.rel (%p280) target = $region20
      $region19: #{tpu_custom_call.1} parent=11 // pred_region
        _
      $region20: #{tpu_custom_call.1} parent=11 // pred_fallthru
        _
      // Predicated region
      $region21: #{tpu_custom_call.1} parent=11 // pred_check
        %p283 = pneg %p131
      $region22: #{tpu_custom_call.1} parent=11 // pred_check_branch
        %285 = sbr.rel (%p283) target = $region24
      $region23: #{tpu_custom_call.1} parent=11 // pred_region
        _
      $region24: #{tpu_custom_call.1} parent=11 // pred_fallthru
        _
      // Predicated region
      $region25: #{tpu_custom_call.1} parent=11 // pred_check
        %p286 = pneg %p152
      $region26: #{tpu_custom_call.1} parent=11 // pred_check_branch
        %288 = sbr.rel (%p286) target = $region28
      $region27: #{tpu_custom_call.1} parent=11 // pred_region
        _
      $region28: #{tpu_custom_call.1} parent=11 // pred_fallthru
        _
      // Predicated region
      $region29: #{tpu_custom_call.1} parent=11 // pred_check
        %p289 = pneg %p173
      $region30: #{tpu_custom_call.1} parent=11 // pred_check_branch
        %291 = sbr.rel (%p289) target = $region32
      $region31: #{tpu_custom_call.1} parent=11 // pred_region
        _
      $region32: #{tpu_custom_call.1} parent=11 // pred_fallthru
        _
      // Predicated region
      $region33: #{tpu_custom_call.1} parent=11 // pred_check
        %p292 = pneg %p194
      $region34: #{tpu_custom_call.1} parent=11 // pred_check_branch
        %294 = sbr.rel (%p292) target = $region36
      $region35: #{tpu_custom_call.1} parent=11 // pred_region
        _
      $region36: #{tpu_custom_call.1} parent=11 // pred_fallthru
        _
      // Predicated region
      $region37: #{tpu_custom_call.1} parent=11 // pred_check
        %p295 = pneg %p215
      $region38: #{tpu_custom_call.1} parent=11 // pred_check_branch
        %297 = sbr.rel (%p295) target = $region40
      $region39: #{tpu_custom_call.1} parent=11 // pred_region
        _
      $region40: #{tpu_custom_call.1} parent=11 // pred_fallthru
        _
      // Predicated region
      $region41: #{tpu_custom_call.1} parent=11 // pred_check
        %p298 = pneg %p236
      $region42: #{tpu_custom_call.1} parent=11 // pred_check_branch
        %300 = sbr.rel (%p298) target = $region44
      $region43: #{tpu_custom_call.1} parent=11 // pred_region
        _
      $region44: #{tpu_custom_call.1} parent=11 // pred_fallthru
        _
    $region12: #{tpu_custom_call.1} parent=5 // pred_fallthru
      _
    %p301 = scmp.lt.s32.totalorder %s16, 2
    // Predicated region
    $region45: #{tpu_custom_call.1} parent=5 // pred_check
      %p302 = pneg %p301
    $region46: #{tpu_custom_call.1} parent=5 // pred_check_branch
      %304 = sbr.rel (%p302) target = $region48
    $region47: #{tpu_custom_call.1} parent=5 // pred_region
      // Predicated region
      $region49: #{tpu_custom_call.1} parent=47 // pred_check
        %p305 = pneg %p36
      $region50: #{tpu_custom_call.1} parent=47 // pred_check_branch
        %307 = sbr.rel (%p305) target = $region52
      $region51: #{tpu_custom_call.1} parent=47 // pred_region
        %p308 = scmp.lt.s32.totalorder %s16, 1
        %s309 = scalar_select %p308, %s16, 1
        %s310 = smul.addr %s309, 192
        %s311 = smul.addr %s310, 4
        %s312 = scalar_lea.vmem %s0, %s311
      $region52: #{tpu_custom_call.1} parent=47 // pred_fallthru
        _
      // Predicated region
      $region53: #{tpu_custom_call.1} parent=47 // pred_check
        %p313 = pneg %p62
      $region54: #{tpu_custom_call.1} parent=47 // pred_check_branch
        %315 = sbr.rel (%p313) target = $region56
      $region55: #{tpu_custom_call.1} parent=47 // pred_region
        %p316 = scmp.lt.s32.totalorder %s16, 1
        %s317 = scalar_select %p316, %s16, 1
        %s318 = smul.addr %s317, 192
        %s319 = smul.addr %s318, 4
        %s320 = scalar_lea.vmem %s1, %s319
      $region56: #{tpu_custom_call.1} parent=47 // pred_fallthru
        _
    $region48: #{tpu_custom_call.1} parent=5 // pred_fallthru
      _
    %p321 = scmp.le.s32.totalorder 1, %s16
    %p322 = scmp.lt.s32.totalorder %s16, 3
    %p323 = pnand %p321, %p322
    %p324 = pneg %p323
    // Predicated region
    $region57: #{tpu_custom_call.1} parent=5 // pred_check
      _
    $region58: #{tpu_custom_call.1} parent=5 // pred_check_branch
      %326 = sbr.rel (%p323) target = $region60
    $region59: #{tpu_custom_call.1} parent=5 // pred_region
      %s327 = ssub.s32 %s16, 1
      %p328 = scmp.lt.s32.totalorder %s21, 1
      %s329 = scalar_select %p328, %s21, 1
      %s330 = smul.addr %s329, 192
      %s331 = smul.addr %s330, 4
      %s332 = scalar_lea.vmem %s0, %s331
      %p333 = pneg %p42
      %p334 = pneg %p39
      %p335 = scmp.lt.s32.totalorder %s21, 1
      %s336 = scalar_select %p335, %s21, 1
      %s337 = smul.addr %s336, 192
      %s338 = smul.addr %s337, 4
      %s339 = scalar_lea.vmem %s1, %s338
      %p340 = pneg %p68
      %p341 = pneg %p65
      %p342 = pneg %p89
      %p343 = pneg %p86
      %p344 = pneg %p110
      %p345 = pneg %p107
      %p346 = pneg %p131
      %p347 = pneg %p128
      %p348 = pneg %p152
      %p349 = pneg %p149
      %p350 = pneg %p173
      %p351 = pneg %p170
      %p352 = pneg %p194
      %p353 = pneg %p191
      %p354 = pneg %p215
      %p355 = pneg %p212
      %p356 = pneg %p236
      %p357 = pneg %p233
      %p358 = pneg %p262
      %p359 = pneg %p259
      %p360 = scmp.lt.s32.totalorder %s21, 1
      %s361 = scalar_select %p360, %s21, 1
      %s362 = scalar_lea.vmem %s10, %s361
      %p363 = scmp.lt.s32.totalorder %s21, 1
      %s364 = scalar_select %p363, %s21, 1
      %s365 = smul.addr %s364, 192
      %s366 = smul.addr %s365, 4
      %s367 = scalar_lea.vmem %s0, %s366
      %p368 = scmp.lt.s32.totalorder %s21, 1
      %s369 = scalar_select %p368, %s21, 1
      %s370 = smul.addr %s369, 192
      %s371 = smul.addr %s370, 4
      %s372 = scalar_lea.vmem %s1, %s371
      %p373 = scmp.lt.s32.totalorder %s21, 1
      %s374 = scalar_select %p373, %s21, 1
      %s375 = scalar_lea.vmem %s10, %s374
      %v377 = vld [vmem:[%s367] sm:$0xff]
      %v378 = vld [vmem:[%s367 + $0x8] sm:$0xf]
      %v379 = vld [vmem:[%s367 + $0xc] sm:$0xff]
      %v380 = vld [vmem:[%s367 + $0x14] sm:$0xf]
      %v381 = vld [vmem:[%s367 + $0x18] sm:$0xff]
      %v382 = vld [vmem:[%s367 + $0x20] sm:$0xf]
      %v383 = vld [vmem:[%s367 + $0x24] sm:$0xff]
      %v384 = vld [vmem:[%s367 + $0x2c] sm:$0xf]
      %v385 = vld [vmem:[%s367 + $0x30] sm:$0xff]
      %v386 = vld [vmem:[%s367 + $0x38] sm:$0xf]
      %v387 = vld [vmem:[%s367 + $0x3c] sm:$0xff]
      %v388 = vld [vmem:[%s367 + $0x44] sm:$0xf]
      %v389 = vld [vmem:[%s367 + $0x48] sm:$0xff]
      %v390 = vld [vmem:[%s367 + $0x50] sm:$0xf]
      %v391 = vld [vmem:[%s367 + $0x54] sm:$0xff]
      %v392 = vld [vmem:[%s367 + $0x5c] sm:$0xf]
      %v393 = vld [vmem:[%s367 + $0x60] sm:$0xff]
      %v394 = vld [vmem:[%s367 + $0x68] sm:$0xf]
      %v395 = vld [vmem:[%s367 + $0x6c] sm:$0xff]
      %v396 = vld [vmem:[%s367 + $0x74] sm:$0xf]
      %v397 = vld [vmem:[%s367 + $0x78] sm:$0xff]
      %v398 = vld [vmem:[%s367 + $0x80] sm:$0xf]
      %v399 = vld [vmem:[%s367 + $0x84] sm:$0xff]
      %v400 = vld [vmem:[%s367 + $0x8c] sm:$0xf]
      %v401 = vld [vmem:[%s367 + $0x90] sm:$0xff]
      %v402 = vld [vmem:[%s367 + $0x98] sm:$0xf]
      %v403 = vld [vmem:[%s367 + $0x9c] sm:$0xff]
      %v404 = vld [vmem:[%s367 + $0xa4] sm:$0xf]
      %v405 = vld [vmem:[%s367 + $0xa8] sm:$0xff]
      %v406 = vld [vmem:[%s367 + $0xb0] sm:$0xf]
      %v407 = vld [vmem:[%s367 + $0xb4] sm:$0xff]
      %v408 = vld [vmem:[%s367 + $0xbc] sm:$0xf]
      %v409 = vld [vmem:[%s367 + $0xc0] sm:$0xff]
      %v410 = vld [vmem:[%s367 + $0xc8] sm:$0xf]
      %v411 = vld [vmem:[%s367 + $0xcc] sm:$0xff]
      %v412 = vld [vmem:[%s367 + $0xd4] sm:$0xf]
      %v413 = vld [vmem:[%s367 + $0xd8] sm:$0xff]
      %v414 = vld [vmem:[%s367 + $0xe0] sm:$0xf]
      %v415 = vld [vmem:[%s367 + $0xe4] sm:$0xff]
      %v416 = vld [vmem:[%s367 + $0xec] sm:$0xf]
      %v417 = vld [vmem:[%s367 + $0xf0] sm:$0xff]
      %v418 = vld [vmem:[%s367 + $0xf8] sm:$0xf]
      %v419 = vld [vmem:[%s367 + $0xfc] sm:$0xff]
      %v420 = vld [vmem:[%s367 + $0x104] sm:$0xf]
      %v421 = vld [vmem:[%s367 + $0x108] sm:$0xff]
      %v422 = vld [vmem:[%s367 + $0x110] sm:$0xf]
      %v423 = vld [vmem:[%s367 + $0x114] sm:$0xff]
      %v424 = vld [vmem:[%s367 + $0x11c] sm:$0xf]
      %v425 = vld [vmem:[%s367 + $0x120] sm:$0xff]
      %v426 = vld [vmem:[%s367 + $0x128] sm:$0xf]
      %v427 = vld [vmem:[%s367 + $0x12c] sm:$0xff]
      %v428 = vld [vmem:[%s367 + $0x134] sm:$0xf]
      %v429 = vld [vmem:[%s367 + $0x138] sm:$0xff]
      %v430 = vld [vmem:[%s367 + $0x140] sm:$0xf]
      %v431 = vld [vmem:[%s367 + $0x144] sm:$0xff]
      %v432 = vld [vmem:[%s367 + $0x14c] sm:$0xf]
      %v433 = vld [vmem:[%s367 + $0x150] sm:$0xff]
      %v434 = vld [vmem:[%s367 + $0x158] sm:$0xf]
      %v435 = vld [vmem:[%s367 + $0x15c] sm:$0xff]
      %v436 = vld [vmem:[%s367 + $0x164] sm:$0xf]
      %v437 = vld [vmem:[%s367 + $0x168] sm:$0xff]
      %v438 = vld [vmem:[%s367 + $0x170] sm:$0xf]
      %v439 = vld [vmem:[%s367 + $0x174] sm:$0xff]
      %v440 = vld [vmem:[%s367 + $0x17c] sm:$0xf]
      %v441 = vld [vmem:[%s367 + $0x180] sm:$0xff]
      %v442 = vld [vmem:[%s367 + $0x188] sm:$0xf]
      %v443 = vld [vmem:[%s367 + $0x18c] sm:$0xff]
      %v444 = vld [vmem:[%s367 + $0x194] sm:$0xf]
      %v445 = vld [vmem:[%s367 + $0x198] sm:$0xff]
      %v446 = vld [vmem:[%s367 + $0x1a0] sm:$0xf]
      %v447 = vld [vmem:[%s367 + $0x1a4] sm:$0xff]
      %v448 = vld [vmem:[%s367 + $0x1ac] sm:$0xf]
      %v449 = vld [vmem:[%s367 + $0x1b0] sm:$0xff]
      %v450 = vld [vmem:[%s367 + $0x1b8] sm:$0xf]
      %v451 = vld [vmem:[%s367 + $0x1bc] sm:$0xff]
      %v452 = vld [vmem:[%s367 + $0x1c4] sm:$0xf]
      %v453 = vld [vmem:[%s367 + $0x1c8] sm:$0xff]
      %v454 = vld [vmem:[%s367 + $0x1d0] sm:$0xf]
      %v455 = vld [vmem:[%s367 + $0x1d4] sm:$0xff]
      %v456 = vld [vmem:[%s367 + $0x1dc] sm:$0xf]
      %v457 = vld [vmem:[%s367 + $0x1e0] sm:$0xff]
      %v458 = vld [vmem:[%s367 + $0x1e8] sm:$0xf]
      %v459 = vld [vmem:[%s367 + $0x1ec] sm:$0xff]
      %v460 = vld [vmem:[%s367 + $0x1f4] sm:$0xf]
      %v461 = vld [vmem:[%s367 + $0x1f8] sm:$0xff]
      %v462 = vld [vmem:[%s367 + $0x200] sm:$0xf]
      %v463 = vld [vmem:[%s367 + $0x204] sm:$0xff]
      %v464 = vld [vmem:[%s367 + $0x20c] sm:$0xf]
      %v465 = vld [vmem:[%s367 + $0x210] sm:$0xff]
      %v466 = vld [vmem:[%s367 + $0x218] sm:$0xf]
      %v467 = vld [vmem:[%s367 + $0x21c] sm:$0xff]
      %v468 = vld [vmem:[%s367 + $0x224] sm:$0xf]
      %v469 = vld [vmem:[%s367 + $0x228] sm:$0xff]
      %v470 = vld [vmem:[%s367 + $0x230] sm:$0xf]
      %v471 = vld [vmem:[%s367 + $0x234] sm:$0xff]
      %v472 = vld [vmem:[%s367 + $0x23c] sm:$0xf]
      %v473 = vld [vmem:[%s367 + $0x240] sm:$0xff]
      %v474 = vld [vmem:[%s367 + $0x248] sm:$0xf]
      %v475 = vld [vmem:[%s367 + $0x24c] sm:$0xff]
      %v476 = vld [vmem:[%s367 + $0x254] sm:$0xf]
      %v477 = vld [vmem:[%s367 + $0x258] sm:$0xff]
      %v478 = vld [vmem:[%s367 + $0x260] sm:$0xf]
      %v479 = vld [vmem:[%s367 + $0x264] sm:$0xff]
      %v480 = vld [vmem:[%s367 + $0x26c] sm:$0xf]
      %v481 = vld [vmem:[%s367 + $0x270] sm:$0xff]
      %v482 = vld [vmem:[%s367 + $0x278] sm:$0xf]
      %v483 = vld [vmem:[%s367 + $0x27c] sm:$0xff]
      %v484 = vld [vmem:[%s367 + $0x284] sm:$0xf]
      %v485 = vld [vmem:[%s367 + $0x288] sm:$0xff]
      %v486 = vld [vmem:[%s367 + $0x290] sm:$0xf]
      %v487 = vld [vmem:[%s367 + $0x294] sm:$0xff]
      %v488 = vld [vmem:[%s367 + $0x29c] sm:$0xf]
      %v489 = vld [vmem:[%s367 + $0x2a0] sm:$0xff]
      %v490 = vld [vmem:[%s367 + $0x2a8] sm:$0xf]
      %v491 = vld [vmem:[%s367 + $0x2ac] sm:$0xff]
      %v492 = vld [vmem:[%s367 + $0x2b4] sm:$0xf]
      %v493 = vld [vmem:[%s367 + $0x2b8] sm:$0xff]
      %v494 = vld [vmem:[%s367 + $0x2c0] sm:$0xf]
      %v495 = vld [vmem:[%s367 + $0x2c4] sm:$0xff]
      %v496 = vld [vmem:[%s367 + $0x2cc] sm:$0xf]
      %v497 = vld [vmem:[%s367 + $0x2d0] sm:$0xff]
      %v498 = vld [vmem:[%s367 + $0x2d8] sm:$0xf]
      %v499 = vld [vmem:[%s367 + $0x2dc] sm:$0xff]
      %v500 = vld [vmem:[%s367 + $0x2e4] sm:$0xf]
      %v501 = vld [vmem:[%s367 + $0x2e8] sm:$0xff]
      %v502 = vld [vmem:[%s367 + $0x2f0] sm:$0xf]
      %v503 = vld [vmem:[%s367 + $0x2f4] sm:$0xff]
      %v504 = vld [vmem:[%s367 + $0x2fc] sm:$0xf]
      %v505 = vld [vmem:[%s2] sm:$0xf]
      %v506 = vld [vmem:[%s2 + $0x4] sm:$0xf]
      %v507 = vld [vmem:[%s2 + $0x8] sm:$0xf]
      %v508 = vld [vmem:[%s2 + $0xc] sm:$0xf]
      %v509 = vld [vmem:[%s2 + $0x10] sm:$0xf]
      %v510 = vld [vmem:[%s2 + $0x14] sm:$0xf]
      %v511 = vld [vmem:[%s2 + $0x18] sm:$0xf]
      %v512 = vld [vmem:[%s2 + $0x1c] sm:$0xf]
      %v513 = vld [vmem:[%s2 + $0x20] sm:$0xf]
      %v514 = vld [vmem:[%s2 + $0x24] sm:$0xf]
      %v515 = vld [vmem:[%s2 + $0x28] sm:$0xf]
      %v516 = vld [vmem:[%s2 + $0x2c] sm:$0xf]
      %v517 = vld [vmem:[%s2 + $0x30] sm:$0xf]
      %v518 = vld [vmem:[%s2 + $0x34] sm:$0xf]
      %v519 = vld [vmem:[%s2 + $0x38] sm:$0xf]
      %v520 = vld [vmem:[%s2 + $0x3c] sm:$0xf]
      %v521 = vld [vmem:[%s2 + $0x40] sm:$0xf]
      %v522 = vld [vmem:[%s2 + $0x44] sm:$0xf]
      %v523 = vld [vmem:[%s2 + $0x48] sm:$0xf]
      %v524 = vld [vmem:[%s2 + $0x4c] sm:$0xf]
      %v525 = vld [vmem:[%s2 + $0x50] sm:$0xf]
      %v526 = vld [vmem:[%s2 + $0x54] sm:$0xf]
      %v527 = vld [vmem:[%s2 + $0x58] sm:$0xf]
      %v528 = vld [vmem:[%s2 + $0x5c] sm:$0xf]
      %v529 = vld [vmem:[%s2 + $0x60] sm:$0xf]
      %v530 = vld [vmem:[%s2 + $0x64] sm:$0xf]
      %v531 = vld [vmem:[%s2 + $0x68] sm:$0xf]
      %v532 = vld [vmem:[%s2 + $0x6c] sm:$0xf]
      %v533 = vld [vmem:[%s2 + $0x70] sm:$0xf]
      %v534 = vld [vmem:[%s2 + $0x74] sm:$0xf]
      %v535 = vld [vmem:[%s2 + $0x78] sm:$0xf]
      %v536 = vld [vmem:[%s2 + $0x7c] sm:$0xf]
      %v537 = vld [vmem:[%s2 + $0x80] sm:$0xf]
      %v538 = vld [vmem:[%s2 + $0x84] sm:$0xf]
      %v539 = vld [vmem:[%s2 + $0x88] sm:$0xf]
      %v540 = vld [vmem:[%s2 + $0x8c] sm:$0xf]
      %v541 = vld [vmem:[%s2 + $0x90] sm:$0xf]
      %v542 = vld [vmem:[%s2 + $0x94] sm:$0x3]
      %v671 = vunpack.c.l.b16 %v377
      %v672 = vunpack.c.h.b16 %v377
      %v673 = vunpack.c.l.b16 %v378
      %v674 = vunpack.c.l.b16 %v379
      %v675 = vunpack.c.h.b16 %v379
      %v676 = vunpack.c.l.b16 %v380
      %v677 = vunpack.c.l.b16 %v381
      %v678 = vunpack.c.h.b16 %v381
      %v679 = vunpack.c.l.b16 %v382
      %v680 = vunpack.c.l.b16 %v383
      %v681 = vunpack.c.h.b16 %v383
      %v682 = vunpack.c.l.b16 %v384
      %v683 = vunpack.c.l.b16 %v385
      %v684 = vunpack.c.h.b16 %v385
      %v685 = vunpack.c.l.b16 %v386
      %v686 = vunpack.c.l.b16 %v387
      %v687 = vunpack.c.h.b16 %v387
      %v688 = vunpack.c.l.b16 %v388
      %v689 = vunpack.c.l.b16 %v389
      %v690 = vunpack.c.h.b16 %v389
      %v691 = vunpack.c.l.b16 %v390
      %v692 = vunpack.c.l.b16 %v391
      %v693 = vunpack.c.h.b16 %v391
      %v694 = vunpack.c.l.b16 %v392
      %v695 = vunpack.c.l.b16 %v393
      %v696 = vunpack.c.h.b16 %v393
      %v697 = vunpack.c.l.b16 %v394
      %v698 = vunpack.c.l.b16 %v395
      %v699 = vunpack.c.h.b16 %v395
      %v700 = vunpack.c.l.b16 %v396
      %v701 = vunpack.c.l.b16 %v397
      %v702 = vunpack.c.h.b16 %v397
      %v703 = vunpack.c.l.b16 %v398
      %v704 = vunpack.c.l.b16 %v399
      %v705 = vunpack.c.h.b16 %v399
      %v706 = vunpack.c.l.b16 %v400
      %v707 = vunpack.c.l.b16 %v401
      %v708 = vunpack.c.h.b16 %v401
      %v709 = vunpack.c.l.b16 %v402
      %v710 = vunpack.c.l.b16 %v403
      %v711 = vunpack.c.h.b16 %v403
      %v712 = vunpack.c.l.b16 %v404
      %v713 = vunpack.c.l.b16 %v405
      %v714 = vunpack.c.h.b16 %v405
      %v715 = vunpack.c.l.b16 %v406
      %v716 = vunpack.c.l.b16 %v407
      %v717 = vunpack.c.h.b16 %v407
      %v718 = vunpack.c.l.b16 %v408
      %v719 = vunpack.c.l.b16 %v409
      %v720 = vunpack.c.h.b16 %v409
      %v721 = vunpack.c.l.b16 %v410
      %v722 = vunpack.c.l.b16 %v411
      %v723 = vunpack.c.h.b16 %v411
      %v724 = vunpack.c.l.b16 %v412
      %v725 = vunpack.c.l.b16 %v413
      %v726 = vunpack.c.h.b16 %v413
      %v727 = vunpack.c.l.b16 %v414
      %v728 = vunpack.c.l.b16 %v415
      %v729 = vunpack.c.h.b16 %v415
      %v730 = vunpack.c.l.b16 %v416
      %v731 = vunpack.c.l.b16 %v417
      %v732 = vunpack.c.h.b16 %v417
      %v733 = vunpack.c.l.b16 %v418
      %v734 = vunpack.c.l.b16 %v419
      %v735 = vunpack.c.h.b16 %v419
      %v736 = vunpack.c.l.b16 %v420
      %v737 = vunpack.c.l.b16 %v421
      %v738 = vunpack.c.h.b16 %v421
      %v739 = vunpack.c.l.b16 %v422
      %v740 = vunpack.c.l.b16 %v423
      %v741 = vunpack.c.h.b16 %v423
      %v742 = vunpack.c.l.b16 %v424
      %v743 = vunpack.c.l.b16 %v425
      %v744 = vunpack.c.h.b16 %v425
      %v745 = vunpack.c.l.b16 %v426
      %v746 = vunpack.c.l.b16 %v427
      %v747 = vunpack.c.h.b16 %v427
      %v748 = vunpack.c.l.b16 %v428
      %v749 = vunpack.c.l.b16 %v429
      %v750 = vunpack.c.h.b16 %v429
      %v751 = vunpack.c.l.b16 %v430
      %v752 = vunpack.c.l.b16 %v431
      %v753 = vunpack.c.h.b16 %v431
      %v754 = vunpack.c.l.b16 %v432
      %v755 = vunpack.c.l.b16 %v433
      %v756 = vunpack.c.h.b16 %v433
      %v757 = vunpack.c.l.b16 %v434
      %v758 = vunpack.c.l.b16 %v435
      %v759 = vunpack.c.h.b16 %v435
      %v760 = vunpack.c.l.b16 %v436
      %v761 = vunpack.c.l.b16 %v437
      %v762 = vunpack.c.h.b16 %v437
      %v763 = vunpack.c.l.b16 %v438
      %v764 = vunpack.c.l.b16 %v439
      %v765 = vunpack.c.h.b16 %v439
      %v766 = vunpack.c.l.b16 %v440
      %v767 = vunpack.c.l.b16 %v441
      %v768 = vunpack.c.h.b16 %v441
      %v769 = vunpack.c.l.b16 %v442
      %v770 = vunpack.c.l.b16 %v443
      %v771 = vunpack.c.h.b16 %v443
      %v772 = vunpack.c.l.b16 %v444
      %v773 = vunpack.c.l.b16 %v445
      %v774 = vunpack.c.h.b16 %v445
      %v775 = vunpack.c.l.b16 %v446
      %v776 = vunpack.c.l.b16 %v447
      %v777 = vunpack.c.h.b16 %v447
      %v778 = vunpack.c.l.b16 %v448
      %v779 = vunpack.c.l.b16 %v449
      %v780 = vunpack.c.h.b16 %v449
      %v781 = vunpack.c.l.b16 %v450
      %v782 = vunpack.c.l.b16 %v451
      %v783 = vunpack.c.h.b16 %v451
      %v784 = vunpack.c.l.b16 %v452
      %v785 = vunpack.c.l.b16 %v453
      %v786 = vunpack.c.h.b16 %v453
      %v787 = vunpack.c.l.b16 %v454
      %v788 = vunpack.c.l.b16 %v455
      %v789 = vunpack.c.h.b16 %v455
      %v790 = vunpack.c.l.b16 %v456
      %v791 = vunpack.c.l.b16 %v457
      %v792 = vunpack.c.h.b16 %v457
      %v793 = vunpack.c.l.b16 %v458
      %v794 = vunpack.c.l.b16 %v459
      %v795 = vunpack.c.h.b16 %v459
      %v796 = vunpack.c.l.b16 %v460
      %v797 = vunpack.c.l.b16 %v461
      %v798 = vunpack.c.h.b16 %v461
      %v799 = vunpack.c.l.b16 %v462
      %v800 = vunpack.c.l.b16 %v463
      %v801 = vunpack.c.h.b16 %v463
      %v802 = vunpack.c.l.b16 %v464
      %v803 = vunpack.c.l.b16 %v465
      %v804 = vunpack.c.h.b16 %v465
      %v805 = vunpack.c.l.b16 %v466
      %v806 = vunpack.c.l.b16 %v467
      %v807 = vunpack.c.h.b16 %v467
      %v808 = vunpack.c.l.b16 %v468
      %v809 = vunpack.c.l.b16 %v469
      %v810 = vunpack.c.h.b16 %v469
      %v811 = vunpack.c.l.b16 %v470
      %v812 = vunpack.c.l.b16 %v471
      %v813 = vunpack.c.h.b16 %v471
      %v814 = vunpack.c.l.b16 %v472
      %v815 = vunpack.c.l.b16 %v473
      %v816 = vunpack.c.h.b16 %v473
      %v817 = vunpack.c.l.b16 %v474
      %v818 = vunpack.c.l.b16 %v475
      %v819 = vunpack.c.h.b16 %v475
      %v820 = vunpack.c.l.b16 %v476
      %v821 = vunpack.c.l.b16 %v477
      %v822 = vunpack.c.h.b16 %v477
      %v823 = vunpack.c.l.b16 %v478
      %v824 = vunpack.c.l.b16 %v479
      %v825 = vunpack.c.h.b16 %v479
      %v826 = vunpack.c.l.b16 %v480
      %v827 = vunpack.c.l.b16 %v481
      %v828 = vunpack.c.h.b16 %v481
      %v829 = vunpack.c.l.b16 %v482
      %v830 = vunpack.c.l.b16 %v483
      %v831 = vunpack.c.h.b16 %v483
      %v832 = vunpack.c.l.b16 %v484
      %v833 = vunpack.c.l.b16 %v485
      %v834 = vunpack.c.h.b16 %v485
      %v835 = vunpack.c.l.b16 %v486
      %v836 = vunpack.c.l.b16 %v487
      %v837 = vunpack.c.h.b16 %v487
      %v838 = vunpack.c.l.b16 %v488
      %v839 = vunpack.c.l.b16 %v489
      %v840 = vunpack.c.h.b16 %v489
      %v841 = vunpack.c.l.b16 %v490
      %v842 = vunpack.c.l.b16 %v491
      %v843 = vunpack.c.h.b16 %v491
      %v844 = vunpack.c.l.b16 %v492
      %v845 = vunpack.c.l.b16 %v493
      %v846 = vunpack.c.h.b16 %v493
      %v847 = vunpack.c.l.b16 %v494
      %v848 = vunpack.c.l.b16 %v495
      %v849 = vunpack.c.h.b16 %v495
      %v850 = vunpack.c.l.b16 %v496
      %v851 = vunpack.c.l.b16 %v497
      %v852 = vunpack.c.h.b16 %v497
      %v853 = vunpack.c.l.b16 %v498
      %v854 = vunpack.c.l.b16 %v499
      %v855 = vunpack.c.h.b16 %v499
      %v856 = vunpack.c.l.b16 %v500
      %v857 = vunpack.c.l.b16 %v501
      %v858 = vunpack.c.h.b16 %v501
      %v859 = vunpack.c.l.b16 %v502
      %v860 = vunpack.c.l.b16 %v503
      %v861 = vunpack.c.h.b16 %v503
      %v862 = vunpack.c.l.b16 %v504
      %v863 = vpack.c.b16 %v674, %v671
      %v864 = vpack.c.b16 %v675, %v672
      %v865 = vpack.c.b16 %v676, %v673
      %v866 = vpack.c.b16 %v680, %v677
      %v867 = vpack.c.b16 %v681, %v678
      %v868 = vpack.c.b16 %v682, %v679
      %v869 = vpack.c.b16 %v686, %v683
      %v870 = vpack.c.b16 %v687, %v684
      %v871 = vpack.c.b16 %v688, %v685
      %v872 = vpack.c.b16 %v692, %v689
      %v873 = vpack.c.b16 %v693, %v690
      %v874 = vpack.c.b16 %v694, %v691
      %v875 = vpack.c.b16 %v698, %v695
      %v876 = vpack.c.b16 %v699, %v696
      %v877 = vpack.c.b16 %v700, %v697
      %v878 = vpack.c.b16 %v704, %v701
      %v879 = vpack.c.b16 %v705, %v702
      %v880 = vpack.c.b16 %v706, %v703
      %v881 = vpack.c.b16 %v710, %v707
      %v882 = vpack.c.b16 %v711, %v708
      %v883 = vpack.c.b16 %v712, %v709
      %v884 = vpack.c.b16 %v716, %v713
      %v885 = vpack.c.b16 %v717, %v714
      %v886 = vpack.c.b16 %v718, %v715
      %v887 = vpack.c.b16 %v722, %v719
      %v888 = vpack.c.b16 %v723, %v720
      %v889 = vpack.c.b16 %v724, %v721
      %v890 = vpack.c.b16 %v728, %v725
      %v891 = vpack.c.b16 %v729, %v726
      %v892 = vpack.c.b16 %v730, %v727
      %v893 = vpack.c.b16 %v734, %v731
      %v894 = vpack.c.b16 %v735, %v732
      %v895 = vpack.c.b16 %v736, %v733
      %v896 = vpack.c.b16 %v740, %v737
      %v897 = vpack.c.b16 %v741, %v738
      %v898 = vpack.c.b16 %v742, %v739
      %v899 = vpack.c.b16 %v746, %v743
      %v900 = vpack.c.b16 %v747, %v744
      %v901 = vpack.c.b16 %v748, %v745
      %v902 = vpack.c.b16 %v752, %v749
      %v903 = vpack.c.b16 %v753, %v750
      %v904 = vpack.c.b16 %v754, %v751
      %v905 = vpack.c.b16 %v758, %v755
      %v906 = vpack.c.b16 %v759, %v756
      %v907 = vpack.c.b16 %v760, %v757
      %v908 = vpack.c.b16 %v764, %v761
      %v909 = vpack.c.b16 %v765, %v762
      %v910 = vpack.c.b16 %v766, %v763
      %v911 = vpack.c.b16 %v770, %v767
      %v912 = vpack.c.b16 %v771, %v768
      %v913 = vpack.c.b16 %v772, %v769
      %v914 = vpack.c.b16 %v776, %v773
      %v915 = vpack.c.b16 %v777, %v774
      %v916 = vpack.c.b16 %v778, %v775
      %v917 = vpack.c.b16 %v782, %v779
      %v918 = vpack.c.b16 %v783, %v780
      %v919 = vpack.c.b16 %v784, %v781
      %v920 = vpack.c.b16 %v788, %v785
      %v921 = vpack.c.b16 %v789, %v786
      %v922 = vpack.c.b16 %v790, %v787
      %v923 = vpack.c.b16 %v794, %v791
      %v924 = vpack.c.b16 %v795, %v792
      %v925 = vpack.c.b16 %v796, %v793
      %v926 = vpack.c.b16 %v800, %v797
      %v927 = vpack.c.b16 %v801, %v798
      %v928 = vpack.c.b16 %v802, %v799
      %v929 = vpack.c.b16 %v806, %v803
      %v930 = vpack.c.b16 %v807, %v804
      %v931 = vpack.c.b16 %v808, %v805
      %v932 = vpack.c.b16 %v812, %v809
      %v933 = vpack.c.b16 %v813, %v810
      %v934 = vpack.c.b16 %v814, %v811
      %v935 = vpack.c.b16 %v818, %v815
      %v936 = vpack.c.b16 %v819, %v816
      %v937 = vpack.c.b16 %v820, %v817
      %v938 = vpack.c.b16 %v824, %v821
      %v939 = vpack.c.b16 %v825, %v822
      %v940 = vpack.c.b16 %v826, %v823
      %v941 = vpack.c.b16 %v830, %v827
      %v942 = vpack.c.b16 %v831, %v828
      %v943 = vpack.c.b16 %v832, %v829
      %v944 = vpack.c.b16 %v836, %v833
      %v945 = vpack.c.b16 %v837, %v834
      %v946 = vpack.c.b16 %v838, %v835
      %v947 = vpack.c.b16 %v842, %v839
      %v948 = vpack.c.b16 %v843, %v840
      %v949 = vpack.c.b16 %v844, %v841
      %v950 = vpack.c.b16 %v848, %v845
      %v951 = vpack.c.b16 %v849, %v846
      %v952 = vpack.c.b16 %v850, %v847
      %v953 = vpack.c.b16 %v854, %v851
      %v954 = vpack.c.b16 %v855, %v852
      %v955 = vpack.c.b16 %v856, %v853
      %v956 = vpack.c.b16 %v860, %v857
      %v957 = vpack.c.b16 %v861, %v858
      %v958 = vpack.c.b16 %v862, %v859
      %v1061 = vunpack.c.l.b16 %v505
      %v1062 = vunpack.c.l.b16 %v506
      %v1063 = vunpack.c.l.b16 %v507
      %v1064 = vunpack.c.l.b16 %v508
      %v1065 = vunpack.c.l.b16 %v509
      %v1066 = vunpack.c.l.b16 %v510
      %v1067 = vunpack.c.l.b16 %v511
      %v1068 = vunpack.c.l.b16 %v512
      %v1069 = vunpack.c.l.b16 %v513
      %v1070 = vunpack.c.l.b16 %v514
      %v1071 = vunpack.c.l.b16 %v515
      %v1072 = vunpack.c.l.b16 %v516
      %v1073 = vunpack.c.l.b16 %v517
      %v1074 = vunpack.c.l.b16 %v518
      %v1075 = vunpack.c.l.b16 %v519
      %v1076 = vunpack.c.l.b16 %v520
      %v1077 = vunpack.c.l.b16 %v521
      %v1078 = vunpack.c.l.b16 %v522
      %v1079 = vunpack.c.l.b16 %v523
      %v1080 = vunpack.c.l.b16 %v524
      %v1081 = vunpack.c.l.b16 %v525
      %v1082 = vunpack.c.l.b16 %v526
      %v1083 = vunpack.c.l.b16 %v527
      %v1084 = vunpack.c.l.b16 %v528
      %v1085 = vunpack.c.l.b16 %v529
      %v1086 = vunpack.c.l.b16 %v530
      %v1087 = vunpack.c.l.b16 %v531
      %v1088 = vunpack.c.l.b16 %v532
      %v1089 = vunpack.c.l.b16 %v533
      %v1090 = vunpack.c.l.b16 %v534
      %v1091 = vunpack.c.l.b16 %v535
      %v1092 = vunpack.c.l.b16 %v536
      %v1093 = vunpack.c.l.b16 %v537
      %v1094 = vunpack.c.l.b16 %v538
      %v1095 = vunpack.c.l.b16 %v539
      %v1096 = vunpack.c.l.b16 %v540
      %v1097 = vunpack.c.l.b16 %v541
      %v1098 = vunpack.c.l.b16 %v542
      %v1099 = vpack.c.b16 %v1062, %v1061
      %v1100 = vpack.c.b16 %v1064, %v1063
      %v1101 = vpack.c.b16 %v1066, %v1065
      %v1102 = vpack.c.b16 %v1068, %v1067
      %v1103 = vpack.c.b16 %v1070, %v1069
      %v1104 = vpack.c.b16 %v1072, %v1071
      %v1105 = vpack.c.b16 %v1074, %v1073
      %v1106 = vpack.c.b16 %v1076, %v1075
      %v1107 = vpack.c.b16 %v1078, %v1077
      %v1108 = vpack.c.b16 %v1080, %v1079
      %v1109 = vpack.c.b16 %v1082, %v1081
      %v1110 = vpack.c.b16 %v1084, %v1083
      %v1111 = vpack.c.b16 %v1086, %v1085
      %v1112 = vpack.c.b16 %v1088, %v1087
      %v1113 = vpack.c.b16 %v1090, %v1089
      %v1114 = vpack.c.b16 %v1092, %v1091
      %v1115 = vpack.c.b16 %v1094, %v1093
      %v1116 = vpack.c.b16 %v1096, %v1095
      %v1117 = vpack.c.b16 %v1098, %v1097
      %vm1136 = vcmask 359424
      %v1138 = vsel %vm1136, %v865, 0
      %v1141 = vsel %vm1136, %v868, 0
      %v1144 = vsel %vm1136, %v871, 0
      %v1147 = vsel %vm1136, %v874, 0
      %v1150 = vsel %vm1136, %v877, 0
      %v1153 = vsel %vm1136, %v880, 0
      %v1156 = vsel %vm1136, %v883, 0
      %v1159 = vsel %vm1136, %v886, 0
      %v1162 = vsel %vm1136, %v889, 0
      %v1165 = vsel %vm1136, %v892, 0
      %v1168 = vsel %vm1136, %v895, 0
      %v1171 = vsel %vm1136, %v898, 0
      %v1174 = vsel %vm1136, %v901, 0
      %v1177 = vsel %vm1136, %v904, 0
      %v1180 = vsel %vm1136, %v907, 0
      %v1183 = vsel %vm1136, %v910, 0
      %v1186 = vsel %vm1136, %v913, 0
      %v1189 = vsel %vm1136, %v916, 0
      %v1192 = vsel %vm1136, %v919, 0
      %v1195 = vsel %vm1136, %v922, 0
      %v1198 = vsel %vm1136, %v925, 0
      %v1201 = vsel %vm1136, %v928, 0
      %v1204 = vsel %vm1136, %v931, 0
      %v1207 = vsel %vm1136, %v934, 0
      %v1210 = vsel %vm1136, %v937, 0
      %v1213 = vsel %vm1136, %v940, 0
      %v1216 = vsel %vm1136, %v943, 0
      %v1219 = vsel %vm1136, %v946, 0
      %v1222 = vsel %vm1136, %v949, 0
      %v1225 = vsel %vm1136, %v952, 0
      %v1228 = vsel %vm1136, %v955, 0
      %v1231 = vsel %vm1136, %v958, 0
      %vm1233 = vcmask 1045504
      %v1235 = vsel %vm1233, %v1117, 0
      %1237 = vmatpush.bf16.msra.mxu0 %v1106
      %1238 = vmatpush.bf16.msra.mxu0 %v1105
      %1239 = vmatpush.bf16.msra.mxu0 %v1104
      %1240 = vmatpush.bf16.msra.mxu0 %v1103
      %1241 = vmatpush.bf16.msra.mxu0 %v1102
      %1242 = vmatpush.bf16.msra.mxu0 %v1101
      %1243 = vmatpush.bf16.msra.mxu0 %v1100
      %1244 = vmatpush.bf16.msra.mxu0 %v1099
      %1245 = vmatmul.bf16.gmra.mxu0 %v863
      %v1246 = vpop.f32.mrf.mxu0
      %v1247 = vadd.f32 0.0, %v1246
      %v1248 = vpop.f32.mrf.mxu0
      %v1249 = vadd.f32 0.0, %v1248
      %1250 = vmatmul.bf16.gmra.mxu0 %v866
      %v1251 = vpop.f32.mrf.mxu0
      %v1252 = vadd.f32 0.0, %v1251
      %v1253 = vpop.f32.mrf.mxu0
      %v1254 = vadd.f32 0.0, %v1253
      %1255 = vmatmul.bf16.gmra.mxu0 %v869
      %v1256 = vpop.f32.mrf.mxu0
      %v1257 = vadd.f32 0.0, %v1256
      %v1258 = vpop.f32.mrf.mxu0
      %v1259 = vadd.f32 0.0, %v1258
      %1260 = vmatmul.bf16.gmra.mxu0 %v872
      %v1261 = vpop.f32.mrf.mxu0
      %v1262 = vadd.f32 0.0, %v1261
      %v1263 = vpop.f32.mrf.mxu0
      %v1264 = vadd.f32 0.0, %v1263
      %1265 = vmatmul.bf16.gmra.mxu0 %v875
      %v1266 = vpop.f32.mrf.mxu0
      %v1267 = vadd.f32 0.0, %v1266
      %v1268 = vpop.f32.mrf.mxu0
      %v1269 = vadd.f32 0.0, %v1268
      %1270 = vmatmul.bf16.gmra.mxu0 %v878
      %v1271 = vpop.f32.mrf.mxu0
      %v1272 = vadd.f32 0.0, %v1271
      %v1273 = vpop.f32.mrf.mxu0
      %v1274 = vadd.f32 0.0, %v1273
      %1275 = vmatmul.bf16.gmra.mxu0 %v881
      %v1276 = vpop.f32.mrf.mxu0
      %v1277 = vadd.f32 0.0, %v1276
      %v1278 = vpop.f32.mrf.mxu0
      %v1279 = vadd.f32 0.0, %v1278
      %1280 = vmatmul.bf16.gmra.mxu0 %v884
      %v1281 = vpop.f32.mrf.mxu0
      %v1282 = vadd.f32 0.0, %v1281
      %v1283 = vpop.f32.mrf.mxu0
      %v1284 = vadd.f32 0.0, %v1283
      %1285 = vmatmul.bf16.gmra.mxu0 %v887
      %v1286 = vpop.f32.mrf.mxu0
      %v1287 = vadd.f32 0.0, %v1286
      %v1288 = vpop.f32.mrf.mxu0
      %v1289 = vadd.f32 0.0, %v1288
      %1290 = vmatmul.bf16.gmra.mxu0 %v890
      %v1291 = vpop.f32.mrf.mxu0
      %v1292 = vadd.f32 0.0, %v1291
      %v1293 = vpop.f32.mrf.mxu0
      %v1294 = vadd.f32 0.0, %v1293
      %1295 = vmatmul.bf16.gmra.mxu0 %v893
      %v1296 = vpop.f32.mrf.mxu0
      %v1297 = vadd.f32 0.0, %v1296
      %v1298 = vpop.f32.mrf.mxu0
      %v1299 = vadd.f32 0.0, %v1298
      %1300 = vmatmul.bf16.gmra.mxu0 %v896
      %v1301 = vpop.f32.mrf.mxu0
      %v1302 = vadd.f32 0.0, %v1301
      %v1303 = vpop.f32.mrf.mxu0
      %v1304 = vadd.f32 0.0, %v1303
      %1305 = vmatmul.bf16.gmra.mxu0 %v899
      %v1306 = vpop.f32.mrf.mxu0
      %v1307 = vadd.f32 0.0, %v1306
      %v1308 = vpop.f32.mrf.mxu0
      %v1309 = vadd.f32 0.0, %v1308
      %1310 = vmatmul.bf16.gmra.mxu0 %v902
      %v1311 = vpop.f32.mrf.mxu0
      %v1312 = vadd.f32 0.0, %v1311
      %v1313 = vpop.f32.mrf.mxu0
      %v1314 = vadd.f32 0.0, %v1313
      %1315 = vmatmul.bf16.gmra.mxu0 %v905
      %v1316 = vpop.f32.mrf.mxu0
      %v1317 = vadd.f32 0.0, %v1316
      %v1318 = vpop.f32.mrf.mxu0
      %v1319 = vadd.f32 0.0, %v1318
      %1320 = vmatmul.bf16.gmra.mxu0 %v908
      %v1321 = vpop.f32.mrf.mxu0
      %v1322 = vadd.f32 0.0, %v1321
      %v1323 = vpop.f32.mrf.mxu0
      %v1324 = vadd.f32 0.0, %v1323
      %1325 = vmatmul.bf16.gmra.mxu0 %v911
      %v1326 = vpop.f32.mrf.mxu0
      %v1327 = vadd.f32 0.0, %v1326
      %v1328 = vpop.f32.mrf.mxu0
      %v1329 = vadd.f32 0.0, %v1328
      %1330 = vmatmul.bf16.gmra.mxu0 %v914
      %v1331 = vpop.f32.mrf.mxu0
      %v1332 = vadd.f32 0.0, %v1331
      %v1333 = vpop.f32.mrf.mxu0
      %v1334 = vadd.f32 0.0, %v1333
      %1335 = vmatmul.bf16.gmra.mxu0 %v917
      %v1336 = vpop.f32.mrf.mxu0
      %v1337 = vadd.f32 0.0, %v1336
      %v1338 = vpop.f32.mrf.mxu0
      %v1339 = vadd.f32 0.0, %v1338
      %1340 = vmatmul.bf16.gmra.mxu0 %v920
      %v1341 = vpop.f32.mrf.mxu0
      %v1342 = vadd.f32 0.0, %v1341
      %v1343 = vpop.f32.mrf.mxu0
      %v1344 = vadd.f32 0.0, %v1343
      %1345 = vmatmul.bf16.gmra.mxu0 %v923
      %v1346 = vpop.f32.mrf.mxu0
      %v1347 = vadd.f32 0.0, %v1346
      %v1348 = vpop.f32.mrf.mxu0
      %v1349 = vadd.f32 0.0, %v1348
      %1350 = vmatmul.bf16.gmra.mxu0 %v926
      %v1351 = vpop.f32.mrf.mxu0
      %v1352 = vadd.f32 0.0, %v1351
      %v1353 = vpop.f32.mrf.mxu0
      %v1354 = vadd.f32 0.0, %v1353
      %1355 = vmatmul.bf16.gmra.mxu0 %v929
      %v1356 = vpop.f32.mrf.mxu0
      %v1357 = vadd.f32 0.0, %v1356
      %v1358 = vpop.f32.mrf.mxu0
      %v1359 = vadd.f32 0.0, %v1358
      %1360 = vmatmul.bf16.gmra.mxu0 %v932
      %v1361 = vpop.f32.mrf.mxu0
      %v1362 = vadd.f32 0.0, %v1361
      %v1363 = vpop.f32.mrf.mxu0
      %v1364 = vadd.f32 0.0, %v1363
      %1365 = vmatmul.bf16.gmra.mxu0 %v935
      %v1366 = vpop.f32.mrf.mxu0
      %v1367 = vadd.f32 0.0, %v1366
      %v1368 = vpop.f32.mrf.mxu0
      %v1369 = vadd.f32 0.0, %v1368
      %1370 = vmatmul.bf16.gmra.mxu0 %v938
      %v1371 = vpop.f32.mrf.mxu0
      %v1372 = vadd.f32 0.0, %v1371
      %v1373 = vpop.f32.mrf.mxu0
      %v1374 = vadd.f32 0.0, %v1373
      %1375 = vmatmul.bf16.gmra.mxu0 %v941
      %v1376 = vpop.f32.mrf.mxu0
      %v1377 = vadd.f32 0.0, %v1376
      %v1378 = vpop.f32.mrf.mxu0
      %v1379 = vadd.f32 0.0, %v1378
      %1380 = vmatmul.bf16.gmra.mxu0 %v944
      %v1381 = vpop.f32.mrf.mxu0
      %v1382 = vadd.f32 0.0, %v1381
      %v1383 = vpop.f32.mrf.mxu0
      %v1384 = vadd.f32 0.0, %v1383
      %1385 = vmatmul.bf16.gmra.mxu0 %v947
      %v1386 = vpop.f32.mrf.mxu0
      %v1387 = vadd.f32 0.0, %v1386
      %v1388 = vpop.f32.mrf.mxu0
      %v1389 = vadd.f32 0.0, %v1388
      %1390 = vmatmul.bf16.gmra.mxu0 %v950
      %v1391 = vpop.f32.mrf.mxu0
      %v1392 = vadd.f32 0.0, %v1391
      %v1393 = vpop.f32.mrf.mxu0
      %v1394 = vadd.f32 0.0, %v1393
      %1395 = vmatmul.bf16.gmra.mxu0 %v953
      %v1396 = vpop.f32.mrf.mxu0
      %v1397 = vadd.f32 0.0, %v1396
      %v1398 = vpop.f32.mrf.mxu0
      %v1399 = vadd.f32 0.0, %v1398
      %1400 = vmatmul.bf16.gmra.mxu0 %v956
      %v1401 = vpop.f32.mrf.mxu0
      %v1402 = vadd.f32 0.0, %v1401
      %v1403 = vpop.f32.mrf.mxu0
      %v1404 = vadd.f32 0.0, %v1403
      %1405 = vdwg.mxu0
      %1406 = vmatpush.bf16.msra.mxu0 %v1114
      %1407 = vmatpush.bf16.msra.mxu0 %v1113
      %1408 = vmatpush.bf16.msra.mxu0 %v1112
      %1409 = vmatpush.bf16.msra.mxu0 %v1111
      %1410 = vmatpush.bf16.msra.mxu0 %v1110
      %1411 = vmatpush.bf16.msra.mxu0 %v1109
      %1412 = vmatpush.bf16.msra.mxu0 %v1108
      %1413 = vmatpush.bf16.msra.mxu0 %v1107
      %1414 = vmatmul.bf16.gmra.mxu0 %v864
      %v1415 = vpop.f32.mrf.mxu0
      %v1416 = vadd.f32 %v1247, %v1415
      %v1417 = vpop.f32.mrf.mxu0
      %v1418 = vadd.f32 %v1249, %v1417
      %1419 = vmatmul.bf16.gmra.mxu0 %v867
      %v1420 = vpop.f32.mrf.mxu0
      %v1421 = vadd.f32 %v1252, %v1420
      %v1422 = vpop.f32.mrf.mxu0
      %v1423 = vadd.f32 %v1254, %v1422
      %1424 = vmatmul.bf16.gmra.mxu0 %v870
      %v1425 = vpop.f32.mrf.mxu0
      %v1426 = vadd.f32 %v1257, %v1425
      %v1427 = vpop.f32.mrf.mxu0
      %v1428 = vadd.f32 %v1259, %v1427
      %1429 = vmatmul.bf16.gmra.mxu0 %v873
      %v1430 = vpop.f32.mrf.mxu0
      %v1431 = vadd.f32 %v1262, %v1430
      %v1432 = vpop.f32.mrf.mxu0
      %v1433 = vadd.f32 %v1264, %v1432
      %1434 = vmatmul.bf16.gmra.mxu0 %v876
      %v1435 = vpop.f32.mrf.mxu0
      %v1436 = vadd.f32 %v1267, %v1435
      %v1437 = vpop.f32.mrf.mxu0
      %v1438 = vadd.f32 %v1269, %v1437
      %1439 = vmatmul.bf16.gmra.mxu0 %v879
      %v1440 = vpop.f32.mrf.mxu0
      %v1441 = vadd.f32 %v1272, %v1440
      %v1442 = vpop.f32.mrf.mxu0
      %v1443 = vadd.f32 %v1274, %v1442
      %1444 = vmatmul.bf16.gmra.mxu0 %v882
      %v1445 = vpop.f32.mrf.mxu0
      %v1446 = vadd.f32 %v1277, %v1445
      %v1447 = vpop.f32.mrf.mxu0
      %v1448 = vadd.f32 %v1279, %v1447
      %1449 = vmatmul.bf16.gmra.mxu0 %v885
      %v1450 = vpop.f32.mrf.mxu0
      %v1451 = vadd.f32 %v1282, %v1450
      %v1452 = vpop.f32.mrf.mxu0
      %v1453 = vadd.f32 %v1284, %v1452
      %1454 = vmatmul.bf16.gmra.mxu0 %v888
      %v1455 = vpop.f32.mrf.mxu0
      %v1456 = vadd.f32 %v1287, %v1455
      %v1457 = vpop.f32.mrf.mxu0
      %v1458 = vadd.f32 %v1289, %v1457
      %1459 = vmatmul.bf16.gmra.mxu0 %v891
      %v1460 = vpop.f32.mrf.mxu0
      %v1461 = vadd.f32 %v1292, %v1460
      %v1462 = vpop.f32.mrf.mxu0
      %v1463 = vadd.f32 %v1294, %v1462
      %1464 = vmatmul.bf16.gmra.mxu0 %v894
      %v1465 = vpop.f32.mrf.mxu0
      %v1466 = vadd.f32 %v1297, %v1465
      %v1467 = vpop.f32.mrf.mxu0
      %v1468 = vadd.f32 %v1299, %v1467
      %1469 = vmatmul.bf16.gmra.mxu0 %v897
      %v1470 = vpop.f32.mrf.mxu0
      %v1471 = vadd.f32 %v1302, %v1470
      %v1472 = vpop.f32.mrf.mxu0
      %v1473 = vadd.f32 %v1304, %v1472
      %1474 = vmatmul.bf16.gmra.mxu0 %v900
      %v1475 = vpop.f32.mrf.mxu0
      %v1476 = vadd.f32 %v1307, %v1475
      %v1477 = vpop.f32.mrf.mxu0
      %v1478 = vadd.f32 %v1309, %v1477
      %1479 = vmatmul.bf16.gmra.mxu0 %v903
      %v1480 = vpop.f32.mrf.mxu0
      %v1481 = vadd.f32 %v1312, %v1480
      %v1482 = vpop.f32.mrf.mxu0
      %v1483 = vadd.f32 %v1314, %v1482
      %1484 = vmatmul.bf16.gmra.mxu0 %v906
      %v1485 = vpop.f32.mrf.mxu0
      %v1486 = vadd.f32 %v1317, %v1485
      %v1487 = vpop.f32.mrf.mxu0
      %v1488 = vadd.f32 %v1319, %v1487
      %1489 = vmatmul.bf16.gmra.mxu0 %v909
      %v1490 = vpop.f32.mrf.mxu0
      %v1491 = vadd.f32 %v1322, %v1490
      %v1492 = vpop.f32.mrf.mxu0
      %v1493 = vadd.f32 %v1324, %v1492
      %1494 = vmatmul.bf16.gmra.mxu0 %v912
      %v1495 = vpop.f32.mrf.mxu0
      %v1496 = vadd.f32 %v1327, %v1495
      %v1497 = vpop.f32.mrf.mxu0
      %v1498 = vadd.f32 %v1329, %v1497
      %1499 = vmatmul.bf16.gmra.mxu0 %v915
      %v1500 = vpop.f32.mrf.mxu0
      %v1501 = vadd.f32 %v1332, %v1500
      %v1502 = vpop.f32.mrf.mxu0
      %v1503 = vadd.f32 %v1334, %v1502
      %1504 = vmatmul.bf16.gmra.mxu0 %v918
      %v1505 = vpop.f32.mrf.mxu0
      %v1506 = vadd.f32 %v1337, %v1505
      %v1507 = vpop.f32.mrf.mxu0
      %v1508 = vadd.f32 %v1339, %v1507
      %1509 = vmatmul.bf16.gmra.mxu0 %v921
      %v1510 = vpop.f32.mrf.mxu0
      %v1511 = vadd.f32 %v1342, %v1510
      %v1512 = vpop.f32.mrf.mxu0
      %v1513 = vadd.f32 %v1344, %v1512
      %1514 = vmatmul.bf16.gmra.mxu0 %v924
      %v1515 = vpop.f32.mrf.mxu0
      %v1516 = vadd.f32 %v1347, %v1515
      %v1517 = vpop.f32.mrf.mxu0
      %v1518 = vadd.f32 %v1349, %v1517
      %1519 = vmatmul.bf16.gmra.mxu0 %v927
      %v1520 = vpop.f32.mrf.mxu0
      %v1521 = vadd.f32 %v1352, %v1520
      %v1522 = vpop.f32.mrf.mxu0
      %v1523 = vadd.f32 %v1354, %v1522
      %1524 = vmatmul.bf16.gmra.mxu0 %v930
      %v1525 = vpop.f32.mrf.mxu0
      %v1526 = vadd.f32 %v1357, %v1525
      %v1527 = vpop.f32.mrf.mxu0
      %v1528 = vadd.f32 %v1359, %v1527
      %1529 = vmatmul.bf16.gmra.mxu0 %v933
      %v1530 = vpop.f32.mrf.mxu0
      %v1531 = vadd.f32 %v1362, %v1530
      %v1532 = vpop.f32.mrf.mxu0
      %v1533 = vadd.f32 %v1364, %v1532
      %1534 = vmatmul.bf16.gmra.mxu0 %v936
      %v1535 = vpop.f32.mrf.mxu0
      %v1536 = vadd.f32 %v1367, %v1535
      %v1537 = vpop.f32.mrf.mxu0
      %v1538 = vadd.f32 %v1369, %v1537
      %1539 = vmatmul.bf16.gmra.mxu0 %v939
      %v1540 = vpop.f32.mrf.mxu0
      %v1541 = vadd.f32 %v1372, %v1540
      %v1542 = vpop.f32.mrf.mxu0
      %v1543 = vadd.f32 %v1374, %v1542
      %1544 = vmatmul.bf16.gmra.mxu0 %v942
      %v1545 = vpop.f32.mrf.mxu0
      %v1546 = vadd.f32 %v1377, %v1545
      %v1547 = vpop.f32.mrf.mxu0
      %v1548 = vadd.f32 %v1379, %v1547
      %1549 = vmatmul.bf16.gmra.mxu0 %v945
      %v1550 = vpop.f32.mrf.mxu0
      %v1551 = vadd.f32 %v1382, %v1550
      %v1552 = vpop.f32.mrf.mxu0
      %v1553 = vadd.f32 %v1384, %v1552
      %1554 = vmatmul.bf16.gmra.mxu0 %v948
      %v1555 = vpop.f32.mrf.mxu0
      %v1556 = vadd.f32 %v1387, %v1555
      %v1557 = vpop.f32.mrf.mxu0
      %v1558 = vadd.f32 %v1389, %v1557
      %1559 = vmatmul.bf16.gmra.mxu0 %v951
      %v1560 = vpop.f32.mrf.mxu0
      %v1561 = vadd.f32 %v1392, %v1560
      %v1562 = vpop.f32.mrf.mxu0
      %v1563 = vadd.f32 %v1394, %v1562
      %1564 = vmatmul.bf16.gmra.mxu0 %v954
      %v1565 = vpop.f32.mrf.mxu0
      %v1566 = vadd.f32 %v1397, %v1565
      %v1567 = vpop.f32.mrf.mxu0
      %v1568 = vadd.f32 %v1399, %v1567
      %1569 = vmatmul.bf16.gmra.mxu0 %v957
      %v1570 = vpop.f32.mrf.mxu0
      %v1571 = vadd.f32 %v1402, %v1570
      %v1572 = vpop.f32.mrf.mxu0
      %v1573 = vadd.f32 %v1404, %v1572
      %1574 = vdwg.mxu0
      %1575 = vmatpush.bf16.msra.mxu0 0
      %1576 = vmatpush.bf16.msra.mxu0 0
      %1577 = vmatpush.bf16.msra.mxu0 0
      %1578 = vmatpush.bf16.msra.mxu0 0
      %1579 = vmatpush.bf16.msra.mxu0 0
      %1580 = vmatpush.bf16.msra.mxu0 %v1235
      %1581 = vmatpush.bf16.msra.mxu0 %v1116
      %1582 = vmatpush.bf16.msra.mxu0 %v1115
      %1583 = vmatmul.bf16.gmra.mxu0 %v1138
      %v1584 = vpop.f32.mrf.mxu0
      %v1585 = vadd.f32 %v1416, %v1584
      %v1586 = vpop.f32.mrf.mxu0
      %v1587 = vadd.f32 %v1418, %v1586
      %1588 = vmatmul.bf16.gmra.mxu0 %v1141
      %v1589 = vpop.f32.mrf.mxu0
      %v1590 = vadd.f32 %v1421, %v1589
      %v1591 = vpop.f32.mrf.mxu0
      %v1592 = vadd.f32 %v1423, %v1591
      %1593 = vmatmul.bf16.gmra.mxu0 %v1144
      %v1594 = vpop.f32.mrf.mxu0
      %v1595 = vadd.f32 %v1426, %v1594
      %v1596 = vpop.f32.mrf.mxu0
      %v1597 = vadd.f32 %v1428, %v1596
      %1598 = vmatmul.bf16.gmra.mxu0 %v1147
      %v1599 = vpop.f32.mrf.mxu0
      %v1600 = vadd.f32 %v1431, %v1599
      %v1601 = vpop.f32.mrf.mxu0
      %v1602 = vadd.f32 %v1433, %v1601
      %1603 = vmatmul.bf16.gmra.mxu0 %v1150
      %v1604 = vpop.f32.mrf.mxu0
      %v1605 = vadd.f32 %v1436, %v1604
      %v1606 = vpop.f32.mrf.mxu0
      %v1607 = vadd.f32 %v1438, %v1606
      %1608 = vmatmul.bf16.gmra.mxu0 %v1153
      %v1609 = vpop.f32.mrf.mxu0
      %v1610 = vadd.f32 %v1441, %v1609
      %v1611 = vpop.f32.mrf.mxu0
      %v1612 = vadd.f32 %v1443, %v1611
      %1613 = vmatmul.bf16.gmra.mxu0 %v1156
      %v1614 = vpop.f32.mrf.mxu0
      %v1615 = vadd.f32 %v1446, %v1614
      %v1616 = vpop.f32.mrf.mxu0
      %v1617 = vadd.f32 %v1448, %v1616
      %1618 = vmatmul.bf16.gmra.mxu0 %v1159
      %v1619 = vpop.f32.mrf.mxu0
      %v1620 = vadd.f32 %v1451, %v1619
      %v1621 = vpop.f32.mrf.mxu0
      %v1622 = vadd.f32 %v1453, %v1621
      %1623 = vmatmul.bf16.gmra.mxu0 %v1162
      %v1624 = vpop.f32.mrf.mxu0
      %v1625 = vadd.f32 %v1456, %v1624
      %v1626 = vpop.f32.mrf.mxu0
      %v1627 = vadd.f32 %v1458, %v1626
      %1628 = vmatmul.bf16.gmra.mxu0 %v1165
      %v1629 = vpop.f32.mrf.mxu0
      %v1630 = vadd.f32 %v1461, %v1629
      %v1631 = vpop.f32.mrf.mxu0
      %v1632 = vadd.f32 %v1463, %v1631
      %1633 = vmatmul.bf16.gmra.mxu0 %v1168
      %v1634 = vpop.f32.mrf.mxu0
      %v1635 = vadd.f32 %v1466, %v1634
      %v1636 = vpop.f32.mrf.mxu0
      %v1637 = vadd.f32 %v1468, %v1636
      %1638 = vmatmul.bf16.gmra.mxu0 %v1171
      %v1639 = vpop.f32.mrf.mxu0
      %v1640 = vadd.f32 %v1471, %v1639
      %v1641 = vpop.f32.mrf.mxu0
      %v1642 = vadd.f32 %v1473, %v1641
      %1643 = vmatmul.bf16.gmra.mxu0 %v1174
      %v1644 = vpop.f32.mrf.mxu0
      %v1645 = vadd.f32 %v1476, %v1644
      %v1646 = vpop.f32.mrf.mxu0
      %v1647 = vadd.f32 %v1478, %v1646
      %1648 = vmatmul.bf16.gmra.mxu0 %v1177
      %v1649 = vpop.f32.mrf.mxu0
      %v1650 = vadd.f32 %v1481, %v1649
      %v1651 = vpop.f32.mrf.mxu0
      %v1652 = vadd.f32 %v1483, %v1651
      %1653 = vmatmul.bf16.gmra.mxu0 %v1180
      %v1654 = vpop.f32.mrf.mxu0
      %v1655 = vadd.f32 %v1486, %v1654
      %v1656 = vpop.f32.mrf.mxu0
      %v1657 = vadd.f32 %v1488, %v1656
      %1658 = vmatmul.bf16.gmra.mxu0 %v1183
      %v1659 = vpop.f32.mrf.mxu0
      %v1660 = vadd.f32 %v1491, %v1659
      %v1661 = vpop.f32.mrf.mxu0
      %v1662 = vadd.f32 %v1493, %v1661
      %1663 = vmatmul.bf16.gmra.mxu0 %v1186
      %v1664 = vpop.f32.mrf.mxu0
      %v1665 = vadd.f32 %v1496, %v1664
      %v1666 = vpop.f32.mrf.mxu0
      %v1667 = vadd.f32 %v1498, %v1666
      %1668 = vmatmul.bf16.gmra.mxu0 %v1189
      %v1669 = vpop.f32.mrf.mxu0
      %v1670 = vadd.f32 %v1501, %v1669
      %v1671 = vpop.f32.mrf.mxu0
      %v1672 = vadd.f32 %v1503, %v1671
      %1673 = vmatmul.bf16.gmra.mxu0 %v1192
      %v1674 = vpop.f32.mrf.mxu0
      %v1675 = vadd.f32 %v1506, %v1674
      %v1676 = vpop.f32.mrf.mxu0
      %v1677 = vadd.f32 %v1508, %v1676
      %1678 = vmatmul.bf16.gmra.mxu0 %v1195
      %v1679 = vpop.f32.mrf.mxu0
      %v1680 = vadd.f32 %v1511, %v1679
      %v1681 = vpop.f32.mrf.mxu0
      %v1682 = vadd.f32 %v1513, %v1681
      %1683 = vmatmul.bf16.gmra.mxu0 %v1198
      %v1684 = vpop.f32.mrf.mxu0
      %v1685 = vadd.f32 %v1516, %v1684
      %v1686 = vpop.f32.mrf.mxu0
      %v1687 = vadd.f32 %v1518, %v1686
      %1688 = vmatmul.bf16.gmra.mxu0 %v1201
      %v1689 = vpop.f32.mrf.mxu0
      %v1690 = vadd.f32 %v1521, %v1689
      %v1691 = vpop.f32.mrf.mxu0
      %v1692 = vadd.f32 %v1523, %v1691
      %1693 = vmatmul.bf16.gmra.mxu0 %v1204
      %v1694 = vpop.f32.mrf.mxu0
      %v1695 = vadd.f32 %v1526, %v1694
      %v1696 = vpop.f32.mrf.mxu0
      %v1697 = vadd.f32 %v1528, %v1696
      %1698 = vmatmul.bf16.gmra.mxu0 %v1207
      %v1699 = vpop.f32.mrf.mxu0
      %v1700 = vadd.f32 %v1531, %v1699
      %v1701 = vpop.f32.mrf.mxu0
      %v1702 = vadd.f32 %v1533, %v1701
      %1703 = vmatmul.bf16.gmra.mxu0 %v1210
      %v1704 = vpop.f32.mrf.mxu0
      %v1705 = vadd.f32 %v1536, %v1704
      %v1706 = vpop.f32.mrf.mxu0
      %v1707 = vadd.f32 %v1538, %v1706
      %1708 = vmatmul.bf16.gmra.mxu0 %v1213
      %v1709 = vpop.f32.mrf.mxu0
      %v1710 = vadd.f32 %v1541, %v1709
      %v1711 = vpop.f32.mrf.mxu0
      %v1712 = vadd.f32 %v1543, %v1711
      %1713 = vmatmul.bf16.gmra.mxu0 %v1216
      %v1714 = vpop.f32.mrf.mxu0
      %v1715 = vadd.f32 %v1546, %v1714
      %v1716 = vpop.f32.mrf.mxu0
      %v1717 = vadd.f32 %v1548, %v1716
      %1718 = vmatmul.bf16.gmra.mxu0 %v1219
      %v1719 = vpop.f32.mrf.mxu0
      %v1720 = vadd.f32 %v1551, %v1719
      %v1721 = vpop.f32.mrf.mxu0
      %v1722 = vadd.f32 %v1553, %v1721
      %1723 = vmatmul.bf16.gmra.mxu0 %v1222
      %v1724 = vpop.f32.mrf.mxu0
      %v1725 = vadd.f32 %v1556, %v1724
      %v1726 = vpop.f32.mrf.mxu0
      %v1727 = vadd.f32 %v1558, %v1726
      %1728 = vmatmul.bf16.gmra.mxu0 %v1225
      %v1729 = vpop.f32.mrf.mxu0
      %v1730 = vadd.f32 %v1561, %v1729
      %v1731 = vpop.f32.mrf.mxu0
      %v1732 = vadd.f32 %v1563, %v1731
      %1733 = vmatmul.bf16.gmra.mxu0 %v1228
      %v1734 = vpop.f32.mrf.mxu0
      %v1735 = vadd.f32 %v1566, %v1734
      %v1736 = vpop.f32.mrf.mxu0
      %v1737 = vadd.f32 %v1568, %v1736
      %1738 = vmatmul.bf16.gmra.mxu0 %v1231
      %v1739 = vpop.f32.mrf.mxu0
      %v1740 = vadd.f32 %v1571, %v1739
      %v1741 = vpop.f32.mrf.mxu0
      %v1742 = vadd.f32 %v1573, %v1741
      %1743 = vdwg.mxu0
      %1808 = vrot.lane.b32.xlu0 %v1585, 73
      %v1809 = vpop.permute.xlu0 %1808
      %1810 = vrot.lane.b32.xlu0 %v1587, 73
      %v1811 = vpop.permute.xlu0 %1810
      %1812 = vrot.lane.b32.xlu0 %v1590, 73
      %v1813 = vpop.permute.xlu0 %1812
      %1814 = vrot.lane.b32.xlu0 %v1592, 73
      %v1815 = vpop.permute.xlu0 %1814
      %1816 = vrot.lane.b32.xlu0 %v1595, 73
      %v1817 = vpop.permute.xlu0 %1816
      %1818 = vrot.lane.b32.xlu0 %v1597, 73
      %v1819 = vpop.permute.xlu0 %1818
      %1820 = vrot.lane.b32.xlu0 %v1600, 73
      %v1821 = vpop.permute.xlu0 %1820
      %1822 = vrot.lane.b32.xlu0 %v1602, 73
      %v1823 = vpop.permute.xlu0 %1822
      %1824 = vrot.lane.b32.xlu0 %v1605, 73
      %v1825 = vpop.permute.xlu0 %1824
      %1826 = vrot.lane.b32.xlu0 %v1607, 73
      %v1827 = vpop.permute.xlu0 %1826
      %1828 = vrot.lane.b32.xlu0 %v1610, 73
      %v1829 = vpop.permute.xlu0 %1828
      %1830 = vrot.lane.b32.xlu0 %v1612, 73
      %v1831 = vpop.permute.xlu0 %1830
      %1832 = vrot.lane.b32.xlu0 %v1615, 73
      %v1833 = vpop.permute.xlu0 %1832
      %1834 = vrot.lane.b32.xlu0 %v1617, 73
      %v1835 = vpop.permute.xlu0 %1834
      %1836 = vrot.lane.b32.xlu0 %v1620, 73
      %v1837 = vpop.permute.xlu0 %1836
      %1838 = vrot.lane.b32.xlu0 %v1622, 73
      %v1839 = vpop.permute.xlu0 %1838
      %1840 = vrot.lane.b32.xlu0 %v1625, 73
      %v1841 = vpop.permute.xlu0 %1840
      %1842 = vrot.lane.b32.xlu0 %v1627, 73
      %v1843 = vpop.permute.xlu0 %1842
      %1844 = vrot.lane.b32.xlu0 %v1630, 73
      %v1845 = vpop.permute.xlu0 %1844
      %1846 = vrot.lane.b32.xlu0 %v1632, 73
      %v1847 = vpop.permute.xlu0 %1846
      %1848 = vrot.lane.b32.xlu0 %v1635, 73
      %v1849 = vpop.permute.xlu0 %1848
      %1850 = vrot.lane.b32.xlu0 %v1637, 73
      %v1851 = vpop.permute.xlu0 %1850
      %1852 = vrot.lane.b32.xlu0 %v1640, 73
      %v1853 = vpop.permute.xlu0 %1852
      %1854 = vrot.lane.b32.xlu0 %v1642, 73
      %v1855 = vpop.permute.xlu0 %1854
      %1856 = vrot.lane.b32.xlu0 %v1645, 73
      %v1857 = vpop.permute.xlu0 %1856
      %1858 = vrot.lane.b32.xlu0 %v1647, 73
      %v1859 = vpop.permute.xlu0 %1858
      %1860 = vrot.lane.b32.xlu0 %v1650, 73
      %v1861 = vpop.permute.xlu0 %1860
      %1862 = vrot.lane.b32.xlu0 %v1652, 73
      %v1863 = vpop.permute.xlu0 %1862
      %1864 = vrot.lane.b32.xlu0 %v1655, 73
      %v1865 = vpop.permute.xlu0 %1864
      %1866 = vrot.lane.b32.xlu0 %v1657, 73
      %v1867 = vpop.permute.xlu0 %1866
      %1868 = vrot.lane.b32.xlu0 %v1660, 73
      %v1869 = vpop.permute.xlu0 %1868
      %1870 = vrot.lane.b32.xlu0 %v1662, 73
      %v1871 = vpop.permute.xlu0 %1870
      %1872 = vrot.lane.b32.xlu0 %v1665, 73
      %v1873 = vpop.permute.xlu0 %1872
      %1874 = vrot.lane.b32.xlu0 %v1667, 73
      %v1875 = vpop.permute.xlu0 %1874
      %1876 = vrot.lane.b32.xlu0 %v1670, 73
      %v1877 = vpop.permute.xlu0 %1876
      %1878 = vrot.lane.b32.xlu0 %v1672, 73
      %v1879 = vpop.permute.xlu0 %1878
      %1880 = vrot.lane.b32.xlu0 %v1675, 73
      %v1881 = vpop.permute.xlu0 %1880
      %1882 = vrot.lane.b32.xlu0 %v1677, 73
      %v1883 = vpop.permute.xlu0 %1882
      %1884 = vrot.lane.b32.xlu0 %v1680, 73
      %v1885 = vpop.permute.xlu0 %1884
      %1886 = vrot.lane.b32.xlu0 %v1682, 73
      %v1887 = vpop.permute.xlu0 %1886
      %1888 = vrot.lane.b32.xlu0 %v1685, 73
      %v1889 = vpop.permute.xlu0 %1888
      %1890 = vrot.lane.b32.xlu0 %v1687, 73
      %v1891 = vpop.permute.xlu0 %1890
      %1892 = vrot.lane.b32.xlu0 %v1690, 73
      %v1893 = vpop.permute.xlu0 %1892
      %1894 = vrot.lane.b32.xlu0 %v1692, 73
      %v1895 = vpop.permute.xlu0 %1894
      %1896 = vrot.lane.b32.xlu0 %v1695, 73
      %v1897 = vpop.permute.xlu0 %1896
      %1898 = vrot.lane.b32.xlu0 %v1697, 73
      %v1899 = vpop.permute.xlu0 %1898
      %1900 = vrot.lane.b32.xlu0 %v1700, 73
      %v1901 = vpop.permute.xlu0 %1900
      %1902 = vrot.lane.b32.xlu0 %v1702, 73
      %v1903 = vpop.permute.xlu0 %1902
      %1904 = vrot.lane.b32.xlu0 %v1705, 73
      %v1905 = vpop.permute.xlu0 %1904
      %1906 = vrot.lane.b32.xlu0 %v1707, 73
      %v1907 = vpop.permute.xlu0 %1906
      %1908 = vrot.lane.b32.xlu0 %v1710, 73
      %v1909 = vpop.permute.xlu0 %1908
      %1910 = vrot.lane.b32.xlu0 %v1712, 73
      %v1911 = vpop.permute.xlu0 %1910
      %1912 = vrot.lane.b32.xlu0 %v1715, 73
      %v1913 = vpop.permute.xlu0 %1912
      %1914 = vrot.lane.b32.xlu0 %v1717, 73
      %v1915 = vpop.permute.xlu0 %1914
      %1916 = vrot.lane.b32.xlu0 %v1720, 73
      %v1917 = vpop.permute.xlu0 %1916
      %1918 = vrot.lane.b32.xlu0 %v1722, 73
      %v1919 = vpop.permute.xlu0 %1918
      %1920 = vrot.lane.b32.xlu0 %v1725, 73
      %v1921 = vpop.permute.xlu0 %1920
      %1922 = vrot.lane.b32.xlu0 %v1727, 73
      %v1923 = vpop.permute.xlu0 %1922
      %1924 = vrot.lane.b32.xlu0 %v1730, 73
      %v1925 = vpop.permute.xlu0 %1924
      %1926 = vrot.lane.b32.xlu0 %v1732, 73
      %v1927 = vpop.permute.xlu0 %1926
      %1928 = vrot.lane.b32.xlu0 %v1735, 73
      %v1929 = vpop.permute.xlu0 %1928
      %1930 = vrot.lane.b32.xlu0 %v1737, 73
      %v1931 = vpop.permute.xlu0 %1930
      %1932 = vrot.lane.b32.xlu0 %v1740, 73
      %v1933 = vpop.permute.xlu0 %1932
      %1934 = vrot.lane.b32.xlu0 %v1742, 73
      %v1935 = vpop.permute.xlu0 %1934
      %v2000 = vrot.slane %v1809, 7
      %v2001 = vrot.slane %v1811, 7
      %v2002 = vrot.slane %v1813, 7
      %v2003 = vrot.slane %v1815, 7
      %v2004 = vrot.slane %v1817, 7
      %v2005 = vrot.slane %v1819, 7
      %v2006 = vrot.slane %v1821, 7
      %v2007 = vrot.slane %v1823, 7
      %v2008 = vrot.slane %v1825, 7
      %v2009 = vrot.slane %v1827, 7
      %v2010 = vrot.slane %v1829, 7
      %v2011 = vrot.slane %v1831, 7
      %v2012 = vrot.slane %v1833, 7
      %v2013 = vrot.slane %v1835, 7
      %v2014 = vrot.slane %v1837, 7
      %v2015 = vrot.slane %v1839, 7
      %v2016 = vrot.slane %v1841, 7
      %v2017 = vrot.slane %v1843, 7
      %v2018 = vrot.slane %v1845, 7
      %v2019 = vrot.slane %v1847, 7
      %v2020 = vrot.slane %v1849, 7
      %v2021 = vrot.slane %v1851, 7
      %v2022 = vrot.slane %v1853, 7
      %v2023 = vrot.slane %v1855, 7
      %v2024 = vrot.slane %v1857, 7
      %v2025 = vrot.slane %v1859, 7
      %v2026 = vrot.slane %v1861, 7
      %v2027 = vrot.slane %v1863, 7
      %v2028 = vrot.slane %v1865, 7
      %v2029 = vrot.slane %v1867, 7
      %v2030 = vrot.slane %v1869, 7
      %v2031 = vrot.slane %v1871, 7
      %v2032 = vrot.slane %v1873, 7
      %v2033 = vrot.slane %v1875, 7
      %v2034 = vrot.slane %v1877, 7
      %v2035 = vrot.slane %v1879, 7
      %v2036 = vrot.slane %v1881, 7
      %v2037 = vrot.slane %v1883, 7
      %v2038 = vrot.slane %v1885, 7
      %v2039 = vrot.slane %v1887, 7
      %v2040 = vrot.slane %v1889, 7
      %v2041 = vrot.slane %v1891, 7
      %v2042 = vrot.slane %v1893, 7
      %v2043 = vrot.slane %v1895, 7
      %v2044 = vrot.slane %v1897, 7
      %v2045 = vrot.slane %v1899, 7
      %v2046 = vrot.slane %v1901, 7
      %v2047 = vrot.slane %v1903, 7
      %v2048 = vrot.slane %v1905, 7
      %v2049 = vrot.slane %v1907, 7
      %v2050 = vrot.slane %v1909, 7
      %v2051 = vrot.slane %v1911, 7
      %v2052 = vrot.slane %v1913, 7
      %v2053 = vrot.slane %v1915, 7
      %v2054 = vrot.slane %v1917, 7
      %v2055 = vrot.slane %v1919, 7
      %v2056 = vrot.slane %v1921, 7
      %v2057 = vrot.slane %v1923, 7
      %v2058 = vrot.slane %v1925, 7
      %v2059 = vrot.slane %v1927, 7
      %v2060 = vrot.slane %v1929, 7
      %v2061 = vrot.slane %v1931, 7
      %v2062 = vrot.slane %v1933, 7
      %v2063 = vrot.slane %v1935, 7
      %v2064 = vlaneseq
      %v2065 = vshrl.u32 %v2064, 7
      %vm2066 = vcmp.lt.s32.totalorder %v2065, 1
      %v2067 = vsel %vm2066, %v2062, %v2063
      %v2068 = vsel %vm2066, %v2061, %v2062
      %v2069 = vsel %vm2066, %v2060, %v2061
      %v2070 = vsel %vm2066, %v2059, %v2060
      %v2071 = vsel %vm2066, %v2058, %v2059
      %v2072 = vsel %vm2066, %v2057, %v2058
      %v2073 = vsel %vm2066, %v2056, %v2057
      %v2074 = vsel %vm2066, %v2055, %v2056
      %v2075 = vsel %vm2066, %v2054, %v2055
      %v2076 = vsel %vm2066, %v2053, %v2054
      %v2077 = vsel %vm2066, %v2052, %v2053
      %v2078 = vsel %vm2066, %v2051, %v2052
      %v2079 = vsel %vm2066, %v2050, %v2051
      %v2080 = vsel %vm2066, %v2049, %v2050
      %v2081 = vsel %vm2066, %v2048, %v2049
      %v2082 = vsel %vm2066, %v2047, %v2048
      %v2083 = vsel %vm2066, %v2046, %v2047
      %v2084 = vsel %vm2066, %v2045, %v2046
      %v2085 = vsel %vm2066, %v2044, %v2045
      %v2086 = vsel %vm2066, %v2043, %v2044
      %v2087 = vsel %vm2066, %v2042, %v2043
      %v2088 = vsel %vm2066, %v2041, %v2042
      %v2089 = vsel %vm2066, %v2040, %v2041
      %v2090 = vsel %vm2066, %v2039, %v2040
      %v2091 = vsel %vm2066, %v2038, %v2039
      %v2092 = vsel %vm2066, %v2037, %v2038
      %v2093 = vsel %vm2066, %v2036, %v2037
      %v2094 = vsel %vm2066, %v2035, %v2036
      %v2095 = vsel %vm2066, %v2034, %v2035
      %v2096 = vsel %vm2066, %v2033, %v2034
      %v2097 = vsel %vm2066, %v2032, %v2033
      %v2098 = vsel %vm2066, %v2031, %v2032
      %v2099 = vsel %vm2066, %v2030, %v2031
      %v2100 = vsel %vm2066, %v2029, %v2030
      %v2101 = vsel %vm2066, %v2028, %v2029
      %v2102 = vsel %vm2066, %v2027, %v2028
      %v2103 = vsel %vm2066, %v2026, %v2027
      %v2104 = vsel %vm2066, %v2025, %v2026
      %v2105 = vsel %vm2066, %v2024, %v2025
      %v2106 = vsel %vm2066, %v2023, %v2024
      %v2107 = vsel %vm2066, %v2022, %v2023
      %v2108 = vsel %vm2066, %v2021, %v2022
      %v2109 = vsel %vm2066, %v2020, %v2021
      %v2110 = vsel %vm2066, %v2019, %v2020
      %v2111 = vsel %vm2066, %v2018, %v2019
      %v2112 = vsel %vm2066, %v2017, %v2018
      %v2113 = vsel %vm2066, %v2016, %v2017
      %v2114 = vsel %vm2066, %v2015, %v2016
      %v2115 = vsel %vm2066, %v2014, %v2015
      %v2116 = vsel %vm2066, %v2013, %v2014
      %v2117 = vsel %vm2066, %v2012, %v2013
      %v2118 = vsel %vm2066, %v2011, %v2012
      %v2119 = vsel %vm2066, %v2010, %v2011
      %v2120 = vsel %vm2066, %v2009, %v2010
      %v2121 = vsel %vm2066, %v2008, %v2009
      %v2122 = vsel %vm2066, %v2007, %v2008
      %v2123 = vsel %vm2066, %v2006, %v2007
      %v2124 = vsel %vm2066, %v2005, %v2006
      %v2125 = vsel %vm2066, %v2004, %v2005
      %v2126 = vsel %vm2066, %v2003, %v2004
      %v2127 = vsel %vm2066, %v2002, %v2003
      %v2128 = vsel %vm2066, %v2001, %v2002
      %v2129 = vsel %vm2066, %v2000, %v2001
      %v2130 = vsel %vm2066, %v2063, %v2000
      %2195 = vrot.lane.b32.xlu0 %v2130, 50
      %v2196 = vpop.permute.xlu0 %2195
      %2197 = vrot.lane.b32.xlu0 %v2129, 50
      %v2198 = vpop.permute.xlu0 %2197
      %2199 = vrot.lane.b32.xlu0 %v2128, 50
      %v2200 = vpop.permute.xlu0 %2199
      %2201 = vrot.lane.b32.xlu0 %v2127, 50
      %v2202 = vpop.permute.xlu0 %2201
      %2203 = vrot.lane.b32.xlu0 %v2126, 50
      %v2204 = vpop.permute.xlu0 %2203
      %2205 = vrot.lane.b32.xlu0 %v2125, 50
      %v2206 = vpop.permute.xlu0 %2205
      %2207 = vrot.lane.b32.xlu0 %v2124, 50
      %v2208 = vpop.permute.xlu0 %2207
      %2209 = vrot.lane.b32.xlu0 %v2123, 50
      %v2210 = vpop.permute.xlu0 %2209
      %2211 = vrot.lane.b32.xlu0 %v2122, 50
      %v2212 = vpop.permute.xlu0 %2211
      %2213 = vrot.lane.b32.xlu0 %v2121, 50
      %v2214 = vpop.permute.xlu0 %2213
      %2215 = vrot.lane.b32.xlu0 %v2120, 50
      %v2216 = vpop.permute.xlu0 %2215
      %2217 = vrot.lane.b32.xlu0 %v2119, 50
      %v2218 = vpop.permute.xlu0 %2217
      %2219 = vrot.lane.b32.xlu0 %v2118, 50
      %v2220 = vpop.permute.xlu0 %2219
      %2221 = vrot.lane.b32.xlu0 %v2117, 50
      %v2222 = vpop.permute.xlu0 %2221
      %2223 = vrot.lane.b32.xlu0 %v2116, 50
      %v2224 = vpop.permute.xlu0 %2223
      %2225 = vrot.lane.b32.xlu0 %v2115, 50
      %v2226 = vpop.permute.xlu0 %2225
      %2227 = vrot.lane.b32.xlu0 %v2114, 50
      %v2228 = vpop.permute.xlu0 %2227
      %2229 = vrot.lane.b32.xlu0 %v2113, 50
      %v2230 = vpop.permute.xlu0 %2229
      %2231 = vrot.lane.b32.xlu0 %v2112, 50
      %v2232 = vpop.permute.xlu0 %2231
      %2233 = vrot.lane.b32.xlu0 %v2111, 50
      %v2234 = vpop.permute.xlu0 %2233
      %2235 = vrot.lane.b32.xlu0 %v2110, 50
      %v2236 = vpop.permute.xlu0 %2235
      %2237 = vrot.lane.b32.xlu0 %v2109, 50
      %v2238 = vpop.permute.xlu0 %2237
      %2239 = vrot.lane.b32.xlu0 %v2108, 50
      %v2240 = vpop.permute.xlu0 %2239
      %2241 = vrot.lane.b32.xlu0 %v2107, 50
      %v2242 = vpop.permute.xlu0 %2241
      %2243 = vrot.lane.b32.xlu0 %v2106, 50
      %v2244 = vpop.permute.xlu0 %2243
      %2245 = vrot.lane.b32.xlu0 %v2105, 50
      %v2246 = vpop.permute.xlu0 %2245
      %2247 = vrot.lane.b32.xlu0 %v2104, 50
      %v2248 = vpop.permute.xlu0 %2247
      %2249 = vrot.lane.b32.xlu0 %v2103, 50
      %v2250 = vpop.permute.xlu0 %2249
      %2251 = vrot.lane.b32.xlu0 %v2102, 50
      %v2252 = vpop.permute.xlu0 %2251
      %2253 = vrot.lane.b32.xlu0 %v2101, 50
      %v2254 = vpop.permute.xlu0 %2253
      %2255 = vrot.lane.b32.xlu0 %v2100, 50
      %v2256 = vpop.permute.xlu0 %2255
      %2257 = vrot.lane.b32.xlu0 %v2099, 50
      %v2258 = vpop.permute.xlu0 %2257
      %2259 = vrot.lane.b32.xlu0 %v2098, 50
      %v2260 = vpop.permute.xlu0 %2259
      %2261 = vrot.lane.b32.xlu0 %v2097, 50
      %v2262 = vpop.permute.xlu0 %2261
      %2263 = vrot.lane.b32.xlu0 %v2096, 50
      %v2264 = vpop.permute.xlu0 %2263
      %2265 = vrot.lane.b32.xlu0 %v2095, 50
      %v2266 = vpop.permute.xlu0 %2265
      %2267 = vrot.lane.b32.xlu0 %v2094, 50
      %v2268 = vpop.permute.xlu0 %2267
      %2269 = vrot.lane.b32.xlu0 %v2093, 50
      %v2270 = vpop.permute.xlu0 %2269
      %2271 = vrot.lane.b32.xlu0 %v2092, 50
      %v2272 = vpop.permute.xlu0 %2271
      %2273 = vrot.lane.b32.xlu0 %v2091, 50
      %v2274 = vpop.permute.xlu0 %2273
      %2275 = vrot.lane.b32.xlu0 %v2090, 50
      %v2276 = vpop.permute.xlu0 %2275
      %2277 = vrot.lane.b32.xlu0 %v2089, 50
      %v2278 = vpop.permute.xlu0 %2277
      %2279 = vrot.lane.b32.xlu0 %v2088, 50
      %v2280 = vpop.permute.xlu0 %2279
      %2281 = vrot.lane.b32.xlu0 %v2087, 50
      %v2282 = vpop.permute.xlu0 %2281
      %2283 = vrot.lane.b32.xlu0 %v2086, 50
      %v2284 = vpop.permute.xlu0 %2283
      %2285 = vrot.lane.b32.xlu0 %v2085, 50
      %v2286 = vpop.permute.xlu0 %2285
      %2287 = vrot.lane.b32.xlu0 %v2084, 50
      %v2288 = vpop.permute.xlu0 %2287
      %2289 = vrot.lane.b32.xlu0 %v2083, 50
      %v2290 = vpop.permute.xlu0 %2289
      %2291 = vrot.lane.b32.xlu0 %v2082, 50
      %v2292 = vpop.permute.xlu0 %2291
      %2293 = vrot.lane.b32.xlu0 %v2081, 50
      %v2294 = vpop.permute.xlu0 %2293
      %2295 = vrot.lane.b32.xlu0 %v2080, 50
      %v2296 = vpop.permute.xlu0 %2295
      %2297 = vrot.lane.b32.xlu0 %v2079, 50
      %v2298 = vpop.permute.xlu0 %2297
      %2299 = vrot.lane.b32.xlu0 %v2078, 50
      %v2300 = vpop.permute.xlu0 %2299
      %2301 = vrot.lane.b32.xlu0 %v2077, 50
      %v2302 = vpop.permute.xlu0 %2301
      %2303 = vrot.lane.b32.xlu0 %v2076, 50
      %v2304 = vpop.permute.xlu0 %2303
      %2305 = vrot.lane.b32.xlu0 %v2075, 50
      %v2306 = vpop.permute.xlu0 %2305
      %2307 = vrot.lane.b32.xlu0 %v2074, 50
      %v2308 = vpop.permute.xlu0 %2307
      %2309 = vrot.lane.b32.xlu0 %v2073, 50
      %v2310 = vpop.permute.xlu0 %2309
      %2311 = vrot.lane.b32.xlu0 %v2072, 50
      %v2312 = vpop.permute.xlu0 %2311
      %2313 = vrot.lane.b32.xlu0 %v2071, 50
      %v2314 = vpop.permute.xlu0 %2313
      %2315 = vrot.lane.b32.xlu0 %v2070, 50
      %v2316 = vpop.permute.xlu0 %2315
      %2317 = vrot.lane.b32.xlu0 %v2069, 50
      %v2318 = vpop.permute.xlu0 %2317
      %2319 = vrot.lane.b32.xlu0 %v2068, 50
      %v2320 = vpop.permute.xlu0 %2319
      %2321 = vrot.lane.b32.xlu0 %v2067, 50
      %v2322 = vpop.permute.xlu0 %2321
      %v2387 = vadd.f32 %v1585, %v2196
      %v2388 = vadd.f32 %v1587, %v2198
      %v2389 = vadd.f32 %v1590, %v2200
      %v2390 = vadd.f32 %v1592, %v2202
      %v2391 = vadd.f32 %v1595, %v2204
      %v2392 = vadd.f32 %v1597, %v2206
      %v2393 = vadd.f32 %v1600, %v2208
      %v2394 = vadd.f32 %v1602, %v2210
      %v2395 = vadd.f32 %v1605, %v2212
      %v2396 = vadd.f32 %v1607, %v2214
      %v2397 = vadd.f32 %v1610, %v2216
      %v2398 = vadd.f32 %v1612, %v2218
      %v2399 = vadd.f32 %v1615, %v2220
      %v2400 = vadd.f32 %v1617, %v2222
      %v2401 = vadd.f32 %v1620, %v2224
      %v2402 = vadd.f32 %v1622, %v2226
      %v2403 = vadd.f32 %v1625, %v2228
      %v2404 = vadd.f32 %v1627, %v2230
      %v2405 = vadd.f32 %v1630, %v2232
      %v2406 = vadd.f32 %v1632, %v2234
      %v2407 = vadd.f32 %v1635, %v2236
      %v2408 = vadd.f32 %v1637, %v2238
      %v2409 = vadd.f32 %v1640, %v2240
      %v2410 = vadd.f32 %v1642, %v2242
      %v2411 = vadd.f32 %v1645, %v2244
      %v2412 = vadd.f32 %v1647, %v2246
      %v2413 = vadd.f32 %v1650, %v2248
      %v2414 = vadd.f32 %v1652, %v2250
      %v2415 = vadd.f32 %v1655, %v2252
      %v2416 = vadd.f32 %v1657, %v2254
      %v2417 = vadd.f32 %v1660, %v2256
      %v2418 = vadd.f32 %v1662, %v2258
      %v2419 = vadd.f32 %v1665, %v2260
      %v2420 = vadd.f32 %v1667, %v2262
      %v2421 = vadd.f32 %v1670, %v2264
      %v2422 = vadd.f32 %v1672, %v2266
      %v2423 = vadd.f32 %v1675, %v2268
      %v2424 = vadd.f32 %v1677, %v2270
      %v2425 = vadd.f32 %v1680, %v2272
      %v2426 = vadd.f32 %v1682, %v2274
      %v2427 = vadd.f32 %v1685, %v2276
      %v2428 = vadd.f32 %v1687, %v2278
      %v2429 = vadd.f32 %v1690, %v2280
      %v2430 = vadd.f32 %v1692, %v2282
      %v2431 = vadd.f32 %v1695, %v2284
      %v2432 = vadd.f32 %v1697, %v2286
      %v2433 = vadd.f32 %v1700, %v2288
      %v2434 = vadd.f32 %v1702, %v2290
      %v2435 = vadd.f32 %v1705, %v2292
      %v2436 = vadd.f32 %v1707, %v2294
      %v2437 = vadd.f32 %v1710, %v2296
      %v2438 = vadd.f32 %v1712, %v2298
      %v2439 = vadd.f32 %v1715, %v2300
      %v2440 = vadd.f32 %v1717, %v2302
      %v2441 = vadd.f32 %v1720, %v2304
      %v2442 = vadd.f32 %v1722, %v2306
      %v2443 = vadd.f32 %v1725, %v2308
      %v2444 = vadd.f32 %v1727, %v2310
      %v2445 = vadd.f32 %v1730, %v2312
      %v2446 = vadd.f32 %v1732, %v2314
      %v2447 = vadd.f32 %v1735, %v2316
      %v2448 = vadd.f32 %v1737, %v2318
      %v2449 = vadd.f32 %v1740, %v2320
      %v2450 = vadd.f32 %v1742, %v2322
      %2451 = vrot.lane.b32.xlu0 %v1585, 68
      %v2452 = vpop.permute.xlu0 %2451
      %2453 = vrot.lane.b32.xlu0 %v1587, 68
      %v2454 = vpop.permute.xlu0 %2453
      %2455 = vrot.lane.b32.xlu0 %v1590, 68
      %v2456 = vpop.permute.xlu0 %2455
      %2457 = vrot.lane.b32.xlu0 %v1592, 68
      %v2458 = vpop.permute.xlu0 %2457
      %2459 = vrot.lane.b32.xlu0 %v1595, 68
      %v2460 = vpop.permute.xlu0 %2459
      %2461 = vrot.lane.b32.xlu0 %v1597, 68
      %v2462 = vpop.permute.xlu0 %2461
      %2463 = vrot.lane.b32.xlu0 %v1600, 68
      %v2464 = vpop.permute.xlu0 %2463
      %2465 = vrot.lane.b32.xlu0 %v1602, 68
      %v2466 = vpop.permute.xlu0 %2465
      %2467 = vrot.lane.b32.xlu0 %v1605, 68
      %v2468 = vpop.permute.xlu0 %2467
      %2469 = vrot.lane.b32.xlu0 %v1607, 68
      %v2470 = vpop.permute.xlu0 %2469
      %2471 = vrot.lane.b32.xlu0 %v1610, 68
      %v2472 = vpop.permute.xlu0 %2471
      %2473 = vrot.lane.b32.xlu0 %v1612, 68
      %v2474 = vpop.permute.xlu0 %2473
      %2475 = vrot.lane.b32.xlu0 %v1615, 68
      %v2476 = vpop.permute.xlu0 %2475
      %2477 = vrot.lane.b32.xlu0 %v1617, 68
      %v2478 = vpop.permute.xlu0 %2477
      %2479 = vrot.lane.b32.xlu0 %v1620, 68
      %v2480 = vpop.permute.xlu0 %2479
      %2481 = vrot.lane.b32.xlu0 %v1622, 68
      %v2482 = vpop.permute.xlu0 %2481
      %2483 = vrot.lane.b32.xlu0 %v1625, 68
      %v2484 = vpop.permute.xlu0 %2483
      %2485 = vrot.lane.b32.xlu0 %v1627, 68
      %v2486 = vpop.permute.xlu0 %2485
      %2487 = vrot.lane.b32.xlu0 %v1630, 68
      %v2488 = vpop.permute.xlu0 %2487
      %2489 = vrot.lane.b32.xlu0 %v1632, 68
      %v2490 = vpop.permute.xlu0 %2489
      %2491 = vrot.lane.b32.xlu0 %v1635, 68
      %v2492 = vpop.permute.xlu0 %2491
      %2493 = vrot.lane.b32.xlu0 %v1637, 68
      %v2494 = vpop.permute.xlu0 %2493
      %2495 = vrot.lane.b32.xlu0 %v1640, 68
      %v2496 = vpop.permute.xlu0 %2495
      %2497 = vrot.lane.b32.xlu0 %v1642, 68
      %v2498 = vpop.permute.xlu0 %2497
      %2499 = vrot.lane.b32.xlu0 %v1645, 68
      %v2500 = vpop.permute.xlu0 %2499
      %2501 = vrot.lane.b32.xlu0 %v1647, 68
      %v2502 = vpop.permute.xlu0 %2501
      %2503 = vrot.lane.b32.xlu0 %v1650, 68
      %v2504 = vpop.permute.xlu0 %2503
      %2505 = vrot.lane.b32.xlu0 %v1652, 68
      %v2506 = vpop.permute.xlu0 %2505
      %2507 = vrot.lane.b32.xlu0 %v1655, 68
      %v2508 = vpop.permute.xlu0 %2507
      %2509 = vrot.lane.b32.xlu0 %v1657, 68
      %v2510 = vpop.permute.xlu0 %2509
      %2511 = vrot.lane.b32.xlu0 %v1660, 68
      %v2512 = vpop.permute.xlu0 %2511
      %2513 = vrot.lane.b32.xlu0 %v1662, 68
      %v2514 = vpop.permute.xlu0 %2513
      %2515 = vrot.lane.b32.xlu0 %v1665, 68
      %v2516 = vpop.permute.xlu0 %2515
      %2517 = vrot.lane.b32.xlu0 %v1667, 68
      %v2518 = vpop.permute.xlu0 %2517
      %2519 = vrot.lane.b32.xlu0 %v1670, 68
      %v2520 = vpop.permute.xlu0 %2519
      %2521 = vrot.lane.b32.xlu0 %v1672, 68
      %v2522 = vpop.permute.xlu0 %2521
      %2523 = vrot.lane.b32.xlu0 %v1675, 68
      %v2524 = vpop.permute.xlu0 %2523
      %2525 = vrot.lane.b32.xlu0 %v1677, 68
      %v2526 = vpop.permute.xlu0 %2525
      %2527 = vrot.lane.b32.xlu0 %v1680, 68
      %v2528 = vpop.permute.xlu0 %2527
      %2529 = vrot.lane.b32.xlu0 %v1682, 68
      %v2530 = vpop.permute.xlu0 %2529
      %2531 = vrot.lane.b32.xlu0 %v1685, 68
      %v2532 = vpop.permute.xlu0 %2531
      %2533 = vrot.lane.b32.xlu0 %v1687, 68
      %v2534 = vpop.permute.xlu0 %2533
      %2535 = vrot.lane.b32.xlu0 %v1690, 68
      %v2536 = vpop.permute.xlu0 %2535
      %2537 = vrot.lane.b32.xlu0 %v1692, 68
      %v2538 = vpop.permute.xlu0 %2537
      %2539 = vrot.lane.b32.xlu0 %v1695, 68
      %v2540 = vpop.permute.xlu0 %2539
      %2541 = vrot.lane.b32.xlu0 %v1697, 68
      %v2542 = vpop.permute.xlu0 %2541
      %2543 = vrot.lane.b32.xlu0 %v1700, 68
      %v2544 = vpop.permute.xlu0 %2543
      %2545 = vrot.lane.b32.xlu0 %v1702, 68
      %v2546 = vpop.permute.xlu0 %2545
      %2547 = vrot.lane.b32.xlu0 %v1705, 68
      %v2548 = vpop.permute.xlu0 %2547
      %2549 = vrot.lane.b32.xlu0 %v1707, 68
      %v2550 = vpop.permute.xlu0 %2549
      %2551 = vrot.lane.b32.xlu0 %v1710, 68
      %v2552 = vpop.permute.xlu0 %2551
      %2553 = vrot.lane.b32.xlu0 %v1712, 68
      %v2554 = vpop.permute.xlu0 %2553
      %2555 = vrot.lane.b32.xlu0 %v1715, 68
      %v2556 = vpop.permute.xlu0 %2555
      %2557 = vrot.lane.b32.xlu0 %v1717, 68
      %v2558 = vpop.permute.xlu0 %2557
      %2559 = vrot.lane.b32.xlu0 %v1720, 68
      %v2560 = vpop.permute.xlu0 %2559
      %2561 = vrot.lane.b32.xlu0 %v1722, 68
      %v2562 = vpop.permute.xlu0 %2561
      %2563 = vrot.lane.b32.xlu0 %v1725, 68
      %v2564 = vpop.permute.xlu0 %2563
      %2565 = vrot.lane.b32.xlu0 %v1727, 68
      %v2566 = vpop.permute.xlu0 %2565
      %2567 = vrot.lane.b32.xlu0 %v1730, 68
      %v2568 = vpop.permute.xlu0 %2567
      %2569 = vrot.lane.b32.xlu0 %v1732, 68
      %v2570 = vpop.permute.xlu0 %2569
      %2571 = vrot.lane.b32.xlu0 %v1735, 68
      %v2572 = vpop.permute.xlu0 %2571
      %2573 = vrot.lane.b32.xlu0 %v1737, 68
      %v2574 = vpop.permute.xlu0 %2573
      %2575 = vrot.lane.b32.xlu0 %v1740, 68
      %v2576 = vpop.permute.xlu0 %2575
      %2577 = vrot.lane.b32.xlu0 %v1742, 68
      %v2578 = vpop.permute.xlu0 %2577
      %v2643 = vrot.slane %v2452, 1
      %v2644 = vrot.slane %v2454, 1
      %v2645 = vrot.slane %v2456, 1
      %v2646 = vrot.slane %v2458, 1
      %v2647 = vrot.slane %v2460, 1
      %v2648 = vrot.slane %v2462, 1
      %v2649 = vrot.slane %v2464, 1
      %v2650 = vrot.slane %v2466, 1
      %v2651 = vrot.slane %v2468, 1
      %v2652 = vrot.slane %v2470, 1
      %v2653 = vrot.slane %v2472, 1
      %v2654 = vrot.slane %v2474, 1
      %v2655 = vrot.slane %v2476, 1
      %v2656 = vrot.slane %v2478, 1
      %v2657 = vrot.slane %v2480, 1
      %v2658 = vrot.slane %v2482, 1
      %v2659 = vrot.slane %v2484, 1
      %v2660 = vrot.slane %v2486, 1
      %v2661 = vrot.slane %v2488, 1
      %v2662 = vrot.slane %v2490, 1
      %v2663 = vrot.slane %v2492, 1
      %v2664 = vrot.slane %v2494, 1
      %v2665 = vrot.slane %v2496, 1
      %v2666 = vrot.slane %v2498, 1
      %v2667 = vrot.slane %v2500, 1
      %v2668 = vrot.slane %v2502, 1
      %v2669 = vrot.slane %v2504, 1
      %v2670 = vrot.slane %v2506, 1
      %v2671 = vrot.slane %v2508, 1
      %v2672 = vrot.slane %v2510, 1
      %v2673 = vrot.slane %v2512, 1
      %v2674 = vrot.slane %v2514, 1
      %v2675 = vrot.slane %v2516, 1
      %v2676 = vrot.slane %v2518, 1
      %v2677 = vrot.slane %v2520, 1
      %v2678 = vrot.slane %v2522, 1
      %v2679 = vrot.slane %v2524, 1
      %v2680 = vrot.slane %v2526, 1
      %v2681 = vrot.slane %v2528, 1
      %v2682 = vrot.slane %v2530, 1
      %v2683 = vrot.slane %v2532, 1
      %v2684 = vrot.slane %v2534, 1
      %v2685 = vrot.slane %v2536, 1
      %v2686 = vrot.slane %v2538, 1
      %v2687 = vrot.slane %v2540, 1
      %v2688 = vrot.slane %v2542, 1
      %v2689 = vrot.slane %v2544, 1
      %v2690 = vrot.slane %v2546, 1
      %v2691 = vrot.slane %v2548, 1
      %v2692 = vrot.slane %v2550, 1
      %v2693 = vrot.slane %v2552, 1
      %v2694 = vrot.slane %v2554, 1
      %v2695 = vrot.slane %v2556, 1
      %v2696 = vrot.slane %v2558, 1
      %v2697 = vrot.slane %v2560, 1
      %v2698 = vrot.slane %v2562, 1
      %v2699 = vrot.slane %v2564, 1
      %v2700 = vrot.slane %v2566, 1
      %v2701 = vrot.slane %v2568, 1
      %v2702 = vrot.slane %v2570, 1
      %v2703 = vrot.slane %v2572, 1
      %v2704 = vrot.slane %v2574, 1
      %v2705 = vrot.slane %v2576, 1
      %v2706 = vrot.slane %v2578, 1
      %vm2707 = vcmp.lt.s32.totalorder %v2065, 7
      %v2708 = vsel %vm2707, %v2705, %v2706
      %v2709 = vsel %vm2707, %v2704, %v2705
      %v2710 = vsel %vm2707, %v2703, %v2704
      %v2711 = vsel %vm2707, %v2702, %v2703
      %v2712 = vsel %vm2707, %v2701, %v2702
      %v2713 = vsel %vm2707, %v2700, %v2701
      %v2714 = vsel %vm2707, %v2699, %v2700
      %v2715 = vsel %vm2707, %v2698, %v2699
      %v2716 = vsel %vm2707, %v2697, %v2698
      %v2717 = vsel %vm2707, %v2696, %v2697
      %v2718 = vsel %vm2707, %v2695, %v2696
      %v2719 = vsel %vm2707, %v2694, %v2695
      %v2720 = vsel %vm2707, %v2693, %v2694
      %v2721 = vsel %vm2707, %v2692, %v2693
      %v2722 = vsel %vm2707, %v2691, %v2692
      %v2723 = vsel %vm2707, %v2690, %v2691
      %v2724 = vsel %vm2707, %v2689, %v2690
      %v2725 = vsel %vm2707, %v2688, %v2689
      %v2726 = vsel %vm2707, %v2687, %v2688
      %v2727 = vsel %vm2707, %v2686, %v2687
      %v2728 = vsel %vm2707, %v2685, %v2686
      %v2729 = vsel %vm2707, %v2684, %v2685
      %v2730 = vsel %vm2707, %v2683, %v2684
      %v2731 = vsel %vm2707, %v2682, %v2683
      %v2732 = vsel %vm2707, %v2681, %v2682
      %v2733 = vsel %vm2707, %v2680, %v2681
      %v2734 = vsel %vm2707, %v2679, %v2680
      %v2735 = vsel %vm2707, %v2678, %v2679
      %v2736 = vsel %vm2707, %v2677, %v2678
      %v2737 = vsel %vm2707, %v2676, %v2677
      %v2738 = vsel %vm2707, %v2675, %v2676
      %v2739 = vsel %vm2707, %v2674, %v2675
      %v2740 = vsel %vm2707, %v2673, %v2674
      %v2741 = vsel %vm2707, %v2672, %v2673
      %v2742 = vsel %vm2707, %v2671, %v2672
      %v2743 = vsel %vm2707, %v2670, %v2671
      %v2744 = vsel %vm2707, %v2669, %v2670
      %v2745 = vsel %vm2707, %v2668, %v2669
      %v2746 = vsel %vm2707, %v2667, %v2668
      %v2747 = vsel %vm2707, %v2666, %v2667
      %v2748 = vsel %vm2707, %v2665, %v2666
      %v2749 = vsel %vm2707, %v2664, %v2665
      %v2750 = vsel %vm2707, %v2663, %v2664
      %v2751 = vsel %vm2707, %v2662, %v2663
      %v2752 = vsel %vm2707, %v2661, %v2662
      %v2753 = vsel %vm2707, %v2660, %v2661
      %v2754 = vsel %vm2707, %v2659, %v2660
      %v2755 = vsel %vm2707, %v2658, %v2659
      %v2756 = vsel %vm2707, %v2657, %v2658
      %v2757 = vsel %vm2707, %v2656, %v2657
      %v2758 = vsel %vm2707, %v2655, %v2656
      %v2759 = vsel %vm2707, %v2654, %v2655
      %v2760 = vsel %vm2707, %v2653, %v2654
      %v2761 = vsel %vm2707, %v2652, %v2653
      %v2762 = vsel %vm2707, %v2651, %v2652
      %v2763 = vsel %vm2707, %v2650, %v2651
      %v2764 = vsel %vm2707, %v2649, %v2650
      %v2765 = vsel %vm2707, %v2648, %v2649
      %v2766 = vsel %vm2707, %v2647, %v2648
      %v2767 = vsel %vm2707, %v2646, %v2647
      %v2768 = vsel %vm2707, %v2645, %v2646
      %v2769 = vsel %vm2707, %v2644, %v2645
      %v2770 = vsel %vm2707, %v2643, %v2644
      %v2771 = vsel %vm2707, %v2706, %v2643
      %2836 = vrot.lane.b32.xlu0 %v2770, 50
      %v2837 = vpop.permute.xlu0 %2836
      %2838 = vrot.lane.b32.xlu0 %v2769, 50
      %v2839 = vpop.permute.xlu0 %2838
      %2840 = vrot.lane.b32.xlu0 %v2768, 50
      %v2841 = vpop.permute.xlu0 %2840
      %2842 = vrot.lane.b32.xlu0 %v2767, 50
      %v2843 = vpop.permute.xlu0 %2842
      %2844 = vrot.lane.b32.xlu0 %v2766, 50
      %v2845 = vpop.permute.xlu0 %2844
      %2846 = vrot.lane.b32.xlu0 %v2765, 50
      %v2847 = vpop.permute.xlu0 %2846
      %2848 = vrot.lane.b32.xlu0 %v2764, 50
      %v2849 = vpop.permute.xlu0 %2848
      %2850 = vrot.lane.b32.xlu0 %v2763, 50
      %v2851 = vpop.permute.xlu0 %2850
      %2852 = vrot.lane.b32.xlu0 %v2762, 50
      %v2853 = vpop.permute.xlu0 %2852
      %2854 = vrot.lane.b32.xlu0 %v2761, 50
      %v2855 = vpop.permute.xlu0 %2854
      %2856 = vrot.lane.b32.xlu0 %v2760, 50
      %v2857 = vpop.permute.xlu0 %2856
      %2858 = vrot.lane.b32.xlu0 %v2759, 50
      %v2859 = vpop.permute.xlu0 %2858
      %2860 = vrot.lane.b32.xlu0 %v2758, 50
      %v2861 = vpop.permute.xlu0 %2860
      %2862 = vrot.lane.b32.xlu0 %v2757, 50
      %v2863 = vpop.permute.xlu0 %2862
      %2864 = vrot.lane.b32.xlu0 %v2756, 50
      %v2865 = vpop.permute.xlu0 %2864
      %2866 = vrot.lane.b32.xlu0 %v2755, 50
      %v2867 = vpop.permute.xlu0 %2866
      %2868 = vrot.lane.b32.xlu0 %v2754, 50
      %v2869 = vpop.permute.xlu0 %2868
      %2870 = vrot.lane.b32.xlu0 %v2753, 50
      %v2871 = vpop.permute.xlu0 %2870
      %2872 = vrot.lane.b32.xlu0 %v2752, 50
      %v2873 = vpop.permute.xlu0 %2872
      %2874 = vrot.lane.b32.xlu0 %v2751, 50
      %v2875 = vpop.permute.xlu0 %2874
      %2876 = vrot.lane.b32.xlu0 %v2750, 50
      %v2877 = vpop.permute.xlu0 %2876
      %2878 = vrot.lane.b32.xlu0 %v2749, 50
      %v2879 = vpop.permute.xlu0 %2878
      %2880 = vrot.lane.b32.xlu0 %v2748, 50
      %v2881 = vpop.permute.xlu0 %2880
      %2882 = vrot.lane.b32.xlu0 %v2747, 50
      %v2883 = vpop.permute.xlu0 %2882
      %2884 = vrot.lane.b32.xlu0 %v2746, 50
      %v2885 = vpop.permute.xlu0 %2884
      %2886 = vrot.lane.b32.xlu0 %v2745, 50
      %v2887 = vpop.permute.xlu0 %2886
      %2888 = vrot.lane.b32.xlu0 %v2744, 50
      %v2889 = vpop.permute.xlu0 %2888
      %2890 = vrot.lane.b32.xlu0 %v2743, 50
      %v2891 = vpop.permute.xlu0 %2890
      %2892 = vrot.lane.b32.xlu0 %v2742, 50
      %v2893 = vpop.permute.xlu0 %2892
      %2894 = vrot.lane.b32.xlu0 %v2741, 50
      %v2895 = vpop.permute.xlu0 %2894
      %2896 = vrot.lane.b32.xlu0 %v2740, 50
      %v2897 = vpop.permute.xlu0 %2896
      %2898 = vrot.lane.b32.xlu0 %v2739, 50
      %v2899 = vpop.permute.xlu0 %2898
      %2900 = vrot.lane.b32.xlu0 %v2738, 50
      %v2901 = vpop.permute.xlu0 %2900
      %2902 = vrot.lane.b32.xlu0 %v2737, 50
      %v2903 = vpop.permute.xlu0 %2902
      %2904 = vrot.lane.b32.xlu0 %v2736, 50
      %v2905 = vpop.permute.xlu0 %2904
      %2906 = vrot.lane.b32.xlu0 %v2735, 50
      %v2907 = vpop.permute.xlu0 %2906
      %2908 = vrot.lane.b32.xlu0 %v2734, 50
      %v2909 = vpop.permute.xlu0 %2908
      %2910 = vrot.lane.b32.xlu0 %v2733, 50
      %v2911 = vpop.permute.xlu0 %2910
      %2912 = vrot.lane.b32.xlu0 %v2732, 50
      %v2913 = vpop.permute.xlu0 %2912
      %2914 = vrot.lane.b32.xlu0 %v2731, 50
      %v2915 = vpop.permute.xlu0 %2914
      %2916 = vrot.lane.b32.xlu0 %v2730, 50
      %v2917 = vpop.permute.xlu0 %2916
      %2918 = vrot.lane.b32.xlu0 %v2729, 50
      %v2919 = vpop.permute.xlu0 %2918
      %2920 = vrot.lane.b32.xlu0 %v2728, 50
      %v2921 = vpop.permute.xlu0 %2920
      %2922 = vrot.lane.b32.xlu0 %v2727, 50
      %v2923 = vpop.permute.xlu0 %2922
      %2924 = vrot.lane.b32.xlu0 %v2726, 50
      %v2925 = vpop.permute.xlu0 %2924
      %2926 = vrot.lane.b32.xlu0 %v2725, 50
      %v2927 = vpop.permute.xlu0 %2926
      %2928 = vrot.lane.b32.xlu0 %v2724, 50
      %v2929 = vpop.permute.xlu0 %2928
      %2930 = vrot.lane.b32.xlu0 %v2723, 50
      %v2931 = vpop.permute.xlu0 %2930
      %2932 = vrot.lane.b32.xlu0 %v2722, 50
      %v2933 = vpop.permute.xlu0 %2932
      %2934 = vrot.lane.b32.xlu0 %v2721, 50
      %v2935 = vpop.permute.xlu0 %2934
      %2936 = vrot.lane.b32.xlu0 %v2720, 50
      %v2937 = vpop.permute.xlu0 %2936
      %2938 = vrot.lane.b32.xlu0 %v2719, 50
      %v2939 = vpop.permute.xlu0 %2938
      %2940 = vrot.lane.b32.xlu0 %v2718, 50
      %v2941 = vpop.permute.xlu0 %2940
      %2942 = vrot.lane.b32.xlu0 %v2717, 50
      %v2943 = vpop.permute.xlu0 %2942
      %2944 = vrot.lane.b32.xlu0 %v2716, 50
      %v2945 = vpop.permute.xlu0 %2944
      %2946 = vrot.lane.b32.xlu0 %v2715, 50
      %v2947 = vpop.permute.xlu0 %2946
      %2948 = vrot.lane.b32.xlu0 %v2714, 50
      %v2949 = vpop.permute.xlu0 %2948
      %2950 = vrot.lane.b32.xlu0 %v2713, 50
      %v2951 = vpop.permute.xlu0 %2950
      %2952 = vrot.lane.b32.xlu0 %v2712, 50
      %v2953 = vpop.permute.xlu0 %2952
      %2954 = vrot.lane.b32.xlu0 %v2711, 50
      %v2955 = vpop.permute.xlu0 %2954
      %2956 = vrot.lane.b32.xlu0 %v2710, 50
      %v2957 = vpop.permute.xlu0 %2956
      %2958 = vrot.lane.b32.xlu0 %v2709, 50
      %v2959 = vpop.permute.xlu0 %2958
      %2960 = vrot.lane.b32.xlu0 %v2708, 50
      %v2961 = vpop.permute.xlu0 %2960
      %2962 = vrot.lane.b32.xlu0 %v2771, 50
      %v2963 = vpop.permute.xlu0 %2962
      %v3028 = vadd.f32 %v2387, %v2837
      %v3029 = vadd.f32 %v2388, %v2839
      %v3030 = vadd.f32 %v2389, %v2841
      %v3031 = vadd.f32 %v2390, %v2843
      %v3032 = vadd.f32 %v2391, %v2845
      %v3033 = vadd.f32 %v2392, %v2847
      %v3034 = vadd.f32 %v2393, %v2849
      %v3035 = vadd.f32 %v2394, %v2851
      %v3036 = vadd.f32 %v2395, %v2853
      %v3037 = vadd.f32 %v2396, %v2855
      %v3038 = vadd.f32 %v2397, %v2857
      %v3039 = vadd.f32 %v2398, %v2859
      %v3040 = vadd.f32 %v2399, %v2861
      %v3041 = vadd.f32 %v2400, %v2863
      %v3042 = vadd.f32 %v2401, %v2865
      %v3043 = vadd.f32 %v2402, %v2867
      %v3044 = vadd.f32 %v2403, %v2869
      %v3045 = vadd.f32 %v2404, %v2871
      %v3046 = vadd.f32 %v2405, %v2873
      %v3047 = vadd.f32 %v2406, %v2875
      %v3048 = vadd.f32 %v2407, %v2877
      %v3049 = vadd.f32 %v2408, %v2879
      %v3050 = vadd.f32 %v2409, %v2881
      %v3051 = vadd.f32 %v2410, %v2883
      %v3052 = vadd.f32 %v2411, %v2885
      %v3053 = vadd.f32 %v2412, %v2887
      %v3054 = vadd.f32 %v2413, %v2889
      %v3055 = vadd.f32 %v2414, %v2891
      %v3056 = vadd.f32 %v2415, %v2893
      %v3057 = vadd.f32 %v2416, %v2895
      %v3058 = vadd.f32 %v2417, %v2897
      %v3059 = vadd.f32 %v2418, %v2899
      %v3060 = vadd.f32 %v2419, %v2901
      %v3061 = vadd.f32 %v2420, %v2903
      %v3062 = vadd.f32 %v2421, %v2905
      %v3063 = vadd.f32 %v2422, %v2907
      %v3064 = vadd.f32 %v2423, %v2909
      %v3065 = vadd.f32 %v2424, %v2911
      %v3066 = vadd.f32 %v2425, %v2913
      %v3067 = vadd.f32 %v2426, %v2915
      %v3068 = vadd.f32 %v2427, %v2917
      %v3069 = vadd.f32 %v2428, %v2919
      %v3070 = vadd.f32 %v2429, %v2921
      %v3071 = vadd.f32 %v2430, %v2923
      %v3072 = vadd.f32 %v2431, %v2925
      %v3073 = vadd.f32 %v2432, %v2927
      %v3074 = vadd.f32 %v2433, %v2929
      %v3075 = vadd.f32 %v2434, %v2931
      %v3076 = vadd.f32 %v2435, %v2933
      %v3077 = vadd.f32 %v2436, %v2935
      %v3078 = vadd.f32 %v2437, %v2937
      %v3079 = vadd.f32 %v2438, %v2939
      %v3080 = vadd.f32 %v2439, %v2941
      %v3081 = vadd.f32 %v2440, %v2943
      %v3082 = vadd.f32 %v2441, %v2945
      %v3083 = vadd.f32 %v2442, %v2947
      %v3084 = vadd.f32 %v2443, %v2949
      %v3085 = vadd.f32 %v2444, %v2951
      %v3086 = vadd.f32 %v2445, %v2953
      %v3087 = vadd.f32 %v2446, %v2955
      %v3088 = vadd.f32 %v2447, %v2957
      %v3089 = vadd.f32 %v2448, %v2959
      %v3090 = vadd.f32 %v2449, %v2961
      %v3091 = vadd.f32 %v2450, %v2963
      %v3092 = vadd.s32 %v2065, 8
      %v3093 = vadd.s32 %v2065, 16
      %v3094 = vadd.s32 %v2065, 24
      %v3095 = vadd.s32 %v2065, 32
      %v3096 = vadd.s32 %v2065, 40
      %v3097 = vadd.s32 %v2065, 48
      %v3098 = vadd.s32 %v2065, 56
      %v3099 = vadd.s32 %v2065, 64
      %v3100 = vadd.s32 %v2065, 72
      %v3101 = vadd.s32 %v2065, 80
      %v3102 = vadd.s32 %v2065, 88
      %v3103 = vadd.s32 %v2065, 96
      %v3104 = vadd.s32 %v2065, 104
      %v3105 = vadd.s32 %v2065, 112
      %v3106 = vadd.s32 %v2065, 120
      %v3107 = vadd.s32 %v2065, 128
      %v3108 = vadd.s32 %v2065, 136
      %v3109 = vadd.s32 %v2065, 144
      %v3110 = vadd.s32 %v2065, 152
      %v3111 = vadd.s32 %v2065, 160
      %v3112 = vadd.s32 %v2065, 168
      %v3113 = vadd.s32 %v2065, 176
      %v3114 = vadd.s32 %v2065, 184
      %v3115 = vadd.s32 %v2065, 192
      %v3116 = vadd.s32 %v2065, 200
      %v3117 = vadd.s32 %v2065, 208
      %v3118 = vadd.s32 %v2065, 216
      %v3119 = vadd.s32 %v2065, 224
      %v3120 = vadd.s32 %v2065, 232
      %v3121 = vadd.s32 %v2065, 240
      %v3122 = vadd.s32 %v2065, 248
      %v3123 = vadd.s32 %v2065, 256
      %v3124 = vadd.s32 %v2065, 264
      %v3125 = vadd.s32 %v2065, 272
      %v3126 = vadd.s32 %v2065, 280
      %v3127 = vadd.s32 %v2065, 288
      %v3128 = vadd.s32 %v2065, 296
      %v3129 = vadd.s32 %v2065, 304
      %v3130 = vadd.s32 %v2065, 312
      %v3131 = vadd.s32 %v2065, 320
      %v3132 = vadd.s32 %v2065, 328
      %v3133 = vadd.s32 %v2065, 336
      %v3134 = vadd.s32 %v2065, 344
      %v3135 = vadd.s32 %v2065, 352
      %v3136 = vadd.s32 %v2065, 360
      %v3137 = vadd.s32 %v2065, 368
      %v3138 = vadd.s32 %v2065, 376
      %v3139 = vadd.s32 %v2065, 384
      %v3140 = vadd.s32 %v2065, 392
      %v3141 = vadd.s32 %v2065, 400
      %v3142 = vadd.s32 %v2065, 408
      %v3143 = vadd.s32 %v2065, 416
      %v3144 = vadd.s32 %v2065, 424
      %v3145 = vadd.s32 %v2065, 432
      %v3146 = vadd.s32 %v2065, 440
      %v3147 = vadd.s32 %v2065, 448
      %v3148 = vadd.s32 %v2065, 456
      %v3149 = vadd.s32 %v2065, 464
      %v3150 = vadd.s32 %v2065, 472
      %v3151 = vadd.s32 %v2065, 480
      %v3152 = vadd.s32 %v2065, 488
      %v3153 = vadd.s32 %v2065, 496
      %v3154 = vadd.s32 %v2065, 504
      %vm3155 = vcmp.lt.s32.totalorder %v2065, 500
      %vm3156 = vcmp.lt.s32.totalorder %v3092, 500
      %vm3157 = vcmp.lt.s32.totalorder %v3093, 500
      %vm3158 = vcmp.lt.s32.totalorder %v3094, 500
      %vm3159 = vcmp.lt.s32.totalorder %v3095, 500
      %vm3160 = vcmp.lt.s32.totalorder %v3096, 500
      %vm3161 = vcmp.lt.s32.totalorder %v3097, 500
      %vm3162 = vcmp.lt.s32.totalorder %v3098, 500
      %vm3163 = vcmp.lt.s32.totalorder %v3099, 500
      %vm3164 = vcmp.lt.s32.totalorder %v3100, 500
      %vm3165 = vcmp.lt.s32.totalorder %v3101, 500
      %vm3166 = vcmp.lt.s32.totalorder %v3102, 500
      %vm3167 = vcmp.lt.s32.totalorder %v3103, 500
      %vm3168 = vcmp.lt.s32.totalorder %v3104, 500
      %vm3169 = vcmp.lt.s32.totalorder %v3105, 500
      %vm3170 = vcmp.lt.s32.totalorder %v3106, 500
      %vm3171 = vcmp.lt.s32.totalorder %v3107, 500
      %vm3172 = vcmp.lt.s32.totalorder %v3108, 500
      %vm3173 = vcmp.lt.s32.totalorder %v3109, 500
      %vm3174 = vcmp.lt.s32.totalorder %v3110, 500
      %vm3175 = vcmp.lt.s32.totalorder %v3111, 500
      %vm3176 = vcmp.lt.s32.totalorder %v3112, 500
      %vm3177 = vcmp.lt.s32.totalorder %v3113, 500
      %vm3178 = vcmp.lt.s32.totalorder %v3114, 500
      %vm3179 = vcmp.lt.s32.totalorder %v3115, 500
      %vm3180 = vcmp.lt.s32.totalorder %v3116, 500
      %vm3181 = vcmp.lt.s32.totalorder %v3117, 500
      %vm3182 = vcmp.lt.s32.totalorder %v3118, 500
      %vm3183 = vcmp.lt.s32.totalorder %v3119, 500
      %vm3184 = vcmp.lt.s32.totalorder %v3120, 500
      %vm3185 = vcmp.lt.s32.totalorder %v3121, 500
      %vm3186 = vcmp.lt.s32.totalorder %v3122, 500
      %vm3187 = vcmp.lt.s32.totalorder %v3123, 500
      %vm3188 = vcmp.lt.s32.totalorder %v3124, 500
      %vm3189 = vcmp.lt.s32.totalorder %v3125, 500
      %vm3190 = vcmp.lt.s32.totalorder %v3126, 500
      %vm3191 = vcmp.lt.s32.totalorder %v3127, 500
      %vm3192 = vcmp.lt.s32.totalorder %v3128, 500
      %vm3193 = vcmp.lt.s32.totalorder %v3129, 500
      %vm3194 = vcmp.lt.s32.totalorder %v3130, 500
      %vm3195 = vcmp.lt.s32.totalorder %v3131, 500
      %vm3196 = vcmp.lt.s32.totalorder %v3132, 500
      %vm3197 = vcmp.lt.s32.totalorder %v3133, 500
      %vm3198 = vcmp.lt.s32.totalorder %v3134, 500
      %vm3199 = vcmp.lt.s32.totalorder %v3135, 500
      %vm3200 = vcmp.lt.s32.totalorder %v3136, 500
      %vm3201 = vcmp.lt.s32.totalorder %v3137, 500
      %vm3202 = vcmp.lt.s32.totalorder %v3138, 500
      %vm3203 = vcmp.lt.s32.totalorder %v3139, 500
      %vm3204 = vcmp.lt.s32.totalorder %v3140, 500
      %vm3205 = vcmp.lt.s32.totalorder %v3141, 500
      %vm3206 = vcmp.lt.s32.totalorder %v3142, 500
      %vm3207 = vcmp.lt.s32.totalorder %v3143, 500
      %vm3208 = vcmp.lt.s32.totalorder %v3144, 500
      %vm3209 = vcmp.lt.s32.totalorder %v3145, 500
      %vm3210 = vcmp.lt.s32.totalorder %v3146, 500
      %vm3211 = vcmp.lt.s32.totalorder %v3147, 500
      %vm3212 = vcmp.lt.s32.totalorder %v3148, 500
      %vm3213 = vcmp.lt.s32.totalorder %v3149, 500
      %vm3214 = vcmp.lt.s32.totalorder %v3150, 500
      %vm3215 = vcmp.lt.s32.totalorder %v3151, 500
      %vm3216 = vcmp.lt.s32.totalorder %v3152, 500
      %vm3217 = vcmp.lt.s32.totalorder %v3153, 500
      %vm3218 = vcmp.lt.s32.totalorder %v3154, 500
      %v3219 = vsel %vm3155, %v3028, -1e+30
      %v3220 = vsel %vm3156, %v3029, -1e+30
      %v3221 = vsel %vm3157, %v3030, -1e+30
      %v3222 = vsel %vm3158, %v3031, -1e+30
      %v3223 = vsel %vm3159, %v3032, -1e+30
      %v3224 = vsel %vm3160, %v3033, -1e+30
      %v3225 = vsel %vm3161, %v3034, -1e+30
      %v3226 = vsel %vm3162, %v3035, -1e+30
      %v3227 = vsel %vm3163, %v3036, -1e+30
      %v3228 = vsel %vm3164, %v3037, -1e+30
      %v3229 = vsel %vm3165, %v3038, -1e+30
      %v3230 = vsel %vm3166, %v3039, -1e+30
      %v3231 = vsel %vm3167, %v3040, -1e+30
      %v3232 = vsel %vm3168, %v3041, -1e+30
      %v3233 = vsel %vm3169, %v3042, -1e+30
      %v3234 = vsel %vm3170, %v3043, -1e+30
      %v3235 = vsel %vm3171, %v3044, -1e+30
      %v3236 = vsel %vm3172, %v3045, -1e+30
      %v3237 = vsel %vm3173, %v3046, -1e+30
      %v3238 = vsel %vm3174, %v3047, -1e+30
      %v3239 = vsel %vm3175, %v3048, -1e+30
      %v3240 = vsel %vm3176, %v3049, -1e+30
      %v3241 = vsel %vm3177, %v3050, -1e+30
      %v3242 = vsel %vm3178, %v3051, -1e+30
      %v3243 = vsel %vm3179, %v3052, -1e+30
      %v3244 = vsel %vm3180, %v3053, -1e+30
      %v3245 = vsel %vm3181, %v3054, -1e+30
      %v3246 = vsel %vm3182, %v3055, -1e+30
      %v3247 = vsel %vm3183, %v3056, -1e+30
      %v3248 = vsel %vm3184, %v3057, -1e+30
      %v3249 = vsel %vm3185, %v3058, -1e+30
      %v3250 = vsel %vm3186, %v3059, -1e+30
      %v3251 = vsel %vm3187, %v3060, -1e+30
      %v3252 = vsel %vm3188, %v3061, -1e+30
      %v3253 = vsel %vm3189, %v3062, -1e+30
      %v3254 = vsel %vm3190, %v3063, -1e+30
      %v3255 = vsel %vm3191, %v3064, -1e+30
      %v3256 = vsel %vm3192, %v3065, -1e+30
      %v3257 = vsel %vm3193, %v3066, -1e+30
      %v3258 = vsel %vm3194, %v3067, -1e+30
      %v3259 = vsel %vm3195, %v3068, -1e+30
      %v3260 = vsel %vm3196, %v3069, -1e+30
      %v3261 = vsel %vm3197, %v3070, -1e+30
      %v3262 = vsel %vm3198, %v3071, -1e+30
      %v3263 = vsel %vm3199, %v3072, -1e+30
      %v3264 = vsel %vm3200, %v3073, -1e+30
      %v3265 = vsel %vm3201, %v3074, -1e+30
      %v3266 = vsel %vm3202, %v3075, -1e+30
      %v3267 = vsel %vm3203, %v3076, -1e+30
      %v3268 = vsel %vm3204, %v3077, -1e+30
      %v3269 = vsel %vm3205, %v3078, -1e+30
      %v3270 = vsel %vm3206, %v3079, -1e+30
      %v3271 = vsel %vm3207, %v3080, -1e+30
      %v3272 = vsel %vm3208, %v3081, -1e+30
      %v3273 = vsel %vm3209, %v3082, -1e+30
      %v3274 = vsel %vm3210, %v3083, -1e+30
      %v3275 = vsel %vm3211, %v3084, -1e+30
      %v3276 = vsel %vm3212, %v3085, -1e+30
      %v3277 = vsel %vm3213, %v3086, -1e+30
      %v3278 = vsel %vm3214, %v3087, -1e+30
      %v3279 = vsel %vm3215, %v3088, -1e+30
      %v3280 = vsel %vm3216, %v3089, -1e+30
      %v3281 = vsel %vm3217, %v3090, -1e+30
      %v3282 = vsel %vm3218, %v3091, -1e+30
      %vm3283 = vcmask 449936
      %v3284 = vsel %vm3283, %v3219, -inf
      %v3285 = vsel %vm3283, %v3220, -inf
      %v3286 = vsel %vm3283, %v3221, -inf
      %v3287 = vsel %vm3283, %v3222, -inf
      %v3288 = vsel %vm3283, %v3223, -inf
      %v3289 = vmax.f32 %v3284, %v3288
      %v3290 = vsel %vm3283, %v3224, -inf
      %v3291 = vmax.f32 %v3285, %v3290
      %v3292 = vsel %vm3283, %v3225, -inf
      %v3293 = vmax.f32 %v3286, %v3292
      %v3294 = vsel %vm3283, %v3226, -inf
      %v3295 = vmax.f32 %v3287, %v3294
      %v3296 = vsel %vm3283, %v3227, -inf
      %v3297 = vmax.f32 %v3289, %v3296
      %v3298 = vsel %vm3283, %v3228, -inf
      %v3299 = vmax.f32 %v3291, %v3298
      %v3300 = vsel %vm3283, %v3229, -inf
      %v3301 = vmax.f32 %v3293, %v3300
      %v3302 = vsel %vm3283, %v3230, -inf
      %v3303 = vmax.f32 %v3295, %v3302
      %v3304 = vsel %vm3283, %v3231, -inf
      %v3305 = vmax.f32 %v3297, %v3304
      %v3306 = vsel %vm3283, %v3232, -inf
      %v3307 = vmax.f32 %v3299, %v3306
      %v3308 = vsel %vm3283, %v3233, -inf
      %v3309 = vmax.f32 %v3301, %v3308
      %v3310 = vsel %vm3283, %v3234, -inf
      %v3311 = vmax.f32 %v3303, %v3310
      %v3312 = vsel %vm3283, %v3235, -inf
      %v3313 = vmax.f32 %v3305, %v3312
      %v3314 = vsel %vm3283, %v3236, -inf
      %v3315 = vmax.f32 %v3307, %v3314
      %v3316 = vsel %vm3283, %v3237, -inf
      %v3317 = vmax.f32 %v3309, %v3316
      %v3318 = vsel %vm3283, %v3238, -inf
      %v3319 = vmax.f32 %v3311, %v3318
      %v3320 = vsel %vm3283, %v3239, -inf
      %v3321 = vmax.f32 %v3313, %v3320
      %v3322 = vsel %vm3283, %v3240, -inf
      %v3323 = vmax.f32 %v3315, %v3322
      %v3324 = vsel %vm3283, %v3241, -inf
      %v3325 = vmax.f32 %v3317, %v3324
      %v3326 = vsel %vm3283, %v3242, -inf
      %v3327 = vmax.f32 %v3319, %v3326
      %v3328 = vsel %vm3283, %v3243, -inf
      %v3329 = vmax.f32 %v3321, %v3328
      %v3330 = vsel %vm3283, %v3244, -inf
      %v3331 = vmax.f32 %v3323, %v3330
      %v3332 = vsel %vm3283, %v3245, -inf
      %v3333 = vmax.f32 %v3325, %v3332
      %v3334 = vsel %vm3283, %v3246, -inf
      %v3335 = vmax.f32 %v3327, %v3334
      %v3336 = vsel %vm3283, %v3247, -inf
      %v3337 = vmax.f32 %v3329, %v3336
      %v3338 = vsel %vm3283, %v3248, -inf
      %v3339 = vmax.f32 %v3331, %v3338
      %v3340 = vsel %vm3283, %v3249, -inf
      %v3341 = vmax.f32 %v3333, %v3340
      %v3342 = vsel %vm3283, %v3250, -inf
      %v3343 = vmax.f32 %v3335, %v3342
      %v3344 = vsel %vm3283, %v3251, -inf
      %v3345 = vmax.f32 %v3337, %v3344
      %v3346 = vsel %vm3283, %v3252, -inf
      %v3347 = vmax.f32 %v3339, %v3346
      %v3348 = vsel %vm3283, %v3253, -inf
      %v3349 = vmax.f32 %v3341, %v3348
      %v3350 = vsel %vm3283, %v3254, -inf
      %v3351 = vmax.f32 %v3343, %v3350
      %v3352 = vsel %vm3283, %v3255, -inf
      %v3353 = vmax.f32 %v3345, %v3352
      %v3354 = vsel %vm3283, %v3256, -inf
      %v3355 = vmax.f32 %v3347, %v3354
      %v3356 = vsel %vm3283, %v3257, -inf
      %v3357 = vmax.f32 %v3349, %v3356
      %v3358 = vsel %vm3283, %v3258, -inf
      %v3359 = vmax.f32 %v3351, %v3358
      %v3360 = vsel %vm3283, %v3259, -inf
      %v3361 = vmax.f32 %v3353, %v3360
      %v3362 = vsel %vm3283, %v3260, -inf
      %v3363 = vmax.f32 %v3355, %v3362
      %v3364 = vsel %vm3283, %v3261, -inf
      %v3365 = vmax.f32 %v3357, %v3364
      %v3366 = vsel %vm3283, %v3262, -inf
      %v3367 = vmax.f32 %v3359, %v3366
      %v3368 = vsel %vm3283, %v3263, -inf
      %v3369 = vmax.f32 %v3361, %v3368
      %v3370 = vsel %vm3283, %v3264, -inf
      %v3371 = vmax.f32 %v3363, %v3370
      %v3372 = vsel %vm3283, %v3265, -inf
      %v3373 = vmax.f32 %v3365, %v3372
      %v3374 = vsel %vm3283, %v3266, -inf
      %v3375 = vmax.f32 %v3367, %v3374
      %v3376 = vsel %vm3283, %v3267, -inf
      %v3377 = vmax.f32 %v3369, %v3376
      %v3378 = vsel %vm3283, %v3268, -inf
      %v3379 = vmax.f32 %v3371, %v3378
      %v3380 = vsel %vm3283, %v3269, -inf
      %v3381 = vmax.f32 %v3373, %v3380
      %v3382 = vsel %vm3283, %v3270, -inf
      %v3383 = vmax.f32 %v3375, %v3382
      %v3384 = vsel %vm3283, %v3271, -inf
      %v3385 = vmax.f32 %v3377, %v3384
      %v3386 = vsel %vm3283, %v3272, -inf
      %v3387 = vmax.f32 %v3379, %v3386
      %v3388 = vsel %vm3283, %v3273, -inf
      %v3389 = vmax.f32 %v3381, %v3388
      %v3390 = vsel %vm3283, %v3274, -inf
      %v3391 = vmax.f32 %v3383, %v3390
      %v3392 = vsel %vm3283, %v3275, -inf
      %v3393 = vmax.f32 %v3385, %v3392
      %v3394 = vsel %vm3283, %v3276, -inf
      %v3395 = vmax.f32 %v3387, %v3394
      %v3396 = vsel %vm3283, %v3277, -inf
      %v3397 = vmax.f32 %v3389, %v3396
      %v3398 = vsel %vm3283, %v3278, -inf
      %v3399 = vmax.f32 %v3391, %v3398
      %v3400 = vsel %vm3283, %v3279, -inf
      %v3401 = vmax.f32 %v3393, %v3400
      %v3402 = vsel %vm3283, %v3280, -inf
      %v3403 = vmax.f32 %v3395, %v3402
      %v3404 = vsel %vm3283, %v3281, -inf
      %v3405 = vmax.f32 %v3397, %v3404
      %v3406 = vsel %vm3283, %v3282, -inf
      %v3407 = vmax.f32 %v3399, %v3406
      %v3408 = vmax.f32 %v3401, %v3403
      %v3409 = vmax.f32 %v3405, %v3407
      %v3410 = vmax.f32 %v3408, %v3409
      %v3411 = vrot.slane %v3410, 4
      %v3412 = vmax.f32 %v3410, %v3411
      %v3413 = vrot.slane %v3412, 2
      %v3414 = vmax.f32 %v3412, %v3413
      %v3415 = vrot.slane %v3414, 1
      %v3416 = vmax.f32 %v3414, %v3415
      %v3417 = vsub.f32 %v3219, %v3416
      %v3418 = vsub.f32 %v3220, %v3416
      %v3419 = vsub.f32 %v3221, %v3416
      %v3420 = vsub.f32 %v3222, %v3416
      %v3421 = vsub.f32 %v3223, %v3416
      %v3422 = vsub.f32 %v3224, %v3416
      %v3423 = vsub.f32 %v3225, %v3416
      %v3424 = vsub.f32 %v3226, %v3416
      %v3425 = vsub.f32 %v3227, %v3416
      %v3426 = vsub.f32 %v3228, %v3416
      %v3427 = vsub.f32 %v3229, %v3416
      %v3428 = vsub.f32 %v3230, %v3416
      %v3429 = vsub.f32 %v3231, %v3416
      %v3430 = vsub.f32 %v3232, %v3416
      %v3431 = vsub.f32 %v3233, %v3416
      %v3432 = vsub.f32 %v3234, %v3416
      %v3433 = vsub.f32 %v3235, %v3416
      %v3434 = vsub.f32 %v3236, %v3416
      %v3435 = vsub.f32 %v3237, %v3416
      %v3436 = vsub.f32 %v3238, %v3416
      %v3437 = vsub.f32 %v3239, %v3416
      %v3438 = vsub.f32 %v3240, %v3416
      %v3439 = vsub.f32 %v3241, %v3416
      %v3440 = vsub.f32 %v3242, %v3416
      %v3441 = vsub.f32 %v3243, %v3416
      %v3442 = vsub.f32 %v3244, %v3416
      %v3443 = vsub.f32 %v3245, %v3416
      %v3444 = vsub.f32 %v3246, %v3416
      %v3445 = vsub.f32 %v3247, %v3416
      %v3446 = vsub.f32 %v3248, %v3416
      %v3447 = vsub.f32 %v3249, %v3416
      %v3448 = vsub.f32 %v3250, %v3416
      %v3449 = vsub.f32 %v3251, %v3416
      %v3450 = vsub.f32 %v3252, %v3416
      %v3451 = vsub.f32 %v3253, %v3416
      %v3452 = vsub.f32 %v3254, %v3416
      %v3453 = vsub.f32 %v3255, %v3416
      %v3454 = vsub.f32 %v3256, %v3416
      %v3455 = vsub.f32 %v3257, %v3416
      %v3456 = vsub.f32 %v3258, %v3416
      %v3457 = vsub.f32 %v3259, %v3416
      %v3458 = vsub.f32 %v3260, %v3416
      %v3459 = vsub.f32 %v3261, %v3416
      %v3460 = vsub.f32 %v3262, %v3416
      %v3461 = vsub.f32 %v3263, %v3416
      %v3462 = vsub.f32 %v3264, %v3416
      %v3463 = vsub.f32 %v3265, %v3416
      %v3464 = vsub.f32 %v3266, %v3416
      %v3465 = vsub.f32 %v3267, %v3416
      %v3466 = vsub.f32 %v3268, %v3416
      %v3467 = vsub.f32 %v3269, %v3416
      %v3468 = vsub.f32 %v3270, %v3416
      %v3469 = vsub.f32 %v3271, %v3416
      %v3470 = vsub.f32 %v3272, %v3416
      %v3471 = vsub.f32 %v3273, %v3416
      %v3472 = vsub.f32 %v3274, %v3416
      %v3473 = vsub.f32 %v3275, %v3416
      %v3474 = vsub.f32 %v3276, %v3416
      %v3475 = vsub.f32 %v3277, %v3416
      %v3476 = vsub.f32 %v3278, %v3416
      %v3477 = vsub.f32 %v3279, %v3416
      %v3478 = vsub.f32 %v3280, %v3416
      %v3479 = vsub.f32 %v3281, %v3416
      %v3480 = vsub.f32 %v3282, %v3416
      %v3481 = vmul.f32 %v3417, 1.442695
      %v3482 = vpow.pop %v3481
      %v3483 = vmul.f32 %v3418, 1.442695
      %v3484 = vpow.pop %v3483
      %v3485 = vmul.f32 %v3419, 1.442695
      %v3486 = vpow.pop %v3485
      %v3487 = vmul.f32 %v3420, 1.442695
      %v3488 = vpow.pop %v3487
      %v3489 = vmul.f32 %v3421, 1.442695
      %v3490 = vpow.pop %v3489
      %v3491 = vmul.f32 %v3422, 1.442695
      %v3492 = vpow.pop %v3491
      %v3493 = vmul.f32 %v3423, 1.442695
      %v3494 = vpow.pop %v3493
      %v3495 = vmul.f32 %v3424, 1.442695
      %v3496 = vpow.pop %v3495
      %v3497 = vmul.f32 %v3425, 1.442695
      %v3498 = vpow.pop %v3497
      %v3499 = vmul.f32 %v3426, 1.442695
      %v3500 = vpow.pop %v3499
      %v3501 = vmul.f32 %v3427, 1.442695
      %v3502 = vpow.pop %v3501
      %v3503 = vmul.f32 %v3428, 1.442695
      %v3504 = vpow.pop %v3503
      %v3505 = vmul.f32 %v3429, 1.442695
      %v3506 = vpow.pop %v3505
      %v3507 = vmul.f32 %v3430, 1.442695
      %v3508 = vpow.pop %v3507
      %v3509 = vmul.f32 %v3431, 1.442695
      %v3510 = vpow.pop %v3509
      %v3511 = vmul.f32 %v3432, 1.442695
      %v3512 = vpow.pop %v3511
      %v3513 = vmul.f32 %v3433, 1.442695
      %v3514 = vpow.pop %v3513
      %v3515 = vmul.f32 %v3434, 1.442695
      %v3516 = vpow.pop %v3515
      %v3517 = vmul.f32 %v3435, 1.442695
      %v3518 = vpow.pop %v3517
      %v3519 = vmul.f32 %v3436, 1.442695
      %v3520 = vpow.pop %v3519
      %v3521 = vmul.f32 %v3437, 1.442695
      %v3522 = vpow.pop %v3521
      %v3523 = vmul.f32 %v3438, 1.442695
      %v3524 = vpow.pop %v3523
      %v3525 = vmul.f32 %v3439, 1.442695
      %v3526 = vpow.pop %v3525
      %v3527 = vmul.f32 %v3440, 1.442695
      %v3528 = vpow.pop %v3527
      %v3529 = vmul.f32 %v3441, 1.442695
      %v3530 = vpow.pop %v3529
      %v3531 = vmul.f32 %v3442, 1.442695
      %v3532 = vpow.pop %v3531
      %v3533 = vmul.f32 %v3443, 1.442695
      %v3534 = vpow.pop %v3533
      %v3535 = vmul.f32 %v3444, 1.442695
      %v3536 = vpow.pop %v3535
      %v3537 = vmul.f32 %v3445, 1.442695
      %v3538 = vpow.pop %v3537
      %v3539 = vmul.f32 %v3446, 1.442695
      %v3540 = vpow.pop %v3539
      %v3541 = vmul.f32 %v3447, 1.442695
      %v3542 = vpow.pop %v3541
      %v3543 = vmul.f32 %v3448, 1.442695
      %v3544 = vpow.pop %v3543
      %v3545 = vmul.f32 %v3449, 1.442695
      %v3546 = vpow.pop %v3545
      %v3547 = vmul.f32 %v3450, 1.442695
      %v3548 = vpow.pop %v3547
      %v3549 = vmul.f32 %v3451, 1.442695
      %v3550 = vpow.pop %v3549
      %v3551 = vmul.f32 %v3452, 1.442695
      %v3552 = vpow.pop %v3551
      %v3553 = vmul.f32 %v3453, 1.442695
      %v3554 = vpow.pop %v3553
      %v3555 = vmul.f32 %v3454, 1.442695
      %v3556 = vpow.pop %v3555
      %v3557 = vmul.f32 %v3455, 1.442695
      %v3558 = vpow.pop %v3557
      %v3559 = vmul.f32 %v3456, 1.442695
      %v3560 = vpow.pop %v3559
      %v3561 = vmul.f32 %v3457, 1.442695
      %v3562 = vpow.pop %v3561
      %v3563 = vmul.f32 %v3458, 1.442695
      %v3564 = vpow.pop %v3563
      %v3565 = vmul.f32 %v3459, 1.442695
      %v3566 = vpow.pop %v3565
      %v3567 = vmul.f32 %v3460, 1.442695
      %v3568 = vpow.pop %v3567
      %v3569 = vmul.f32 %v3461, 1.442695
      %v3570 = vpow.pop %v3569
      %v3571 = vmul.f32 %v3462, 1.442695
      %v3572 = vpow.pop %v3571
      %v3573 = vmul.f32 %v3463, 1.442695
      %v3574 = vpow.pop %v3573
      %v3575 = vmul.f32 %v3464, 1.442695
      %v3576 = vpow.pop %v3575
      %v3577 = vmul.f32 %v3465, 1.442695
      %v3578 = vpow.pop %v3577
      %v3579 = vmul.f32 %v3466, 1.442695
      %v3580 = vpow.pop %v3579
      %v3581 = vmul.f32 %v3467, 1.442695
      %v3582 = vpow.pop %v3581
      %v3583 = vmul.f32 %v3468, 1.442695
      %v3584 = vpow.pop %v3583
      %v3585 = vmul.f32 %v3469, 1.442695
      %v3586 = vpow.pop %v3585
      %v3587 = vmul.f32 %v3470, 1.442695
      %v3588 = vpow.pop %v3587
      %v3589 = vmul.f32 %v3471, 1.442695
      %v3590 = vpow.pop %v3589
      %v3591 = vmul.f32 %v3472, 1.442695
      %v3592 = vpow.pop %v3591
      %v3593 = vmul.f32 %v3473, 1.442695
      %v3594 = vpow.pop %v3593
      %v3595 = vmul.f32 %v3474, 1.442695
      %v3596 = vpow.pop %v3595
      %v3597 = vmul.f32 %v3475, 1.442695
      %v3598 = vpow.pop %v3597
      %v3599 = vmul.f32 %v3476, 1.442695
      %v3600 = vpow.pop %v3599
      %v3601 = vmul.f32 %v3477, 1.442695
      %v3602 = vpow.pop %v3601
      %v3603 = vmul.f32 %v3478, 1.442695
      %v3604 = vpow.pop %v3603
      %v3605 = vmul.f32 %v3479, 1.442695
      %v3606 = vpow.pop %v3605
      %v3607 = vmul.f32 %v3480, 1.442695
      %v3608 = vpow.pop %v3607
      %v3609 = vsel %vm3283, %v3482, 0.0
      %v3610 = vsel %vm3283, %v3484, 0.0
      %v3611 = vadd.f32 %v3609, %v3610
      %v3612 = vsel %vm3283, %v3486, 0.0
      %v3613 = vadd.f32 %v3611, %v3612
      %v3614 = vsel %vm3283, %v3488, 0.0
      %v3615 = vadd.f32 %v3613, %v3614
      %v3616 = vsel %vm3283, %v3490, 0.0
      %v3617 = vadd.f32 %v3615, %v3616
      %v3618 = vsel %vm3283, %v3492, 0.0
      %v3619 = vadd.f32 %v3617, %v3618
      %v3620 = vsel %vm3283, %v3494, 0.0
      %v3621 = vadd.f32 %v3619, %v3620
      %v3622 = vsel %vm3283, %v3496, 0.0
      %v3623 = vadd.f32 %v3621, %v3622
      %v3624 = vsel %vm3283, %v3498, 0.0
      %v3625 = vadd.f32 %v3623, %v3624
      %v3626 = vsel %vm3283, %v3500, 0.0
      %v3627 = vadd.f32 %v3625, %v3626
      %v3628 = vsel %vm3283, %v3502, 0.0
      %v3629 = vadd.f32 %v3627, %v3628
      %v3630 = vsel %vm3283, %v3504, 0.0
      %v3631 = vadd.f32 %v3629, %v3630
      %v3632 = vsel %vm3283, %v3506, 0.0
      %v3633 = vadd.f32 %v3631, %v3632
      %v3634 = vsel %vm3283, %v3508, 0.0
      %v3635 = vadd.f32 %v3633, %v3634
      %v3636 = vsel %vm3283, %v3510, 0.0
      %v3637 = vadd.f32 %v3635, %v3636
      %v3638 = vsel %vm3283, %v3512, 0.0
      %v3639 = vadd.f32 %v3637, %v3638
      %v3640 = vsel %vm3283, %v3514, 0.0
      %v3641 = vadd.f32 %v3639, %v3640
      %v3642 = vsel %vm3283, %v3516, 0.0
      %v3643 = vadd.f32 %v3641, %v3642
      %v3644 = vsel %vm3283, %v3518, 0.0
      %v3645 = vadd.f32 %v3643, %v3644
      %v3646 = vsel %vm3283, %v3520, 0.0
      %v3647 = vadd.f32 %v3645, %v3646
      %v3648 = vsel %vm3283, %v3522, 0.0
      %v3649 = vadd.f32 %v3647, %v3648
      %v3650 = vsel %vm3283, %v3524, 0.0
      %v3651 = vadd.f32 %v3649, %v3650
      %v3652 = vsel %vm3283, %v3526, 0.0
      %v3653 = vadd.f32 %v3651, %v3652
      %v3654 = vsel %vm3283, %v3528, 0.0
      %v3655 = vadd.f32 %v3653, %v3654
      %v3656 = vsel %vm3283, %v3530, 0.0
      %v3657 = vadd.f32 %v3655, %v3656
      %v3658 = vsel %vm3283, %v3532, 0.0
      %v3659 = vadd.f32 %v3657, %v3658
      %v3660 = vsel %vm3283, %v3534, 0.0
      %v3661 = vadd.f32 %v3659, %v3660
      %v3662 = vsel %vm3283, %v3536, 0.0
      %v3663 = vadd.f32 %v3661, %v3662
      %v3664 = vsel %vm3283, %v3538, 0.0
      %v3665 = vadd.f32 %v3663, %v3664
      %v3666 = vsel %vm3283, %v3540, 0.0
      %v3667 = vadd.f32 %v3665, %v3666
      %v3668 = vsel %vm3283, %v3542, 0.0
      %v3669 = vadd.f32 %v3667, %v3668
      %v3670 = vsel %vm3283, %v3544, 0.0
      %v3671 = vadd.f32 %v3669, %v3670
      %v3672 = vsel %vm3283, %v3546, 0.0
      %v3673 = vadd.f32 %v3671, %v3672
      %v3674 = vsel %vm3283, %v3548, 0.0
      %v3675 = vadd.f32 %v3673, %v3674
      %v3676 = vsel %vm3283, %v3550, 0.0
      %v3677 = vadd.f32 %v3675, %v3676
      %v3678 = vsel %vm3283, %v3552, 0.0
      %v3679 = vadd.f32 %v3677, %v3678
      %v3680 = vsel %vm3283, %v3554, 0.0
      %v3681 = vadd.f32 %v3679, %v3680
      %v3682 = vsel %vm3283, %v3556, 0.0
      %v3683 = vadd.f32 %v3681, %v3682
      %v3684 = vsel %vm3283, %v3558, 0.0
      %v3685 = vadd.f32 %v3683, %v3684
      %v3686 = vsel %vm3283, %v3560, 0.0
      %v3687 = vadd.f32 %v3685, %v3686
      %v3688 = vsel %vm3283, %v3562, 0.0
      %v3689 = vadd.f32 %v3687, %v3688
      %v3690 = vsel %vm3283, %v3564, 0.0
      %v3691 = vadd.f32 %v3689, %v3690
      %v3692 = vsel %vm3283, %v3566, 0.0
      %v3693 = vadd.f32 %v3691, %v3692
      %v3694 = vsel %vm3283, %v3568, 0.0
      %v3695 = vadd.f32 %v3693, %v3694
      %v3696 = vsel %vm3283, %v3570, 0.0
      %v3697 = vadd.f32 %v3695, %v3696
      %v3698 = vsel %vm3283, %v3572, 0.0
      %v3699 = vadd.f32 %v3697, %v3698
      %v3700 = vsel %vm3283, %v3574, 0.0
      %v3701 = vadd.f32 %v3699, %v3700
      %v3702 = vsel %vm3283, %v3576, 0.0
      %v3703 = vadd.f32 %v3701, %v3702
      %v3704 = vsel %vm3283, %v3578, 0.0
      %v3705 = vadd.f32 %v3703, %v3704
      %v3706 = vsel %vm3283, %v3580, 0.0
      %v3707 = vadd.f32 %v3705, %v3706
      %v3708 = vsel %vm3283, %v3582, 0.0
      %v3709 = vadd.f32 %v3707, %v3708
      %v3710 = vsel %vm3283, %v3584, 0.0
      %v3711 = vadd.f32 %v3709, %v3710
      %v3712 = vsel %vm3283, %v3586, 0.0
      %v3713 = vadd.f32 %v3711, %v3712
      %v3714 = vsel %vm3283, %v3588, 0.0
      %v3715 = vadd.f32 %v3713, %v3714
      %v3716 = vsel %vm3283, %v3590, 0.0
      %v3717 = vadd.f32 %v3715, %v3716
      %v3718 = vsel %vm3283, %v3592, 0.0
      %v3719 = vadd.f32 %v3717, %v3718
      %v3720 = vsel %vm3283, %v3594, 0.0
      %v3721 = vadd.f32 %v3719, %v3720
      %v3722 = vsel %vm3283, %v3596, 0.0
      %v3723 = vadd.f32 %v3721, %v3722
      %v3724 = vsel %vm3283, %v3598, 0.0
      %v3725 = vadd.f32 %v3723, %v3724
      %v3726 = vsel %vm3283, %v3600, 0.0
      %v3727 = vadd.f32 %v3725, %v3726
      %v3728 = vsel %vm3283, %v3602, 0.0
      %v3729 = vadd.f32 %v3727, %v3728
      %v3730 = vsel %vm3283, %v3604, 0.0
      %v3731 = vadd.f32 %v3729, %v3730
      %v3732 = vsel %vm3283, %v3606, 0.0
      %v3733 = vadd.f32 %v3731, %v3732
      %v3734 = vsel %vm3283, %v3608, 0.0
      %v3735 = vadd.f32 %v3733, %v3734
      %v3736 = vrot.slane %v3735, 4
      %v3737 = vadd.f32 %v3735, %v3736
      %v3738 = vrot.slane %v3737, 2
      %v3739 = vadd.f32 %v3737, %v3738
      %v3740 = vrot.slane %v3739, 1
      %v3741 = vadd.f32 %v3739, %v3740
      %v3742 = vrcp.pop %v3741
      %v3743 = vmul.f32 %v3741, %v3742
      %v3744 = vsub.f32 1.0, %v3743
      %v3745 = vmul.f32 %v3742, %v3744
      %v3746 = vadd.f32 %v3742, %v3745
      %vm3747 = vweird.f32 %v3741
      %vm3748 = vweird.f32 %v3742
      %vm3749 = vmor %vm3747, %vm3748
      %v3750 = vsel %vm3749, %v3742, %v3746
      %v3751 = vand.u32 2147483647, %v3741
      %vm3752 = vcmp.eq.f32.partialorder %v3751, 8.507059e+37
      %v3753 = vand.u32 %v3741, 2147483648
      %v3754 = vor.u32 1.1754944e-38, %v3753
      %v3755 = vsel %vm3752, %v3754, %v3750
      %v3756 = vmul.f32 %v3482, %v3755
      %v3757 = vmul.f32 %v3484, %v3755
      %v3758 = vmul.f32 %v3486, %v3755
      %v3759 = vmul.f32 %v3488, %v3755
      %v3760 = vmul.f32 %v3490, %v3755
      %v3761 = vmul.f32 %v3492, %v3755
      %v3762 = vmul.f32 %v3494, %v3755
      %v3763 = vmul.f32 %v3496, %v3755
      %v3764 = vmul.f32 %v3498, %v3755
      %v3765 = vmul.f32 %v3500, %v3755
      %v3766 = vmul.f32 %v3502, %v3755
      %v3767 = vmul.f32 %v3504, %v3755
      %v3768 = vmul.f32 %v3506, %v3755
      %v3769 = vmul.f32 %v3508, %v3755
      %v3770 = vmul.f32 %v3510, %v3755
      %v3771 = vmul.f32 %v3512, %v3755
      %v3772 = vmul.f32 %v3514, %v3755
      %v3773 = vmul.f32 %v3516, %v3755
      %v3774 = vmul.f32 %v3518, %v3755
      %v3775 = vmul.f32 %v3520, %v3755
      %v3776 = vmul.f32 %v3522, %v3755
      %v3777 = vmul.f32 %v3524, %v3755
      %v3778 = vmul.f32 %v3526, %v3755
      %v3779 = vmul.f32 %v3528, %v3755
      %v3780 = vmul.f32 %v3530, %v3755
      %v3781 = vmul.f32 %v3532, %v3755
      %v3782 = vmul.f32 %v3534, %v3755
      %v3783 = vmul.f32 %v3536, %v3755
      %v3784 = vmul.f32 %v3538, %v3755
      %v3785 = vmul.f32 %v3540, %v3755
      %v3786 = vmul.f32 %v3542, %v3755
      %v3787 = vmul.f32 %v3544, %v3755
      %v3788 = vmul.f32 %v3546, %v3755
      %v3789 = vmul.f32 %v3548, %v3755
      %v3790 = vmul.f32 %v3550, %v3755
      %v3791 = vmul.f32 %v3552, %v3755
      %v3792 = vmul.f32 %v3554, %v3755
      %v3793 = vmul.f32 %v3556, %v3755
      %v3794 = vmul.f32 %v3558, %v3755
      %v3795 = vmul.f32 %v3560, %v3755
      %v3796 = vmul.f32 %v3562, %v3755
      %v3797 = vmul.f32 %v3564, %v3755
      %v3798 = vmul.f32 %v3566, %v3755
      %v3799 = vmul.f32 %v3568, %v3755
      %v3800 = vmul.f32 %v3570, %v3755
      %v3801 = vmul.f32 %v3572, %v3755
      %v3802 = vmul.f32 %v3574, %v3755
      %v3803 = vmul.f32 %v3576, %v3755
      %v3804 = vmul.f32 %v3578, %v3755
      %v3805 = vmul.f32 %v3580, %v3755
      %v3806 = vmul.f32 %v3582, %v3755
      %v3807 = vmul.f32 %v3584, %v3755
      %v3808 = vmul.f32 %v3586, %v3755
      %v3809 = vmul.f32 %v3588, %v3755
      %v3810 = vmul.f32 %v3590, %v3755
      %v3811 = vmul.f32 %v3592, %v3755
      %v3812 = vmul.f32 %v3594, %v3755
      %v3813 = vmul.f32 %v3596, %v3755
      %v3814 = vmul.f32 %v3598, %v3755
      %v3815 = vmul.f32 %v3600, %v3755
      %v3816 = vmul.f32 %v3602, %v3755
      %v3817 = vmul.f32 %v3604, %v3755
      %v3818 = vmul.f32 %v3606, %v3755
      %v3819 = vmul.f32 %v3608, %v3755
      %3884 = vrot.lane.b32.xlu0 %v3756, 78
      %v3885 = vpop.permute.xlu0 %3884
      %3886 = vrot.lane.b32.xlu0 %v3757, 78
      %v3887 = vpop.permute.xlu0 %3886
      %3888 = vrot.lane.b32.xlu0 %v3758, 78
      %v3889 = vpop.permute.xlu0 %3888
      %3890 = vrot.lane.b32.xlu0 %v3759, 78
      %v3891 = vpop.permute.xlu0 %3890
      %3892 = vrot.lane.b32.xlu0 %v3760, 78
      %v3893 = vpop.permute.xlu0 %3892
      %3894 = vrot.lane.b32.xlu0 %v3761, 78
      %v3895 = vpop.permute.xlu0 %3894
      %3896 = vrot.lane.b32.xlu0 %v3762, 78
      %v3897 = vpop.permute.xlu0 %3896
      %3898 = vrot.lane.b32.xlu0 %v3763, 78
      %v3899 = vpop.permute.xlu0 %3898
      %3900 = vrot.lane.b32.xlu0 %v3764, 78
      %v3901 = vpop.permute.xlu0 %3900
      %3902 = vrot.lane.b32.xlu0 %v3765, 78
      %v3903 = vpop.permute.xlu0 %3902
      %3904 = vrot.lane.b32.xlu0 %v3766, 78
      %v3905 = vpop.permute.xlu0 %3904
      %3906 = vrot.lane.b32.xlu0 %v3767, 78
      %v3907 = vpop.permute.xlu0 %3906
      %3908 = vrot.lane.b32.xlu0 %v3768, 78
      %v3909 = vpop.permute.xlu0 %3908
      %3910 = vrot.lane.b32.xlu0 %v3769, 78
      %v3911 = vpop.permute.xlu0 %3910
      %3912 = vrot.lane.b32.xlu0 %v3770, 78
      %v3913 = vpop.permute.xlu0 %3912
      %3914 = vrot.lane.b32.xlu0 %v3771, 78
      %v3915 = vpop.permute.xlu0 %3914
      %3916 = vrot.lane.b32.xlu0 %v3772, 78
      %v3917 = vpop.permute.xlu0 %3916
      %3918 = vrot.lane.b32.xlu0 %v3773, 78
      %v3919 = vpop.permute.xlu0 %3918
      %3920 = vrot.lane.b32.xlu0 %v3774, 78
      %v3921 = vpop.permute.xlu0 %3920
      %3922 = vrot.lane.b32.xlu0 %v3775, 78
      %v3923 = vpop.permute.xlu0 %3922
      %3924 = vrot.lane.b32.xlu0 %v3776, 78
      %v3925 = vpop.permute.xlu0 %3924
      %3926 = vrot.lane.b32.xlu0 %v3777, 78
      %v3927 = vpop.permute.xlu0 %3926
      %3928 = vrot.lane.b32.xlu0 %v3778, 78
      %v3929 = vpop.permute.xlu0 %3928
      %3930 = vrot.lane.b32.xlu0 %v3779, 78
      %v3931 = vpop.permute.xlu0 %3930
      %3932 = vrot.lane.b32.xlu0 %v3780, 78
      %v3933 = vpop.permute.xlu0 %3932
      %3934 = vrot.lane.b32.xlu0 %v3781, 78
      %v3935 = vpop.permute.xlu0 %3934
      %3936 = vrot.lane.b32.xlu0 %v3782, 78
      %v3937 = vpop.permute.xlu0 %3936
      %3938 = vrot.lane.b32.xlu0 %v3783, 78
      %v3939 = vpop.permute.xlu0 %3938
      %3940 = vrot.lane.b32.xlu0 %v3784, 78
      %v3941 = vpop.permute.xlu0 %3940
      %3942 = vrot.lane.b32.xlu0 %v3785, 78
      %v3943 = vpop.permute.xlu0 %3942
      %3944 = vrot.lane.b32.xlu0 %v3786, 78
      %v3945 = vpop.permute.xlu0 %3944
      %3946 = vrot.lane.b32.xlu0 %v3787, 78
      %v3947 = vpop.permute.xlu0 %3946
      %3948 = vrot.lane.b32.xlu0 %v3788, 78
      %v3949 = vpop.permute.xlu0 %3948
      %3950 = vrot.lane.b32.xlu0 %v3789, 78
      %v3951 = vpop.permute.xlu0 %3950
      %3952 = vrot.lane.b32.xlu0 %v3790, 78
      %v3953 = vpop.permute.xlu0 %3952
      %3954 = vrot.lane.b32.xlu0 %v3791, 78
      %v3955 = vpop.permute.xlu0 %3954
      %3956 = vrot.lane.b32.xlu0 %v3792, 78
      %v3957 = vpop.permute.xlu0 %3956
      %3958 = vrot.lane.b32.xlu0 %v3793, 78
      %v3959 = vpop.permute.xlu0 %3958
      %3960 = vrot.lane.b32.xlu0 %v3794, 78
      %v3961 = vpop.permute.xlu0 %3960
      %3962 = vrot.lane.b32.xlu0 %v3795, 78
      %v3963 = vpop.permute.xlu0 %3962
      %3964 = vrot.lane.b32.xlu0 %v3796, 78
      %v3965 = vpop.permute.xlu0 %3964
      %3966 = vrot.lane.b32.xlu0 %v3797, 78
      %v3967 = vpop.permute.xlu0 %3966
      %3968 = vrot.lane.b32.xlu0 %v3798, 78
      %v3969 = vpop.permute.xlu0 %3968
      %3970 = vrot.lane.b32.xlu0 %v3799, 78
      %v3971 = vpop.permute.xlu0 %3970
      %3972 = vrot.lane.b32.xlu0 %v3800, 78
      %v3973 = vpop.permute.xlu0 %3972
      %3974 = vrot.lane.b32.xlu0 %v3801, 78
      %v3975 = vpop.permute.xlu0 %3974
      %3976 = vrot.lane.b32.xlu0 %v3802, 78
      %v3977 = vpop.permute.xlu0 %3976
      %3978 = vrot.lane.b32.xlu0 %v3803, 78
      %v3979 = vpop.permute.xlu0 %3978
      %3980 = vrot.lane.b32.xlu0 %v3804, 78
      %v3981 = vpop.permute.xlu0 %3980
      %3982 = vrot.lane.b32.xlu0 %v3805, 78
      %v3983 = vpop.permute.xlu0 %3982
      %3984 = vrot.lane.b32.xlu0 %v3806, 78
      %v3985 = vpop.permute.xlu0 %3984
      %3986 = vrot.lane.b32.xlu0 %v3807, 78
      %v3987 = vpop.permute.xlu0 %3986
      %3988 = vrot.lane.b32.xlu0 %v3808, 78
      %v3989 = vpop.permute.xlu0 %3988
      %3990 = vrot.lane.b32.xlu0 %v3809, 78
      %v3991 = vpop.permute.xlu0 %3990
      %3992 = vrot.lane.b32.xlu0 %v3810, 78
      %v3993 = vpop.permute.xlu0 %3992
      %3994 = vrot.lane.b32.xlu0 %v3811, 78
      %v3995 = vpop.permute.xlu0 %3994
      %3996 = vrot.lane.b32.xlu0 %v3812, 78
      %v3997 = vpop.permute.xlu0 %3996
      %3998 = vrot.lane.b32.xlu0 %v3813, 78
      %v3999 = vpop.permute.xlu0 %3998
      %4000 = vrot.lane.b32.xlu0 %v3814, 78
      %v4001 = vpop.permute.xlu0 %4000
      %4002 = vrot.lane.b32.xlu0 %v3815, 78
      %v4003 = vpop.permute.xlu0 %4002
      %4004 = vrot.lane.b32.xlu0 %v3816, 78
      %v4005 = vpop.permute.xlu0 %4004
      %4006 = vrot.lane.b32.xlu0 %v3817, 78
      %v4007 = vpop.permute.xlu0 %4006
      %4008 = vrot.lane.b32.xlu0 %v3818, 78
      %v4009 = vpop.permute.xlu0 %4008
      %4010 = vrot.lane.b32.xlu0 %v3819, 78
      %v4011 = vpop.permute.xlu0 %4010
      %4076 = vxpose.xlu0.b32.start [1/16] %v3885, 128
      %4077 = vxpose.xlu0.b32.cont [2/16] %v3887, 128
      %4078 = vxpose.xlu0.b32.cont [3/16] %v3889, 128
      %4079 = vxpose.xlu0.b32.cont [4/16] %v3891, 128
      %4080 = vxpose.xlu0.b32.cont [5/16] %v3893, 128
      %4081 = vxpose.xlu0.b32.cont [6/16] %v3895, 128
      %4082 = vxpose.xlu0.b32.cont [7/16] %v3897, 128
      %4083 = vxpose.xlu0.b32.cont [8/16] %v3899, 128
      %4084 = vxpose.xlu0.b32.cont [9/16] %v3901, 128
      %4085 = vxpose.xlu0.b32.cont [10/16] %v3903, 128
      %4086 = vxpose.xlu0.b32.cont [11/16] %v3905, 128
      %4087 = vxpose.xlu0.b32.cont [12/16] %v3907, 128
      %4088 = vxpose.xlu0.b32.cont [13/16] %v3909, 128
      %4089 = vxpose.xlu0.b32.cont [14/16] %v3911, 128
      %4090 = vxpose.xlu0.b32.cont [15/16] %v3913, 128
      %4091 = vxpose.xlu0.b32.end [16/16] %v3915, 128
      %v4092 = vpop.trf.xlu0
      %v4093 = vpop.trf.xlu0
      %v4094 = vpop.trf.xlu0
      %v4095 = vpop.trf.xlu0
      %v4096 = vpop.trf.xlu0
      %v4097 = vpop.trf.xlu0
      %v4098 = vpop.trf.xlu0
      %v4099 = vpop.trf.xlu0
      %v4100 = vpop.trf.xlu0
      %v4101 = vpop.trf.xlu0
      %v4102 = vpop.trf.xlu0
      %v4103 = vpop.trf.xlu0
      %v4104 = vpop.trf.xlu0
      %v4105 = vpop.trf.xlu0
      %v4106 = vpop.trf.xlu0
      %v4107 = vpop.trf.xlu0
      %4108 = vxpose.xlu0.b32.start [1/16] %v3917, 128
      %4109 = vxpose.xlu0.b32.cont [2/16] %v3919, 128
      %4110 = vxpose.xlu0.b32.cont [3/16] %v3921, 128
      %4111 = vxpose.xlu0.b32.cont [4/16] %v3923, 128
      %4112 = vxpose.xlu0.b32.cont [5/16] %v3925, 128
      %4113 = vxpose.xlu0.b32.cont [6/16] %v3927, 128
      %4114 = vxpose.xlu0.b32.cont [7/16] %v3929, 128
      %4115 = vxpose.xlu0.b32.cont [8/16] %v3931, 128
      %4116 = vxpose.xlu0.b32.cont [9/16] %v3933, 128
      %4117 = vxpose.xlu0.b32.cont [10/16] %v3935, 128
      %4118 = vxpose.xlu0.b32.cont [11/16] %v3937, 128
      %4119 = vxpose.xlu0.b32.cont [12/16] %v3939, 128
      %4120 = vxpose.xlu0.b32.cont [13/16] %v3941, 128
      %4121 = vxpose.xlu0.b32.cont [14/16] %v3943, 128
      %4122 = vxpose.xlu0.b32.cont [15/16] %v3945, 128
      %4123 = vxpose.xlu0.b32.end [16/16] %v3947, 128
      %v4124 = vpop.trf.xlu0
      %v4125 = vpop.trf.xlu0
      %v4126 = vpop.trf.xlu0
      %v4127 = vpop.trf.xlu0
      %v4128 = vpop.trf.xlu0
      %v4129 = vpop.trf.xlu0
      %v4130 = vpop.trf.xlu0
      %v4131 = vpop.trf.xlu0
      %v4132 = vpop.trf.xlu0
      %v4133 = vpop.trf.xlu0
      %v4134 = vpop.trf.xlu0
      %v4135 = vpop.trf.xlu0
      %v4136 = vpop.trf.xlu0
      %v4137 = vpop.trf.xlu0
      %v4138 = vpop.trf.xlu0
      %v4139 = vpop.trf.xlu0
      %4140 = vxpose.xlu0.b32.start [1/16] %v3949, 128
      %4141 = vxpose.xlu0.b32.cont [2/16] %v3951, 128
      %4142 = vxpose.xlu0.b32.cont [3/16] %v3953, 128
      %4143 = vxpose.xlu0.b32.cont [4/16] %v3955, 128
      %4144 = vxpose.xlu0.b32.cont [5/16] %v3957, 128
      %4145 = vxpose.xlu0.b32.cont [6/16] %v3959, 128
      %4146 = vxpose.xlu0.b32.cont [7/16] %v3961, 128
      %4147 = vxpose.xlu0.b32.cont [8/16] %v3963, 128
      %4148 = vxpose.xlu0.b32.cont [9/16] %v3965, 128
      %4149 = vxpose.xlu0.b32.cont [10/16] %v3967, 128
      %4150 = vxpose.xlu0.b32.cont [11/16] %v3969, 128
      %4151 = vxpose.xlu0.b32.cont [12/16] %v3971, 128
      %4152 = vxpose.xlu0.b32.cont [13/16] %v3973, 128
      %4153 = vxpose.xlu0.b32.cont [14/16] %v3975, 128
      %4154 = vxpose.xlu0.b32.cont [15/16] %v3977, 128
      %4155 = vxpose.xlu0.b32.end [16/16] %v3979, 128
      %v4156 = vpop.trf.xlu0
      %v4157 = vpop.trf.xlu0
      %v4158 = vpop.trf.xlu0
      %v4159 = vpop.trf.xlu0
      %v4160 = vpop.trf.xlu0
      %v4161 = vpop.trf.xlu0
      %v4162 = vpop.trf.xlu0
      %v4163 = vpop.trf.xlu0
      %v4164 = vpop.trf.xlu0
      %v4165 = vpop.trf.xlu0
      %v4166 = vpop.trf.xlu0
      %v4167 = vpop.trf.xlu0
      %v4168 = vpop.trf.xlu0
      %v4169 = vpop.trf.xlu0
      %v4170 = vpop.trf.xlu0
      %v4171 = vpop.trf.xlu0
      %4172 = vxpose.xlu0.b32.start [1/16] %v3981, 128
      %4173 = vxpose.xlu0.b32.cont [2/16] %v3983, 128
      %4174 = vxpose.xlu0.b32.cont [3/16] %v3985, 128
      %4175 = vxpose.xlu0.b32.cont [4/16] %v3987, 128
      %4176 = vxpose.xlu0.b32.cont [5/16] %v3989, 128
      %4177 = vxpose.xlu0.b32.cont [6/16] %v3991, 128
      %4178 = vxpose.xlu0.b32.cont [7/16] %v3993, 128
      %4179 = vxpose.xlu0.b32.cont [8/16] %v3995, 128
      %4180 = vxpose.xlu0.b32.cont [9/16] %v3997, 128
      %4181 = vxpose.xlu0.b32.cont [10/16] %v3999, 128
      %4182 = vxpose.xlu0.b32.cont [11/16] %v4001, 128
      %4183 = vxpose.xlu0.b32.cont [12/16] %v4003, 128
      %4184 = vxpose.xlu0.b32.cont [13/16] %v4005, 128
      %4185 = vxpose.xlu0.b32.cont [14/16] %v4007, 128
      %4186 = vxpose.xlu0.b32.cont [15/16] %v4009, 128
      %4187 = vxpose.xlu0.b32.end [16/16] %v4011, 128
      %v4188 = vpop.trf.xlu0
      %v4189 = vpop.trf.xlu0
      %v4190 = vpop.trf.xlu0
      %v4191 = vpop.trf.xlu0
      %v4192 = vpop.trf.xlu0
      %v4193 = vpop.trf.xlu0
      %v4194 = vpop.trf.xlu0
      %v4195 = vpop.trf.xlu0
      %v4196 = vpop.trf.xlu0
      %v4197 = vpop.trf.xlu0
      %v4198 = vpop.trf.xlu0
      %v4199 = vpop.trf.xlu0
      %v4200 = vpop.trf.xlu0
      %v4201 = vpop.trf.xlu0
      %v4202 = vpop.trf.xlu0
      %v4203 = vpop.trf.xlu0
      %4204 = vmatpush.msra.mxu0 %v1622
      %4205 = vmatpush.msra.mxu0 %v1620
      %4206 = vmatpush.msra.mxu0 %v1617
      %4207 = vmatpush.msra.mxu0 %v1615
      %4208 = vmatpush.msra.mxu0 %v1612
      %4209 = vmatpush.msra.mxu0 %v1610
      %4210 = vmatpush.msra.mxu0 %v1607
      %4211 = vmatpush.msra.mxu0 %v1605
      %4212 = vmatpush.msra.mxu0 %v1602
      %4213 = vmatpush.msra.mxu0 %v1600
      %4214 = vmatpush.msra.mxu0 %v1597
      %4215 = vmatpush.msra.mxu0 %v1595
      %4216 = vmatpush.msra.mxu0 %v1592
      %4217 = vmatpush.msra.mxu0 %v1590
      %4218 = vmatpush.msra.mxu0 %v1587
      %4219 = vmatpush.msra.mxu0 %v1585
      %4220 = vmatmul.f32.gmra.mxu0 %v4092
      %v4221 = vpop.f32.mrf.mxu0
      %v4222 = vadd.f32 0.0, %v4221
      %4223 = vdwg.mxu0
      %4224 = vmatpush.msra.mxu0 %v1662
      %4225 = vmatpush.msra.mxu0 %v1660
      %4226 = vmatpush.msra.mxu0 %v1657
      %4227 = vmatpush.msra.mxu0 %v1655
      %4228 = vmatpush.msra.mxu0 %v1652
      %4229 = vmatpush.msra.mxu0 %v1650
      %4230 = vmatpush.msra.mxu0 %v1647
      %4231 = vmatpush.msra.mxu0 %v1645
      %4232 = vmatpush.msra.mxu0 %v1642
      %4233 = vmatpush.msra.mxu0 %v1640
      %4234 = vmatpush.msra.mxu0 %v1637
      %4235 = vmatpush.msra.mxu0 %v1635
      %4236 = vmatpush.msra.mxu0 %v1632
      %4237 = vmatpush.msra.mxu0 %v1630
      %4238 = vmatpush.msra.mxu0 %v1627
      %4239 = vmatpush.msra.mxu0 %v1625
      %4240 = vmatmul.f32.gmra.mxu0 %v4124
      %v4241 = vpop.f32.mrf.mxu0
      %v4242 = vadd.f32 %v4222, %v4241
      %4243 = vdwg.mxu0
      %4244 = vmatpush.msra.mxu0 %v1702
      %4245 = vmatpush.msra.mxu0 %v1700
      %4246 = vmatpush.msra.mxu0 %v1697
      %4247 = vmatpush.msra.mxu0 %v1695
      %4248 = vmatpush.msra.mxu0 %v1692
      %4249 = vmatpush.msra.mxu0 %v1690
      %4250 = vmatpush.msra.mxu0 %v1687
      %4251 = vmatpush.msra.mxu0 %v1685
      %4252 = vmatpush.msra.mxu0 %v1682
      %4253 = vmatpush.msra.mxu0 %v1680
      %4254 = vmatpush.msra.mxu0 %v1677
      %4255 = vmatpush.msra.mxu0 %v1675
      %4256 = vmatpush.msra.mxu0 %v1672
      %4257 = vmatpush.msra.mxu0 %v1670
      %4258 = vmatpush.msra.mxu0 %v1667
      %4259 = vmatpush.msra.mxu0 %v1665
      %4260 = vmatmul.f32.gmra.mxu0 %v4156
      %v4261 = vpop.f32.mrf.mxu0
      %v4262 = vadd.f32 %v4242, %v4261
      %4263 = vdwg.mxu0
      %4264 = vmatpush.msra.mxu0 %v1742
      %4265 = vmatpush.msra.mxu0 %v1740
      %4266 = vmatpush.msra.mxu0 %v1737
      %4267 = vmatpush.msra.mxu0 %v1735
      %4268 = vmatpush.msra.mxu0 %v1732
      %4269 = vmatpush.msra.mxu0 %v1730
      %4270 = vmatpush.msra.mxu0 %v1727
      %4271 = vmatpush.msra.mxu0 %v1725
      %4272 = vmatpush.msra.mxu0 %v1722
      %4273 = vmatpush.msra.mxu0 %v1720
      %4274 = vmatpush.msra.mxu0 %v1717
      %4275 = vmatpush.msra.mxu0 %v1715
      %4276 = vmatpush.msra.mxu0 %v1712
      %4277 = vmatpush.msra.mxu0 %v1710
      %4278 = vmatpush.msra.mxu0 %v1707
      %4279 = vmatpush.msra.mxu0 %v1705
      %4280 = vmatmul.f32.gmra.mxu0 %v4188
      %v4281 = vpop.f32.mrf.mxu0
      %v4282 = vadd.f32 %v4262, %v4281
      %4283 = vdwg.mxu0
      %v4284 = vld [vmem:[%s3] sm:$0x1f]
      %v4285 = vmul.f32 %v4282, %v4284
      %v4286 = vld [vmem:[%s4] sm:$0xff]
      %v4287 = vld [vmem:[%s4 + $0x8] sm:$0xff]
      %v4288 = vld [vmem:[%s4 + $0x10] sm:$0xff]
      %v4289 = vld [vmem:[%s4 + $0x18] sm:$0xff]
      %v4290 = vld [vmem:[%s4 + $0x20] sm:$0xff]
      %v4291 = vld [vmem:[%s4 + $0x28] sm:$0xff]
      %v4292 = vld [vmem:[%s4 + $0x30] sm:$0xff]
      %v4293 = vld [vmem:[%s4 + $0x38] sm:$0xff]
      %v4294 = vld [vmem:[%s4 + $0x40] sm:$0xff]
      %v4295 = vld [vmem:[%s4 + $0x48] sm:$0xff]
      %v4296 = vld [vmem:[%s4 + $0x50] sm:$0xff]
      %v4297 = vld [vmem:[%s4 + $0x58] sm:$0xff]
      %v4298 = vld [vmem:[%s4 + $0x60] sm:$0xff]
      %v4299 = vld [vmem:[%s4 + $0x68] sm:$0xff]
      %v4300 = vld [vmem:[%s4 + $0x70] sm:$0xff]
      %v4301 = vld [vmem:[%s4 + $0x78] sm:$0xff]
      %4302 = vmatpush.msra.mxu0 %v4301
      %4303 = vmatpush.msra.mxu0 %v4300
      %4304 = vmatpush.msra.mxu0 %v4299
      %4305 = vmatpush.msra.mxu0 %v4298
      %4306 = vmatpush.msra.mxu0 %v4297
      %4307 = vmatpush.msra.mxu0 %v4296
      %4308 = vmatpush.msra.mxu0 %v4295
      %4309 = vmatpush.msra.mxu0 %v4294
      %4310 = vmatpush.msra.mxu0 %v4293
      %4311 = vmatpush.msra.mxu0 %v4292
      %4312 = vmatpush.msra.mxu0 %v4291
      %4313 = vmatpush.msra.mxu0 %v4290
      %4314 = vmatpush.msra.mxu0 %v4289
      %4315 = vmatpush.msra.mxu0 %v4288
      %4316 = vmatpush.msra.mxu0 %v4287
      %4317 = vmatpush.msra.mxu0 %v4286
      %4318 = vmatmul.f32.gmra.mxu0 %v4285
      %v4319 = vpop.f32.mrf.mxu0
      %v4320 = vadd.f32 0.0, %v4319
      %4321 = vdwg.mxu0
      %v4322 = vld [vmem:[%s372] sm:$0xff]
      %v4323 = vld [vmem:[%s372 + $0x8] sm:$0xf]
      %v4324 = vld [vmem:[%s372 + $0xc] sm:$0xff]
      %v4325 = vld [vmem:[%s372 + $0x14] sm:$0xf]
      %v4326 = vld [vmem:[%s372 + $0x18] sm:$0xff]
      %v4327 = vld [vmem:[%s372 + $0x20] sm:$0xf]
      %v4328 = vld [vmem:[%s372 + $0x24] sm:$0xff]
      %v4329 = vld [vmem:[%s372 + $0x2c] sm:$0xf]
      %v4330 = vld [vmem:[%s372 + $0x30] sm:$0xff]
      %v4331 = vld [vmem:[%s372 + $0x38] sm:$0xf]
      %v4332 = vld [vmem:[%s372 + $0x3c] sm:$0xff]
      %v4333 = vld [vmem:[%s372 + $0x44] sm:$0xf]
      %v4334 = vld [vmem:[%s372 + $0x48] sm:$0xff]
      %v4335 = vld [vmem:[%s372 + $0x50] sm:$0xf]
      %v4336 = vld [vmem:[%s372 + $0x54] sm:$0xff]
      %v4337 = vld [vmem:[%s372 + $0x5c] sm:$0xf]
      %v4338 = vld [vmem:[%s372 + $0x60] sm:$0xff]
      %v4339 = vld [vmem:[%s372 + $0x68] sm:$0xf]
      %v4340 = vld [vmem:[%s372 + $0x6c] sm:$0xff]
      %v4341 = vld [vmem:[%s372 + $0x74] sm:$0xf]
      %v4342 = vld [vmem:[%s372 + $0x78] sm:$0xff]
      %v4343 = vld [vmem:[%s372 + $0x80] sm:$0xf]
      %v4344 = vld [vmem:[%s372 + $0x84] sm:$0xff]
      %v4345 = vld [vmem:[%s372 + $0x8c] sm:$0xf]
      %v4346 = vld [vmem:[%s372 + $0x90] sm:$0xff]
      %v4347 = vld [vmem:[%s372 + $0x98] sm:$0xf]
      %v4348 = vld [vmem:[%s372 + $0x9c] sm:$0xff]
      %v4349 = vld [vmem:[%s372 + $0xa4] sm:$0xf]
      %v4350 = vld [vmem:[%s372 + $0xa8] sm:$0xff]
      %v4351 = vld [vmem:[%s372 + $0xb0] sm:$0xf]
      %v4352 = vld [vmem:[%s372 + $0xb4] sm:$0xff]
      %v4353 = vld [vmem:[%s372 + $0xbc] sm:$0xf]
      %v4354 = vld [vmem:[%s372 + $0xc0] sm:$0xff]
      %v4355 = vld [vmem:[%s372 + $0xc8] sm:$0xf]
      %v4356 = vld [vmem:[%s372 + $0xcc] sm:$0xff]
      %v4357 = vld [vmem:[%s372 + $0xd4] sm:$0xf]
      %v4358 = vld [vmem:[%s372 + $0xd8] sm:$0xff]
      %v4359 = vld [vmem:[%s372 + $0xe0] sm:$0xf]
      %v4360 = vld [vmem:[%s372 + $0xe4] sm:$0xff]
      %v4361 = vld [vmem:[%s372 + $0xec] sm:$0xf]
      %v4362 = vld [vmem:[%s372 + $0xf0] sm:$0xff]
      %v4363 = vld [vmem:[%s372 + $0xf8] sm:$0xf]
      %v4364 = vld [vmem:[%s372 + $0xfc] sm:$0xff]
      %v4365 = vld [vmem:[%s372 + $0x104] sm:$0xf]
      %v4366 = vld [vmem:[%s372 + $0x108] sm:$0xff]
      %v4367 = vld [vmem:[%s372 + $0x110] sm:$0xf]
      %v4368 = vld [vmem:[%s372 + $0x114] sm:$0xff]
      %v4369 = vld [vmem:[%s372 + $0x11c] sm:$0xf]
      %v4370 = vld [vmem:[%s372 + $0x120] sm:$0xff]
      %v4371 = vld [vmem:[%s372 + $0x128] sm:$0xf]
      %v4372 = vld [vmem:[%s372 + $0x12c] sm:$0xff]
      %v4373 = vld [vmem:[%s372 + $0x134] sm:$0xf]
      %v4374 = vld [vmem:[%s372 + $0x138] sm:$0xff]
      %v4375 = vld [vmem:[%s372 + $0x140] sm:$0xf]
      %v4376 = vld [vmem:[%s372 + $0x144] sm:$0xff]
      %v4377 = vld [vmem:[%s372 + $0x14c] sm:$0xf]
      %v4378 = vld [vmem:[%s372 + $0x150] sm:$0xff]
      %v4379 = vld [vmem:[%s372 + $0x158] sm:$0xf]
      %v4380 = vld [vmem:[%s372 + $0x15c] sm:$0xff]
      %v4381 = vld [vmem:[%s372 + $0x164] sm:$0xf]
      %v4382 = vld [vmem:[%s372 + $0x168] sm:$0xff]
      %v4383 = vld [vmem:[%s372 + $0x170] sm:$0xf]
      %v4384 = vld [vmem:[%s372 + $0x174] sm:$0xff]
      %v4385 = vld [vmem:[%s372 + $0x17c] sm:$0xf]
      %v4386 = vld [vmem:[%s372 + $0x180] sm:$0xff]
      %v4387 = vld [vmem:[%s372 + $0x188] sm:$0xf]
      %v4388 = vld [vmem:[%s372 + $0x18c] sm:$0xff]
      %v4389 = vld [vmem:[%s372 + $0x194] sm:$0xf]
      %v4390 = vld [vmem:[%s372 + $0x198] sm:$0xff]
      %v4391 = vld [vmem:[%s372 + $0x1a0] sm:$0xf]
      %v4392 = vld [vmem:[%s372 + $0x1a4] sm:$0xff]
      %v4393 = vld [vmem:[%s372 + $0x1ac] sm:$0xf]
      %v4394 = vld [vmem:[%s372 + $0x1b0] sm:$0xff]
      %v4395 = vld [vmem:[%s372 + $0x1b8] sm:$0xf]
      %v4396 = vld [vmem:[%s372 + $0x1bc] sm:$0xff]
      %v4397 = vld [vmem:[%s372 + $0x1c4] sm:$0xf]
      %v4398 = vld [vmem:[%s372 + $0x1c8] sm:$0xff]
      %v4399 = vld [vmem:[%s372 + $0x1d0] sm:$0xf]
      %v4400 = vld [vmem:[%s372 + $0x1d4] sm:$0xff]
      %v4401 = vld [vmem:[%s372 + $0x1dc] sm:$0xf]
      %v4402 = vld [vmem:[%s372 + $0x1e0] sm:$0xff]
      %v4403 = vld [vmem:[%s372 + $0x1e8] sm:$0xf]
      %v4404 = vld [vmem:[%s372 + $0x1ec] sm:$0xff]
      %v4405 = vld [vmem:[%s372 + $0x1f4] sm:$0xf]
      %v4406 = vld [vmem:[%s372 + $0x1f8] sm:$0xff]
      %v4407 = vld [vmem:[%s372 + $0x200] sm:$0xf]
      %v4408 = vld [vmem:[%s372 + $0x204] sm:$0xff]
      %v4409 = vld [vmem:[%s372 + $0x20c] sm:$0xf]
      %v4410 = vld [vmem:[%s372 + $0x210] sm:$0xff]
      %v4411 = vld [vmem:[%s372 + $0x218] sm:$0xf]
      %v4412 = vld [vmem:[%s372 + $0x21c] sm:$0xff]
      %v4413 = vld [vmem:[%s372 + $0x224] sm:$0xf]
      %v4414 = vld [vmem:[%s372 + $0x228] sm:$0xff]
      %v4415 = vld [vmem:[%s372 + $0x230] sm:$0xf]
      %v4416 = vld [vmem:[%s372 + $0x234] sm:$0xff]
      %v4417 = vld [vmem:[%s372 + $0x23c] sm:$0xf]
      %v4418 = vld [vmem:[%s372 + $0x240] sm:$0xff]
      %v4419 = vld [vmem:[%s372 + $0x248] sm:$0xf]
      %v4420 = vld [vmem:[%s372 + $0x24c] sm:$0xff]
      %v4421 = vld [vmem:[%s372 + $0x254] sm:$0xf]
      %v4422 = vld [vmem:[%s372 + $0x258] sm:$0xff]
      %v4423 = vld [vmem:[%s372 + $0x260] sm:$0xf]
      %v4424 = vld [vmem:[%s372 + $0x264] sm:$0xff]
      %v4425 = vld [vmem:[%s372 + $0x26c] sm:$0xf]
      %v4426 = vld [vmem:[%s372 + $0x270] sm:$0xff]
      %v4427 = vld [vmem:[%s372 + $0x278] sm:$0xf]
      %v4428 = vld [vmem:[%s372 + $0x27c] sm:$0xff]
      %v4429 = vld [vmem:[%s372 + $0x284] sm:$0xf]
      %v4430 = vld [vmem:[%s372 + $0x288] sm:$0xff]
      %v4431 = vld [vmem:[%s372 + $0x290] sm:$0xf]
      %v4432 = vld [vmem:[%s372 + $0x294] sm:$0xff]
      %v4433 = vld [vmem:[%s372 + $0x29c] sm:$0xf]
      %v4434 = vld [vmem:[%s372 + $0x2a0] sm:$0xff]
      %v4435 = vld [vmem:[%s372 + $0x2a8] sm:$0xf]
      %v4436 = vld [vmem:[%s372 + $0x2ac] sm:$0xff]
      %v4437 = vld [vmem:[%s372 + $0x2b4] sm:$0xf]
      %v4438 = vld [vmem:[%s372 + $0x2b8] sm:$0xff]
      %v4439 = vld [vmem:[%s372 + $0x2c0] sm:$0xf]
      %v4440 = vld [vmem:[%s372 + $0x2c4] sm:$0xff]
      %v4441 = vld [vmem:[%s372 + $0x2cc] sm:$0xf]
      %v4442 = vld [vmem:[%s372 + $0x2d0] sm:$0xff]
      %v4443 = vld [vmem:[%s372 + $0x2d8] sm:$0xf]
      %v4444 = vld [vmem:[%s372 + $0x2dc] sm:$0xff]
      %v4445 = vld [vmem:[%s372 + $0x2e4] sm:$0xf]
      %v4446 = vld [vmem:[%s372 + $0x2e8] sm:$0xff]
      %v4447 = vld [vmem:[%s372 + $0x2f0] sm:$0xf]
      %v4448 = vld [vmem:[%s372 + $0x2f4] sm:$0xff]
      %v4449 = vld [vmem:[%s372 + $0x2fc] sm:$0xf]
      %v4578 = vunpack.c.l.b16 %v4322
      %v4579 = vunpack.c.h.b16 %v4322
      %v4580 = vunpack.c.l.b16 %v4323
      %v4581 = vunpack.c.l.b16 %v4324
      %v4582 = vunpack.c.h.b16 %v4324
      %v4583 = vunpack.c.l.b16 %v4325
      %v4584 = vunpack.c.l.b16 %v4326
      %v4585 = vunpack.c.h.b16 %v4326
      %v4586 = vunpack.c.l.b16 %v4327
      %v4587 = vunpack.c.l.b16 %v4328
      %v4588 = vunpack.c.h.b16 %v4328
      %v4589 = vunpack.c.l.b16 %v4329
      %v4590 = vunpack.c.l.b16 %v4330
      %v4591 = vunpack.c.h.b16 %v4330
      %v4592 = vunpack.c.l.b16 %v4331
      %v4593 = vunpack.c.l.b16 %v4332
      %v4594 = vunpack.c.h.b16 %v4332
      %v4595 = vunpack.c.l.b16 %v4333
      %v4596 = vunpack.c.l.b16 %v4334
      %v4597 = vunpack.c.h.b16 %v4334
      %v4598 = vunpack.c.l.b16 %v4335
      %v4599 = vunpack.c.l.b16 %v4336
      %v4600 = vunpack.c.h.b16 %v4336
      %v4601 = vunpack.c.l.b16 %v4337
      %v4602 = vunpack.c.l.b16 %v4338
      %v4603 = vunpack.c.h.b16 %v4338
      %v4604 = vunpack.c.l.b16 %v4339
      %v4605 = vunpack.c.l.b16 %v4340
      %v4606 = vunpack.c.h.b16 %v4340
      %v4607 = vunpack.c.l.b16 %v4341
      %v4608 = vunpack.c.l.b16 %v4342
      %v4609 = vunpack.c.h.b16 %v4342
      %v4610 = vunpack.c.l.b16 %v4343
      %v4611 = vunpack.c.l.b16 %v4344
      %v4612 = vunpack.c.h.b16 %v4344
      %v4613 = vunpack.c.l.b16 %v4345
      %v4614 = vunpack.c.l.b16 %v4346
      %v4615 = vunpack.c.h.b16 %v4346
      %v4616 = vunpack.c.l.b16 %v4347
      %v4617 = vunpack.c.l.b16 %v4348
      %v4618 = vunpack.c.h.b16 %v4348
      %v4619 = vunpack.c.l.b16 %v4349
      %v4620 = vunpack.c.l.b16 %v4350
      %v4621 = vunpack.c.h.b16 %v4350
      %v4622 = vunpack.c.l.b16 %v4351
      %v4623 = vunpack.c.l.b16 %v4352
      %v4624 = vunpack.c.h.b16 %v4352
      %v4625 = vunpack.c.l.b16 %v4353
      %v4626 = vunpack.c.l.b16 %v4354
      %v4627 = vunpack.c.h.b16 %v4354
      %v4628 = vunpack.c.l.b16 %v4355
      %v4629 = vunpack.c.l.b16 %v4356
      %v4630 = vunpack.c.h.b16 %v4356
      %v4631 = vunpack.c.l.b16 %v4357
      %v4632 = vunpack.c.l.b16 %v4358
      %v4633 = vunpack.c.h.b16 %v4358
      %v4634 = vunpack.c.l.b16 %v4359
      %v4635 = vunpack.c.l.b16 %v4360
      %v4636 = vunpack.c.h.b16 %v4360
      %v4637 = vunpack.c.l.b16 %v4361
      %v4638 = vunpack.c.l.b16 %v4362
      %v4639 = vunpack.c.h.b16 %v4362
      %v4640 = vunpack.c.l.b16 %v4363
      %v4641 = vunpack.c.l.b16 %v4364
      %v4642 = vunpack.c.h.b16 %v4364
      %v4643 = vunpack.c.l.b16 %v4365
      %v4644 = vunpack.c.l.b16 %v4366
      %v4645 = vunpack.c.h.b16 %v4366
      %v4646 = vunpack.c.l.b16 %v4367
      %v4647 = vunpack.c.l.b16 %v4368
      %v4648 = vunpack.c.h.b16 %v4368
      %v4649 = vunpack.c.l.b16 %v4369
      %v4650 = vunpack.c.l.b16 %v4370
      %v4651 = vunpack.c.h.b16 %v4370
      %v4652 = vunpack.c.l.b16 %v4371
      %v4653 = vunpack.c.l.b16 %v4372
      %v4654 = vunpack.c.h.b16 %v4372
      %v4655 = vunpack.c.l.b16 %v4373
      %v4656 = vunpack.c.l.b16 %v4374
      %v4657 = vunpack.c.h.b16 %v4374
      %v4658 = vunpack.c.l.b16 %v4375
      %v4659 = vunpack.c.l.b16 %v4376
      %v4660 = vunpack.c.h.b16 %v4376
      %v4661 = vunpack.c.l.b16 %v4377
      %v4662 = vunpack.c.l.b16 %v4378
      %v4663 = vunpack.c.h.b16 %v4378
      %v4664 = vunpack.c.l.b16 %v4379
      %v4665 = vunpack.c.l.b16 %v4380
      %v4666 = vunpack.c.h.b16 %v4380
      %v4667 = vunpack.c.l.b16 %v4381
      %v4668 = vunpack.c.l.b16 %v4382
      %v4669 = vunpack.c.h.b16 %v4382
      %v4670 = vunpack.c.l.b16 %v4383
      %v4671 = vunpack.c.l.b16 %v4384
      %v4672 = vunpack.c.h.b16 %v4384
      %v4673 = vunpack.c.l.b16 %v4385
      %v4674 = vunpack.c.l.b16 %v4386
      %v4675 = vunpack.c.h.b16 %v4386
      %v4676 = vunpack.c.l.b16 %v4387
      %v4677 = vunpack.c.l.b16 %v4388
      %v4678 = vunpack.c.h.b16 %v4388
      %v4679 = vunpack.c.l.b16 %v4389
      %v4680 = vunpack.c.l.b16 %v4390
      %v4681 = vunpack.c.h.b16 %v4390
      %v4682 = vunpack.c.l.b16 %v4391
      %v4683 = vunpack.c.l.b16 %v4392
      %v4684 = vunpack.c.h.b16 %v4392
      %v4685 = vunpack.c.l.b16 %v4393
      %v4686 = vunpack.c.l.b16 %v4394
      %v4687 = vunpack.c.h.b16 %v4394
      %v4688 = vunpack.c.l.b16 %v4395
      %v4689 = vunpack.c.l.b16 %v4396
      %v4690 = vunpack.c.h.b16 %v4396
      %v4691 = vunpack.c.l.b16 %v4397
      %v4692 = vunpack.c.l.b16 %v4398
      %v4693 = vunpack.c.h.b16 %v4398
      %v4694 = vunpack.c.l.b16 %v4399
      %v4695 = vunpack.c.l.b16 %v4400
      %v4696 = vunpack.c.h.b16 %v4400
      %v4697 = vunpack.c.l.b16 %v4401
      %v4698 = vunpack.c.l.b16 %v4402
      %v4699 = vunpack.c.h.b16 %v4402
      %v4700 = vunpack.c.l.b16 %v4403
      %v4701 = vunpack.c.l.b16 %v4404
      %v4702 = vunpack.c.h.b16 %v4404
      %v4703 = vunpack.c.l.b16 %v4405
      %v4704 = vunpack.c.l.b16 %v4406
      %v4705 = vunpack.c.h.b16 %v4406
      %v4706 = vunpack.c.l.b16 %v4407
      %v4707 = vunpack.c.l.b16 %v4408
      %v4708 = vunpack.c.h.b16 %v4408
      %v4709 = vunpack.c.l.b16 %v4409
      %v4710 = vunpack.c.l.b16 %v4410
      %v4711 = vunpack.c.h.b16 %v4410
      %v4712 = vunpack.c.l.b16 %v4411
      %v4713 = vunpack.c.l.b16 %v4412
      %v4714 = vunpack.c.h.b16 %v4412
      %v4715 = vunpack.c.l.b16 %v4413
      %v4716 = vunpack.c.l.b16 %v4414
      %v4717 = vunpack.c.h.b16 %v4414
      %v4718 = vunpack.c.l.b16 %v4415
      %v4719 = vunpack.c.l.b16 %v4416
      %v4720 = vunpack.c.h.b16 %v4416
      %v4721 = vunpack.c.l.b16 %v4417
      %v4722 = vunpack.c.l.b16 %v4418
      %v4723 = vunpack.c.h.b16 %v4418
      %v4724 = vunpack.c.l.b16 %v4419
      %v4725 = vunpack.c.l.b16 %v4420
      %v4726 = vunpack.c.h.b16 %v4420
      %v4727 = vunpack.c.l.b16 %v4421
      %v4728 = vunpack.c.l.b16 %v4422
      %v4729 = vunpack.c.h.b16 %v4422
      %v4730 = vunpack.c.l.b16 %v4423
      %v4731 = vunpack.c.l.b16 %v4424
      %v4732 = vunpack.c.h.b16 %v4424
      %v4733 = vunpack.c.l.b16 %v4425
      %v4734 = vunpack.c.l.b16 %v4426
      %v4735 = vunpack.c.h.b16 %v4426
      %v4736 = vunpack.c.l.b16 %v4427
      %v4737 = vunpack.c.l.b16 %v4428
      %v4738 = vunpack.c.h.b16 %v4428
      %v4739 = vunpack.c.l.b16 %v4429
      %v4740 = vunpack.c.l.b16 %v4430
      %v4741 = vunpack.c.h.b16 %v4430
      %v4742 = vunpack.c.l.b16 %v4431
      %v4743 = vunpack.c.l.b16 %v4432
      %v4744 = vunpack.c.h.b16 %v4432
      %v4745 = vunpack.c.l.b16 %v4433
      %v4746 = vunpack.c.l.b16 %v4434
      %v4747 = vunpack.c.h.b16 %v4434
      %v4748 = vunpack.c.l.b16 %v4435
      %v4749 = vunpack.c.l.b16 %v4436
      %v4750 = vunpack.c.h.b16 %v4436
      %v4751 = vunpack.c.l.b16 %v4437
      %v4752 = vunpack.c.l.b16 %v4438
      %v4753 = vunpack.c.h.b16 %v4438
      %v4754 = vunpack.c.l.b16 %v4439
      %v4755 = vunpack.c.l.b16 %v4440
      %v4756 = vunpack.c.h.b16 %v4440
      %v4757 = vunpack.c.l.b16 %v4441
      %v4758 = vunpack.c.l.b16 %v4442
      %v4759 = vunpack.c.h.b16 %v4442
      %v4760 = vunpack.c.l.b16 %v4443
      %v4761 = vunpack.c.l.b16 %v4444
      %v4762 = vunpack.c.h.b16 %v4444
      %v4763 = vunpack.c.l.b16 %v4445
      %v4764 = vunpack.c.l.b16 %v4446
      %v4765 = vunpack.c.h.b16 %v4446
      %v4766 = vunpack.c.l.b16 %v4447
      %v4767 = vunpack.c.l.b16 %v4448
      %v4768 = vunpack.c.h.b16 %v4448
      %v4769 = vunpack.c.l.b16 %v4449
      %v4770 = vpack.c.b16 %v4581, %v4578
      %v4771 = vpack.c.b16 %v4582, %v4579
      %v4772 = vpack.c.b16 %v4583, %v4580
      %v4773 = vpack.c.b16 %v4587, %v4584
      %v4774 = vpack.c.b16 %v4588, %v4585
      %v4775 = vpack.c.b16 %v4589, %v4586
      %v4776 = vpack.c.b16 %v4593, %v4590
      %v4777 = vpack.c.b16 %v4594, %v4591
      %v4778 = vpack.c.b16 %v4595, %v4592
      %v4779 = vpack.c.b16 %v4599, %v4596
      %v4780 = vpack.c.b16 %v4600, %v4597
      %v4781 = vpack.c.b16 %v4601, %v4598
      %v4782 = vpack.c.b16 %v4605, %v4602
      %v4783 = vpack.c.b16 %v4606, %v4603
      %v4784 = vpack.c.b16 %v4607, %v4604
      %v4785 = vpack.c.b16 %v4611, %v4608
      %v4786 = vpack.c.b16 %v4612, %v4609
      %v4787 = vpack.c.b16 %v4613, %v4610
      %v4788 = vpack.c.b16 %v4617, %v4614
      %v4789 = vpack.c.b16 %v4618, %v4615
      %v4790 = vpack.c.b16 %v4619, %v4616
      %v4791 = vpack.c.b16 %v4623, %v4620
      %v4792 = vpack.c.b16 %v4624, %v4621
      %v4793 = vpack.c.b16 %v4625, %v4622
      %v4794 = vpack.c.b16 %v4629, %v4626
      %v4795 = vpack.c.b16 %v4630, %v4627
      %v4796 = vpack.c.b16 %v4631, %v4628
      %v4797 = vpack.c.b16 %v4635, %v4632
      %v4798 = vpack.c.b16 %v4636, %v4633
      %v4799 = vpack.c.b16 %v4637, %v4634
      %v4800 = vpack.c.b16 %v4641, %v4638
      %v4801 = vpack.c.b16 %v4642, %v4639
      %v4802 = vpack.c.b16 %v4643, %v4640
      %v4803 = vpack.c.b16 %v4647, %v4644
      %v4804 = vpack.c.b16 %v4648, %v4645
      %v4805 = vpack.c.b16 %v4649, %v4646
      %v4806 = vpack.c.b16 %v4653, %v4650
      %v4807 = vpack.c.b16 %v4654, %v4651
      %v4808 = vpack.c.b16 %v4655, %v4652
      %v4809 = vpack.c.b16 %v4659, %v4656
      %v4810 = vpack.c.b16 %v4660, %v4657
      %v4811 = vpack.c.b16 %v4661, %v4658
      %v4812 = vpack.c.b16 %v4665, %v4662
      %v4813 = vpack.c.b16 %v4666, %v4663
      %v4814 = vpack.c.b16 %v4667, %v4664
      %v4815 = vpack.c.b16 %v4671, %v4668
      %v4816 = vpack.c.b16 %v4672, %v4669
      %v4817 = vpack.c.b16 %v4673, %v4670
      %v4818 = vpack.c.b16 %v4677, %v4674
      %v4819 = vpack.c.b16 %v4678, %v4675
      %v4820 = vpack.c.b16 %v4679, %v4676
      %v4821 = vpack.c.b16 %v4683, %v4680
      %v4822 = vpack.c.b16 %v4684, %v4681
      %v4823 = vpack.c.b16 %v4685, %v4682
      %v4824 = vpack.c.b16 %v4689, %v4686
      %v4825 = vpack.c.b16 %v4690, %v4687
      %v4826 = vpack.c.b16 %v4691, %v4688
      %v4827 = vpack.c.b16 %v4695, %v4692
      %v4828 = vpack.c.b16 %v4696, %v4693
      %v4829 = vpack.c.b16 %v4697, %v4694
      %v4830 = vpack.c.b16 %v4701, %v4698
      %v4831 = vpack.c.b16 %v4702, %v4699
      %v4832 = vpack.c.b16 %v4703, %v4700
      %v4833 = vpack.c.b16 %v4707, %v4704
      %v4834 = vpack.c.b16 %v4708, %v4705
      %v4835 = vpack.c.b16 %v4709, %v4706
      %v4836 = vpack.c.b16 %v4713, %v4710
      %v4837 = vpack.c.b16 %v4714, %v4711
      %v4838 = vpack.c.b16 %v4715, %v4712
      %v4839 = vpack.c.b16 %v4719, %v4716
      %v4840 = vpack.c.b16 %v4720, %v4717
      %v4841 = vpack.c.b16 %v4721, %v4718
      %v4842 = vpack.c.b16 %v4725, %v4722
      %v4843 = vpack.c.b16 %v4726, %v4723
      %v4844 = vpack.c.b16 %v4727, %v4724
      %v4845 = vpack.c.b16 %v4731, %v4728
      %v4846 = vpack.c.b16 %v4732, %v4729
      %v4847 = vpack.c.b16 %v4733, %v4730
      %v4848 = vpack.c.b16 %v4737, %v4734
      %v4849 = vpack.c.b16 %v4738, %v4735
      %v4850 = vpack.c.b16 %v4739, %v4736
      %v4851 = vpack.c.b16 %v4743, %v4740
      %v4852 = vpack.c.b16 %v4744, %v4741
      %v4853 = vpack.c.b16 %v4745, %v4742
      %v4854 = vpack.c.b16 %v4749, %v4746
      %v4855 = vpack.c.b16 %v4750, %v4747
      %v4856 = vpack.c.b16 %v4751, %v4748
      %v4857 = vpack.c.b16 %v4755, %v4752
      %v4858 = vpack.c.b16 %v4756, %v4753
      %v4859 = vpack.c.b16 %v4757, %v4754
      %v4860 = vpack.c.b16 %v4761, %v4758
      %v4861 = vpack.c.b16 %v4762, %v4759
      %v4862 = vpack.c.b16 %v4763, %v4760
      %v4863 = vpack.c.b16 %v4767, %v4764
      %v4864 = vpack.c.b16 %v4768, %v4765
      %v4865 = vpack.c.b16 %v4769, %v4766
      %v4931 = vsel %vm1136, %v4772, 0
      %v4934 = vsel %vm1136, %v4775, 0
      %v4937 = vsel %vm1136, %v4778, 0
      %v4940 = vsel %vm1136, %v4781, 0
      %v4943 = vsel %vm1136, %v4784, 0
      %v4946 = vsel %vm1136, %v4787, 0
      %v4949 = vsel %vm1136, %v4790, 0
      %v4952 = vsel %vm1136, %v4793, 0
      %v4955 = vsel %vm1136, %v4796, 0
      %v4958 = vsel %vm1136, %v4799, 0
      %v4961 = vsel %vm1136, %v4802, 0
      %v4964 = vsel %vm1136, %v4805, 0
      %v4967 = vsel %vm1136, %v4808, 0
      %v4970 = vsel %vm1136, %v4811, 0
      %v4973 = vsel %vm1136, %v4814, 0
      %v4976 = vsel %vm1136, %v4817, 0
      %v4979 = vsel %vm1136, %v4820, 0
      %v4982 = vsel %vm1136, %v4823, 0
      %v4985 = vsel %vm1136, %v4826, 0
      %v4988 = vsel %vm1136, %v4829, 0
      %v4991 = vsel %vm1136, %v4832, 0
      %v4994 = vsel %vm1136, %v4835, 0
      %v4997 = vsel %vm1136, %v4838, 0
      %v5000 = vsel %vm1136, %v4841, 0
      %v5003 = vsel %vm1136, %v4844, 0
      %v5006 = vsel %vm1136, %v4847, 0
      %v5009 = vsel %vm1136, %v4850, 0
      %v5012 = vsel %vm1136, %v4853, 0
      %v5015 = vsel %vm1136, %v4856, 0
      %v5018 = vsel %vm1136, %v4859, 0
      %v5021 = vsel %vm1136, %v4862, 0
      %v5024 = vsel %vm1136, %v4865, 0
      %5026 = vmatpush.bf16.msra.mxu0 %v1106
      %5027 = vmatpush.bf16.msra.mxu0 %v1105
      %5028 = vmatpush.bf16.msra.mxu0 %v1104
      %5029 = vmatpush.bf16.msra.mxu0 %v1103
      %5030 = vmatpush.bf16.msra.mxu0 %v1102
      %5031 = vmatpush.bf16.msra.mxu0 %v1101
      %5032 = vmatpush.bf16.msra.mxu0 %v1100
      %5033 = vmatpush.bf16.msra.mxu0 %v1099
      %5034 = vmatmul.bf16.gmra.mxu0 %v4770
      %v5035 = vpop.f32.mrf.mxu0
      %v5036 = vadd.f32 0.0, %v5035
      %v5037 = vpop.f32.mrf.mxu0
      %v5038 = vadd.f32 0.0, %v5037
      %5039 = vmatmul.bf16.gmra.mxu0 %v4773
      %v5040 = vpop.f32.mrf.mxu0
      %v5041 = vadd.f32 0.0, %v5040
      %v5042 = vpop.f32.mrf.mxu0
      %v5043 = vadd.f32 0.0, %v5042
      %5044 = vmatmul.bf16.gmra.mxu0 %v4776
      %v5045 = vpop.f32.mrf.mxu0
      %v5046 = vadd.f32 0.0, %v5045
      %v5047 = vpop.f32.mrf.mxu0
      %v5048 = vadd.f32 0.0, %v5047
      %5049 = vmatmul.bf16.gmra.mxu0 %v4779
      %v5050 = vpop.f32.mrf.mxu0
      %v5051 = vadd.f32 0.0, %v5050
      %v5052 = vpop.f32.mrf.mxu0
      %v5053 = vadd.f32 0.0, %v5052
      %5054 = vmatmul.bf16.gmra.mxu0 %v4782
      %v5055 = vpop.f32.mrf.mxu0
      %v5056 = vadd.f32 0.0, %v5055
      %v5057 = vpop.f32.mrf.mxu0
      %v5058 = vadd.f32 0.0, %v5057
      %5059 = vmatmul.bf16.gmra.mxu0 %v4785
      %v5060 = vpop.f32.mrf.mxu0
      %v5061 = vadd.f32 0.0, %v5060
      %v5062 = vpop.f32.mrf.mxu0
      %v5063 = vadd.f32 0.0, %v5062
      %5064 = vmatmul.bf16.gmra.mxu0 %v4788
      %v5065 = vpop.f32.mrf.mxu0
      %v5066 = vadd.f32 0.0, %v5065
      %v5067 = vpop.f32.mrf.mxu0
      %v5068 = vadd.f32 0.0, %v5067
      %5069 = vmatmul.bf16.gmra.mxu0 %v4791
      %v5070 = vpop.f32.mrf.mxu0
      %v5071 = vadd.f32 0.0, %v5070
      %v5072 = vpop.f32.mrf.mxu0
      %v5073 = vadd.f32 0.0, %v5072
      %5074 = vmatmul.bf16.gmra.mxu0 %v4794
      %v5075 = vpop.f32.mrf.mxu0
      %v5076 = vadd.f32 0.0, %v5075
      %v5077 = vpop.f32.mrf.mxu0
      %v5078 = vadd.f32 0.0, %v5077
      %5079 = vmatmul.bf16.gmra.mxu0 %v4797
      %v5080 = vpop.f32.mrf.mxu0
      %v5081 = vadd.f32 0.0, %v5080
      %v5082 = vpop.f32.mrf.mxu0
      %v5083 = vadd.f32 0.0, %v5082
      %5084 = vmatmul.bf16.gmra.mxu0 %v4800
      %v5085 = vpop.f32.mrf.mxu0
      %v5086 = vadd.f32 0.0, %v5085
      %v5087 = vpop.f32.mrf.mxu0
      %v5088 = vadd.f32 0.0, %v5087
      %5089 = vmatmul.bf16.gmra.mxu0 %v4803
      %v5090 = vpop.f32.mrf.mxu0
      %v5091 = vadd.f32 0.0, %v5090
      %v5092 = vpop.f32.mrf.mxu0
      %v5093 = vadd.f32 0.0, %v5092
      %5094 = vmatmul.bf16.gmra.mxu0 %v4806
      %v5095 = vpop.f32.mrf.mxu0
      %v5096 = vadd.f32 0.0, %v5095
      %v5097 = vpop.f32.mrf.mxu0
      %v5098 = vadd.f32 0.0, %v5097
      %5099 = vmatmul.bf16.gmra.mxu0 %v4809
      %v5100 = vpop.f32.mrf.mxu0
      %v5101 = vadd.f32 0.0, %v5100
      %v5102 = vpop.f32.mrf.mxu0
      %v5103 = vadd.f32 0.0, %v5102
      %5104 = vmatmul.bf16.gmra.mxu0 %v4812
      %v5105 = vpop.f32.mrf.mxu0
      %v5106 = vadd.f32 0.0, %v5105
      %v5107 = vpop.f32.mrf.mxu0
      %v5108 = vadd.f32 0.0, %v5107
      %5109 = vmatmul.bf16.gmra.mxu0 %v4815
      %v5110 = vpop.f32.mrf.mxu0
      %v5111 = vadd.f32 0.0, %v5110
      %v5112 = vpop.f32.mrf.mxu0
      %v5113 = vadd.f32 0.0, %v5112
      %5114 = vmatmul.bf16.gmra.mxu0 %v4818
      %v5115 = vpop.f32.mrf.mxu0
      %v5116 = vadd.f32 0.0, %v5115
      %v5117 = vpop.f32.mrf.mxu0
      %v5118 = vadd.f32 0.0, %v5117
      %5119 = vmatmul.bf16.gmra.mxu0 %v4821
      %v5120 = vpop.f32.mrf.mxu0
      %v5121 = vadd.f32 0.0, %v5120
      %v5122 = vpop.f32.mrf.mxu0
      %v5123 = vadd.f32 0.0, %v5122
      %5124 = vmatmul.bf16.gmra.mxu0 %v4824
      %v5125 = vpop.f32.mrf.mxu0
      %v5126 = vadd.f32 0.0, %v5125
      %v5127 = vpop.f32.mrf.mxu0
      %v5128 = vadd.f32 0.0, %v5127
      %5129 = vmatmul.bf16.gmra.mxu0 %v4827
      %v5130 = vpop.f32.mrf.mxu0
      %v5131 = vadd.f32 0.0, %v5130
      %v5132 = vpop.f32.mrf.mxu0
      %v5133 = vadd.f32 0.0, %v5132
      %5134 = vmatmul.bf16.gmra.mxu0 %v4830
      %v5135 = vpop.f32.mrf.mxu0
      %v5136 = vadd.f32 0.0, %v5135
      %v5137 = vpop.f32.mrf.mxu0
      %v5138 = vadd.f32 0.0, %v5137
      %5139 = vmatmul.bf16.gmra.mxu0 %v4833
      %v5140 = vpop.f32.mrf.mxu0
      %v5141 = vadd.f32 0.0, %v5140
      %v5142 = vpop.f32.mrf.mxu0
      %v5143 = vadd.f32 0.0, %v5142
      %5144 = vmatmul.bf16.gmra.mxu0 %v4836
      %v5145 = vpop.f32.mrf.mxu0
      %v5146 = vadd.f32 0.0, %v5145
      %v5147 = vpop.f32.mrf.mxu0
      %v5148 = vadd.f32 0.0, %v5147
      %5149 = vmatmul.bf16.gmra.mxu0 %v4839
      %v5150 = vpop.f32.mrf.mxu0
      %v5151 = vadd.f32 0.0, %v5150
      %v5152 = vpop.f32.mrf.mxu0
      %v5153 = vadd.f32 0.0, %v5152
      %5154 = vmatmul.bf16.gmra.mxu0 %v4842
      %v5155 = vpop.f32.mrf.mxu0
      %v5156 = vadd.f32 0.0, %v5155
      %v5157 = vpop.f32.mrf.mxu0
      %v5158 = vadd.f32 0.0, %v5157
      %5159 = vmatmul.bf16.gmra.mxu0 %v4845
      %v5160 = vpop.f32.mrf.mxu0
      %v5161 = vadd.f32 0.0, %v5160
      %v5162 = vpop.f32.mrf.mxu0
      %v5163 = vadd.f32 0.0, %v5162
      %5164 = vmatmul.bf16.gmra.mxu0 %v4848
      %v5165 = vpop.f32.mrf.mxu0
      %v5166 = vadd.f32 0.0, %v5165
      %v5167 = vpop.f32.mrf.mxu0
      %v5168 = vadd.f32 0.0, %v5167
      %5169 = vmatmul.bf16.gmra.mxu0 %v4851
      %v5170 = vpop.f32.mrf.mxu0
      %v5171 = vadd.f32 0.0, %v5170
      %v5172 = vpop.f32.mrf.mxu0
      %v5173 = vadd.f32 0.0, %v5172
      %5174 = vmatmul.bf16.gmra.mxu0 %v4854
      %v5175 = vpop.f32.mrf.mxu0
      %v5176 = vadd.f32 0.0, %v5175
      %v5177 = vpop.f32.mrf.mxu0
      %v5178 = vadd.f32 0.0, %v5177
      %5179 = vmatmul.bf16.gmra.mxu0 %v4857
      %v5180 = vpop.f32.mrf.mxu0
      %v5181 = vadd.f32 0.0, %v5180
      %v5182 = vpop.f32.mrf.mxu0
      %v5183 = vadd.f32 0.0, %v5182
      %5184 = vmatmul.bf16.gmra.mxu0 %v4860
      %v5185 = vpop.f32.mrf.mxu0
      %v5186 = vadd.f32 0.0, %v5185
      %v5187 = vpop.f32.mrf.mxu0
      %v5188 = vadd.f32 0.0, %v5187
      %5189 = vmatmul.bf16.gmra.mxu0 %v4863
      %v5190 = vpop.f32.mrf.mxu0
      %v5191 = vadd.f32 0.0, %v5190
      %v5192 = vpop.f32.mrf.mxu0
      %v5193 = vadd.f32 0.0, %v5192
      %5194 = vdwg.mxu0
      %5195 = vmatpush.bf16.msra.mxu0 %v1114
      %5196 = vmatpush.bf16.msra.mxu0 %v1113
      %5197 = vmatpush.bf16.msra.mxu0 %v1112
      %5198 = vmatpush.bf16.msra.mxu0 %v1111
      %5199 = vmatpush.bf16.msra.mxu0 %v1110
      %5200 = vmatpush.bf16.msra.mxu0 %v1109
      %5201 = vmatpush.bf16.msra.mxu0 %v1108
      %5202 = vmatpush.bf16.msra.mxu0 %v1107
      %5203 = vmatmul.bf16.gmra.mxu0 %v4771
      %v5204 = vpop.f32.mrf.mxu0
      %v5205 = vadd.f32 %v5036, %v5204
      %v5206 = vpop.f32.mrf.mxu0
      %v5207 = vadd.f32 %v5038, %v5206
      %5208 = vmatmul.bf16.gmra.mxu0 %v4774
      %v5209 = vpop.f32.mrf.mxu0
      %v5210 = vadd.f32 %v5041, %v5209
      %v5211 = vpop.f32.mrf.mxu0
      %v5212 = vadd.f32 %v5043, %v5211
      %5213 = vmatmul.bf16.gmra.mxu0 %v4777
      %v5214 = vpop.f32.mrf.mxu0
      %v5215 = vadd.f32 %v5046, %v5214
      %v5216 = vpop.f32.mrf.mxu0
      %v5217 = vadd.f32 %v5048, %v5216
      %5218 = vmatmul.bf16.gmra.mxu0 %v4780
      %v5219 = vpop.f32.mrf.mxu0
      %v5220 = vadd.f32 %v5051, %v5219
      %v5221 = vpop.f32.mrf.mxu0
      %v5222 = vadd.f32 %v5053, %v5221
      %5223 = vmatmul.bf16.gmra.mxu0 %v4783
      %v5224 = vpop.f32.mrf.mxu0
      %v5225 = vadd.f32 %v5056, %v5224
      %v5226 = vpop.f32.mrf.mxu0
      %v5227 = vadd.f32 %v5058, %v5226
      %5228 = vmatmul.bf16.gmra.mxu0 %v4786
      %v5229 = vpop.f32.mrf.mxu0
      %v5230 = vadd.f32 %v5061, %v5229
      %v5231 = vpop.f32.mrf.mxu0
      %v5232 = vadd.f32 %v5063, %v5231
      %5233 = vmatmul.bf16.gmra.mxu0 %v4789
      %v5234 = vpop.f32.mrf.mxu0
      %v5235 = vadd.f32 %v5066, %v5234
      %v5236 = vpop.f32.mrf.mxu0
      %v5237 = vadd.f32 %v5068, %v5236
      %5238 = vmatmul.bf16.gmra.mxu0 %v4792
      %v5239 = vpop.f32.mrf.mxu0
      %v5240 = vadd.f32 %v5071, %v5239
      %v5241 = vpop.f32.mrf.mxu0
      %v5242 = vadd.f32 %v5073, %v5241
      %5243 = vmatmul.bf16.gmra.mxu0 %v4795
      %v5244 = vpop.f32.mrf.mxu0
      %v5245 = vadd.f32 %v5076, %v5244
      %v5246 = vpop.f32.mrf.mxu0
      %v5247 = vadd.f32 %v5078, %v5246
      %5248 = vmatmul.bf16.gmra.mxu0 %v4798
      %v5249 = vpop.f32.mrf.mxu0
      %v5250 = vadd.f32 %v5081, %v5249
      %v5251 = vpop.f32.mrf.mxu0
      %v5252 = vadd.f32 %v5083, %v5251
      %5253 = vmatmul.bf16.gmra.mxu0 %v4801
      %v5254 = vpop.f32.mrf.mxu0
      %v5255 = vadd.f32 %v5086, %v5254
      %v5256 = vpop.f32.mrf.mxu0
      %v5257 = vadd.f32 %v5088, %v5256
      %5258 = vmatmul.bf16.gmra.mxu0 %v4804
      %v5259 = vpop.f32.mrf.mxu0
      %v5260 = vadd.f32 %v5091, %v5259
      %v5261 = vpop.f32.mrf.mxu0
      %v5262 = vadd.f32 %v5093, %v5261
      %5263 = vmatmul.bf16.gmra.mxu0 %v4807
      %v5264 = vpop.f32.mrf.mxu0
      %v5265 = vadd.f32 %v5096, %v5264
      %v5266 = vpop.f32.mrf.mxu0
      %v5267 = vadd.f32 %v5098, %v5266
      %5268 = vmatmul.bf16.gmra.mxu0 %v4810
      %v5269 = vpop.f32.mrf.mxu0
      %v5270 = vadd.f32 %v5101, %v5269
      %v5271 = vpop.f32.mrf.mxu0
      %v5272 = vadd.f32 %v5103, %v5271
      %5273 = vmatmul.bf16.gmra.mxu0 %v4813
      %v5274 = vpop.f32.mrf.mxu0
      %v5275 = vadd.f32 %v5106, %v5274
      %v5276 = vpop.f32.mrf.mxu0
      %v5277 = vadd.f32 %v5108, %v5276
      %5278 = vmatmul.bf16.gmra.mxu0 %v4816
      %v5279 = vpop.f32.mrf.mxu0
      %v5280 = vadd.f32 %v5111, %v5279
      %v5281 = vpop.f32.mrf.mxu0
      %v5282 = vadd.f32 %v5113, %v5281
      %5283 = vmatmul.bf16.gmra.mxu0 %v4819
      %v5284 = vpop.f32.mrf.mxu0
      %v5285 = vadd.f32 %v5116, %v5284
      %v5286 = vpop.f32.mrf.mxu0
      %v5287 = vadd.f32 %v5118, %v5286
      %5288 = vmatmul.bf16.gmra.mxu0 %v4822
      %v5289 = vpop.f32.mrf.mxu0
      %v5290 = vadd.f32 %v5121, %v5289
      %v5291 = vpop.f32.mrf.mxu0
      %v5292 = vadd.f32 %v5123, %v5291
      %5293 = vmatmul.bf16.gmra.mxu0 %v4825
      %v5294 = vpop.f32.mrf.mxu0
      %v5295 = vadd.f32 %v5126, %v5294
      %v5296 = vpop.f32.mrf.mxu0
      %v5297 = vadd.f32 %v5128, %v5296
      %5298 = vmatmul.bf16.gmra.mxu0 %v4828
      %v5299 = vpop.f32.mrf.mxu0
      %v5300 = vadd.f32 %v5131, %v5299
      %v5301 = vpop.f32.mrf.mxu0
      %v5302 = vadd.f32 %v5133, %v5301
      %5303 = vmatmul.bf16.gmra.mxu0 %v4831
      %v5304 = vpop.f32.mrf.mxu0
      %v5305 = vadd.f32 %v5136, %v5304
      %v5306 = vpop.f32.mrf.mxu0
      %v5307 = vadd.f32 %v5138, %v5306
      %5308 = vmatmul.bf16.gmra.mxu0 %v4834
      %v5309 = vpop.f32.mrf.mxu0
      %v5310 = vadd.f32 %v5141, %v5309
      %v5311 = vpop.f32.mrf.mxu0
      %v5312 = vadd.f32 %v5143, %v5311
      %5313 = vmatmul.bf16.gmra.mxu0 %v4837
      %v5314 = vpop.f32.mrf.mxu0
      %v5315 = vadd.f32 %v5146, %v5314
      %v5316 = vpop.f32.mrf.mxu0
      %v5317 = vadd.f32 %v5148, %v5316
      %5318 = vmatmul.bf16.gmra.mxu0 %v4840
      %v5319 = vpop.f32.mrf.mxu0
      %v5320 = vadd.f32 %v5151, %v5319
      %v5321 = vpop.f32.mrf.mxu0
      %v5322 = vadd.f32 %v5153, %v5321
      %5323 = vmatmul.bf16.gmra.mxu0 %v4843
      %v5324 = vpop.f32.mrf.mxu0
      %v5325 = vadd.f32 %v5156, %v5324
      %v5326 = vpop.f32.mrf.mxu0
      %v5327 = vadd.f32 %v5158, %v5326
      %5328 = vmatmul.bf16.gmra.mxu0 %v4846
      %v5329 = vpop.f32.mrf.mxu0
      %v5330 = vadd.f32 %v5161, %v5329
      %v5331 = vpop.f32.mrf.mxu0
      %v5332 = vadd.f32 %v5163, %v5331
      %5333 = vmatmul.bf16.gmra.mxu0 %v4849
      %v5334 = vpop.f32.mrf.mxu0
      %v5335 = vadd.f32 %v5166, %v5334
      %v5336 = vpop.f32.mrf.mxu0
      %v5337 = vadd.f32 %v5168, %v5336
      %5338 = vmatmul.bf16.gmra.mxu0 %v4852
      %v5339 = vpop.f32.mrf.mxu0
      %v5340 = vadd.f32 %v5171, %v5339
      %v5341 = vpop.f32.mrf.mxu0
      %v5342 = vadd.f32 %v5173, %v5341
      %5343 = vmatmul.bf16.gmra.mxu0 %v4855
      %v5344 = vpop.f32.mrf.mxu0
      %v5345 = vadd.f32 %v5176, %v5344
      %v5346 = vpop.f32.mrf.mxu0
      %v5347 = vadd.f32 %v5178, %v5346
      %5348 = vmatmul.bf16.gmra.mxu0 %v4858
      %v5349 = vpop.f32.mrf.mxu0
      %v5350 = vadd.f32 %v5181, %v5349
      %v5351 = vpop.f32.mrf.mxu0
      %v5352 = vadd.f32 %v5183, %v5351
      %5353 = vmatmul.bf16.gmra.mxu0 %v4861
      %v5354 = vpop.f32.mrf.mxu0
      %v5355 = vadd.f32 %v5186, %v5354
      %v5356 = vpop.f32.mrf.mxu0
      %v5357 = vadd.f32 %v5188, %v5356
      %5358 = vmatmul.bf16.gmra.mxu0 %v4864
      %v5359 = vpop.f32.mrf.mxu0
      %v5360 = vadd.f32 %v5191, %v5359
      %v5361 = vpop.f32.mrf.mxu0
      %v5362 = vadd.f32 %v5193, %v5361
      %5363 = vdwg.mxu0
      %5364 = vmatpush.bf16.msra.mxu0 0
      %5365 = vmatpush.bf16.msra.mxu0 0
      %5366 = vmatpush.bf16.msra.mxu0 0
      %5367 = vmatpush.bf16.msra.mxu0 0
      %5368 = vmatpush.bf16.msra.mxu0 0
      %5369 = vmatpush.bf16.msra.mxu0 %v1235
      %5370 = vmatpush.bf16.msra.mxu0 %v1116
      %5371 = vmatpush.bf16.msra.mxu0 %v1115
      %5372 = vmatmul.bf16.gmra.mxu0 %v4931
      %v5373 = vpop.f32.mrf.mxu0
      %v5374 = vadd.f32 %v5205, %v5373
      %v5375 = vpop.f32.mrf.mxu0
      %v5376 = vadd.f32 %v5207, %v5375
      %5377 = vmatmul.bf16.gmra.mxu0 %v4934
      %v5378 = vpop.f32.mrf.mxu0
      %v5379 = vadd.f32 %v5210, %v5378
      %v5380 = vpop.f32.mrf.mxu0
      %v5381 = vadd.f32 %v5212, %v5380
      %5382 = vmatmul.bf16.gmra.mxu0 %v4937
      %v5383 = vpop.f32.mrf.mxu0
      %v5384 = vadd.f32 %v5215, %v5383
      %v5385 = vpop.f32.mrf.mxu0
      %v5386 = vadd.f32 %v5217, %v5385
      %5387 = vmatmul.bf16.gmra.mxu0 %v4940
      %v5388 = vpop.f32.mrf.mxu0
      %v5389 = vadd.f32 %v5220, %v5388
      %v5390 = vpop.f32.mrf.mxu0
      %v5391 = vadd.f32 %v5222, %v5390
      %5392 = vmatmul.bf16.gmra.mxu0 %v4943
      %v5393 = vpop.f32.mrf.mxu0
      %v5394 = vadd.f32 %v5225, %v5393
      %v5395 = vpop.f32.mrf.mxu0
      %v5396 = vadd.f32 %v5227, %v5395
      %5397 = vmatmul.bf16.gmra.mxu0 %v4946
      %v5398 = vpop.f32.mrf.mxu0
      %v5399 = vadd.f32 %v5230, %v5398
      %v5400 = vpop.f32.mrf.mxu0
      %v5401 = vadd.f32 %v5232, %v5400
      %5402 = vmatmul.bf16.gmra.mxu0 %v4949
      %v5403 = vpop.f32.mrf.mxu0
      %v5404 = vadd.f32 %v5235, %v5403
      %v5405 = vpop.f32.mrf.mxu0
      %v5406 = vadd.f32 %v5237, %v5405
      %5407 = vmatmul.bf16.gmra.mxu0 %v4952
      %v5408 = vpop.f32.mrf.mxu0
      %v5409 = vadd.f32 %v5240, %v5408
      %v5410 = vpop.f32.mrf.mxu0
      %v5411 = vadd.f32 %v5242, %v5410
      %5412 = vmatmul.bf16.gmra.mxu0 %v4955
      %v5413 = vpop.f32.mrf.mxu0
      %v5414 = vadd.f32 %v5245, %v5413
      %v5415 = vpop.f32.mrf.mxu0
      %v5416 = vadd.f32 %v5247, %v5415
      %5417 = vmatmul.bf16.gmra.mxu0 %v4958
      %v5418 = vpop.f32.mrf.mxu0
      %v5419 = vadd.f32 %v5250, %v5418
      %v5420 = vpop.f32.mrf.mxu0
      %v5421 = vadd.f32 %v5252, %v5420
      %5422 = vmatmul.bf16.gmra.mxu0 %v4961
      %v5423 = vpop.f32.mrf.mxu0
      %v5424 = vadd.f32 %v5255, %v5423
      %v5425 = vpop.f32.mrf.mxu0
      %v5426 = vadd.f32 %v5257, %v5425
      %5427 = vmatmul.bf16.gmra.mxu0 %v4964
      %v5428 = vpop.f32.mrf.mxu0
      %v5429 = vadd.f32 %v5260, %v5428
      %v5430 = vpop.f32.mrf.mxu0
      %v5431 = vadd.f32 %v5262, %v5430
      %5432 = vmatmul.bf16.gmra.mxu0 %v4967
      %v5433 = vpop.f32.mrf.mxu0
      %v5434 = vadd.f32 %v5265, %v5433
      %v5435 = vpop.f32.mrf.mxu0
      %v5436 = vadd.f32 %v5267, %v5435
      %5437 = vmatmul.bf16.gmra.mxu0 %v4970
      %v5438 = vpop.f32.mrf.mxu0
      %v5439 = vadd.f32 %v5270, %v5438
      %v5440 = vpop.f32.mrf.mxu0
      %v5441 = vadd.f32 %v5272, %v5440
      %5442 = vmatmul.bf16.gmra.mxu0 %v4973
      %v5443 = vpop.f32.mrf.mxu0
      %v5444 = vadd.f32 %v5275, %v5443
      %v5445 = vpop.f32.mrf.mxu0
      %v5446 = vadd.f32 %v5277, %v5445
      %5447 = vmatmul.bf16.gmra.mxu0 %v4976
      %v5448 = vpop.f32.mrf.mxu0
      %v5449 = vadd.f32 %v5280, %v5448
      %v5450 = vpop.f32.mrf.mxu0
      %v5451 = vadd.f32 %v5282, %v5450
      %5452 = vmatmul.bf16.gmra.mxu0 %v4979
      %v5453 = vpop.f32.mrf.mxu0
      %v5454 = vadd.f32 %v5285, %v5453
      %v5455 = vpop.f32.mrf.mxu0
      %v5456 = vadd.f32 %v5287, %v5455
      %5457 = vmatmul.bf16.gmra.mxu0 %v4982
      %v5458 = vpop.f32.mrf.mxu0
      %v5459 = vadd.f32 %v5290, %v5458
      %v5460 = vpop.f32.mrf.mxu0
      %v5461 = vadd.f32 %v5292, %v5460
      %5462 = vmatmul.bf16.gmra.mxu0 %v4985
      %v5463 = vpop.f32.mrf.mxu0
      %v5464 = vadd.f32 %v5295, %v5463
      %v5465 = vpop.f32.mrf.mxu0
      %v5466 = vadd.f32 %v5297, %v5465
      %5467 = vmatmul.bf16.gmra.mxu0 %v4988
      %v5468 = vpop.f32.mrf.mxu0
      %v5469 = vadd.f32 %v5300, %v5468
      %v5470 = vpop.f32.mrf.mxu0
      %v5471 = vadd.f32 %v5302, %v5470
      %5472 = vmatmul.bf16.gmra.mxu0 %v4991
      %v5473 = vpop.f32.mrf.mxu0
      %v5474 = vadd.f32 %v5305, %v5473
      %v5475 = vpop.f32.mrf.mxu0
      %v5476 = vadd.f32 %v5307, %v5475
      %5477 = vmatmul.bf16.gmra.mxu0 %v4994
      %v5478 = vpop.f32.mrf.mxu0
      %v5479 = vadd.f32 %v5310, %v5478
      %v5480 = vpop.f32.mrf.mxu0
      %v5481 = vadd.f32 %v5312, %v5480
      %5482 = vmatmul.bf16.gmra.mxu0 %v4997
      %v5483 = vpop.f32.mrf.mxu0
      %v5484 = vadd.f32 %v5315, %v5483
      %v5485 = vpop.f32.mrf.mxu0
      %v5486 = vadd.f32 %v5317, %v5485
      %5487 = vmatmul.bf16.gmra.mxu0 %v5000
      %v5488 = vpop.f32.mrf.mxu0
      %v5489 = vadd.f32 %v5320, %v5488
      %v5490 = vpop.f32.mrf.mxu0
      %v5491 = vadd.f32 %v5322, %v5490
      %5492 = vmatmul.bf16.gmra.mxu0 %v5003
      %v5493 = vpop.f32.mrf.mxu0
      %v5494 = vadd.f32 %v5325, %v5493
      %v5495 = vpop.f32.mrf.mxu0
      %v5496 = vadd.f32 %v5327, %v5495
      %5497 = vmatmul.bf16.gmra.mxu0 %v5006
      %v5498 = vpop.f32.mrf.mxu0
      %v5499 = vadd.f32 %v5330, %v5498
      %v5500 = vpop.f32.mrf.mxu0
      %v5501 = vadd.f32 %v5332, %v5500
      %5502 = vmatmul.bf16.gmra.mxu0 %v5009
      %v5503 = vpop.f32.mrf.mxu0
      %v5504 = vadd.f32 %v5335, %v5503
      %v5505 = vpop.f32.mrf.mxu0
      %v5506 = vadd.f32 %v5337, %v5505
      %5507 = vmatmul.bf16.gmra.mxu0 %v5012
      %v5508 = vpop.f32.mrf.mxu0
      %v5509 = vadd.f32 %v5340, %v5508
      %v5510 = vpop.f32.mrf.mxu0
      %v5511 = vadd.f32 %v5342, %v5510
      %5512 = vmatmul.bf16.gmra.mxu0 %v5015
      %v5513 = vpop.f32.mrf.mxu0
      %v5514 = vadd.f32 %v5345, %v5513
      %v5515 = vpop.f32.mrf.mxu0
      %v5516 = vadd.f32 %v5347, %v5515
      %5517 = vmatmul.bf16.gmra.mxu0 %v5018
      %v5518 = vpop.f32.mrf.mxu0
      %v5519 = vadd.f32 %v5350, %v5518
      %v5520 = vpop.f32.mrf.mxu0
      %v5521 = vadd.f32 %v5352, %v5520
      %5522 = vmatmul.bf16.gmra.mxu0 %v5021
      %v5523 = vpop.f32.mrf.mxu0
      %v5524 = vadd.f32 %v5355, %v5523
      %v5525 = vpop.f32.mrf.mxu0
      %v5526 = vadd.f32 %v5357, %v5525
      %5527 = vmatmul.bf16.gmra.mxu0 %v5024
      %v5528 = vpop.f32.mrf.mxu0
      %v5529 = vadd.f32 %v5360, %v5528
      %v5530 = vpop.f32.mrf.mxu0
      %v5531 = vadd.f32 %v5362, %v5530
      %5532 = vdwg.mxu0
      %5597 = vrot.lane.b32.xlu0 %v5374, 73
      %v5598 = vpop.permute.xlu0 %5597
      %5599 = vrot.lane.b32.xlu0 %v5376, 73
      %v5600 = vpop.permute.xlu0 %5599
      %5601 = vrot.lane.b32.xlu0 %v5379, 73
      %v5602 = vpop.permute.xlu0 %5601
      %5603 = vrot.lane.b32.xlu0 %v5381, 73
      %v5604 = vpop.permute.xlu0 %5603
      %5605 = vrot.lane.b32.xlu0 %v5384, 73
      %v5606 = vpop.permute.xlu0 %5605
      %5607 = vrot.lane.b32.xlu0 %v5386, 73
      %v5608 = vpop.permute.xlu0 %5607
      %5609 = vrot.lane.b32.xlu0 %v5389, 73
      %v5610 = vpop.permute.xlu0 %5609
      %5611 = vrot.lane.b32.xlu0 %v5391, 73
      %v5612 = vpop.permute.xlu0 %5611
      %5613 = vrot.lane.b32.xlu0 %v5394, 73
      %v5614 = vpop.permute.xlu0 %5613
      %5615 = vrot.lane.b32.xlu0 %v5396, 73
      %v5616 = vpop.permute.xlu0 %5615
      %5617 = vrot.lane.b32.xlu0 %v5399, 73
      %v5618 = vpop.permute.xlu0 %5617
      %5619 = vrot.lane.b32.xlu0 %v5401, 73
      %v5620 = vpop.permute.xlu0 %5619
      %5621 = vrot.lane.b32.xlu0 %v5404, 73
      %v5622 = vpop.permute.xlu0 %5621
      %5623 = vrot.lane.b32.xlu0 %v5406, 73
      %v5624 = vpop.permute.xlu0 %5623
      %5625 = vrot.lane.b32.xlu0 %v5409, 73
      %v5626 = vpop.permute.xlu0 %5625
      %5627 = vrot.lane.b32.xlu0 %v5411, 73
      %v5628 = vpop.permute.xlu0 %5627
      %5629 = vrot.lane.b32.xlu0 %v5414, 73
      %v5630 = vpop.permute.xlu0 %5629
      %5631 = vrot.lane.b32.xlu0 %v5416, 73
      %v5632 = vpop.permute.xlu0 %5631
      %5633 = vrot.lane.b32.xlu0 %v5419, 73
      %v5634 = vpop.permute.xlu0 %5633
      %5635 = vrot.lane.b32.xlu0 %v5421, 73
      %v5636 = vpop.permute.xlu0 %5635
      %5637 = vrot.lane.b32.xlu0 %v5424, 73
      %v5638 = vpop.permute.xlu0 %5637
      %5639 = vrot.lane.b32.xlu0 %v5426, 73
      %v5640 = vpop.permute.xlu0 %5639
      %5641 = vrot.lane.b32.xlu0 %v5429, 73
      %v5642 = vpop.permute.xlu0 %5641
      %5643 = vrot.lane.b32.xlu0 %v5431, 73
      %v5644 = vpop.permute.xlu0 %5643
      %5645 = vrot.lane.b32.xlu0 %v5434, 73
      %v5646 = vpop.permute.xlu0 %5645
      %5647 = vrot.lane.b32.xlu0 %v5436, 73
      %v5648 = vpop.permute.xlu0 %5647
      %5649 = vrot.lane.b32.xlu0 %v5439, 73
      %v5650 = vpop.permute.xlu0 %5649
      %5651 = vrot.lane.b32.xlu0 %v5441, 73
      %v5652 = vpop.permute.xlu0 %5651
      %5653 = vrot.lane.b32.xlu0 %v5444, 73
      %v5654 = vpop.permute.xlu0 %5653
      %5655 = vrot.lane.b32.xlu0 %v5446, 73
      %v5656 = vpop.permute.xlu0 %5655
      %5657 = vrot.lane.b32.xlu0 %v5449, 73
      %v5658 = vpop.permute.xlu0 %5657
      %5659 = vrot.lane.b32.xlu0 %v5451, 73
      %v5660 = vpop.permute.xlu0 %5659
      %5661 = vrot.lane.b32.xlu0 %v5454, 73
      %v5662 = vpop.permute.xlu0 %5661
      %5663 = vrot.lane.b32.xlu0 %v5456, 73
      %v5664 = vpop.permute.xlu0 %5663
      %5665 = vrot.lane.b32.xlu0 %v5459, 73
      %v5666 = vpop.permute.xlu0 %5665
      %5667 = vrot.lane.b32.xlu0 %v5461, 73
      %v5668 = vpop.permute.xlu0 %5667
      %5669 = vrot.lane.b32.xlu0 %v5464, 73
      %v5670 = vpop.permute.xlu0 %5669
      %5671 = vrot.lane.b32.xlu0 %v5466, 73
      %v5672 = vpop.permute.xlu0 %5671
      %5673 = vrot.lane.b32.xlu0 %v5469, 73
      %v5674 = vpop.permute.xlu0 %5673
      %5675 = vrot.lane.b32.xlu0 %v5471, 73
      %v5676 = vpop.permute.xlu0 %5675
      %5677 = vrot.lane.b32.xlu0 %v5474, 73
      %v5678 = vpop.permute.xlu0 %5677
      %5679 = vrot.lane.b32.xlu0 %v5476, 73
      %v5680 = vpop.permute.xlu0 %5679
      %5681 = vrot.lane.b32.xlu0 %v5479, 73
      %v5682 = vpop.permute.xlu0 %5681
      %5683 = vrot.lane.b32.xlu0 %v5481, 73
      %v5684 = vpop.permute.xlu0 %5683
      %5685 = vrot.lane.b32.xlu0 %v5484, 73
      %v5686 = vpop.permute.xlu0 %5685
      %5687 = vrot.lane.b32.xlu0 %v5486, 73
      %v5688 = vpop.permute.xlu0 %5687
      %5689 = vrot.lane.b32.xlu0 %v5489, 73
      %v5690 = vpop.permute.xlu0 %5689
      %5691 = vrot.lane.b32.xlu0 %v5491, 73
      %v5692 = vpop.permute.xlu0 %5691
      %5693 = vrot.lane.b32.xlu0 %v5494, 73
      %v5694 = vpop.permute.xlu0 %5693
      %5695 = vrot.lane.b32.xlu0 %v5496, 73
      %v5696 = vpop.permute.xlu0 %5695
      %5697 = vrot.lane.b32.xlu0 %v5499, 73
      %v5698 = vpop.permute.xlu0 %5697
      %5699 = vrot.lane.b32.xlu0 %v5501, 73
      %v5700 = vpop.permute.xlu0 %5699
      %5701 = vrot.lane.b32.xlu0 %v5504, 73
      %v5702 = vpop.permute.xlu0 %5701
      %5703 = vrot.lane.b32.xlu0 %v5506, 73
      %v5704 = vpop.permute.xlu0 %5703
      %5705 = vrot.lane.b32.xlu0 %v5509, 73
      %v5706 = vpop.permute.xlu0 %5705
      %5707 = vrot.lane.b32.xlu0 %v5511, 73
      %v5708 = vpop.permute.xlu0 %5707
      %5709 = vrot.lane.b32.xlu0 %v5514, 73
      %v5710 = vpop.permute.xlu0 %5709
      %5711 = vrot.lane.b32.xlu0 %v5516, 73
      %v5712 = vpop.permute.xlu0 %5711
      %5713 = vrot.lane.b32.xlu0 %v5519, 73
      %v5714 = vpop.permute.xlu0 %5713
      %5715 = vrot.lane.b32.xlu0 %v5521, 73
      %v5716 = vpop.permute.xlu0 %5715
      %5717 = vrot.lane.b32.xlu0 %v5524, 73
      %v5718 = vpop.permute.xlu0 %5717
      %5719 = vrot.lane.b32.xlu0 %v5526, 73
      %v5720 = vpop.permute.xlu0 %5719
      %5721 = vrot.lane.b32.xlu0 %v5529, 73
      %v5722 = vpop.permute.xlu0 %5721
      %5723 = vrot.lane.b32.xlu0 %v5531, 73
      %v5724 = vpop.permute.xlu0 %5723
      %v5789 = vrot.slane %v5598, 7
      %v5790 = vrot.slane %v5600, 7
      %v5791 = vrot.slane %v5602, 7
      %v5792 = vrot.slane %v5604, 7
      %v5793 = vrot.slane %v5606, 7
      %v5794 = vrot.slane %v5608, 7
      %v5795 = vrot.slane %v5610, 7
      %v5796 = vrot.slane %v5612, 7
      %v5797 = vrot.slane %v5614, 7
      %v5798 = vrot.slane %v5616, 7
      %v5799 = vrot.slane %v5618, 7
      %v5800 = vrot.slane %v5620, 7
      %v5801 = vrot.slane %v5622, 7
      %v5802 = vrot.slane %v5624, 7
      %v5803 = vrot.slane %v5626, 7
      %v5804 = vrot.slane %v5628, 7
      %v5805 = vrot.slane %v5630, 7
      %v5806 = vrot.slane %v5632, 7
      %v5807 = vrot.slane %v5634, 7
      %v5808 = vrot.slane %v5636, 7
      %v5809 = vrot.slane %v5638, 7
      %v5810 = vrot.slane %v5640, 7
      %v5811 = vrot.slane %v5642, 7
      %v5812 = vrot.slane %v5644, 7
      %v5813 = vrot.slane %v5646, 7
      %v5814 = vrot.slane %v5648, 7
      %v5815 = vrot.slane %v5650, 7
      %v5816 = vrot.slane %v5652, 7
      %v5817 = vrot.slane %v5654, 7
      %v5818 = vrot.slane %v5656, 7
      %v5819 = vrot.slane %v5658, 7
      %v5820 = vrot.slane %v5660, 7
      %v5821 = vrot.slane %v5662, 7
      %v5822 = vrot.slane %v5664, 7
      %v5823 = vrot.slane %v5666, 7
      %v5824 = vrot.slane %v5668, 7
      %v5825 = vrot.slane %v5670, 7
      %v5826 = vrot.slane %v5672, 7
      %v5827 = vrot.slane %v5674, 7
      %v5828 = vrot.slane %v5676, 7
      %v5829 = vrot.slane %v5678, 7
      %v5830 = vrot.slane %v5680, 7
      %v5831 = vrot.slane %v5682, 7
      %v5832 = vrot.slane %v5684, 7
      %v5833 = vrot.slane %v5686, 7
      %v5834 = vrot.slane %v5688, 7
      %v5835 = vrot.slane %v5690, 7
      %v5836 = vrot.slane %v5692, 7
      %v5837 = vrot.slane %v5694, 7
      %v5838 = vrot.slane %v5696, 7
      %v5839 = vrot.slane %v5698, 7
      %v5840 = vrot.slane %v5700, 7
      %v5841 = vrot.slane %v5702, 7
      %v5842 = vrot.slane %v5704, 7
      %v5843 = vrot.slane %v5706, 7
      %v5844 = vrot.slane %v5708, 7
      %v5845 = vrot.slane %v5710, 7
      %v5846 = vrot.slane %v5712, 7
      %v5847 = vrot.slane %v5714, 7
      %v5848 = vrot.slane %v5716, 7
      %v5849 = vrot.slane %v5718, 7
      %v5850 = vrot.slane %v5720, 7
      %v5851 = vrot.slane %v5722, 7
      %v5852 = vrot.slane %v5724, 7
      %v5853 = vsel %vm2066, %v5851, %v5852
      %v5854 = vsel %vm2066, %v5850, %v5851
      %v5855 = vsel %vm2066, %v5849, %v5850
      %v5856 = vsel %vm2066, %v5848, %v5849
      %v5857 = vsel %vm2066, %v5847, %v5848
      %v5858 = vsel %vm2066, %v5846, %v5847
      %v5859 = vsel %vm2066, %v5845, %v5846
      %v5860 = vsel %vm2066, %v5844, %v5845
      %v5861 = vsel %vm2066, %v5843, %v5844
      %v5862 = vsel %vm2066, %v5842, %v5843
      %v5863 = vsel %vm2066, %v5841, %v5842
      %v5864 = vsel %vm2066, %v5840, %v5841
      %v5865 = vsel %vm2066, %v5839, %v5840
      %v5866 = vsel %vm2066, %v5838, %v5839
      %v5867 = vsel %vm2066, %v5837, %v5838
      %v5868 = vsel %vm2066, %v5836, %v5837
      %v5869 = vsel %vm2066, %v5835, %v5836
      %v5870 = vsel %vm2066, %v5834, %v5835
      %v5871 = vsel %vm2066, %v5833, %v5834
      %v5872 = vsel %vm2066, %v5832, %v5833
      %v5873 = vsel %vm2066, %v5831, %v5832
      %v5874 = vsel %vm2066, %v5830, %v5831
      %v5875 = vsel %vm2066, %v5829, %v5830
      %v5876 = vsel %vm2066, %v5828, %v5829
      %v5877 = vsel %vm2066, %v5827, %v5828
      %v5878 = vsel %vm2066, %v5826, %v5827
      %v5879 = vsel %vm2066, %v5825, %v5826
      %v5880 = vsel %vm2066, %v5824, %v5825
      %v5881 = vsel %vm2066, %v5823, %v5824
      %v5882 = vsel %vm2066, %v5822, %v5823
      %v5883 = vsel %vm2066, %v5821, %v5822
      %v5884 = vsel %vm2066, %v5820, %v5821
      %v5885 = vsel %vm2066, %v5819, %v5820
      %v5886 = vsel %vm2066, %v5818, %v5819
      %v5887 = vsel %vm2066, %v5817, %v5818
      %v5888 = vsel %vm2066, %v5816, %v5817
      %v5889 = vsel %vm2066, %v5815, %v5816
      %v5890 = vsel %vm2066, %v5814, %v5815
      %v5891 = vsel %vm2066, %v5813, %v5814
      %v5892 = vsel %vm2066, %v5812, %v5813
      %v5893 = vsel %vm2066, %v5811, %v5812
      %v5894 = vsel %vm2066, %v5810, %v5811
      %v5895 = vsel %vm2066, %v5809, %v5810
      %v5896 = vsel %vm2066, %v5808, %v5809
      %v5897 = vsel %vm2066, %v5807, %v5808
      %v5898 = vsel %vm2066, %v5806, %v5807
      %v5899 = vsel %vm2066, %v5805, %v5806
      %v5900 = vsel %vm2066, %v5804, %v5805
      %v5901 = vsel %vm2066, %v5803, %v5804
      %v5902 = vsel %vm2066, %v5802, %v5803
      %v5903 = vsel %vm2066, %v5801, %v5802
      %v5904 = vsel %vm2066, %v5800, %v5801
      %v5905 = vsel %vm2066, %v5799, %v5800
      %v5906 = vsel %vm2066, %v5798, %v5799
      %v5907 = vsel %vm2066, %v5797, %v5798
      %v5908 = vsel %vm2066, %v5796, %v5797
      %v5909 = vsel %vm2066, %v5795, %v5796
      %v5910 = vsel %vm2066, %v5794, %v5795
      %v5911 = vsel %vm2066, %v5793, %v5794
      %v5912 = vsel %vm2066, %v5792, %v5793
      %v5913 = vsel %vm2066, %v5791, %v5792
      %v5914 = vsel %vm2066, %v5790, %v5791
      %v5915 = vsel %vm2066, %v5789, %v5790
      %v5916 = vsel %vm2066, %v5852, %v5789
      %5981 = vrot.lane.b32.xlu0 %v5916, 50
      %v5982 = vpop.permute.xlu0 %5981
      %5983 = vrot.lane.b32.xlu0 %v5915, 50
      %v5984 = vpop.permute.xlu0 %5983
      %5985 = vrot.lane.b32.xlu0 %v5914, 50
      %v5986 = vpop.permute.xlu0 %5985
      %5987 = vrot.lane.b32.xlu0 %v5913, 50
      %v5988 = vpop.permute.xlu0 %5987
      %5989 = vrot.lane.b32.xlu0 %v5912, 50
      %v5990 = vpop.permute.xlu0 %5989
      %5991 = vrot.lane.b32.xlu0 %v5911, 50
      %v5992 = vpop.permute.xlu0 %5991
      %5993 = vrot.lane.b32.xlu0 %v5910, 50
      %v5994 = vpop.permute.xlu0 %5993
      %5995 = vrot.lane.b32.xlu0 %v5909, 50
      %v5996 = vpop.permute.xlu0 %5995
      %5997 = vrot.lane.b32.xlu0 %v5908, 50
      %v5998 = vpop.permute.xlu0 %5997
      %5999 = vrot.lane.b32.xlu0 %v5907, 50
      %v6000 = vpop.permute.xlu0 %5999
      %6001 = vrot.lane.b32.xlu0 %v5906, 50
      %v6002 = vpop.permute.xlu0 %6001
      %6003 = vrot.lane.b32.xlu0 %v5905, 50
      %v6004 = vpop.permute.xlu0 %6003
      %6005 = vrot.lane.b32.xlu0 %v5904, 50
      %v6006 = vpop.permute.xlu0 %6005
      %6007 = vrot.lane.b32.xlu0 %v5903, 50
      %v6008 = vpop.permute.xlu0 %6007
      %6009 = vrot.lane.b32.xlu0 %v5902, 50
      %v6010 = vpop.permute.xlu0 %6009
      %6011 = vrot.lane.b32.xlu0 %v5901, 50
      %v6012 = vpop.permute.xlu0 %6011
      %6013 = vrot.lane.b32.xlu0 %v5900, 50
      %v6014 = vpop.permute.xlu0 %6013
      %6015 = vrot.lane.b32.xlu0 %v5899, 50
      %v6016 = vpop.permute.xlu0 %6015
      %6017 = vrot.lane.b32.xlu0 %v5898, 50
      %v6018 = vpop.permute.xlu0 %6017
      %6019 = vrot.lane.b32.xlu0 %v5897, 50
      %v6020 = vpop.permute.xlu0 %6019
      %6021 = vrot.lane.b32.xlu0 %v5896, 50
      %v6022 = vpop.permute.xlu0 %6021
      %6023 = vrot.lane.b32.xlu0 %v5895, 50
      %v6024 = vpop.permute.xlu0 %6023
      %6025 = vrot.lane.b32.xlu0 %v5894, 50
      %v6026 = vpop.permute.xlu0 %6025
      %6027 = vrot.lane.b32.xlu0 %v5893, 50
      %v6028 = vpop.permute.xlu0 %6027
      %6029 = vrot.lane.b32.xlu0 %v5892, 50
      %v6030 = vpop.permute.xlu0 %6029
      %6031 = vrot.lane.b32.xlu0 %v5891, 50
      %v6032 = vpop.permute.xlu0 %6031
      %6033 = vrot.lane.b32.xlu0 %v5890, 50
      %v6034 = vpop.permute.xlu0 %6033
      %6035 = vrot.lane.b32.xlu0 %v5889, 50
      %v6036 = vpop.permute.xlu0 %6035
      %6037 = vrot.lane.b32.xlu0 %v5888, 50
      %v6038 = vpop.permute.xlu0 %6037
      %6039 = vrot.lane.b32.xlu0 %v5887, 50
      %v6040 = vpop.permute.xlu0 %6039
      %6041 = vrot.lane.b32.xlu0 %v5886, 50
      %v6042 = vpop.permute.xlu0 %6041
      %6043 = vrot.lane.b32.xlu0 %v5885, 50
      %v6044 = vpop.permute.xlu0 %6043
      %6045 = vrot.lane.b32.xlu0 %v5884, 50
      %v6046 = vpop.permute.xlu0 %6045
      %6047 = vrot.lane.b32.xlu0 %v5883, 50
      %v6048 = vpop.permute.xlu0 %6047
      %6049 = vrot.lane.b32.xlu0 %v5882, 50
      %v6050 = vpop.permute.xlu0 %6049
      %6051 = vrot.lane.b32.xlu0 %v5881, 50
      %v6052 = vpop.permute.xlu0 %6051
      %6053 = vrot.lane.b32.xlu0 %v5880, 50
      %v6054 = vpop.permute.xlu0 %6053
      %6055 = vrot.lane.b32.xlu0 %v5879, 50
      %v6056 = vpop.permute.xlu0 %6055
      %6057 = vrot.lane.b32.xlu0 %v5878, 50
      %v6058 = vpop.permute.xlu0 %6057
      %6059 = vrot.lane.b32.xlu0 %v5877, 50
      %v6060 = vpop.permute.xlu0 %6059
      %6061 = vrot.lane.b32.xlu0 %v5876, 50
      %v6062 = vpop.permute.xlu0 %6061
      %6063 = vrot.lane.b32.xlu0 %v5875, 50
      %v6064 = vpop.permute.xlu0 %6063
      %6065 = vrot.lane.b32.xlu0 %v5874, 50
      %v6066 = vpop.permute.xlu0 %6065
      %6067 = vrot.lane.b32.xlu0 %v5873, 50
      %v6068 = vpop.permute.xlu0 %6067
      %6069 = vrot.lane.b32.xlu0 %v5872, 50
      %v6070 = vpop.permute.xlu0 %6069
      %6071 = vrot.lane.b32.xlu0 %v5871, 50
      %v6072 = vpop.permute.xlu0 %6071
      %6073 = vrot.lane.b32.xlu0 %v5870, 50
      %v6074 = vpop.permute.xlu0 %6073
      %6075 = vrot.lane.b32.xlu0 %v5869, 50
      %v6076 = vpop.permute.xlu0 %6075
      %6077 = vrot.lane.b32.xlu0 %v5868, 50
      %v6078 = vpop.permute.xlu0 %6077
      %6079 = vrot.lane.b32.xlu0 %v5867, 50
      %v6080 = vpop.permute.xlu0 %6079
      %6081 = vrot.lane.b32.xlu0 %v5866, 50
      %v6082 = vpop.permute.xlu0 %6081
      %6083 = vrot.lane.b32.xlu0 %v5865, 50
      %v6084 = vpop.permute.xlu0 %6083
      %6085 = vrot.lane.b32.xlu0 %v5864, 50
      %v6086 = vpop.permute.xlu0 %6085
      %6087 = vrot.lane.b32.xlu0 %v5863, 50
      %v6088 = vpop.permute.xlu0 %6087
      %6089 = vrot.lane.b32.xlu0 %v5862, 50
      %v6090 = vpop.permute.xlu0 %6089
      %6091 = vrot.lane.b32.xlu0 %v5861, 50
      %v6092 = vpop.permute.xlu0 %6091
      %6093 = vrot.lane.b32.xlu0 %v5860, 50
      %v6094 = vpop.permute.xlu0 %6093
      %6095 = vrot.lane.b32.xlu0 %v5859, 50
      %v6096 = vpop.permute.xlu0 %6095
      %6097 = vrot.lane.b32.xlu0 %v5858, 50
      %v6098 = vpop.permute.xlu0 %6097
      %6099 = vrot.lane.b32.xlu0 %v5857, 50
      %v6100 = vpop.permute.xlu0 %6099
      %6101 = vrot.lane.b32.xlu0 %v5856, 50
      %v6102 = vpop.permute.xlu0 %6101
      %6103 = vrot.lane.b32.xlu0 %v5855, 50
      %v6104 = vpop.permute.xlu0 %6103
      %6105 = vrot.lane.b32.xlu0 %v5854, 50
      %v6106 = vpop.permute.xlu0 %6105
      %6107 = vrot.lane.b32.xlu0 %v5853, 50
      %v6108 = vpop.permute.xlu0 %6107
      %v6173 = vadd.f32 %v5374, %v5982
      %v6174 = vadd.f32 %v5376, %v5984
      %v6175 = vadd.f32 %v5379, %v5986
      %v6176 = vadd.f32 %v5381, %v5988
      %v6177 = vadd.f32 %v5384, %v5990
      %v6178 = vadd.f32 %v5386, %v5992
      %v6179 = vadd.f32 %v5389, %v5994
      %v6180 = vadd.f32 %v5391, %v5996
      %v6181 = vadd.f32 %v5394, %v5998
      %v6182 = vadd.f32 %v5396, %v6000
      %v6183 = vadd.f32 %v5399, %v6002
      %v6184 = vadd.f32 %v5401, %v6004
      %v6185 = vadd.f32 %v5404, %v6006
      %v6186 = vadd.f32 %v5406, %v6008
      %v6187 = vadd.f32 %v5409, %v6010
      %v6188 = vadd.f32 %v5411, %v6012
      %v6189 = vadd.f32 %v5414, %v6014
      %v6190 = vadd.f32 %v5416, %v6016
      %v6191 = vadd.f32 %v5419, %v6018
      %v6192 = vadd.f32 %v5421, %v6020
      %v6193 = vadd.f32 %v5424, %v6022
      %v6194 = vadd.f32 %v5426, %v6024
      %v6195 = vadd.f32 %v5429, %v6026
      %v6196 = vadd.f32 %v5431, %v6028
      %v6197 = vadd.f32 %v5434, %v6030
      %v6198 = vadd.f32 %v5436, %v6032
      %v6199 = vadd.f32 %v5439, %v6034
      %v6200 = vadd.f32 %v5441, %v6036
      %v6201 = vadd.f32 %v5444, %v6038
      %v6202 = vadd.f32 %v5446, %v6040
      %v6203 = vadd.f32 %v5449, %v6042
      %v6204 = vadd.f32 %v5451, %v6044
      %v6205 = vadd.f32 %v5454, %v6046
      %v6206 = vadd.f32 %v5456, %v6048
      %v6207 = vadd.f32 %v5459, %v6050
      %v6208 = vadd.f32 %v5461, %v6052
      %v6209 = vadd.f32 %v5464, %v6054
      %v6210 = vadd.f32 %v5466, %v6056
      %v6211 = vadd.f32 %v5469, %v6058
      %v6212 = vadd.f32 %v5471, %v6060
      %v6213 = vadd.f32 %v5474, %v6062
      %v6214 = vadd.f32 %v5476, %v6064
      %v6215 = vadd.f32 %v5479, %v6066
      %v6216 = vadd.f32 %v5481, %v6068
      %v6217 = vadd.f32 %v5484, %v6070
      %v6218 = vadd.f32 %v5486, %v6072
      %v6219 = vadd.f32 %v5489, %v6074
      %v6220 = vadd.f32 %v5491, %v6076
      %v6221 = vadd.f32 %v5494, %v6078
      %v6222 = vadd.f32 %v5496, %v6080
      %v6223 = vadd.f32 %v5499, %v6082
      %v6224 = vadd.f32 %v5501, %v6084
      %v6225 = vadd.f32 %v5504, %v6086
      %v6226 = vadd.f32 %v5506, %v6088
      %v6227 = vadd.f32 %v5509, %v6090
      %v6228 = vadd.f32 %v5511, %v6092
      %v6229 = vadd.f32 %v5514, %v6094
      %v6230 = vadd.f32 %v5516, %v6096
      %v6231 = vadd.f32 %v5519, %v6098
      %v6232 = vadd.f32 %v5521, %v6100
      %v6233 = vadd.f32 %v5524, %v6102
      %v6234 = vadd.f32 %v5526, %v6104
      %v6235 = vadd.f32 %v5529, %v6106
      %v6236 = vadd.f32 %v5531, %v6108
      %6237 = vrot.lane.b32.xlu0 %v5374, 68
      %v6238 = vpop.permute.xlu0 %6237
      %6239 = vrot.lane.b32.xlu0 %v5376, 68
      %v6240 = vpop.permute.xlu0 %6239
      %6241 = vrot.lane.b32.xlu0 %v5379, 68
      %v6242 = vpop.permute.xlu0 %6241
      %6243 = vrot.lane.b32.xlu0 %v5381, 68
      %v6244 = vpop.permute.xlu0 %6243
      %6245 = vrot.lane.b32.xlu0 %v5384, 68
      %v6246 = vpop.permute.xlu0 %6245
      %6247 = vrot.lane.b32.xlu0 %v5386, 68
      %v6248 = vpop.permute.xlu0 %6247
      %6249 = vrot.lane.b32.xlu0 %v5389, 68
      %v6250 = vpop.permute.xlu0 %6249
      %6251 = vrot.lane.b32.xlu0 %v5391, 68
      %v6252 = vpop.permute.xlu0 %6251
      %6253 = vrot.lane.b32.xlu0 %v5394, 68
      %v6254 = vpop.permute.xlu0 %6253
      %6255 = vrot.lane.b32.xlu0 %v5396, 68
      %v6256 = vpop.permute.xlu0 %6255
      %6257 = vrot.lane.b32.xlu0 %v5399, 68
      %v6258 = vpop.permute.xlu0 %6257
      %6259 = vrot.lane.b32.xlu0 %v5401, 68
      %v6260 = vpop.permute.xlu0 %6259
      %6261 = vrot.lane.b32.xlu0 %v5404, 68
      %v6262 = vpop.permute.xlu0 %6261
      %6263 = vrot.lane.b32.xlu0 %v5406, 68
      %v6264 = vpop.permute.xlu0 %6263
      %6265 = vrot.lane.b32.xlu0 %v5409, 68
      %v6266 = vpop.permute.xlu0 %6265
      %6267 = vrot.lane.b32.xlu0 %v5411, 68
      %v6268 = vpop.permute.xlu0 %6267
      %6269 = vrot.lane.b32.xlu0 %v5414, 68
      %v6270 = vpop.permute.xlu0 %6269
      %6271 = vrot.lane.b32.xlu0 %v5416, 68
      %v6272 = vpop.permute.xlu0 %6271
      %6273 = vrot.lane.b32.xlu0 %v5419, 68
      %v6274 = vpop.permute.xlu0 %6273
      %6275 = vrot.lane.b32.xlu0 %v5421, 68
      %v6276 = vpop.permute.xlu0 %6275
      %6277 = vrot.lane.b32.xlu0 %v5424, 68
      %v6278 = vpop.permute.xlu0 %6277
      %6279 = vrot.lane.b32.xlu0 %v5426, 68
      %v6280 = vpop.permute.xlu0 %6279
      %6281 = vrot.lane.b32.xlu0 %v5429, 68
      %v6282 = vpop.permute.xlu0 %6281
      %6283 = vrot.lane.b32.xlu0 %v5431, 68
      %v6284 = vpop.permute.xlu0 %6283
      %6285 = vrot.lane.b32.xlu0 %v5434, 68
      %v6286 = vpop.permute.xlu0 %6285
      %6287 = vrot.lane.b32.xlu0 %v5436, 68
      %v6288 = vpop.permute.xlu0 %6287
      %6289 = vrot.lane.b32.xlu0 %v5439, 68
      %v6290 = vpop.permute.xlu0 %6289
      %6291 = vrot.lane.b32.xlu0 %v5441, 68
      %v6292 = vpop.permute.xlu0 %6291
      %6293 = vrot.lane.b32.xlu0 %v5444, 68
      %v6294 = vpop.permute.xlu0 %6293
      %6295 = vrot.lane.b32.xlu0 %v5446, 68
      %v6296 = vpop.permute.xlu0 %6295
      %6297 = vrot.lane.b32.xlu0 %v5449, 68
      %v6298 = vpop.permute.xlu0 %6297
      %6299 = vrot.lane.b32.xlu0 %v5451, 68
      %v6300 = vpop.permute.xlu0 %6299
      %6301 = vrot.lane.b32.xlu0 %v5454, 68
      %v6302 = vpop.permute.xlu0 %6301
      %6303 = vrot.lane.b32.xlu0 %v5456, 68
      %v6304 = vpop.permute.xlu0 %6303
      %6305 = vrot.lane.b32.xlu0 %v5459, 68
      %v6306 = vpop.permute.xlu0 %6305
      %6307 = vrot.lane.b32.xlu0 %v5461, 68
      %v6308 = vpop.permute.xlu0 %6307
      %6309 = vrot.lane.b32.xlu0 %v5464, 68
      %v6310 = vpop.permute.xlu0 %6309
      %6311 = vrot.lane.b32.xlu0 %v5466, 68
      %v6312 = vpop.permute.xlu0 %6311
      %6313 = vrot.lane.b32.xlu0 %v5469, 68
      %v6314 = vpop.permute.xlu0 %6313
      %6315 = vrot.lane.b32.xlu0 %v5471, 68
      %v6316 = vpop.permute.xlu0 %6315
      %6317 = vrot.lane.b32.xlu0 %v5474, 68
      %v6318 = vpop.permute.xlu0 %6317
      %6319 = vrot.lane.b32.xlu0 %v5476, 68
      %v6320 = vpop.permute.xlu0 %6319
      %6321 = vrot.lane.b32.xlu0 %v5479, 68
      %v6322 = vpop.permute.xlu0 %6321
      %6323 = vrot.lane.b32.xlu0 %v5481, 68
      %v6324 = vpop.permute.xlu0 %6323
      %6325 = vrot.lane.b32.xlu0 %v5484, 68
      %v6326 = vpop.permute.xlu0 %6325
      %6327 = vrot.lane.b32.xlu0 %v5486, 68
      %v6328 = vpop.permute.xlu0 %6327
      %6329 = vrot.lane.b32.xlu0 %v5489, 68
      %v6330 = vpop.permute.xlu0 %6329
      %6331 = vrot.lane.b32.xlu0 %v5491, 68
      %v6332 = vpop.permute.xlu0 %6331
      %6333 = vrot.lane.b32.xlu0 %v5494, 68
      %v6334 = vpop.permute.xlu0 %6333
      %6335 = vrot.lane.b32.xlu0 %v5496, 68
      %v6336 = vpop.permute.xlu0 %6335
      %6337 = vrot.lane.b32.xlu0 %v5499, 68
      %v6338 = vpop.permute.xlu0 %6337
      %6339 = vrot.lane.b32.xlu0 %v5501, 68
      %v6340 = vpop.permute.xlu0 %6339
      %6341 = vrot.lane.b32.xlu0 %v5504, 68
      %v6342 = vpop.permute.xlu0 %6341
      %6343 = vrot.lane.b32.xlu0 %v5506, 68
      %v6344 = vpop.permute.xlu0 %6343
      %6345 = vrot.lane.b32.xlu0 %v5509, 68
      %v6346 = vpop.permute.xlu0 %6345
      %6347 = vrot.lane.b32.xlu0 %v5511, 68
      %v6348 = vpop.permute.xlu0 %6347
      %6349 = vrot.lane.b32.xlu0 %v5514, 68
      %v6350 = vpop.permute.xlu0 %6349
      %6351 = vrot.lane.b32.xlu0 %v5516, 68
      %v6352 = vpop.permute.xlu0 %6351
      %6353 = vrot.lane.b32.xlu0 %v5519, 68
      %v6354 = vpop.permute.xlu0 %6353
      %6355 = vrot.lane.b32.xlu0 %v5521, 68
      %v6356 = vpop.permute.xlu0 %6355
      %6357 = vrot.lane.b32.xlu0 %v5524, 68
      %v6358 = vpop.permute.xlu0 %6357
      %6359 = vrot.lane.b32.xlu0 %v5526, 68
      %v6360 = vpop.permute.xlu0 %6359
      %6361 = vrot.lane.b32.xlu0 %v5529, 68
      %v6362 = vpop.permute.xlu0 %6361
      %6363 = vrot.lane.b32.xlu0 %v5531, 68
      %v6364 = vpop.permute.xlu0 %6363
      %v6429 = vrot.slane %v6238, 1
      %v6430 = vrot.slane %v6240, 1
      %v6431 = vrot.slane %v6242, 1
      %v6432 = vrot.slane %v6244, 1
      %v6433 = vrot.slane %v6246, 1
      %v6434 = vrot.slane %v6248, 1
      %v6435 = vrot.slane %v6250, 1
      %v6436 = vrot.slane %v6252, 1
      %v6437 = vrot.slane %v6254, 1
      %v6438 = vrot.slane %v6256, 1
      %v6439 = vrot.slane %v6258, 1
      %v6440 = vrot.slane %v6260, 1
      %v6441 = vrot.slane %v6262, 1
      %v6442 = vrot.slane %v6264, 1
      %v6443 = vrot.slane %v6266, 1
      %v6444 = vrot.slane %v6268, 1
      %v6445 = vrot.slane %v6270, 1
      %v6446 = vrot.slane %v6272, 1
      %v6447 = vrot.slane %v6274, 1
      %v6448 = vrot.slane %v6276, 1
      %v6449 = vrot.slane %v6278, 1
      %v6450 = vrot.slane %v6280, 1
      %v6451 = vrot.slane %v6282, 1
      %v6452 = vrot.slane %v6284, 1
      %v6453 = vrot.slane %v6286, 1
      %v6454 = vrot.slane %v6288, 1
      %v6455 = vrot.slane %v6290, 1
      %v6456 = vrot.slane %v6292, 1
      %v6457 = vrot.slane %v6294, 1
      %v6458 = vrot.slane %v6296, 1
      %v6459 = vrot.slane %v6298, 1
      %v6460 = vrot.slane %v6300, 1
      %v6461 = vrot.slane %v6302, 1
      %v6462 = vrot.slane %v6304, 1
      %v6463 = vrot.slane %v6306, 1
      %v6464 = vrot.slane %v6308, 1
      %v6465 = vrot.slane %v6310, 1
      %v6466 = vrot.slane %v6312, 1
      %v6467 = vrot.slane %v6314, 1
      %v6468 = vrot.slane %v6316, 1
      %v6469 = vrot.slane %v6318, 1
      %v6470 = vrot.slane %v6320, 1
      %v6471 = vrot.slane %v6322, 1
      %v6472 = vrot.slane %v6324, 1
      %v6473 = vrot.slane %v6326, 1
      %v6474 = vrot.slane %v6328, 1
      %v6475 = vrot.slane %v6330, 1
      %v6476 = vrot.slane %v6332, 1
      %v6477 = vrot.slane %v6334, 1
      %v6478 = vrot.slane %v6336, 1
      %v6479 = vrot.slane %v6338, 1
      %v6480 = vrot.slane %v6340, 1
      %v6481 = vrot.slane %v6342, 1
      %v6482 = vrot.slane %v6344, 1
      %v6483 = vrot.slane %v6346, 1
      %v6484 = vrot.slane %v6348, 1
      %v6485 = vrot.slane %v6350, 1
      %v6486 = vrot.slane %v6352, 1
      %v6487 = vrot.slane %v6354, 1
      %v6488 = vrot.slane %v6356, 1
      %v6489 = vrot.slane %v6358, 1
      %v6490 = vrot.slane %v6360, 1
      %v6491 = vrot.slane %v6362, 1
      %v6492 = vrot.slane %v6364, 1
      %v6493 = vsel %vm2707, %v6491, %v6492
      %v6494 = vsel %vm2707, %v6490, %v6491
      %v6495 = vsel %vm2707, %v6489, %v6490
      %v6496 = vsel %vm2707, %v6488, %v6489
      %v6497 = vsel %vm2707, %v6487, %v6488
      %v6498 = vsel %vm2707, %v6486, %v6487
      %v6499 = vsel %vm2707, %v6485, %v6486
      %v6500 = vsel %vm2707, %v6484, %v6485
      %v6501 = vsel %vm2707, %v6483, %v6484
      %v6502 = vsel %vm2707, %v6482, %v6483
      %v6503 = vsel %vm2707, %v6481, %v6482
      %v6504 = vsel %vm2707, %v6480, %v6481
      %v6505 = vsel %vm2707, %v6479, %v6480
      %v6506 = vsel %vm2707, %v6478, %v6479
      %v6507 = vsel %vm2707, %v6477, %v6478
      %v6508 = vsel %vm2707, %v6476, %v6477
      %v6509 = vsel %vm2707, %v6475, %v6476
      %v6510 = vsel %vm2707, %v6474, %v6475
      %v6511 = vsel %vm2707, %v6473, %v6474
      %v6512 = vsel %vm2707, %v6472, %v6473
      %v6513 = vsel %vm2707, %v6471, %v6472
      %v6514 = vsel %vm2707, %v6470, %v6471
      %v6515 = vsel %vm2707, %v6469, %v6470
      %v6516 = vsel %vm2707, %v6468, %v6469
      %v6517 = vsel %vm2707, %v6467, %v6468
      %v6518 = vsel %vm2707, %v6466, %v6467
      %v6519 = vsel %vm2707, %v6465, %v6466
      %v6520 = vsel %vm2707, %v6464, %v6465
      %v6521 = vsel %vm2707, %v6463, %v6464
      %v6522 = vsel %vm2707, %v6462, %v6463
      %v6523 = vsel %vm2707, %v6461, %v6462
      %v6524 = vsel %vm2707, %v6460, %v6461
      %v6525 = vsel %vm2707, %v6459, %v6460
      %v6526 = vsel %vm2707, %v6458, %v6459
      %v6527 = vsel %vm2707, %v6457, %v6458
      %v6528 = vsel %vm2707, %v6456, %v6457
      %v6529 = vsel %vm2707, %v6455, %v6456
      %v6530 = vsel %vm2707, %v6454, %v6455
      %v6531 = vsel %vm2707, %v6453, %v6454
      %v6532 = vsel %vm2707, %v6452, %v6453
      %v6533 = vsel %vm2707, %v6451, %v6452
      %v6534 = vsel %vm2707, %v6450, %v6451
      %v6535 = vsel %vm2707, %v6449, %v6450
      %v6536 = vsel %vm2707, %v6448, %v6449
      %v6537 = vsel %vm2707, %v6447, %v6448
      %v6538 = vsel %vm2707, %v6446, %v6447
      %v6539 = vsel %vm2707, %v6445, %v6446
      %v6540 = vsel %vm2707, %v6444, %v6445
      %v6541 = vsel %vm2707, %v6443, %v6444
      %v6542 = vsel %vm2707, %v6442, %v6443
      %v6543 = vsel %vm2707, %v6441, %v6442
      %v6544 = vsel %vm2707, %v6440, %v6441
      %v6545 = vsel %vm2707, %v6439, %v6440
      %v6546 = vsel %vm2707, %v6438, %v6439
      %v6547 = vsel %vm2707, %v6437, %v6438
      %v6548 = vsel %vm2707, %v6436, %v6437
      %v6549 = vsel %vm2707, %v6435, %v6436
      %v6550 = vsel %vm2707, %v6434, %v6435
      %v6551 = vsel %vm2707, %v6433, %v6434
      %v6552 = vsel %vm2707, %v6432, %v6433
      %v6553 = vsel %vm2707, %v6431, %v6432
      %v6554 = vsel %vm2707, %v6430, %v6431
      %v6555 = vsel %vm2707, %v6429, %v6430
      %v6556 = vsel %vm2707, %v6492, %v6429
      %6621 = vrot.lane.b32.xlu0 %v6555, 50
      %v6622 = vpop.permute.xlu0 %6621
      %6623 = vrot.lane.b32.xlu0 %v6554, 50
      %v6624 = vpop.permute.xlu0 %6623
      %6625 = vrot.lane.b32.xlu0 %v6553, 50
      %v6626 = vpop.permute.xlu0 %6625
      %6627 = vrot.lane.b32.xlu0 %v6552, 50
      %v6628 = vpop.permute.xlu0 %6627
      %6629 = vrot.lane.b32.xlu0 %v6551, 50
      %v6630 = vpop.permute.xlu0 %6629
      %6631 = vrot.lane.b32.xlu0 %v6550, 50
      %v6632 = vpop.permute.xlu0 %6631
      %6633 = vrot.lane.b32.xlu0 %v6549, 50
      %v6634 = vpop.permute.xlu0 %6633
      %6635 = vrot.lane.b32.xlu0 %v6548, 50
      %v6636 = vpop.permute.xlu0 %6635
      %6637 = vrot.lane.b32.xlu0 %v6547, 50
      %v6638 = vpop.permute.xlu0 %6637
      %6639 = vrot.lane.b32.xlu0 %v6546, 50
      %v6640 = vpop.permute.xlu0 %6639
      %6641 = vrot.lane.b32.xlu0 %v6545, 50
      %v6642 = vpop.permute.xlu0 %6641
      %6643 = vrot.lane.b32.xlu0 %v6544, 50
      %v6644 = vpop.permute.xlu0 %6643
      %6645 = vrot.lane.b32.xlu0 %v6543, 50
      %v6646 = vpop.permute.xlu0 %6645
      %6647 = vrot.lane.b32.xlu0 %v6542, 50
      %v6648 = vpop.permute.xlu0 %6647
      %6649 = vrot.lane.b32.xlu0 %v6541, 50
      %v6650 = vpop.permute.xlu0 %6649
      %6651 = vrot.lane.b32.xlu0 %v6540, 50
      %v6652 = vpop.permute.xlu0 %6651
      %6653 = vrot.lane.b32.xlu0 %v6539, 50
      %v6654 = vpop.permute.xlu0 %6653
      %6655 = vrot.lane.b32.xlu0 %v6538, 50
      %v6656 = vpop.permute.xlu0 %6655
      %6657 = vrot.lane.b32.xlu0 %v6537, 50
      %v6658 = vpop.permute.xlu0 %6657
      %6659 = vrot.lane.b32.xlu0 %v6536, 50
      %v6660 = vpop.permute.xlu0 %6659
      %6661 = vrot.lane.b32.xlu0 %v6535, 50
      %v6662 = vpop.permute.xlu0 %6661
      %6663 = vrot.lane.b32.xlu0 %v6534, 50
      %v6664 = vpop.permute.xlu0 %6663
      %6665 = vrot.lane.b32.xlu0 %v6533, 50
      %v6666 = vpop.permute.xlu0 %6665
      %6667 = vrot.lane.b32.xlu0 %v6532, 50
      %v6668 = vpop.permute.xlu0 %6667
      %6669 = vrot.lane.b32.xlu0 %v6531, 50
      %v6670 = vpop.permute.xlu0 %6669
      %6671 = vrot.lane.b32.xlu0 %v6530, 50
      %v6672 = vpop.permute.xlu0 %6671
      %6673 = vrot.lane.b32.xlu0 %v6529, 50
      %v6674 = vpop.permute.xlu0 %6673
      %6675 = vrot.lane.b32.xlu0 %v6528, 50
      %v6676 = vpop.permute.xlu0 %6675
      %6677 = vrot.lane.b32.xlu0 %v6527, 50
      %v6678 = vpop.permute.xlu0 %6677
      %6679 = vrot.lane.b32.xlu0 %v6526, 50
      %v6680 = vpop.permute.xlu0 %6679
      %6681 = vrot.lane.b32.xlu0 %v6525, 50
      %v6682 = vpop.permute.xlu0 %6681
      %6683 = vrot.lane.b32.xlu0 %v6524, 50
      %v6684 = vpop.permute.xlu0 %6683
      %6685 = vrot.lane.b32.xlu0 %v6523, 50
      %v6686 = vpop.permute.xlu0 %6685
      %6687 = vrot.lane.b32.xlu0 %v6522, 50
      %v6688 = vpop.permute.xlu0 %6687
      %6689 = vrot.lane.b32.xlu0 %v6521, 50
      %v6690 = vpop.permute.xlu0 %6689
      %6691 = vrot.lane.b32.xlu0 %v6520, 50
      %v6692 = vpop.permute.xlu0 %6691
      %6693 = vrot.lane.b32.xlu0 %v6519, 50
      %v6694 = vpop.permute.xlu0 %6693
      %6695 = vrot.lane.b32.xlu0 %v6518, 50
      %v6696 = vpop.permute.xlu0 %6695
      %6697 = vrot.lane.b32.xlu0 %v6517, 50
      %v6698 = vpop.permute.xlu0 %6697
      %6699 = vrot.lane.b32.xlu0 %v6516, 50
      %v6700 = vpop.permute.xlu0 %6699
      %6701 = vrot.lane.b32.xlu0 %v6515, 50
      %v6702 = vpop.permute.xlu0 %6701
      %6703 = vrot.lane.b32.xlu0 %v6514, 50
      %v6704 = vpop.permute.xlu0 %6703
      %6705 = vrot.lane.b32.xlu0 %v6513, 50
      %v6706 = vpop.permute.xlu0 %6705
      %6707 = vrot.lane.b32.xlu0 %v6512, 50
      %v6708 = vpop.permute.xlu0 %6707
      %6709 = vrot.lane.b32.xlu0 %v6511, 50
      %v6710 = vpop.permute.xlu0 %6709
      %6711 = vrot.lane.b32.xlu0 %v6510, 50
      %v6712 = vpop.permute.xlu0 %6711
      %6713 = vrot.lane.b32.xlu0 %v6509, 50
      %v6714 = vpop.permute.xlu0 %6713
      %6715 = vrot.lane.b32.xlu0 %v6508, 50
      %v6716 = vpop.permute.xlu0 %6715
      %6717 = vrot.lane.b32.xlu0 %v6507, 50
      %v6718 = vpop.permute.xlu0 %6717
      %6719 = vrot.lane.b32.xlu0 %v6506, 50
      %v6720 = vpop.permute.xlu0 %6719
      %6721 = vrot.lane.b32.xlu0 %v6505, 50
      %v6722 = vpop.permute.xlu0 %6721
      %6723 = vrot.lane.b32.xlu0 %v6504, 50
      %v6724 = vpop.permute.xlu0 %6723
      %6725 = vrot.lane.b32.xlu0 %v6503, 50
      %v6726 = vpop.permute.xlu0 %6725
      %6727 = vrot.lane.b32.xlu0 %v6502, 50
      %v6728 = vpop.permute.xlu0 %6727
      %6729 = vrot.lane.b32.xlu0 %v6501, 50
      %v6730 = vpop.permute.xlu0 %6729
      %6731 = vrot.lane.b32.xlu0 %v6500, 50
      %v6732 = vpop.permute.xlu0 %6731
      %6733 = vrot.lane.b32.xlu0 %v6499, 50
      %v6734 = vpop.permute.xlu0 %6733
      %6735 = vrot.lane.b32.xlu0 %v6498, 50
      %v6736 = vpop.permute.xlu0 %6735
      %6737 = vrot.lane.b32.xlu0 %v6497, 50
      %v6738 = vpop.permute.xlu0 %6737
      %6739 = vrot.lane.b32.xlu0 %v6496, 50
      %v6740 = vpop.permute.xlu0 %6739
      %6741 = vrot.lane.b32.xlu0 %v6495, 50
      %v6742 = vpop.permute.xlu0 %6741
      %6743 = vrot.lane.b32.xlu0 %v6494, 50
      %v6744 = vpop.permute.xlu0 %6743
      %6745 = vrot.lane.b32.xlu0 %v6493, 50
      %v6746 = vpop.permute.xlu0 %6745
      %6747 = vrot.lane.b32.xlu0 %v6556, 50
      %v6748 = vpop.permute.xlu0 %6747
      %v6813 = vadd.f32 %v6173, %v6622
      %v6814 = vadd.f32 %v6174, %v6624
      %v6815 = vadd.f32 %v6175, %v6626
      %v6816 = vadd.f32 %v6176, %v6628
      %v6817 = vadd.f32 %v6177, %v6630
      %v6818 = vadd.f32 %v6178, %v6632
      %v6819 = vadd.f32 %v6179, %v6634
      %v6820 = vadd.f32 %v6180, %v6636
      %v6821 = vadd.f32 %v6181, %v6638
      %v6822 = vadd.f32 %v6182, %v6640
      %v6823 = vadd.f32 %v6183, %v6642
      %v6824 = vadd.f32 %v6184, %v6644
      %v6825 = vadd.f32 %v6185, %v6646
      %v6826 = vadd.f32 %v6186, %v6648
      %v6827 = vadd.f32 %v6187, %v6650
      %v6828 = vadd.f32 %v6188, %v6652
      %v6829 = vadd.f32 %v6189, %v6654
      %v6830 = vadd.f32 %v6190, %v6656
      %v6831 = vadd.f32 %v6191, %v6658
      %v6832 = vadd.f32 %v6192, %v6660
      %v6833 = vadd.f32 %v6193, %v6662
      %v6834 = vadd.f32 %v6194, %v6664
      %v6835 = vadd.f32 %v6195, %v6666
      %v6836 = vadd.f32 %v6196, %v6668
      %v6837 = vadd.f32 %v6197, %v6670
      %v6838 = vadd.f32 %v6198, %v6672
      %v6839 = vadd.f32 %v6199, %v6674
      %v6840 = vadd.f32 %v6200, %v6676
      %v6841 = vadd.f32 %v6201, %v6678
      %v6842 = vadd.f32 %v6202, %v6680
      %v6843 = vadd.f32 %v6203, %v6682
      %v6844 = vadd.f32 %v6204, %v6684
      %v6845 = vadd.f32 %v6205, %v6686
      %v6846 = vadd.f32 %v6206, %v6688
      %v6847 = vadd.f32 %v6207, %v6690
      %v6848 = vadd.f32 %v6208, %v6692
      %v6849 = vadd.f32 %v6209, %v6694
      %v6850 = vadd.f32 %v6210, %v6696
      %v6851 = vadd.f32 %v6211, %v6698
      %v6852 = vadd.f32 %v6212, %v6700
      %v6853 = vadd.f32 %v6213, %v6702
      %v6854 = vadd.f32 %v6214, %v6704
      %v6855 = vadd.f32 %v6215, %v6706
      %v6856 = vadd.f32 %v6216, %v6708
      %v6857 = vadd.f32 %v6217, %v6710
      %v6858 = vadd.f32 %v6218, %v6712
      %v6859 = vadd.f32 %v6219, %v6714
      %v6860 = vadd.f32 %v6220, %v6716
      %v6861 = vadd.f32 %v6221, %v6718
      %v6862 = vadd.f32 %v6222, %v6720
      %v6863 = vadd.f32 %v6223, %v6722
      %v6864 = vadd.f32 %v6224, %v6724
      %v6865 = vadd.f32 %v6225, %v6726
      %v6866 = vadd.f32 %v6226, %v6728
      %v6867 = vadd.f32 %v6227, %v6730
      %v6868 = vadd.f32 %v6228, %v6732
      %v6869 = vadd.f32 %v6229, %v6734
      %v6870 = vadd.f32 %v6230, %v6736
      %v6871 = vadd.f32 %v6231, %v6738
      %v6872 = vadd.f32 %v6232, %v6740
      %v6873 = vadd.f32 %v6233, %v6742
      %v6874 = vadd.f32 %v6234, %v6744
      %v6875 = vadd.f32 %v6235, %v6746
      %v6876 = vadd.f32 %v6236, %v6748
      %v6877 = vsel %vm3155, %v6813, -1e+30
      %v6878 = vsel %vm3156, %v6814, -1e+30
      %v6879 = vsel %vm3157, %v6815, -1e+30
      %v6880 = vsel %vm3158, %v6816, -1e+30
      %v6881 = vsel %vm3159, %v6817, -1e+30
      %v6882 = vsel %vm3160, %v6818, -1e+30
      %v6883 = vsel %vm3161, %v6819, -1e+30
      %v6884 = vsel %vm3162, %v6820, -1e+30
      %v6885 = vsel %vm3163, %v6821, -1e+30
      %v6886 = vsel %vm3164, %v6822, -1e+30
      %v6887 = vsel %vm3165, %v6823, -1e+30
      %v6888 = vsel %vm3166, %v6824, -1e+30
      %v6889 = vsel %vm3167, %v6825, -1e+30
      %v6890 = vsel %vm3168, %v6826, -1e+30
      %v6891 = vsel %vm3169, %v6827, -1e+30
      %v6892 = vsel %vm3170, %v6828, -1e+30
      %v6893 = vsel %vm3171, %v6829, -1e+30
      %v6894 = vsel %vm3172, %v6830, -1e+30
      %v6895 = vsel %vm3173, %v6831, -1e+30
      %v6896 = vsel %vm3174, %v6832, -1e+30
      %v6897 = vsel %vm3175, %v6833, -1e+30
      %v6898 = vsel %vm3176, %v6834, -1e+30
      %v6899 = vsel %vm3177, %v6835, -1e+30
      %v6900 = vsel %vm3178, %v6836, -1e+30
      %v6901 = vsel %vm3179, %v6837, -1e+30
      %v6902 = vsel %vm3180, %v6838, -1e+30
      %v6903 = vsel %vm3181, %v6839, -1e+30
      %v6904 = vsel %vm3182, %v6840, -1e+30
      %v6905 = vsel %vm3183, %v6841, -1e+30
      %v6906 = vsel %vm3184, %v6842, -1e+30
      %v6907 = vsel %vm3185, %v6843, -1e+30
      %v6908 = vsel %vm3186, %v6844, -1e+30
      %v6909 = vsel %vm3187, %v6845, -1e+30
      %v6910 = vsel %vm3188, %v6846, -1e+30
      %v6911 = vsel %vm3189, %v6847, -1e+30
      %v6912 = vsel %vm3190, %v6848, -1e+30
      %v6913 = vsel %vm3191, %v6849, -1e+30
      %v6914 = vsel %vm3192, %v6850, -1e+30
      %v6915 = vsel %vm3193, %v6851, -1e+30
      %v6916 = vsel %vm3194, %v6852, -1e+30
      %v6917 = vsel %vm3195, %v6853, -1e+30
      %v6918 = vsel %vm3196, %v6854, -1e+30
      %v6919 = vsel %vm3197, %v6855, -1e+30
      %v6920 = vsel %vm3198, %v6856, -1e+30
      %v6921 = vsel %vm3199, %v6857, -1e+30
      %v6922 = vsel %vm3200, %v6858, -1e+30
      %v6923 = vsel %vm3201, %v6859, -1e+30
      %v6924 = vsel %vm3202, %v6860, -1e+30
      %v6925 = vsel %vm3203, %v6861, -1e+30
      %v6926 = vsel %vm3204, %v6862, -1e+30
      %v6927 = vsel %vm3205, %v6863, -1e+30
      %v6928 = vsel %vm3206, %v6864, -1e+30
      %v6929 = vsel %vm3207, %v6865, -1e+30
      %v6930 = vsel %vm3208, %v6866, -1e+30
      %v6931 = vsel %vm3209, %v6867, -1e+30
      %v6932 = vsel %vm3210, %v6868, -1e+30
      %v6933 = vsel %vm3211, %v6869, -1e+30
      %v6934 = vsel %vm3212, %v6870, -1e+30
      %v6935 = vsel %vm3213, %v6871, -1e+30
      %v6936 = vsel %vm3214, %v6872, -1e+30
      %v6937 = vsel %vm3215, %v6873, -1e+30
      %v6938 = vsel %vm3216, %v6874, -1e+30
      %v6939 = vsel %vm3217, %v6875, -1e+30
      %v6940 = vsel %vm3218, %v6876, -1e+30
      %v6941 = vsel %vm3283, %v6877, -inf
      %v6942 = vsel %vm3283, %v6878, -inf
      %v6943 = vsel %vm3283, %v6879, -inf
      %v6944 = vsel %vm3283, %v6880, -inf
      %v6945 = vsel %vm3283, %v6881, -inf
      %v6946 = vmax.f32 %v6941, %v6945
      %v6947 = vsel %vm3283, %v6882, -inf
      %v6948 = vmax.f32 %v6942, %v6947
      %v6949 = vsel %vm3283, %v6883, -inf
      %v6950 = vmax.f32 %v6943, %v6949
      %v6951 = vsel %vm3283, %v6884, -inf
      %v6952 = vmax.f32 %v6944, %v6951
      %v6953 = vsel %vm3283, %v6885, -inf
      %v6954 = vmax.f32 %v6946, %v6953
      %v6955 = vsel %vm3283, %v6886, -inf
      %v6956 = vmax.f32 %v6948, %v6955
      %v6957 = vsel %vm3283, %v6887, -inf
      %v6958 = vmax.f32 %v6950, %v6957
      %v6959 = vsel %vm3283, %v6888, -inf
      %v6960 = vmax.f32 %v6952, %v6959
      %v6961 = vsel %vm3283, %v6889, -inf
      %v6962 = vmax.f32 %v6954, %v6961
      %v6963 = vsel %vm3283, %v6890, -inf
      %v6964 = vmax.f32 %v6956, %v6963
      %v6965 = vsel %vm3283, %v6891, -inf
      %v6966 = vmax.f32 %v6958, %v6965
      %v6967 = vsel %vm3283, %v6892, -inf
      %v6968 = vmax.f32 %v6960, %v6967
      %v6969 = vsel %vm3283, %v6893, -inf
      %v6970 = vmax.f32 %v6962, %v6969
      %v6971 = vsel %vm3283, %v6894, -inf
      %v6972 = vmax.f32 %v6964, %v6971
      %v6973 = vsel %vm3283, %v6895, -inf
      %v6974 = vmax.f32 %v6966, %v6973
      %v6975 = vsel %vm3283, %v6896, -inf
      %v6976 = vmax.f32 %v6968, %v6975
      %v6977 = vsel %vm3283, %v6897, -inf
      %v6978 = vmax.f32 %v6970, %v6977
      %v6979 = vsel %vm3283, %v6898, -inf
      %v6980 = vmax.f32 %v6972, %v6979
      %v6981 = vsel %vm3283, %v6899, -inf
      %v6982 = vmax.f32 %v6974, %v6981
      %v6983 = vsel %vm3283, %v6900, -inf
      %v6984 = vmax.f32 %v6976, %v6983
      %v6985 = vsel %vm3283, %v6901, -inf
      %v6986 = vmax.f32 %v6978, %v6985
      %v6987 = vsel %vm3283, %v6902, -inf
      %v6988 = vmax.f32 %v6980, %v6987
      %v6989 = vsel %vm3283, %v6903, -inf
      %v6990 = vmax.f32 %v6982, %v6989
      %v6991 = vsel %vm3283, %v6904, -inf
      %v6992 = vmax.f32 %v6984, %v6991
      %v6993 = vsel %vm3283, %v6905, -inf
      %v6994 = vmax.f32 %v6986, %v6993
      %v6995 = vsel %vm3283, %v6906, -inf
      %v6996 = vmax.f32 %v6988, %v6995
      %v6997 = vsel %vm3283, %v6907, -inf
      %v6998 = vmax.f32 %v6990, %v6997
      %v6999 = vsel %vm3283, %v6908, -inf
      %v7000 = vmax.f32 %v6992, %v6999
      %v7001 = vsel %vm3283, %v6909, -inf
      %v7002 = vmax.f32 %v6994, %v7001
      %v7003 = vsel %vm3283, %v6910, -inf
      %v7004 = vmax.f32 %v6996, %v7003
      %v7005 = vsel %vm3283, %v6911, -inf
      %v7006 = vmax.f32 %v6998, %v7005
      %v7007 = vsel %vm3283, %v6912, -inf
      %v7008 = vmax.f32 %v7000, %v7007
      %v7009 = vsel %vm3283, %v6913, -inf
      %v7010 = vmax.f32 %v7002, %v7009
      %v7011 = vsel %vm3283, %v6914, -inf
      %v7012 = vmax.f32 %v7004, %v7011
      %v7013 = vsel %vm3283, %v6915, -inf
      %v7014 = vmax.f32 %v7006, %v7013
      %v7015 = vsel %vm3283, %v6916, -inf
      %v7016 = vmax.f32 %v7008, %v7015
      %v7017 = vsel %vm3283, %v6917, -inf
      %v7018 = vmax.f32 %v7010, %v7017
      %v7019 = vsel %vm3283, %v6918, -inf
      %v7020 = vmax.f32 %v7012, %v7019
      %v7021 = vsel %vm3283, %v6919, -inf
      %v7022 = vmax.f32 %v7014, %v7021
      %v7023 = vsel %vm3283, %v6920, -inf
      %v7024 = vmax.f32 %v7016, %v7023
      %v7025 = vsel %vm3283, %v6921, -inf
      %v7026 = vmax.f32 %v7018, %v7025
      %v7027 = vsel %vm3283, %v6922, -inf
      %v7028 = vmax.f32 %v7020, %v7027
      %v7029 = vsel %vm3283, %v6923, -inf
      %v7030 = vmax.f32 %v7022, %v7029
      %v7031 = vsel %vm3283, %v6924, -inf
      %v7032 = vmax.f32 %v7024, %v7031
      %v7033 = vsel %vm3283, %v6925, -inf
      %v7034 = vmax.f32 %v7026, %v7033
      %v7035 = vsel %vm3283, %v6926, -inf
      %v7036 = vmax.f32 %v7028, %v7035
      %v7037 = vsel %vm3283, %v6927, -inf
      %v7038 = vmax.f32 %v7030, %v7037
      %v7039 = vsel %vm3283, %v6928, -inf
      %v7040 = vmax.f32 %v7032, %v7039
      %v7041 = vsel %vm3283, %v6929, -inf
      %v7042 = vmax.f32 %v7034, %v7041
      %v7043 = vsel %vm3283, %v6930, -inf
      %v7044 = vmax.f32 %v7036, %v7043
      %v7045 = vsel %vm3283, %v6931, -inf
      %v7046 = vmax.f32 %v7038, %v7045
      %v7047 = vsel %vm3283, %v6932, -inf
      %v7048 = vmax.f32 %v7040, %v7047
      %v7049 = vsel %vm3283, %v6933, -inf
      %v7050 = vmax.f32 %v7042, %v7049
      %v7051 = vsel %vm3283, %v6934, -inf
      %v7052 = vmax.f32 %v7044, %v7051
      %v7053 = vsel %vm3283, %v6935, -inf
      %v7054 = vmax.f32 %v7046, %v7053
      %v7055 = vsel %vm3283, %v6936, -inf
      %v7056 = vmax.f32 %v7048, %v7055
      %v7057 = vsel %vm3283, %v6937, -inf
      %v7058 = vmax.f32 %v7050, %v7057
      %v7059 = vsel %vm3283, %v6938, -inf
      %v7060 = vmax.f32 %v7052, %v7059
      %v7061 = vsel %vm3283, %v6939, -inf
      %v7062 = vmax.f32 %v7054, %v7061
      %v7063 = vsel %vm3283, %v6940, -inf
      %v7064 = vmax.f32 %v7056, %v7063
      %v7065 = vmax.f32 %v7058, %v7060
      %v7066 = vmax.f32 %v7062, %v7064
      %v7067 = vmax.f32 %v7065, %v7066
      %v7068 = vrot.slane %v7067, 4
      %v7069 = vmax.f32 %v7067, %v7068
      %v7070 = vrot.slane %v7069, 2
      %v7071 = vmax.f32 %v7069, %v7070
      %v7072 = vrot.slane %v7071, 1
      %v7073 = vmax.f32 %v7071, %v7072
      %v7074 = vsub.f32 %v6877, %v7073
      %v7075 = vsub.f32 %v6878, %v7073
      %v7076 = vsub.f32 %v6879, %v7073
      %v7077 = vsub.f32 %v6880, %v7073
      %v7078 = vsub.f32 %v6881, %v7073
      %v7079 = vsub.f32 %v6882, %v7073
      %v7080 = vsub.f32 %v6883, %v7073
      %v7081 = vsub.f32 %v6884, %v7073
      %v7082 = vsub.f32 %v6885, %v7073
      %v7083 = vsub.f32 %v6886, %v7073
      %v7084 = vsub.f32 %v6887, %v7073
      %v7085 = vsub.f32 %v6888, %v7073
      %v7086 = vsub.f32 %v6889, %v7073
      %v7087 = vsub.f32 %v6890, %v7073
      %v7088 = vsub.f32 %v6891, %v7073
      %v7089 = vsub.f32 %v6892, %v7073
      %v7090 = vsub.f32 %v6893, %v7073
      %v7091 = vsub.f32 %v6894, %v7073
      %v7092 = vsub.f32 %v6895, %v7073
      %v7093 = vsub.f32 %v6896, %v7073
      %v7094 = vsub.f32 %v6897, %v7073
      %v7095 = vsub.f32 %v6898, %v7073
      %v7096 = vsub.f32 %v6899, %v7073
      %v7097 = vsub.f32 %v6900, %v7073
      %v7098 = vsub.f32 %v6901, %v7073
      %v7099 = vsub.f32 %v6902, %v7073
      %v7100 = vsub.f32 %v6903, %v7073
      %v7101 = vsub.f32 %v6904, %v7073
      %v7102 = vsub.f32 %v6905, %v7073
      %v7103 = vsub.f32 %v6906, %v7073
      %v7104 = vsub.f32 %v6907, %v7073
      %v7105 = vsub.f32 %v6908, %v7073
      %v7106 = vsub.f32 %v6909, %v7073
      %v7107 = vsub.f32 %v6910, %v7073
      %v7108 = vsub.f32 %v6911, %v7073
      %v7109 = vsub.f32 %v6912, %v7073
      %v7110 = vsub.f32 %v6913, %v7073
      %v7111 = vsub.f32 %v6914, %v7073
      %v7112 = vsub.f32 %v6915, %v7073
      %v7113 = vsub.f32 %v6916, %v7073
      %v7114 = vsub.f32 %v6917, %v7073
      %v7115 = vsub.f32 %v6918, %v7073
      %v7116 = vsub.f32 %v6919, %v7073
      %v7117 = vsub.f32 %v6920, %v7073
      %v7118 = vsub.f32 %v6921, %v7073
      %v7119 = vsub.f32 %v6922, %v7073
      %v7120 = vsub.f32 %v6923, %v7073
      %v7121 = vsub.f32 %v6924, %v7073
      %v7122 = vsub.f32 %v6925, %v7073
      %v7123 = vsub.f32 %v6926, %v7073
      %v7124 = vsub.f32 %v6927, %v7073
      %v7125 = vsub.f32 %v6928, %v7073
      %v7126 = vsub.f32 %v6929, %v7073
      %v7127 = vsub.f32 %v6930, %v7073
      %v7128 = vsub.f32 %v6931, %v7073
      %v7129 = vsub.f32 %v6932, %v7073
      %v7130 = vsub.f32 %v6933, %v7073
      %v7131 = vsub.f32 %v6934, %v7073
      %v7132 = vsub.f32 %v6935, %v7073
      %v7133 = vsub.f32 %v6936, %v7073
      %v7134 = vsub.f32 %v6937, %v7073
      %v7135 = vsub.f32 %v6938, %v7073
      %v7136 = vsub.f32 %v6939, %v7073
      %v7137 = vsub.f32 %v6940, %v7073
      %v7138 = vmul.f32 %v7074, 1.442695
      %v7139 = vpow.pop %v7138
      %v7140 = vmul.f32 %v7075, 1.442695
      %v7141 = vpow.pop %v7140
      %v7142 = vmul.f32 %v7076, 1.442695
      %v7143 = vpow.pop %v7142
      %v7144 = vmul.f32 %v7077, 1.442695
      %v7145 = vpow.pop %v7144
      %v7146 = vmul.f32 %v7078, 1.442695
      %v7147 = vpow.pop %v7146
      %v7148 = vmul.f32 %v7079, 1.442695
      %v7149 = vpow.pop %v7148
      %v7150 = vmul.f32 %v7080, 1.442695
      %v7151 = vpow.pop %v7150
      %v7152 = vmul.f32 %v7081, 1.442695
      %v7153 = vpow.pop %v7152
      %v7154 = vmul.f32 %v7082, 1.442695
      %v7155 = vpow.pop %v7154
      %v7156 = vmul.f32 %v7083, 1.442695
      %v7157 = vpow.pop %v7156
      %v7158 = vmul.f32 %v7084, 1.442695
      %v7159 = vpow.pop %v7158
      %v7160 = vmul.f32 %v7085, 1.442695
      %v7161 = vpow.pop %v7160
      %v7162 = vmul.f32 %v7086, 1.442695
      %v7163 = vpow.pop %v7162
      %v7164 = vmul.f32 %v7087, 1.442695
      %v7165 = vpow.pop %v7164
      %v7166 = vmul.f32 %v7088, 1.442695
      %v7167 = vpow.pop %v7166
      %v7168 = vmul.f32 %v7089, 1.442695
      %v7169 = vpow.pop %v7168
      %v7170 = vmul.f32 %v7090, 1.442695
      %v7171 = vpow.pop %v7170
      %v7172 = vmul.f32 %v7091, 1.442695
      %v7173 = vpow.pop %v7172
      %v7174 = vmul.f32 %v7092, 1.442695
      %v7175 = vpow.pop %v7174
      %v7176 = vmul.f32 %v7093, 1.442695
      %v7177 = vpow.pop %v7176
      %v7178 = vmul.f32 %v7094, 1.442695
      %v7179 = vpow.pop %v7178
      %v7180 = vmul.f32 %v7095, 1.442695
      %v7181 = vpow.pop %v7180
      %v7182 = vmul.f32 %v7096, 1.442695
      %v7183 = vpow.pop %v7182
      %v7184 = vmul.f32 %v7097, 1.442695
      %v7185 = vpow.pop %v7184
      %v7186 = vmul.f32 %v7098, 1.442695
      %v7187 = vpow.pop %v7186
      %v7188 = vmul.f32 %v7099, 1.442695
      %v7189 = vpow.pop %v7188
      %v7190 = vmul.f32 %v7100, 1.442695
      %v7191 = vpow.pop %v7190
      %v7192 = vmul.f32 %v7101, 1.442695
      %v7193 = vpow.pop %v7192
      %v7194 = vmul.f32 %v7102, 1.442695
      %v7195 = vpow.pop %v7194
      %v7196 = vmul.f32 %v7103, 1.442695
      %v7197 = vpow.pop %v7196
      %v7198 = vmul.f32 %v7104, 1.442695
      %v7199 = vpow.pop %v7198
      %v7200 = vmul.f32 %v7105, 1.442695
      %v7201 = vpow.pop %v7200
      %v7202 = vmul.f32 %v7106, 1.442695
      %v7203 = vpow.pop %v7202
      %v7204 = vmul.f32 %v7107, 1.442695
      %v7205 = vpow.pop %v7204
      %v7206 = vmul.f32 %v7108, 1.442695
      %v7207 = vpow.pop %v7206
      %v7208 = vmul.f32 %v7109, 1.442695
      %v7209 = vpow.pop %v7208
      %v7210 = vmul.f32 %v7110, 1.442695
      %v7211 = vpow.pop %v7210
      %v7212 = vmul.f32 %v7111, 1.442695
      %v7213 = vpow.pop %v7212
      %v7214 = vmul.f32 %v7112, 1.442695
      %v7215 = vpow.pop %v7214
      %v7216 = vmul.f32 %v7113, 1.442695
      %v7217 = vpow.pop %v7216
      %v7218 = vmul.f32 %v7114, 1.442695
      %v7219 = vpow.pop %v7218
      %v7220 = vmul.f32 %v7115, 1.442695
      %v7221 = vpow.pop %v7220
      %v7222 = vmul.f32 %v7116, 1.442695
      %v7223 = vpow.pop %v7222
      %v7224 = vmul.f32 %v7117, 1.442695
      %v7225 = vpow.pop %v7224
      %v7226 = vmul.f32 %v7118, 1.442695
      %v7227 = vpow.pop %v7226
      %v7228 = vmul.f32 %v7119, 1.442695
      %v7229 = vpow.pop %v7228
      %v7230 = vmul.f32 %v7120, 1.442695
      %v7231 = vpow.pop %v7230
      %v7232 = vmul.f32 %v7121, 1.442695
      %v7233 = vpow.pop %v7232
      %v7234 = vmul.f32 %v7122, 1.442695
      %v7235 = vpow.pop %v7234
      %v7236 = vmul.f32 %v7123, 1.442695
      %v7237 = vpow.pop %v7236
      %v7238 = vmul.f32 %v7124, 1.442695
      %v7239 = vpow.pop %v7238
      %v7240 = vmul.f32 %v7125, 1.442695
      %v7241 = vpow.pop %v7240
      %v7242 = vmul.f32 %v7126, 1.442695
      %v7243 = vpow.pop %v7242
      %v7244 = vmul.f32 %v7127, 1.442695
      %v7245 = vpow.pop %v7244
      %v7246 = vmul.f32 %v7128, 1.442695
      %v7247 = vpow.pop %v7246
      %v7248 = vmul.f32 %v7129, 1.442695
      %v7249 = vpow.pop %v7248
      %v7250 = vmul.f32 %v7130, 1.442695
      %v7251 = vpow.pop %v7250
      %v7252 = vmul.f32 %v7131, 1.442695
      %v7253 = vpow.pop %v7252
      %v7254 = vmul.f32 %v7132, 1.442695
      %v7255 = vpow.pop %v7254
      %v7256 = vmul.f32 %v7133, 1.442695
      %v7257 = vpow.pop %v7256
      %v7258 = vmul.f32 %v7134, 1.442695
      %v7259 = vpow.pop %v7258
      %v7260 = vmul.f32 %v7135, 1.442695
      %v7261 = vpow.pop %v7260
      %v7262 = vmul.f32 %v7136, 1.442695
      %v7263 = vpow.pop %v7262
      %v7264 = vmul.f32 %v7137, 1.442695
      %v7265 = vpow.pop %v7264
      %v7266 = vsel %vm3283, %v7139, 0.0
      %v7267 = vsel %vm3283, %v7141, 0.0
      %v7268 = vadd.f32 %v7266, %v7267
      %v7269 = vsel %vm3283, %v7143, 0.0
      %v7270 = vadd.f32 %v7268, %v7269
      %v7271 = vsel %vm3283, %v7145, 0.0
      %v7272 = vadd.f32 %v7270, %v7271
      %v7273 = vsel %vm3283, %v7147, 0.0
      %v7274 = vadd.f32 %v7272, %v7273
      %v7275 = vsel %vm3283, %v7149, 0.0
      %v7276 = vadd.f32 %v7274, %v7275
      %v7277 = vsel %vm3283, %v7151, 0.0
      %v7278 = vadd.f32 %v7276, %v7277
      %v7279 = vsel %vm3283, %v7153, 0.0
      %v7280 = vadd.f32 %v7278, %v7279
      %v7281 = vsel %vm3283, %v7155, 0.0
      %v7282 = vadd.f32 %v7280, %v7281
      %v7283 = vsel %vm3283, %v7157, 0.0
      %v7284 = vadd.f32 %v7282, %v7283
      %v7285 = vsel %vm3283, %v7159, 0.0
      %v7286 = vadd.f32 %v7284, %v7285
      %v7287 = vsel %vm3283, %v7161, 0.0
      %v7288 = vadd.f32 %v7286, %v7287
      %v7289 = vsel %vm3283, %v7163, 0.0
      %v7290 = vadd.f32 %v7288, %v7289
      %v7291 = vsel %vm3283, %v7165, 0.0
      %v7292 = vadd.f32 %v7290, %v7291
      %v7293 = vsel %vm3283, %v7167, 0.0
      %v7294 = vadd.f32 %v7292, %v7293
      %v7295 = vsel %vm3283, %v7169, 0.0
      %v7296 = vadd.f32 %v7294, %v7295
      %v7297 = vsel %vm3283, %v7171, 0.0
      %v7298 = vadd.f32 %v7296, %v7297
      %v7299 = vsel %vm3283, %v7173, 0.0
      %v7300 = vadd.f32 %v7298, %v7299
      %v7301 = vsel %vm3283, %v7175, 0.0
      %v7302 = vadd.f32 %v7300, %v7301
      %v7303 = vsel %vm3283, %v7177, 0.0
      %v7304 = vadd.f32 %v7302, %v7303
      %v7305 = vsel %vm3283, %v7179, 0.0
      %v7306 = vadd.f32 %v7304, %v7305
      %v7307 = vsel %vm3283, %v7181, 0.0
      %v7308 = vadd.f32 %v7306, %v7307
      %v7309 = vsel %vm3283, %v7183, 0.0
      %v7310 = vadd.f32 %v7308, %v7309
      %v7311 = vsel %vm3283, %v7185, 0.0
      %v7312 = vadd.f32 %v7310, %v7311
      %v7313 = vsel %vm3283, %v7187, 0.0
      %v7314 = vadd.f32 %v7312, %v7313
      %v7315 = vsel %vm3283, %v7189, 0.0
      %v7316 = vadd.f32 %v7314, %v7315
      %v7317 = vsel %vm3283, %v7191, 0.0
      %v7318 = vadd.f32 %v7316, %v7317
      %v7319 = vsel %vm3283, %v7193, 0.0
      %v7320 = vadd.f32 %v7318, %v7319
      %v7321 = vsel %vm3283, %v7195, 0.0
      %v7322 = vadd.f32 %v7320, %v7321
      %v7323 = vsel %vm3283, %v7197, 0.0
      %v7324 = vadd.f32 %v7322, %v7323
      %v7325 = vsel %vm3283, %v7199, 0.0
      %v7326 = vadd.f32 %v7324, %v7325
      %v7327 = vsel %vm3283, %v7201, 0.0
      %v7328 = vadd.f32 %v7326, %v7327
      %v7329 = vsel %vm3283, %v7203, 0.0
      %v7330 = vadd.f32 %v7328, %v7329
      %v7331 = vsel %vm3283, %v7205, 0.0
      %v7332 = vadd.f32 %v7330, %v7331
      %v7333 = vsel %vm3283, %v7207, 0.0
      %v7334 = vadd.f32 %v7332, %v7333
      %v7335 = vsel %vm3283, %v7209, 0.0
      %v7336 = vadd.f32 %v7334, %v7335
      %v7337 = vsel %vm3283, %v7211, 0.0
      %v7338 = vadd.f32 %v7336, %v7337
      %v7339 = vsel %vm3283, %v7213, 0.0
      %v7340 = vadd.f32 %v7338, %v7339
      %v7341 = vsel %vm3283, %v7215, 0.0
      %v7342 = vadd.f32 %v7340, %v7341
      %v7343 = vsel %vm3283, %v7217, 0.0
      %v7344 = vadd.f32 %v7342, %v7343
      %v7345 = vsel %vm3283, %v7219, 0.0
      %v7346 = vadd.f32 %v7344, %v7345
      %v7347 = vsel %vm3283, %v7221, 0.0
      %v7348 = vadd.f32 %v7346, %v7347
      %v7349 = vsel %vm3283, %v7223, 0.0
      %v7350 = vadd.f32 %v7348, %v7349
      %v7351 = vsel %vm3283, %v7225, 0.0
      %v7352 = vadd.f32 %v7350, %v7351
      %v7353 = vsel %vm3283, %v7227, 0.0
      %v7354 = vadd.f32 %v7352, %v7353
      %v7355 = vsel %vm3283, %v7229, 0.0
      %v7356 = vadd.f32 %v7354, %v7355
      %v7357 = vsel %vm3283, %v7231, 0.0
      %v7358 = vadd.f32 %v7356, %v7357
      %v7359 = vsel %vm3283, %v7233, 0.0
      %v7360 = vadd.f32 %v7358, %v7359
      %v7361 = vsel %vm3283, %v7235, 0.0
      %v7362 = vadd.f32 %v7360, %v7361
      %v7363 = vsel %vm3283, %v7237, 0.0
      %v7364 = vadd.f32 %v7362, %v7363
      %v7365 = vsel %vm3283, %v7239, 0.0
      %v7366 = vadd.f32 %v7364, %v7365
      %v7367 = vsel %vm3283, %v7241, 0.0
      %v7368 = vadd.f32 %v7366, %v7367
      %v7369 = vsel %vm3283, %v7243, 0.0
      %v7370 = vadd.f32 %v7368, %v7369
      %v7371 = vsel %vm3283, %v7245, 0.0
      %v7372 = vadd.f32 %v7370, %v7371
      %v7373 = vsel %vm3283, %v7247, 0.0
      %v7374 = vadd.f32 %v7372, %v7373
      %v7375 = vsel %vm3283, %v7249, 0.0
      %v7376 = vadd.f32 %v7374, %v7375
      %v7377 = vsel %vm3283, %v7251, 0.0
      %v7378 = vadd.f32 %v7376, %v7377
      %v7379 = vsel %vm3283, %v7253, 0.0
      %v7380 = vadd.f32 %v7378, %v7379
      %v7381 = vsel %vm3283, %v7255, 0.0
      %v7382 = vadd.f32 %v7380, %v7381
      %v7383 = vsel %vm3283, %v7257, 0.0
      %v7384 = vadd.f32 %v7382, %v7383
      %v7385 = vsel %vm3283, %v7259, 0.0
      %v7386 = vadd.f32 %v7384, %v7385
      %v7387 = vsel %vm3283, %v7261, 0.0
      %v7388 = vadd.f32 %v7386, %v7387
      %v7389 = vsel %vm3283, %v7263, 0.0
      %v7390 = vadd.f32 %v7388, %v7389
      %v7391 = vsel %vm3283, %v7265, 0.0
      %v7392 = vadd.f32 %v7390, %v7391
      %v7393 = vrot.slane %v7392, 4
      %v7394 = vadd.f32 %v7392, %v7393
      %v7395 = vrot.slane %v7394, 2
      %v7396 = vadd.f32 %v7394, %v7395
      %v7397 = vrot.slane %v7396, 1
      %v7398 = vadd.f32 %v7396, %v7397
      %v7399 = vrcp.pop %v7398
      %v7400 = vmul.f32 %v7398, %v7399
      %v7401 = vsub.f32 1.0, %v7400
      %v7402 = vmul.f32 %v7399, %v7401
      %v7403 = vadd.f32 %v7399, %v7402
      %vm7404 = vweird.f32 %v7398
      %vm7405 = vweird.f32 %v7399
      %vm7406 = vmor %vm7404, %vm7405
      %v7407 = vsel %vm7406, %v7399, %v7403
      %v7408 = vand.u32 2147483647, %v7398
      %vm7409 = vcmp.eq.f32.partialorder %v7408, 8.507059e+37
      %v7410 = vand.u32 %v7398, 2147483648
      %v7411 = vor.u32 1.1754944e-38, %v7410
      %v7412 = vsel %vm7409, %v7411, %v7407
      %v7413 = vmul.f32 %v7139, %v7412
      %v7414 = vmul.f32 %v7141, %v7412
      %v7415 = vmul.f32 %v7143, %v7412
      %v7416 = vmul.f32 %v7145, %v7412
      %v7417 = vmul.f32 %v7147, %v7412
      %v7418 = vmul.f32 %v7149, %v7412
      %v7419 = vmul.f32 %v7151, %v7412
      %v7420 = vmul.f32 %v7153, %v7412
      %v7421 = vmul.f32 %v7155, %v7412
      %v7422 = vmul.f32 %v7157, %v7412
      %v7423 = vmul.f32 %v7159, %v7412
      %v7424 = vmul.f32 %v7161, %v7412
      %v7425 = vmul.f32 %v7163, %v7412
      %v7426 = vmul.f32 %v7165, %v7412
      %v7427 = vmul.f32 %v7167, %v7412
      %v7428 = vmul.f32 %v7169, %v7412
      %v7429 = vmul.f32 %v7171, %v7412
      %v7430 = vmul.f32 %v7173, %v7412
      %v7431 = vmul.f32 %v7175, %v7412
      %v7432 = vmul.f32 %v7177, %v7412
      %v7433 = vmul.f32 %v7179, %v7412
      %v7434 = vmul.f32 %v7181, %v7412
      %v7435 = vmul.f32 %v7183, %v7412
      %v7436 = vmul.f32 %v7185, %v7412
      %v7437 = vmul.f32 %v7187, %v7412
      %v7438 = vmul.f32 %v7189, %v7412
      %v7439 = vmul.f32 %v7191, %v7412
      %v7440 = vmul.f32 %v7193, %v7412
      %v7441 = vmul.f32 %v7195, %v7412
      %v7442 = vmul.f32 %v7197, %v7412
      %v7443 = vmul.f32 %v7199, %v7412
      %v7444 = vmul.f32 %v7201, %v7412
      %v7445 = vmul.f32 %v7203, %v7412
      %v7446 = vmul.f32 %v7205, %v7412
      %v7447 = vmul.f32 %v7207, %v7412
      %v7448 = vmul.f32 %v7209, %v7412
      %v7449 = vmul.f32 %v7211, %v7412
      %v7450 = vmul.f32 %v7213, %v7412
      %v7451 = vmul.f32 %v7215, %v7412
      %v7452 = vmul.f32 %v7217, %v7412
      %v7453 = vmul.f32 %v7219, %v7412
      %v7454 = vmul.f32 %v7221, %v7412
      %v7455 = vmul.f32 %v7223, %v7412
      %v7456 = vmul.f32 %v7225, %v7412
      %v7457 = vmul.f32 %v7227, %v7412
      %v7458 = vmul.f32 %v7229, %v7412
      %v7459 = vmul.f32 %v7231, %v7412
      %v7460 = vmul.f32 %v7233, %v7412
      %v7461 = vmul.f32 %v7235, %v7412
      %v7462 = vmul.f32 %v7237, %v7412
      %v7463 = vmul.f32 %v7239, %v7412
      %v7464 = vmul.f32 %v7241, %v7412
      %v7465 = vmul.f32 %v7243, %v7412
      %v7466 = vmul.f32 %v7245, %v7412
      %v7467 = vmul.f32 %v7247, %v7412
      %v7468 = vmul.f32 %v7249, %v7412
      %v7469 = vmul.f32 %v7251, %v7412
      %v7470 = vmul.f32 %v7253, %v7412
      %v7471 = vmul.f32 %v7255, %v7412
      %v7472 = vmul.f32 %v7257, %v7412
      %v7473 = vmul.f32 %v7259, %v7412
      %v7474 = vmul.f32 %v7261, %v7412
      %v7475 = vmul.f32 %v7263, %v7412
      %v7476 = vmul.f32 %v7265, %v7412
      %7541 = vrot.lane.b32.xlu0 %v7413, 78
      %v7542 = vpop.permute.xlu0 %7541
      %7543 = vrot.lane.b32.xlu0 %v7414, 78
      %v7544 = vpop.permute.xlu0 %7543
      %7545 = vrot.lane.b32.xlu0 %v7415, 78
      %v7546 = vpop.permute.xlu0 %7545
      %7547 = vrot.lane.b32.xlu0 %v7416, 78
      %v7548 = vpop.permute.xlu0 %7547
      %7549 = vrot.lane.b32.xlu0 %v7417, 78
      %v7550 = vpop.permute.xlu0 %7549
      %7551 = vrot.lane.b32.xlu0 %v7418, 78
      %v7552 = vpop.permute.xlu0 %7551
      %7553 = vrot.lane.b32.xlu0 %v7419, 78
      %v7554 = vpop.permute.xlu0 %7553
      %7555 = vrot.lane.b32.xlu0 %v7420, 78
      %v7556 = vpop.permute.xlu0 %7555
      %7557 = vrot.lane.b32.xlu0 %v7421, 78
      %v7558 = vpop.permute.xlu0 %7557
      %7559 = vrot.lane.b32.xlu0 %v7422, 78
      %v7560 = vpop.permute.xlu0 %7559
      %7561 = vrot.lane.b32.xlu0 %v7423, 78
      %v7562 = vpop.permute.xlu0 %7561
      %7563 = vrot.lane.b32.xlu0 %v7424, 78
      %v7564 = vpop.permute.xlu0 %7563
      %7565 = vrot.lane.b32.xlu0 %v7425, 78
      %v7566 = vpop.permute.xlu0 %7565
      %7567 = vrot.lane.b32.xlu0 %v7426, 78
      %v7568 = vpop.permute.xlu0 %7567
      %7569 = vrot.lane.b32.xlu0 %v7427, 78
      %v7570 = vpop.permute.xlu0 %7569
      %7571 = vrot.lane.b32.xlu0 %v7428, 78
      %v7572 = vpop.permute.xlu0 %7571
      %7573 = vrot.lane.b32.xlu0 %v7429, 78
      %v7574 = vpop.permute.xlu0 %7573
      %7575 = vrot.lane.b32.xlu0 %v7430, 78
      %v7576 = vpop.permute.xlu0 %7575
      %7577 = vrot.lane.b32.xlu0 %v7431, 78
      %v7578 = vpop.permute.xlu0 %7577
      %7579 = vrot.lane.b32.xlu0 %v7432, 78
      %v7580 = vpop.permute.xlu0 %7579
      %7581 = vrot.lane.b32.xlu0 %v7433, 78
      %v7582 = vpop.permute.xlu0 %7581
      %7583 = vrot.lane.b32.xlu0 %v7434, 78
      %v7584 = vpop.permute.xlu0 %7583
      %7585 = vrot.lane.b32.xlu0 %v7435, 78
      %v7586 = vpop.permute.xlu0 %7585
      %7587 = vrot.lane.b32.xlu0 %v7436, 78
      %v7588 = vpop.permute.xlu0 %7587
      %7589 = vrot.lane.b32.xlu0 %v7437, 78
      %v7590 = vpop.permute.xlu0 %7589
      %7591 = vrot.lane.b32.xlu0 %v7438, 78
      %v7592 = vpop.permute.xlu0 %7591
      %7593 = vrot.lane.b32.xlu0 %v7439, 78
      %v7594 = vpop.permute.xlu0 %7593
      %7595 = vrot.lane.b32.xlu0 %v7440, 78
      %v7596 = vpop.permute.xlu0 %7595
      %7597 = vrot.lane.b32.xlu0 %v7441, 78
      %v7598 = vpop.permute.xlu0 %7597
      %7599 = vrot.lane.b32.xlu0 %v7442, 78
      %v7600 = vpop.permute.xlu0 %7599
      %7601 = vrot.lane.b32.xlu0 %v7443, 78
      %v7602 = vpop.permute.xlu0 %7601
      %7603 = vrot.lane.b32.xlu0 %v7444, 78
      %v7604 = vpop.permute.xlu0 %7603
      %7605 = vrot.lane.b32.xlu0 %v7445, 78
      %v7606 = vpop.permute.xlu0 %7605
      %7607 = vrot.lane.b32.xlu0 %v7446, 78
      %v7608 = vpop.permute.xlu0 %7607
      %7609 = vrot.lane.b32.xlu0 %v7447, 78
      %v7610 = vpop.permute.xlu0 %7609
      %7611 = vrot.lane.b32.xlu0 %v7448, 78
      %v7612 = vpop.permute.xlu0 %7611
      %7613 = vrot.lane.b32.xlu0 %v7449, 78
      %v7614 = vpop.permute.xlu0 %7613
      %7615 = vrot.lane.b32.xlu0 %v7450, 78
      %v7616 = vpop.permute.xlu0 %7615
      %7617 = vrot.lane.b32.xlu0 %v7451, 78
      %v7618 = vpop.permute.xlu0 %7617
      %7619 = vrot.lane.b32.xlu0 %v7452, 78
      %v7620 = vpop.permute.xlu0 %7619
      %7621 = vrot.lane.b32.xlu0 %v7453, 78
      %v7622 = vpop.permute.xlu0 %7621
      %7623 = vrot.lane.b32.xlu0 %v7454, 78
      %v7624 = vpop.permute.xlu0 %7623
      %7625 = vrot.lane.b32.xlu0 %v7455, 78
      %v7626 = vpop.permute.xlu0 %7625
      %7627 = vrot.lane.b32.xlu0 %v7456, 78
      %v7628 = vpop.permute.xlu0 %7627
      %7629 = vrot.lane.b32.xlu0 %v7457, 78
      %v7630 = vpop.permute.xlu0 %7629
      %7631 = vrot.lane.b32.xlu0 %v7458, 78
      %v7632 = vpop.permute.xlu0 %7631
      %7633 = vrot.lane.b32.xlu0 %v7459, 78
      %v7634 = vpop.permute.xlu0 %7633
      %7635 = vrot.lane.b32.xlu0 %v7460, 78
      %v7636 = vpop.permute.xlu0 %7635
      %7637 = vrot.lane.b32.xlu0 %v7461, 78
      %v7638 = vpop.permute.xlu0 %7637
      %7639 = vrot.lane.b32.xlu0 %v7462, 78
      %v7640 = vpop.permute.xlu0 %7639
      %7641 = vrot.lane.b32.xlu0 %v7463, 78
      %v7642 = vpop.permute.xlu0 %7641
      %7643 = vrot.lane.b32.xlu0 %v7464, 78
      %v7644 = vpop.permute.xlu0 %7643
      %7645 = vrot.lane.b32.xlu0 %v7465, 78
      %v7646 = vpop.permute.xlu0 %7645
      %7647 = vrot.lane.b32.xlu0 %v7466, 78
      %v7648 = vpop.permute.xlu0 %7647
      %7649 = vrot.lane.b32.xlu0 %v7467, 78
      %v7650 = vpop.permute.xlu0 %7649
      %7651 = vrot.lane.b32.xlu0 %v7468, 78
      %v7652 = vpop.permute.xlu0 %7651
      %7653 = vrot.lane.b32.xlu0 %v7469, 78
      %v7654 = vpop.permute.xlu0 %7653
      %7655 = vrot.lane.b32.xlu0 %v7470, 78
      %v7656 = vpop.permute.xlu0 %7655
      %7657 = vrot.lane.b32.xlu0 %v7471, 78
      %v7658 = vpop.permute.xlu0 %7657
      %7659 = vrot.lane.b32.xlu0 %v7472, 78
      %v7660 = vpop.permute.xlu0 %7659
      %7661 = vrot.lane.b32.xlu0 %v7473, 78
      %v7662 = vpop.permute.xlu0 %7661
      %7663 = vrot.lane.b32.xlu0 %v7474, 78
      %v7664 = vpop.permute.xlu0 %7663
      %7665 = vrot.lane.b32.xlu0 %v7475, 78
      %v7666 = vpop.permute.xlu0 %7665
      %7667 = vrot.lane.b32.xlu0 %v7476, 78
      %v7668 = vpop.permute.xlu0 %7667
      %7733 = vxpose.xlu0.b32.start [1/16] %v7542, 128
      %7734 = vxpose.xlu0.b32.cont [2/16] %v7544, 128
      %7735 = vxpose.xlu0.b32.cont [3/16] %v7546, 128
      %7736 = vxpose.xlu0.b32.cont [4/16] %v7548, 128
      %7737 = vxpose.xlu0.b32.cont [5/16] %v7550, 128
      %7738 = vxpose.xlu0.b32.cont [6/16] %v7552, 128
      %7739 = vxpose.xlu0.b32.cont [7/16] %v7554, 128
      %7740 = vxpose.xlu0.b32.cont [8/16] %v7556, 128
      %7741 = vxpose.xlu0.b32.cont [9/16] %v7558, 128
      %7742 = vxpose.xlu0.b32.cont [10/16] %v7560, 128
      %7743 = vxpose.xlu0.b32.cont [11/16] %v7562, 128
      %7744 = vxpose.xlu0.b32.cont [12/16] %v7564, 128
      %7745 = vxpose.xlu0.b32.cont [13/16] %v7566, 128
      %7746 = vxpose.xlu0.b32.cont [14/16] %v7568, 128
      %7747 = vxpose.xlu0.b32.cont [15/16] %v7570, 128
      %7748 = vxpose.xlu0.b32.end [16/16] %v7572, 128
      %v7749 = vpop.trf.xlu0
      %v7750 = vpop.trf.xlu0
      %v7751 = vpop.trf.xlu0
      %v7752 = vpop.trf.xlu0
      %v7753 = vpop.trf.xlu0
      %v7754 = vpop.trf.xlu0
      %v7755 = vpop.trf.xlu0
      %v7756 = vpop.trf.xlu0
      %v7757 = vpop.trf.xlu0
      %v7758 = vpop.trf.xlu0
      %v7759 = vpop.trf.xlu0
      %v7760 = vpop.trf.xlu0
      %v7761 = vpop.trf.xlu0
      %v7762 = vpop.trf.xlu0
      %v7763 = vpop.trf.xlu0
      %v7764 = vpop.trf.xlu0
      %7765 = vxpose.xlu0.b32.start [1/16] %v7574, 128
      %7766 = vxpose.xlu0.b32.cont [2/16] %v7576, 128
      %7767 = vxpose.xlu0.b32.cont [3/16] %v7578, 128
      %7768 = vxpose.xlu0.b32.cont [4/16] %v7580, 128
      %7769 = vxpose.xlu0.b32.cont [5/16] %v7582, 128
      %7770 = vxpose.xlu0.b32.cont [6/16] %v7584, 128
      %7771 = vxpose.xlu0.b32.cont [7/16] %v7586, 128
      %7772 = vxpose.xlu0.b32.cont [8/16] %v7588, 128
      %7773 = vxpose.xlu0.b32.cont [9/16] %v7590, 128
      %7774 = vxpose.xlu0.b32.cont [10/16] %v7592, 128
      %7775 = vxpose.xlu0.b32.cont [11/16] %v7594, 128
      %7776 = vxpose.xlu0.b32.cont [12/16] %v7596, 128
      %7777 = vxpose.xlu0.b32.cont [13/16] %v7598, 128
      %7778 = vxpose.xlu0.b32.cont [14/16] %v7600, 128
      %7779 = vxpose.xlu0.b32.cont [15/16] %v7602, 128
      %7780 = vxpose.xlu0.b32.end [16/16] %v7604, 128
      %v7781 = vpop.trf.xlu0
      %v7782 = vpop.trf.xlu0
      %v7783 = vpop.trf.xlu0
      %v7784 = vpop.trf.xlu0
      %v7785 = vpop.trf.xlu0
      %v7786 = vpop.trf.xlu0
      %v7787 = vpop.trf.xlu0
      %v7788 = vpop.trf.xlu0
      %v7789 = vpop.trf.xlu0
      %v7790 = vpop.trf.xlu0
      %v7791 = vpop.trf.xlu0
      %v7792 = vpop.trf.xlu0
      %v7793 = vpop.trf.xlu0
      %v7794 = vpop.trf.xlu0
      %v7795 = vpop.trf.xlu0
      %v7796 = vpop.trf.xlu0
      %7797 = vxpose.xlu0.b32.start [1/16] %v7606, 128
      %7798 = vxpose.xlu0.b32.cont [2/16] %v7608, 128
      %7799 = vxpose.xlu0.b32.cont [3/16] %v7610, 128
      %7800 = vxpose.xlu0.b32.cont [4/16] %v7612, 128
      %7801 = vxpose.xlu0.b32.cont [5/16] %v7614, 128
      %7802 = vxpose.xlu0.b32.cont [6/16] %v7616, 128
      %7803 = vxpose.xlu0.b32.cont [7/16] %v7618, 128
      %7804 = vxpose.xlu0.b32.cont [8/16] %v7620, 128
      %7805 = vxpose.xlu0.b32.cont [9/16] %v7622, 128
      %7806 = vxpose.xlu0.b32.cont [10/16] %v7624, 128
      %7807 = vxpose.xlu0.b32.cont [11/16] %v7626, 128
      %7808 = vxpose.xlu0.b32.cont [12/16] %v7628, 128
      %7809 = vxpose.xlu0.b32.cont [13/16] %v7630, 128
      %7810 = vxpose.xlu0.b32.cont [14/16] %v7632, 128
      %7811 = vxpose.xlu0.b32.cont [15/16] %v7634, 128
      %7812 = vxpose.xlu0.b32.end [16/16] %v7636, 128
      %v7813 = vpop.trf.xlu0
      %v7814 = vpop.trf.xlu0
      %v7815 = vpop.trf.xlu0
      %v7816 = vpop.trf.xlu0
      %v7817 = vpop.trf.xlu0
      %v7818 = vpop.trf.xlu0
      %v7819 = vpop.trf.xlu0
      %v7820 = vpop.trf.xlu0
      %v7821 = vpop.trf.xlu0
      %v7822 = vpop.trf.xlu0
      %v7823 = vpop.trf.xlu0
      %v7824 = vpop.trf.xlu0
      %v7825 = vpop.trf.xlu0
      %v7826 = vpop.trf.xlu0
      %v7827 = vpop.trf.xlu0
      %v7828 = vpop.trf.xlu0
      %7829 = vxpose.xlu0.b32.start [1/16] %v7638, 128
      %7830 = vxpose.xlu0.b32.cont [2/16] %v7640, 128
      %7831 = vxpose.xlu0.b32.cont [3/16] %v7642, 128
      %7832 = vxpose.xlu0.b32.cont [4/16] %v7644, 128
      %7833 = vxpose.xlu0.b32.cont [5/16] %v7646, 128
      %7834 = vxpose.xlu0.b32.cont [6/16] %v7648, 128
      %7835 = vxpose.xlu0.b32.cont [7/16] %v7650, 128
      %7836 = vxpose.xlu0.b32.cont [8/16] %v7652, 128
      %7837 = vxpose.xlu0.b32.cont [9/16] %v7654, 128
      %7838 = vxpose.xlu0.b32.cont [10/16] %v7656, 128
      %7839 = vxpose.xlu0.b32.cont [11/16] %v7658, 128
      %7840 = vxpose.xlu0.b32.cont [12/16] %v7660, 128
      %7841 = vxpose.xlu0.b32.cont [13/16] %v7662, 128
      %7842 = vxpose.xlu0.b32.cont [14/16] %v7664, 128
      %7843 = vxpose.xlu0.b32.cont [15/16] %v7666, 128
      %7844 = vxpose.xlu0.b32.end [16/16] %v7668, 128
      %v7845 = vpop.trf.xlu0
      %v7846 = vpop.trf.xlu0
      %v7847 = vpop.trf.xlu0
      %v7848 = vpop.trf.xlu0
      %v7849 = vpop.trf.xlu0
      %v7850 = vpop.trf.xlu0
      %v7851 = vpop.trf.xlu0
      %v7852 = vpop.trf.xlu0
      %v7853 = vpop.trf.xlu0
      %v7854 = vpop.trf.xlu0
      %v7855 = vpop.trf.xlu0
      %v7856 = vpop.trf.xlu0
      %v7857 = vpop.trf.xlu0
      %v7858 = vpop.trf.xlu0
      %v7859 = vpop.trf.xlu0
      %v7860 = vpop.trf.xlu0
      %7861 = vmatpush.msra.mxu0 %v5411
      %7862 = vmatpush.msra.mxu0 %v5409
      %7863 = vmatpush.msra.mxu0 %v5406
      %7864 = vmatpush.msra.mxu0 %v5404
      %7865 = vmatpush.msra.mxu0 %v5401
      %7866 = vmatpush.msra.mxu0 %v5399
      %7867 = vmatpush.msra.mxu0 %v5396
      %7868 = vmatpush.msra.mxu0 %v5394
      %7869 = vmatpush.msra.mxu0 %v5391
      %7870 = vmatpush.msra.mxu0 %v5389
      %7871 = vmatpush.msra.mxu0 %v5386
      %7872 = vmatpush.msra.mxu0 %v5384
      %7873 = vmatpush.msra.mxu0 %v5381
      %7874 = vmatpush.msra.mxu0 %v5379
      %7875 = vmatpush.msra.mxu0 %v5376
      %7876 = vmatpush.msra.mxu0 %v5374
      %7877 = vmatmul.f32.gmra.mxu0 %v7749
      %v7878 = vpop.f32.mrf.mxu0
      %v7879 = vadd.f32 0.0, %v7878
      %7880 = vdwg.mxu0
      %7881 = vmatpush.msra.mxu0 %v5451
      %7882 = vmatpush.msra.mxu0 %v5449
      %7883 = vmatpush.msra.mxu0 %v5446
      %7884 = vmatpush.msra.mxu0 %v5444
      %7885 = vmatpush.msra.mxu0 %v5441
      %7886 = vmatpush.msra.mxu0 %v5439
      %7887 = vmatpush.msra.mxu0 %v5436
      %7888 = vmatpush.msra.mxu0 %v5434
      %7889 = vmatpush.msra.mxu0 %v5431
      %7890 = vmatpush.msra.mxu0 %v5429
      %7891 = vmatpush.msra.mxu0 %v5426
      %7892 = vmatpush.msra.mxu0 %v5424
      %7893 = vmatpush.msra.mxu0 %v5421
      %7894 = vmatpush.msra.mxu0 %v5419
      %7895 = vmatpush.msra.mxu0 %v5416
      %7896 = vmatpush.msra.mxu0 %v5414
      %7897 = vmatmul.f32.gmra.mxu0 %v7781
      %v7898 = vpop.f32.mrf.mxu0
      %v7899 = vadd.f32 %v7879, %v7898
      %7900 = vdwg.mxu0
      %7901 = vmatpush.msra.mxu0 %v5491
      %7902 = vmatpush.msra.mxu0 %v5489
      %7903 = vmatpush.msra.mxu0 %v5486
      %7904 = vmatpush.msra.mxu0 %v5484
      %7905 = vmatpush.msra.mxu0 %v5481
      %7906 = vmatpush.msra.mxu0 %v5479
      %7907 = vmatpush.msra.mxu0 %v5476
      %7908 = vmatpush.msra.mxu0 %v5474
      %7909 = vmatpush.msra.mxu0 %v5471
      %7910 = vmatpush.msra.mxu0 %v5469
      %7911 = vmatpush.msra.mxu0 %v5466
      %7912 = vmatpush.msra.mxu0 %v5464
      %7913 = vmatpush.msra.mxu0 %v5461
      %7914 = vmatpush.msra.mxu0 %v5459
      %7915 = vmatpush.msra.mxu0 %v5456
      %7916 = vmatpush.msra.mxu0 %v5454
      %7917 = vmatmul.f32.gmra.mxu0 %v7813
      %v7918 = vpop.f32.mrf.mxu0
      %v7919 = vadd.f32 %v7899, %v7918
      %7920 = vdwg.mxu0
      %7921 = vmatpush.msra.mxu0 %v5531
      %7922 = vmatpush.msra.mxu0 %v5529
      %7923 = vmatpush.msra.mxu0 %v5526
      %7924 = vmatpush.msra.mxu0 %v5524
      %7925 = vmatpush.msra.mxu0 %v5521
      %7926 = vmatpush.msra.mxu0 %v5519
      %7927 = vmatpush.msra.mxu0 %v5516
      %7928 = vmatpush.msra.mxu0 %v5514
      %7929 = vmatpush.msra.mxu0 %v5511
      %7930 = vmatpush.msra.mxu0 %v5509
      %7931 = vmatpush.msra.mxu0 %v5506
      %7932 = vmatpush.msra.mxu0 %v5504
      %7933 = vmatpush.msra.mxu0 %v5501
      %7934 = vmatpush.msra.mxu0 %v5499
      %7935 = vmatpush.msra.mxu0 %v5496
      %7936 = vmatpush.msra.mxu0 %v5494
      %7937 = vmatmul.f32.gmra.mxu0 %v7845
      %v7938 = vpop.f32.mrf.mxu0
      %v7939 = vadd.f32 %v7919, %v7938
      %7940 = vdwg.mxu0
      %v7941 = vmul.f32 %v7939, %v4284
      %7942 = vmatpush.msra.mxu0 %v4301
      %7943 = vmatpush.msra.mxu0 %v4300
      %7944 = vmatpush.msra.mxu0 %v4299
      %7945 = vmatpush.msra.mxu0 %v4298
      %7946 = vmatpush.msra.mxu0 %v4297
      %7947 = vmatpush.msra.mxu0 %v4296
      %7948 = vmatpush.msra.mxu0 %v4295
      %7949 = vmatpush.msra.mxu0 %v4294
      %7950 = vmatpush.msra.mxu0 %v4293
      %7951 = vmatpush.msra.mxu0 %v4292
      %7952 = vmatpush.msra.mxu0 %v4291
      %7953 = vmatpush.msra.mxu0 %v4290
      %7954 = vmatpush.msra.mxu0 %v4289
      %7955 = vmatpush.msra.mxu0 %v4288
      %7956 = vmatpush.msra.mxu0 %v4287
      %7957 = vmatpush.msra.mxu0 %v4286
      %7958 = vmatmul.f32.gmra.mxu0 %v7941
      %v7959 = vpop.f32.mrf.mxu0
      %v7960 = vadd.f32 0.0, %v7959
      %7961 = vdwg.mxu0
      %v7962 = vld [vmem:[%s5] sm:$0xff]
      %v7963 = vld [vmem:[%s5 + $0x8] sm:$0x3]
      %vm7964 = vcmask 80896
      %v7966 = vsel %vm7964, %v4320, 0
      %vm7968 = vcmask 1041408
      %v7970 = vsel %vm7968, %v7963, 0
      %7972 = vmatpush.msra.mxu0 0.0
      %7973 = vmatpush.msra.mxu0 0.0
      %7974 = vmatpush.msra.mxu0 0.0
      %7975 = vmatpush.msra.mxu0 0.0
      %7976 = vmatpush.msra.mxu0 0.0
      %7977 = vmatpush.msra.mxu0 0.0
      %7978 = vmatpush.msra.mxu0 0.0
      %7979 = vmatpush.msra.mxu0 0.0
      %7980 = vmatpush.msra.mxu0 0.0
      %7981 = vmatpush.msra.mxu0 0.0
      %7982 = vmatpush.msra.mxu0 0.0
      %7983 = vmatpush.msra.mxu0 0.0
      %7984 = vmatpush.msra.mxu0 0.0
      %7985 = vmatpush.msra.mxu0 0.0
      %7986 = vmatpush.msra.mxu0 %v7970
      %7987 = vmatpush.msra.mxu0 %v7962
      %7988 = vmatmul.f32.gmra.mxu0 %v7966
      %v7989 = vpop.f32.mrf.mxu0
      %v7990 = vadd.f32 0.0, %v7989
      %7991 = vdwg.mxu0
      %v7993 = vsel %vm7964, %v7990, 0
      %v7996 = vsel %vm7964, %v7960, 0
      %7998 = vmatpush.xpose.msra.mxu0 0.0
      %7999 = vmatpush.xpose.msra.mxu0 0.0
      %8000 = vmatpush.xpose.msra.mxu0 0.0
      %8001 = vmatpush.xpose.msra.mxu0 0.0
      %8002 = vmatpush.xpose.msra.mxu0 0.0
      %8003 = vmatpush.xpose.msra.mxu0 0.0
      %8004 = vmatpush.xpose.msra.mxu0 0.0
      %8005 = vmatpush.xpose.msra.mxu0 0.0
      %8006 = vmatpush.xpose.msra.mxu0 0.0
      %8007 = vmatpush.xpose.msra.mxu0 0.0
      %8008 = vmatpush.xpose.msra.mxu0 0.0
      %8009 = vmatpush.xpose.msra.mxu0 0.0
      %8010 = vmatpush.xpose.msra.mxu0 0.0
      %8011 = vmatpush.xpose.msra.mxu0 0.0
      %8012 = vmatpush.xpose.msra.mxu0 0.0
      %8013 = vmatpush.xpose.msra.mxu0 %v7996
      %8014 = vmatmul.f32.gmra.mxu0 %v7993
      %v8015 = vpop.f32.mrf.mxu0
      %v8016 = vadd.f32 0.0, %v8015
      %8017 = vdwg.mxu0
      %v8018 = vmax.f32 %v8016, 0.0
      %v8019 = vld [vmem:[%s6] sm:$0xff]
      %v8020 = vld [vmem:[%s6 + $0x8] sm:$0x3]
      %v8022 = vsel %vm7968, %v8020, 0
      %8024 = vmatpush.msra.mxu0 0.0
      %8025 = vmatpush.msra.mxu0 0.0
      %8026 = vmatpush.msra.mxu0 0.0
      %8027 = vmatpush.msra.mxu0 0.0
      %8028 = vmatpush.msra.mxu0 0.0
      %8029 = vmatpush.msra.mxu0 0.0
      %8030 = vmatpush.msra.mxu0 0.0
      %8031 = vmatpush.msra.mxu0 0.0
      %8032 = vmatpush.msra.mxu0 0.0
      %8033 = vmatpush.msra.mxu0 0.0
      %8034 = vmatpush.msra.mxu0 0.0
      %8035 = vmatpush.msra.mxu0 0.0
      %8036 = vmatpush.msra.mxu0 0.0
      %8037 = vmatpush.msra.mxu0 0.0
      %8038 = vmatpush.msra.mxu0 %v8022
      %8039 = vmatpush.msra.mxu0 %v8019
      %8040 = vmatmul.f32.gmra.mxu0 %v7966
      %v8041 = vpop.f32.mrf.mxu0
      %v8042 = vadd.f32 0.0, %v8041
      %8043 = vdwg.mxu0
      %v8044 = vld [vmem:[%s7] sm:$0xff]
      %v8045 = vld [vmem:[%s7 + $0x8] sm:$0x3]
      %v8047 = vsel %vm7968, %v8045, 0
      %8049 = vmatpush.msra.mxu0 0.0
      %8050 = vmatpush.msra.mxu0 0.0
      %8051 = vmatpush.msra.mxu0 0.0
      %8052 = vmatpush.msra.mxu0 0.0
      %8053 = vmatpush.msra.mxu0 0.0
      %8054 = vmatpush.msra.mxu0 0.0
      %8055 = vmatpush.msra.mxu0 0.0
      %8056 = vmatpush.msra.mxu0 0.0
      %8057 = vmatpush.msra.mxu0 0.0
      %8058 = vmatpush.msra.mxu0 0.0
      %8059 = vmatpush.msra.mxu0 0.0
      %8060 = vmatpush.msra.mxu0 0.0
      %8061 = vmatpush.msra.mxu0 0.0
      %8062 = vmatpush.msra.mxu0 0.0
      %8063 = vmatpush.msra.mxu0 %v8047
      %8064 = vmatpush.msra.mxu0 %v8044
      %8065 = vmatmul.f32.gmra.mxu0 %v7996
      %v8066 = vpop.f32.mrf.mxu0
      %v8067 = vadd.f32 0.0, %v8066
      %8068 = vdwg.mxu0
      %vm8069 = vcmask 39936
      %v8071 = vsel %vm8069, %v8018, 0
      %vm8073 = vcmask 1044480
      %v8075 = vsel %vm8073, %v8067, 0
      %8077 = vmatpush.msra.mxu0 0.0
      %8078 = vmatpush.msra.mxu0 0.0
      %8079 = vmatpush.msra.mxu0 0.0
      %8080 = vmatpush.msra.mxu0 0.0
      %8081 = vmatpush.msra.mxu0 0.0
      %8082 = vmatpush.msra.mxu0 0.0
      %8083 = vmatpush.msra.mxu0 0.0
      %8084 = vmatpush.msra.mxu0 0.0
      %8085 = vmatpush.msra.mxu0 0.0
      %8086 = vmatpush.msra.mxu0 0.0
      %8087 = vmatpush.msra.mxu0 0.0
      %8088 = vmatpush.msra.mxu0 0.0
      %8089 = vmatpush.msra.mxu0 0.0
      %8090 = vmatpush.msra.mxu0 0.0
      %8091 = vmatpush.msra.mxu0 0.0
      %8092 = vmatpush.msra.mxu0 %v8075
      %8093 = vmatmul.f32.gmra.mxu0 %v8071
      %v8094 = vpop.f32.mrf.mxu0
      %v8095 = vadd.f32 0.0, %v8094
      %8096 = vdwg.mxu0
      %v8097 = vadd.f32 %v8042, %v8095
      %v8098 = vmax.f32 %v8097, 0.0
      %8099 = vxpose.xlu0.b32.start [1/16] %v8018, 128
      %8100 = vxpose.xlu0.b32.cont [2/16] 0.0, 128
      %8101 = vxpose.xlu0.b32.cont [3/16] 0.0, 128
      %8102 = vxpose.xlu0.b32.cont [4/16] 0.0, 128
      %8103 = vxpose.xlu0.b32.cont [5/16] 0.0, 128
      %8104 = vxpose.xlu0.b32.cont [6/16] 0.0, 128
      %8105 = vxpose.xlu0.b32.cont [7/16] 0.0, 128
      %8106 = vxpose.xlu0.b32.cont [8/16] 0.0, 128
      %8107 = vxpose.xlu0.b32.cont [9/16] 0.0, 128
      %8108 = vxpose.xlu0.b32.cont [10/16] 0.0, 128
      %8109 = vxpose.xlu0.b32.cont [11/16] 0.0, 128
      %8110 = vxpose.xlu0.b32.cont [12/16] 0.0, 128
      %8111 = vxpose.xlu0.b32.cont [13/16] 0.0, 128
      %8112 = vxpose.xlu0.b32.cont [14/16] 0.0, 128
      %8113 = vxpose.xlu0.b32.cont [15/16] 0.0, 128
      %8114 = vxpose.xlu0.b32.end [16/16] 0.0, 128
      %v8115 = vpop.trf.xlu0
      %v8116 = vpop.trf.xlu0
      %v8117 = vpop.trf.xlu0
      %v8118 = vpop.trf.xlu0
      %v8119 = vpop.trf.xlu0
      %v8120 = vpop.trf.xlu0
      %v8121 = vpop.trf.xlu0
      %v8122 = vpop.trf.xlu0
      %v8123 = vpop.trf.xlu0
      %v8124 = vpop.trf.xlu0
      %v8125 = vpop.trf.xlu0
      %v8126 = vpop.trf.xlu0
      %v8127 = vpop.trf.xlu0
      %v8128 = vpop.trf.xlu0
      %v8129 = vpop.trf.xlu0
      %v8130 = vpop.trf.xlu0
      %v8132 = vsel %vm8069, %v8115, 0
      %v8135 = vsel %vm8073, %v8042, 0
      %8137 = vmatpush.msra.mxu0 0.0
      %8138 = vmatpush.msra.mxu0 0.0
      %8139 = vmatpush.msra.mxu0 0.0
      %8140 = vmatpush.msra.mxu0 0.0
      %8141 = vmatpush.msra.mxu0 0.0
      %8142 = vmatpush.msra.mxu0 0.0
      %8143 = vmatpush.msra.mxu0 0.0
      %8144 = vmatpush.msra.mxu0 0.0
      %8145 = vmatpush.msra.mxu0 0.0
      %8146 = vmatpush.msra.mxu0 0.0
      %8147 = vmatpush.msra.mxu0 0.0
      %8148 = vmatpush.msra.mxu0 0.0
      %8149 = vmatpush.msra.mxu0 0.0
      %8150 = vmatpush.msra.mxu0 0.0
      %8151 = vmatpush.msra.mxu0 0.0
      %8152 = vmatpush.msra.mxu0 %v8135
      %8153 = vmatmul.f32.gmra.mxu0 %v8132
      %v8154 = vpop.f32.mrf.mxu0
      %v8155 = vadd.f32 0.0, %v8154
      %8156 = vdwg.mxu0
      %v8157 = vadd.f32 %v8067, %v8155
      %v8158 = vmax.f32 %v8157, 0.0
      %v8159 = vld [vmem:[%s8] sm:$0xff]
      %v8160 = vld [vmem:[%s8 + $0x8] sm:$0xff]
      %v8161 = vld [vmem:[%s8 + $0x10] sm:$0xff]
      %v8162 = vld [vmem:[%s8 + $0x18] sm:$0xff]
      %v8163 = vld [vmem:[%s8 + $0x20] sm:$0xff]
      %v8164 = vld [vmem:[%s8 + $0x28] sm:$0xff]
      %v8165 = vld [vmem:[%s8 + $0x30] sm:$0x3]
      %vm8166 = vcmask 408576
      %v8168 = vsel %vm8166, %v8098, 0
      %v8171 = vsel %vm7968, %v8165, 0
      %8173 = vmatpush.msra.mxu0 0.0
      %8174 = vmatpush.msra.mxu0 0.0
      %8175 = vmatpush.msra.mxu0 0.0
      %8176 = vmatpush.msra.mxu0 0.0
      %8177 = vmatpush.msra.mxu0 0.0
      %8178 = vmatpush.msra.mxu0 0.0
      %8179 = vmatpush.msra.mxu0 0.0
      %8180 = vmatpush.msra.mxu0 0.0
      %8181 = vmatpush.msra.mxu0 0.0
      %8182 = vmatpush.msra.mxu0 %v8171
      %8183 = vmatpush.msra.mxu0 %v8164
      %8184 = vmatpush.msra.mxu0 %v8163
      %8185 = vmatpush.msra.mxu0 %v8162
      %8186 = vmatpush.msra.mxu0 %v8161
      %8187 = vmatpush.msra.mxu0 %v8160
      %8188 = vmatpush.msra.mxu0 %v8159
      %8189 = vmatmul.f32.gmra.mxu0 %v8168
      %v8190 = vpop.f32.mrf.mxu0
      %v8191 = vadd.f32 0.0, %v8190
      %8192 = vdwg.mxu0
      %v8193 = vld [vmem:[%s9] sm:$0xff]
      %v8194 = vld [vmem:[%s9 + $0x8] sm:$0xff]
      %v8195 = vld [vmem:[%s9 + $0x10] sm:$0xff]
      %v8196 = vld [vmem:[%s9 + $0x18] sm:$0xff]
      %v8197 = vld [vmem:[%s9 + $0x20] sm:$0xff]
      %v8198 = vld [vmem:[%s9 + $0x28] sm:$0xff]
      %v8199 = vld [vmem:[%s9 + $0x30] sm:$0x3]
      %v8201 = vsel %vm8166, %v8158, 0
      %v8204 = vsel %vm7968, %v8199, 0
      %8206 = vmatpush.msra.mxu0 0.0
      %8207 = vmatpush.msra.mxu0 0.0
      %8208 = vmatpush.msra.mxu0 0.0
      %8209 = vmatpush.msra.mxu0 0.0
      %8210 = vmatpush.msra.mxu0 0.0
      %8211 = vmatpush.msra.mxu0 0.0
      %8212 = vmatpush.msra.mxu0 0.0
      %8213 = vmatpush.msra.mxu0 0.0
      %8214 = vmatpush.msra.mxu0 0.0
      %8215 = vmatpush.msra.mxu0 %v8204
      %8216 = vmatpush.msra.mxu0 %v8198
      %8217 = vmatpush.msra.mxu0 %v8197
      %8218 = vmatpush.msra.mxu0 %v8196
      %8219 = vmatpush.msra.mxu0 %v8195
      %8220 = vmatpush.msra.mxu0 %v8194
      %8221 = vmatpush.msra.mxu0 %v8193
      %8222 = vmatmul.f32.gmra.mxu0 %v8201
      %v8223 = vpop.f32.mrf.mxu0
      %v8224 = vadd.f32 0.0, %v8223
      %8225 = vdwg.mxu0
      %vm8226 = vcmask 4096
      %v8227 = vsel %vm8226, %v8191, -inf
      %v8228 = vrot.slane %v8227, 4
      %v8229 = vmax.f32 %v8227, %v8228
      %v8230 = vrot.slane %v8229, 2
      %v8231 = vmax.f32 %v8229, %v8230
      %v8232 = vrot.slane %v8231, 1
      %v8233 = vmax.f32 %v8231, %v8232
      %v8234 = vsub.f32 %v8191, %v8233
      %v8235 = vmul.f32 %v8234, 1.442695
      %v8236 = vpow.pop %v8235
      %v8237 = vsel %vm8226, %v8236, 0.0
      %v8238 = vrot.slane %v8237, 4
      %v8239 = vadd.f32 %v8237, %v8238
      %v8240 = vrot.slane %v8239, 2
      %v8241 = vadd.f32 %v8239, %v8240
      %v8242 = vrot.slane %v8241, 1
      %v8243 = vadd.f32 %v8241, %v8242
      %v8244 = vrcp.pop %v8243
      %v8245 = vmul.f32 %v8243, %v8244
      %v8246 = vsub.f32 1.0, %v8245
      %v8247 = vmul.f32 %v8244, %v8246
      %v8248 = vadd.f32 %v8244, %v8247
      %vm8249 = vweird.f32 %v8243
      %vm8250 = vweird.f32 %v8244
      %vm8251 = vmor %vm8249, %vm8250
      %v8252 = vsel %vm8251, %v8244, %v8248
      %v8253 = vand.u32 2147483647, %v8243
      %vm8254 = vcmp.eq.f32.partialorder %v8253, 8.507059e+37
      %v8255 = vand.u32 %v8243, 2147483648
      %v8256 = vor.u32 1.1754944e-38, %v8255
      %v8257 = vsel %vm8254, %v8256, %v8252
      %v8258 = vmul.f32 %v8236, %v8257
      %v8259 = vsel %vm8226, %v8224, -inf
      %v8260 = vrot.slane %v8259, 4
      %v8261 = vmax.f32 %v8259, %v8260
      %v8262 = vrot.slane %v8261, 2
      %v8263 = vmax.f32 %v8261, %v8262
      %v8264 = vrot.slane %v8263, 1
      %v8265 = vmax.f32 %v8263, %v8264
      %v8266 = vsub.f32 %v8224, %v8265
      %v8267 = vmul.f32 %v8266, 1.442695
      %v8268 = vpow.pop %v8267
      %v8269 = vsel %vm8226, %v8268, 0.0
      %v8270 = vrot.slane %v8269, 4
      %v8271 = vadd.f32 %v8269, %v8270
      %v8272 = vrot.slane %v8271, 2
      %v8273 = vadd.f32 %v8271, %v8272
      %v8274 = vrot.slane %v8273, 1
      %v8275 = vadd.f32 %v8273, %v8274
      %v8276 = vrcp.pop %v8275
      %v8277 = vmul.f32 %v8275, %v8276
      %v8278 = vsub.f32 1.0, %v8277
      %v8279 = vmul.f32 %v8276, %v8278
      %v8280 = vadd.f32 %v8276, %v8279
      %vm8281 = vweird.f32 %v8275
      %vm8282 = vweird.f32 %v8276
      %vm8283 = vmor %vm8281, %vm8282
      %v8284 = vsel %vm8283, %v8276, %v8280
      %v8285 = vand.u32 2147483647, %v8275
      %vm8286 = vcmp.eq.f32.partialorder %v8285, 8.507059e+37
      %v8287 = vand.u32 %v8275, 2147483648
      %v8288 = vor.u32 1.1754944e-38, %v8287
      %v8289 = vsel %vm8286, %v8288, %v8284
      %v8290 = vmul.f32 %v8268, %v8289
      %v8291 = vmul.f32 %v4320, %v7960
      %vm8292 = vcmask 77824
      %v8293 = vsel %vm8292, %v8291, 0.0
      %8294 = vadd.xlane.f32.xlu0 %v8293
      %v8295 = vpop.xlane.xlu0 %8294
      %v8296 = vmul.f32 %v8258, %v8290
      %v8297 = vmul.f32 %v8296, %v8295
      %v8298 = vsel %vm8226, %v8297, 0.0
      %v8299 = vrot.slane %v8298, 4
      %v8300 = vadd.f32 %v8298, %v8299
      %v8301 = vrot.slane %v8300, 2
      %v8302 = vadd.f32 %v8300, %v8301
      %v8303 = vrot.slane %v8302, 1
      %v8304 = vadd.f32 %v8302, %v8303
      %vm8305 = vcmask 0
      %8306 = vst.msk [vmem:[%s375] sm:$0x1] %vm8305, %v8304
      %p8307 = scmp.lt.s32.totalorder %s21, 1
      %s8308 = scalar_select %p8307, %s21, 1
      %s8309 = scalar_lea.vmem %s10, %s8308
      // Predicated region
      $region61: #{tpu_custom_call.1} parent=59 // pred_check
        %p8310 = pneg %p259
      $region62: #{tpu_custom_call.1} parent=59 // pred_check_branch
        %8312 = sbr.rel (%p8310) target = $region64
      $region63: #{tpu_custom_call.1} parent=59 // pred_region
        _
      $region64: #{tpu_custom_call.1} parent=59 // pred_fallthru
        _
    $region60: #{tpu_custom_call.1} parent=5 // pred_fallthru
      _
    %p8313 = scmp.le.s32.totalorder 2, %s16
    // Predicated region
    $region65: #{tpu_custom_call.1} parent=5 // pred_check
      %p8314 = pneg %p8313
    $region66: #{tpu_custom_call.1} parent=5 // pred_check_branch
      %8316 = sbr.rel (%p8314) target = $region68
    $region67: #{tpu_custom_call.1} parent=5 // pred_region
      %s8317 = ssub.s32 %s16, 2
      // Predicated region
      $region69: #{tpu_custom_call.1} parent=67 // pred_check
        %p8318 = pneg %p265
      $region70: #{tpu_custom_call.1} parent=67 // pred_check_branch
        %8320 = sbr.rel (%p8318) target = $region72
      $region71: #{tpu_custom_call.1} parent=67 // pred_region
        %p8321 = scmp.lt.s32.totalorder %s22, 1
        %s8322 = scalar_select %p8321, %s22, 1
        %s8323 = scalar_lea.vmem %s10, %s8322
      $region72: #{tpu_custom_call.1} parent=67 // pred_fallthru
        _
    $region68: #{tpu_custom_call.1} parent=5 // pred_fallthru
      _
  $region6: #{tpu_custom_call.1} parent=0 // loop_footer
    %s20 = sadd.s32 1, %s16
  $region7: #{tpu_custom_call.1} parent=0 // loop_footer_branch
    %15 = sbr.rel target = $region3
  $region8: #{tpu_custom_call.1} parent=0 // loop_exit
    _

</llo_original>
